<compile_context>
chip_gen: v7x
topology: tpu7x:2x2x1
jax: 0.10.0
libtpu: 0.0.40
codegen_flags: <defaults>
</compile_context>

<pallas_src>
import functools

import jax
import jax.numpy as jnp
from jax.experimental import pallas as pl
from jax.experimental.pallas import tpu as pltpu

INPUT_DIM = 7
INPUT_PAD = 8            # sublane-friendly, zero-padded feature dim
EMBED_DIM = 128
NUM_HEADS = 4
NUM_LAYERS = 2
FF_DIM = 2048            # nn.TransformerEncoderLayer default dim_feedforward
LN_EPS = 1e-5
HEAD_DIM = EMBED_DIM // NUM_HEADS

ROWS_TARGET = 256        # MXU rows on v6e/v7x (128 on v5e; 256 is fine there too)


# ----------------------------------------------------------------------------
# Fused forward kernel (one grid step == TB batch elements)
# ----------------------------------------------------------------------------
def _mm(a, w):
    """Matmul with f32 accumulation; casts activations to the weight dtype
    (no-op for f32 weights, bf16 operand fast-path for bf16 weights)."""
    return jnp.dot(a.astype(w.dtype), w, preferred_element_type=jnp.float32)


def _layer_norm(y, g, b):
    mu = jnp.mean(y, axis=-1, keepdims=True)
    var = jnp.mean((y - mu) ** 2, axis=-1, keepdims=True)
    return (y - mu) * jax.lax.rsqrt(var + LN_EPS) * g + b


def _fused_forward_kernel(x_ref, w_in_ref, b_in_ref,
                          w_qkv_ref, b_qkv_ref, w_ao_ref, b_ao_ref,
                          ln1_g_ref, ln1_b_ref,
                          w_ff1_ref, b_ff1_ref, w_ff2_ref, b_ff2_ref,
                          ln2_g_ref, ln2_b_ref,
                          w_out_ref, b_out_ref, o_ref):
    TB, S, FP = x_ref.shape
    M = TB * S                                                   # token rows

    x = x_ref[...].reshape(M, FP)                                # (M, 8)
    h = _mm(x, w_in_ref[...]) + b_in_ref[...]                    # (M, 128)

    scale = 1.0 / (HEAD_DIM ** 0.5)

    for l in range(NUM_LAYERS):                                  # static unroll
        # ---- multi-head self-attention (post-norm residual block) ----
        qkv = _mm(h, w_qkv_ref[l]) + b_qkv_ref[l]                # (M, 384)
        w_ao = w_ao_ref[l]                                       # (128, 128)

        attn = jnp.zeros((M, EMBED_DIM), jnp.float32)
        for hd in range(NUM_HEADS):                              # static, 4 heads
            lo = hd * HEAD_DIM
            qh = qkv[:, lo:lo + HEAD_DIM].reshape(TB, S, HEAD_DIM)
            kh = qkv[:, EMBED_DIM + lo:EMBED_DIM + lo + HEAD_DIM
                     ].reshape(TB, S, HEAD_DIM)
            vh = qkv[:, 2 * EMBED_DIM + lo:2 * EMBED_DIM + lo + HEAD_DIM
                     ].reshape(TB, S, HEAD_DIM)

            s = jnp.einsum("bqd,bkd->bqk", qh, kh,
                           preferred_element_type=jnp.float32) * scale
            s = s - jnp.max(s, axis=-1, keepdims=True)
            p = jnp.exp(s)
            p = p / jnp.sum(p, axis=-1, keepdims=True)           # exact divide
            oh = jnp.einsum("bqk,bkd->bqd", p, vh,
                            preferred_element_type=jnp.float32)  # (TB, S, 32)

            # Fold the output projection per head: no lane concatenate.
            attn = attn + _mm(oh.reshape(M, HEAD_DIM),
                              w_ao[lo:lo + HEAD_DIM, :])
        attn = attn + b_ao_ref[l]
        h = _layer_norm(h + attn, ln1_g_ref[l], ln1_b_ref[l])

        # ---- feed-forward (ReLU) block ----
        ff = jnp.maximum(_mm(h, w_ff1_ref[l]) + b_ff1_ref[l], 0.0)
        ff = _mm(ff, w_ff2_ref[l]) + b_ff2_ref[l]
        h = _layer_norm(h + ff, ln2_g_ref[l], ln2_b_ref[l])

    # ---- mean pool over sequence, fused with the output projection ----
    pooled = jnp.mean(h.reshape(TB, S, EMBED_DIM), axis=1)       # (TB, 128)
    out = _mm(pooled, w_out_ref[...]) + b_out_ref[...]           # (TB, 128)
    o_ref[...] = out.reshape(TB, 1, EMBED_DIM)


# ----------------------------------------------------------------------------
# Wrapper
# ----------------------------------------------------------------------------
_MM_WEIGHT_KEYS = ("w_in", "w_qkv", "w_ao", "w_ff1", "w_ff2", "w_out")


def event_transformer_forward(params, x, weights_dtype=jnp.float32):
    B, S, F = x.shape
    # TODO(synk): flash-style S-tiling for long sequences (scores / FF slab).
    assert S <= 2048, "sequence too long for the un-tiled in-kernel attention"

    # Pad/truncate features straight to 8 lanes in one concatenate.  The extra
    # lane multiplies a zero weight row, so numerics are unchanged.
    keep = min(F, INPUT_DIM)
    x = jnp.concatenate(
        [x[..., :keep].astype(jnp.float32),
         jnp.zeros((B, S, INPUT_PAD - keep), jnp.float32)], axis=-1)

    # Batch tile: TB*S ~= 256 rows to fill the MXU, bounded by B.
    TB = max(1, min(B, ROWS_TARGET // max(S, 1)))
    n_blocks = -(-B // TB)
    B_pad = n_blocks * TB
    if B_pad != B:
        x = jnp.concatenate(
            [x, jnp.zeros((B_pad - B, S, INPUT_PAD), jnp.float32)], axis=0)

    # Matmul weights may be cast to bf16 (v6e/v7x MXU fast path, halved VMEM);
    # biases / LayerNorm params stay f32 (all elementwise math is f32).
    p = {k: (v.astype(weights_dtype) if k in _MM_WEIGHT_KEYS else v)
         for k, v in params.items()}

    weights = (
        p["w_in"], p["b_in"],
        p["w_qkv"], p["b_qkv"], p["w_ao"], p["b_ao"],
        p["ln1_g"], p["ln1_b"],
        p["w_ff1"], p["b_ff1"], p["w_ff2"], p["b_ff2"],
        p["ln2_g"], p["ln2_b"],
        p["w_out"], p["b_out"],
    )

    # Weights: whole-array, VMEM-resident, single-buffered (no pipelining).
    weight_spec = pl.BlockSpec(memory_space=pltpu.MemorySpace.VMEM)
    in_specs = [pl.BlockSpec((TB, S, INPUT_PAD), lambda i: (i, 0, 0))]
    in_specs += [weight_spec] * len(weights)

    out = pl.pallas_call(
        _fused_forward_kernel,
        out_shape=jax.ShapeDtypeStruct((B_pad, 1, EMBED_DIM), jnp.float32),
        grid=(n_blocks,),
        in_specs=in_specs,
        out_specs=pl.BlockSpec((TB, 1, EMBED_DIM), lambda i: (i, 0, 0)),
        compiler_params=pltpu.CompilerParams(
            dimension_semantics=("parallel",),
            vmem_limit_bytes=32 * 1024 * 1024),
    )(x, *weights)
    return out.reshape(B_pad, EMBED_DIM)[:B]


# ----------------------------------------------------------------------------
# Parameter construction (deterministic, synthetic), stacked per layer
# ----------------------------------------------------------------------------
def init_params(key):
    def w(k, shape, scale=0.02):
        return jax.random.normal(k, shape, jnp.float32) * scale

    keys = jax.random.split(key, 6)
    w_in7 = w(keys[0], (INPUT_DIM, EMBED_DIM))
    w_in = jnp.concatenate(
        [w_in7, jnp.zeros((INPUT_PAD - INPUT_DIM, EMBED_DIM), jnp.float32)],
        axis=0)                                   # zero row for the pad lane

    return {
        "w_in": w_in,
        "b_in": jnp.zeros((1, EMBED_DIM), jnp.float32),
        "w_qkv": w(keys[1], (NUM_LAYERS, EMBED_DIM, 3 * EMBED_DIM)),
        "b_qkv": jnp.zeros((NUM_LAYERS, 1, 3 * EMBED_DIM), jnp.float32),
        "w_ao": w(keys[2], (NUM_LAYERS, EMBED_DIM, EMBED_DIM)),
        "b_ao": jnp.zeros((NUM_LAYERS, 1, EMBED_DIM), jnp.float32),
        "ln1_g": jnp.ones((NUM_LAYERS, 1, EMBED_DIM), jnp.float32),
        "ln1_b": jnp.zeros((NUM_LAYERS, 1, EMBED_DIM), jnp.float32),
        "w_ff1": w(keys[3], (NUM_LAYERS, EMBED_DIM, FF_DIM)),
        "b_ff1": jnp.zeros((NUM_LAYERS, 1, FF_DIM), jnp.float32),
        "w_ff2": w(keys[4], (NUM_LAYERS, FF_DIM, EMBED_DIM)),
        "b_ff2": jnp.zeros((NUM_LAYERS, 1, EMBED_DIM), jnp.float32),
        "ln2_g": jnp.ones((NUM_LAYERS, 1, EMBED_DIM), jnp.float32),
        "ln2_b": jnp.zeros((NUM_LAYERS, 1, EMBED_DIM), jnp.float32),
        "w_out": w(keys[5], (EMBED_DIM, EMBED_DIM)),
        "b_out": jnp.zeros((1, EMBED_DIM), jnp.float32),
    }


# ----------------------------------------------------------------------------
# Pure-JAX reference (for correctness validation only)
# ----------------------------------------------------------------------------
def _reference_forward(params, x):
    B, S, F = x.shape
    if F < INPUT_DIM:
        x = jnp.concatenate(
            [x, jnp.zeros((B, S, INPUT_DIM - F), x.dtype)], axis=-1)
    elif F > INPUT_DIM:
        x = x[..., :INPUT_DIM]
    h = x @ params["w_in"][:INPUT_DIM] + params["b_in"][0]

    def ln(y, g, b):
        mu = y.mean(-1, keepdims=True)
        var = ((y - mu) ** 2).mean(-1, keepdims=True)
        return (y - mu) / jnp.sqrt(var + LN_EPS) * g + b

    for l in range(NUM_LAYERS):
        qkv = h @ params["w_qkv"][l] + params["b_qkv"][l, 0]
        q, k, v = jnp.split(qkv, 3, axis=-1)
        q = q.reshape(B, S, NUM_HEADS, HEAD_DIM).transpose(0, 2, 1, 3)
        k = k.reshape(B, S, NUM_HEADS, HEAD_DIM).transpose(0, 2, 1, 3)
        v = v.reshape(B, S, NUM_HEADS, HEAD_DIM).transpose(0, 2, 1, 3)
        s = jnp.einsum("bhqd,bhkd->bhqk", q, k) / (HEAD_DIM ** 0.5)
        p = jax.nn.softmax(s, axis=-1)
        a = jnp.einsum("bhqk,bhkd->bhqd", p, v)
        a = a.transpose(0, 2, 1, 3).reshape(B, S, EMBED_DIM)
        a = a @ params["w_ao"][l] + params["b_ao"][l, 0]
        h = ln(h + a, params["ln1_g"][l, 0], params["ln1_b"][l, 0])
        f = jnp.maximum(h @ params["w_ff1"][l] + params["b_ff1"][l, 0], 0.0)
        f = f @ params["w_ff2"][l] + params["b_ff2"][l, 0]
        h = ln(h + f, params["ln2_g"][l, 0], params["ln2_b"][l, 0])
    pooled = h.mean(axis=1)
    return pooled @ params["w_out"] + params["b_out"][0]


if __name__ == "__main__":
    key = jax.random.PRNGKey(0)
    pkey, xkey = jax.random.split(key)
    params = init_params(pkey)

    B, S = 2, 8
    x = jax.random.normal(xkey, (B, S, INPUT_DIM), jnp.float32)

    # f32 weights: parity with the PyTorch-equivalent reference.
    fwd = jax.jit(event_transformer_forward)
    out = fwd(params, x)
    jax.block_until_ready(out)
    assert out.shape == (B, EMBED_DIM), out.shape
    assert bool(jnp.all(jnp.isfinite(out)))

    ref = _reference_forward(params, x)
    assert bool(jnp.allclose(out, ref, rtol=1e-2, atol=1e-2)), \
        float(jnp.max(jnp.abs(out - ref)))

    # bf16 matmul-weight operands (v6e/v7x fast path), f32 accumulation.
    fwd_bf16 = jax.jit(functools.partial(event_transformer_forward,
                                         weights_dtype=jnp.bfloat16))
    out_bf16 = fwd_bf16(params, x)
    jax.block_until_ready(out_bf16)
    assert bool(jnp.all(jnp.isfinite(out_bf16)))
    assert bool(jnp.allclose(out_bf16, out, rtol=5e-2, atol=5e-2)), \
        float(jnp.max(jnp.abs(out_bf16 - out)))

    print("KERNEL_OK")
</pallas_src>

<mosaic_0001>
module attributes {stable_mosaic.version = 11 : i64} {
  func.func @_fused_forward_kernel(%arg0: i32, %arg1: memref<2x8x8xf32, #tpu.memory_space<vmem>>, %arg2: memref<8x128xf32, #tpu.memory_space<vmem>>, %arg3: memref<1x128xf32, #tpu.memory_space<vmem>>, %arg4: memref<2x128x384xf32, #tpu.memory_space<vmem>>, %arg5: memref<2x1x384xf32, #tpu.memory_space<vmem>>, %arg6: memref<2x128x128xf32, #tpu.memory_space<vmem>>, %arg7: memref<2x1x128xf32, #tpu.memory_space<vmem>>, %arg8: memref<2x1x128xf32, #tpu.memory_space<vmem>>, %arg9: memref<2x1x128xf32, #tpu.memory_space<vmem>>, %arg10: memref<2x128x2048xf32, #tpu.memory_space<vmem>>, %arg11: memref<2x1x2048xf32, #tpu.memory_space<vmem>>, %arg12: memref<2x2048x128xf32, #tpu.memory_space<vmem>>, %arg13: memref<2x1x128xf32, #tpu.memory_space<vmem>>, %arg14: memref<2x1x128xf32, #tpu.memory_space<vmem>>, %arg15: memref<2x1x128xf32, #tpu.memory_space<vmem>>, %arg16: memref<128x128xf32, #tpu.memory_space<vmem>>, %arg17: memref<1x128xf32, #tpu.memory_space<vmem>>, %arg18: memref<2x1x128xf32, #tpu.memory_space<vmem>>) attributes {dimension_semantics = [#tpu.dimension_semantics<parallel>], iteration_bounds = array<i64: 1>, scalar_prefetch = 0 : i64, scratch_operands = 0 : i64, tpu.core_type = #tpu.core_type<tc>, window_params = [{transform_indices = @transform_0, window_bounds = array<i64: 2, 8, 8>}, {pipeline_mode = #tpu.pipeline_mode<synchronous>, transform_indices = @transform_1, window_bounds = array<i64: 8, 128>}, {pipeline_mode = #tpu.pipeline_mode<synchronous>, transform_indices = @transform_2, window_bounds = array<i64: 1, 128>}, {pipeline_mode = #tpu.pipeline_mode<synchronous>, transform_indices = @transform_3, window_bounds = array<i64: 2, 128, 384>}, {pipeline_mode = #tpu.pipeline_mode<synchronous>, transform_indices = @transform_4, window_bounds = array<i64: 2, 1, 384>}, {pipeline_mode = #tpu.pipeline_mode<synchronous>, transform_indices = @transform_5, window_bounds = array<i64: 2, 128, 128>}, {pipeline_mode = #tpu.pipeline_mode<synchronous>, transform_indices = @transform_6, window_bounds = array<i64: 2, 1, 128>}, {pipeline_mode = #tpu.pipeline_mode<synchronous>, transform_indices = @transform_7, window_bounds = array<i64: 2, 1, 128>}, {pipeline_mode = #tpu.pipeline_mode<synchronous>, transform_indices = @transform_8, window_bounds = array<i64: 2, 1, 128>}, {pipeline_mode = #tpu.pipeline_mode<synchronous>, transform_indices = @transform_9, window_bounds = array<i64: 2, 128, 2048>}, {pipeline_mode = #tpu.pipeline_mode<synchronous>, transform_indices = @transform_10, window_bounds = array<i64: 2, 1, 2048>}, {pipeline_mode = #tpu.pipeline_mode<synchronous>, transform_indices = @transform_11, window_bounds = array<i64: 2, 2048, 128>}, {pipeline_mode = #tpu.pipeline_mode<synchronous>, transform_indices = @transform_12, window_bounds = array<i64: 2, 1, 128>}, {pipeline_mode = #tpu.pipeline_mode<synchronous>, transform_indices = @transform_13, window_bounds = array<i64: 2, 1, 128>}, {pipeline_mode = #tpu.pipeline_mode<synchronous>, transform_indices = @transform_14, window_bounds = array<i64: 2, 1, 128>}, {pipeline_mode = #tpu.pipeline_mode<synchronous>, transform_indices = @transform_15, window_bounds = array<i64: 128, 128>}, {pipeline_mode = #tpu.pipeline_mode<synchronous>, transform_indices = @transform_16, window_bounds = array<i64: 1, 128>}, {transform_indices = @transform_17, window_bounds = array<i64: 2, 1, 128>}]} {
    %c0 = arith.constant 0 : index
    %c0_0 = arith.constant 0 : index
    %c0_1 = arith.constant 0 : index
    %0 = vector.load %arg1[%c0, %c0_0, %c0_1] : memref<2x8x8xf32, #tpu.memory_space<vmem>>, vector<2x8x8xf32>
    %1 = vector.shape_cast %0 : vector<2x8x8xf32> to vector<16x8xf32>
    %c0_2 = arith.constant 0 : index
    %c0_3 = arith.constant 0 : index
    %2 = vector.load %arg2[%c0_2, %c0_3] : memref<8x128xf32, #tpu.memory_space<vmem>>, vector<8x128xf32>
    %cst = arith.constant dense<0.000000e+00> : vector<16x128xf32>
    %3 = tpu.matmul %1, %2, %cst {dimension_numbers = #tpu.dot_dimension_numbers<[1], [0], [0], [1], [0, 0, 1, 1], [], []>} : vector<16x8xf32>, vector<8x128xf32>, vector<16x128xf32> -> vector<16x128xf32>
    %c0_4 = arith.constant 0 : index
    %c0_5 = arith.constant 0 : index
    %4 = vector.load %arg3[%c0_4, %c0_5] : memref<1x128xf32, #tpu.memory_space<vmem>>, vector<1x128xf32>
    %5 = vector.broadcast %4 : vector<1x128xf32> to vector<16x128xf32>
    %6 = arith.addf %3, %5 : vector<16x128xf32>
    %c0_6 = arith.constant 0 : index
    %c0_7 = arith.constant 0 : index
    %c0_8 = arith.constant 0 : index
    %7 = vector.load %arg4[%c0_6, %c0_7, %c0_8] : memref<2x128x384xf32, #tpu.memory_space<vmem>>, vector<1x128x384xf32>
    %8 = vector.shape_cast %7 : vector<1x128x384xf32> to vector<128x384xf32>
    %cst_9 = arith.constant dense<0.000000e+00> : vector<16x384xf32>
    %9 = tpu.matmul %6, %8, %cst_9 {dimension_numbers = #tpu.dot_dimension_numbers<[1], [0], [0], [1], [0, 0, 1, 1], [], []>} : vector<16x128xf32>, vector<128x384xf32>, vector<16x384xf32> -> vector<16x384xf32>
    %c0_10 = arith.constant 0 : index
    %c0_11 = arith.constant 0 : index
    %c0_12 = arith.constant 0 : index
    %10 = vector.load %arg5[%c0_10, %c0_11, %c0_12] : memref<2x1x384xf32, #tpu.memory_space<vmem>>, vector<1x1x384xf32>
    %11 = vector.shape_cast %10 : vector<1x1x384xf32> to vector<1x384xf32>
    %12 = vector.broadcast %11 : vector<1x384xf32> to vector<16x384xf32>
    %13 = arith.addf %9, %12 : vector<16x384xf32>
    %c0_13 = arith.constant 0 : index
    %c0_14 = arith.constant 0 : index
    %c0_15 = arith.constant 0 : index
    %14 = vector.load %arg6[%c0_13, %c0_14, %c0_15] : memref<2x128x128xf32, #tpu.memory_space<vmem>>, vector<1x128x128xf32>
    %15 = vector.shape_cast %14 : vector<1x128x128xf32> to vector<128x128xf32>
    %cst_16 = arith.constant 0.000000e+00 : f32
    %16 = vector.broadcast %cst_16 : f32 to vector<16x128xf32>
    %17 = vector.extract_strided_slice %13 {offsets = [0, 0], sizes = [16, 32], strides = [1, 1]} : vector<16x384xf32> to vector<16x32xf32>
    %18 = vector.shape_cast %17 : vector<16x32xf32> to vector<2x8x32xf32>
    %19 = vector.extract_strided_slice %13 {offsets = [0, 128], sizes = [16, 32], strides = [1, 1]} : vector<16x384xf32> to vector<16x32xf32>
    %20 = vector.shape_cast %19 : vector<16x32xf32> to vector<2x8x32xf32>
    %21 = vector.extract_strided_slice %13 {offsets = [0, 256], sizes = [16, 32], strides = [1, 1]} : vector<16x384xf32> to vector<16x32xf32>
    %22 = vector.shape_cast %21 : vector<16x32xf32> to vector<2x8x32xf32>
    "tpu.trace_start"() <{level = 10 : i32, message = "bqd,bkd->bqk"}> : () -> ()
    %cst_17 = arith.constant dense<0.000000e+00> : vector<2x8x8xf32>
    %23 = tpu.matmul %18, %20, %cst_17 {dimension_numbers = #tpu.dot_dimension_numbers<[2], [2], [1], [1], [0, 0, 0, 1, 1, 1], [0], [0]>} : vector<2x8x32xf32>, vector<2x8x32xf32>, vector<2x8x8xf32> -> vector<2x8x8xf32>
    "tpu.trace_stop"() : () -> ()
    %cst_18 = arith.constant 0.176776692 : f32
    %24 = vector.broadcast %cst_18 : f32 to vector<2x8x8xf32>
    %25 = arith.mulf %23, %24 : vector<2x8x8xf32>
    %cst_19 = arith.constant dense<0xFF800000> : vector<2x8xf32>
    %26 = vector.multi_reduction <maximumf>, %25, %cst_19 [2] : vector<2x8x8xf32> to vector<2x8xf32>
    %27 = vector.shape_cast %26 : vector<2x8xf32> to vector<2x8x1xf32>
    %28 = vector.broadcast %27 : vector<2x8x1xf32> to vector<2x8x8xf32>
    %29 = arith.subf %25, %28 : vector<2x8x8xf32>
    %30 = math.exp %29 : vector<2x8x8xf32>
    %cst_20 = arith.constant dense<0.000000e+00> : vector<2x8xf32>
    %31 = vector.multi_reduction <add>, %30, %cst_20 [2] : vector<2x8x8xf32> to vector<2x8xf32>
    %32 = vector.shape_cast %31 : vector<2x8xf32> to vector<2x8x1xf32>
    %33 = vector.broadcast %32 : vector<2x8x1xf32> to vector<2x8x8xf32>
    %34 = arith.divf %30, %33 : vector<2x8x8xf32>
    "tpu.trace_start"() <{level = 10 : i32, message = "bqk,bkd->bqd"}> : () -> ()
    %cst_21 = arith.constant dense<0.000000e+00> : vector<2x8x32xf32>
    %35 = tpu.matmul %34, %22, %cst_21 {dimension_numbers = #tpu.dot_dimension_numbers<[2], [1], [1], [2], [0, 0, 0, 1, 1, 2], [0], [0]>} : vector<2x8x8xf32>, vector<2x8x32xf32>, vector<2x8x32xf32> -> vector<2x8x32xf32>
    "tpu.trace_stop"() : () -> ()
    %36 = vector.shape_cast %35 : vector<2x8x32xf32> to vector<16x32xf32>
    %37 = vector.extract_strided_slice %15 {offsets = [0, 0], sizes = [32, 128], strides = [1, 1]} : vector<128x128xf32> to vector<32x128xf32>
    %cst_22 = arith.constant dense<0.000000e+00> : vector<16x128xf32>
    %38 = tpu.matmul %36, %37, %cst_22 {dimension_numbers = #tpu.dot_dimension_numbers<[1], [0], [0], [1], [0, 0, 1, 1], [], []>} : vector<16x32xf32>, vector<32x128xf32>, vector<16x128xf32> -> vector<16x128xf32>
    %39 = arith.addf %16, %38 : vector<16x128xf32>
    %40 = vector.extract_strided_slice %13 {offsets = [0, 32], sizes = [16, 32], strides = [1, 1]} : vector<16x384xf32> to vector<16x32xf32>
    %41 = vector.shape_cast %40 : vector<16x32xf32> to vector<2x8x32xf32>
    %42 = vector.extract_strided_slice %13 {offsets = [0, 160], sizes = [16, 32], strides = [1, 1]} : vector<16x384xf32> to vector<16x32xf32>
    %43 = vector.shape_cast %42 : vector<16x32xf32> to vector<2x8x32xf32>
    %44 = vector.extract_strided_slice %13 {offsets = [0, 288], sizes = [16, 32], strides = [1, 1]} : vector<16x384xf32> to vector<16x32xf32>
    %45 = vector.shape_cast %44 : vector<16x32xf32> to vector<2x8x32xf32>
    "tpu.trace_start"() <{level = 10 : i32, message = "bqd,bkd->bqk"}> : () -> ()
    %cst_23 = arith.constant dense<0.000000e+00> : vector<2x8x8xf32>
    %46 = tpu.matmul %41, %43, %cst_23 {dimension_numbers = #tpu.dot_dimension_numbers<[2], [2], [1], [1], [0, 0, 0, 1, 1, 1], [0], [0]>} : vector<2x8x32xf32>, vector<2x8x32xf32>, vector<2x8x8xf32> -> vector<2x8x8xf32>
    "tpu.trace_stop"() : () -> ()
    %cst_24 = arith.constant 0.176776692 : f32
    %47 = vector.broadcast %cst_24 : f32 to vector<2x8x8xf32>
    %48 = arith.mulf %46, %47 : vector<2x8x8xf32>
    %cst_25 = arith.constant dense<0xFF800000> : vector<2x8xf32>
    %49 = vector.multi_reduction <maximumf>, %48, %cst_25 [2] : vector<2x8x8xf32> to vector<2x8xf32>
    %50 = vector.shape_cast %49 : vector<2x8xf32> to vector<2x8x1xf32>
    %51 = vector.broadcast %50 : vector<2x8x1xf32> to vector<2x8x8xf32>
    %52 = arith.subf %48, %51 : vector<2x8x8xf32>
    %53 = math.exp %52 : vector<2x8x8xf32>
    %cst_26 = arith.constant dense<0.000000e+00> : vector<2x8xf32>
    %54 = vector.multi_reduction <add>, %53, %cst_26 [2] : vector<2x8x8xf32> to vector<2x8xf32>
    %55 = vector.shape_cast %54 : vector<2x8xf32> to vector<2x8x1xf32>
    %56 = vector.broadcast %55 : vector<2x8x1xf32> to vector<2x8x8xf32>
    %57 = arith.divf %53, %56 : vector<2x8x8xf32>
    "tpu.trace_start"() <{level = 10 : i32, message = "bqk,bkd->bqd"}> : () -> ()
    %cst_27 = arith.constant dense<0.000000e+00> : vector<2x8x32xf32>
    %58 = tpu.matmul %57, %45, %cst_27 {dimension_numbers = #tpu.dot_dimension_numbers<[2], [1], [1], [2], [0, 0, 0, 1, 1, 2], [0], [0]>} : vector<2x8x8xf32>, vector<2x8x32xf32>, vector<2x8x32xf32> -> vector<2x8x32xf32>
    "tpu.trace_stop"() : () -> ()
    %59 = vector.shape_cast %58 : vector<2x8x32xf32> to vector<16x32xf32>
    %60 = vector.extract_strided_slice %15 {offsets = [32, 0], sizes = [32, 128], strides = [1, 1]} : vector<128x128xf32> to vector<32x128xf32>
    %cst_28 = arith.constant dense<0.000000e+00> : vector<16x128xf32>
    %61 = tpu.matmul %59, %60, %cst_28 {dimension_numbers = #tpu.dot_dimension_numbers<[1], [0], [0], [1], [0, 0, 1, 1], [], []>} : vector<16x32xf32>, vector<32x128xf32>, vector<16x128xf32> -> vector<16x128xf32>
    %62 = arith.addf %39, %61 : vector<16x128xf32>
    %63 = vector.extract_strided_slice %13 {offsets = [0, 64], sizes = [16, 32], strides = [1, 1]} : vector<16x384xf32> to vector<16x32xf32>
    %64 = vector.shape_cast %63 : vector<16x32xf32> to vector<2x8x32xf32>
    %65 = vector.extract_strided_slice %13 {offsets = [0, 192], sizes = [16, 32], strides = [1, 1]} : vector<16x384xf32> to vector<16x32xf32>
    %66 = vector.shape_cast %65 : vector<16x32xf32> to vector<2x8x32xf32>
    %67 = vector.extract_strided_slice %13 {offsets = [0, 320], sizes = [16, 32], strides = [1, 1]} : vector<16x384xf32> to vector<16x32xf32>
    %68 = vector.shape_cast %67 : vector<16x32xf32> to vector<2x8x32xf32>
    "tpu.trace_start"() <{level = 10 : i32, message = "bqd,bkd->bqk"}> : () -> ()
    %cst_29 = arith.constant dense<0.000000e+00> : vector<2x8x8xf32>
    %69 = tpu.matmul %64, %66, %cst_29 {dimension_numbers = #tpu.dot_dimension_numbers<[2], [2], [1], [1], [0, 0, 0, 1, 1, 1], [0], [0]>} : vector<2x8x32xf32>, vector<2x8x32xf32>, vector<2x8x8xf32> -> vector<2x8x8xf32>
    "tpu.trace_stop"() : () -> ()
    %cst_30 = arith.constant 0.176776692 : f32
    %70 = vector.broadcast %cst_30 : f32 to vector<2x8x8xf32>
    %71 = arith.mulf %69, %70 : vector<2x8x8xf32>
    %cst_31 = arith.constant dense<0xFF800000> : vector<2x8xf32>
    %72 = vector.multi_reduction <maximumf>, %71, %cst_31 [2] : vector<2x8x8xf32> to vector<2x8xf32>
    %73 = vector.shape_cast %72 : vector<2x8xf32> to vector<2x8x1xf32>
    %74 = vector.broadcast %73 : vector<2x8x1xf32> to vector<2x8x8xf32>
    %75 = arith.subf %71, %74 : vector<2x8x8xf32>
    %76 = math.exp %75 : vector<2x8x8xf32>
    %cst_32 = arith.constant dense<0.000000e+00> : vector<2x8xf32>
    %77 = vector.multi_reduction <add>, %76, %cst_32 [2] : vector<2x8x8xf32> to vector<2x8xf32>
    %78 = vector.shape_cast %77 : vector<2x8xf32> to vector<2x8x1xf32>
    %79 = vector.broadcast %78 : vector<2x8x1xf32> to vector<2x8x8xf32>
    %80 = arith.divf %76, %79 : vector<2x8x8xf32>
    "tpu.trace_start"() <{level = 10 : i32, message = "bqk,bkd->bqd"}> : () -> ()
    %cst_33 = arith.constant dense<0.000000e+00> : vector<2x8x32xf32>
    %81 = tpu.matmul %80, %68, %cst_33 {dimension_numbers = #tpu.dot_dimension_numbers<[2], [1], [1], [2], [0, 0, 0, 1, 1, 2], [0], [0]>} : vector<2x8x8xf32>, vector<2x8x32xf32>, vector<2x8x32xf32> -> vector<2x8x32xf32>
    "tpu.trace_stop"() : () -> ()
    %82 = vector.shape_cast %81 : vector<2x8x32xf32> to vector<16x32xf32>
    %83 = vector.extract_strided_slice %15 {offsets = [64, 0], sizes = [32, 128], strides = [1, 1]} : vector<128x128xf32> to vector<32x128xf32>
    %cst_34 = arith.constant dense<0.000000e+00> : vector<16x128xf32>
    %84 = tpu.matmul %82, %83, %cst_34 {dimension_numbers = #tpu.dot_dimension_numbers<[1], [0], [0], [1], [0, 0, 1, 1], [], []>} : vector<16x32xf32>, vector<32x128xf32>, vector<16x128xf32> -> vector<16x128xf32>
    %85 = arith.addf %62, %84 : vector<16x128xf32>
    %86 = vector.extract_strided_slice %13 {offsets = [0, 96], sizes = [16, 32], strides = [1, 1]} : vector<16x384xf32> to vector<16x32xf32>
    %87 = vector.shape_cast %86 : vector<16x32xf32> to vector<2x8x32xf32>
    %88 = vector.extract_strided_slice %13 {offsets = [0, 224], sizes = [16, 32], strides = [1, 1]} : vector<16x384xf32> to vector<16x32xf32>
    %89 = vector.shape_cast %88 : vector<16x32xf32> to vector<2x8x32xf32>
    %90 = vector.extract_strided_slice %13 {offsets = [0, 352], sizes = [16, 32], strides = [1, 1]} : vector<16x384xf32> to vector<16x32xf32>
    %91 = vector.shape_cast %90 : vector<16x32xf32> to vector<2x8x32xf32>
    "tpu.trace_start"() <{level = 10 : i32, message = "bqd,bkd->bqk"}> : () -> ()
    %cst_35 = arith.constant dense<0.000000e+00> : vector<2x8x8xf32>
    %92 = tpu.matmul %87, %89, %cst_35 {dimension_numbers = #tpu.dot_dimension_numbers<[2], [2], [1], [1], [0, 0, 0, 1, 1, 1], [0], [0]>} : vector<2x8x32xf32>, vector<2x8x32xf32>, vector<2x8x8xf32> -> vector<2x8x8xf32>
    "tpu.trace_stop"() : () -> ()
    %cst_36 = arith.constant 0.176776692 : f32
    %93 = vector.broadcast %cst_36 : f32 to vector<2x8x8xf32>
    %94 = arith.mulf %92, %93 : vector<2x8x8xf32>
    %cst_37 = arith.constant dense<0xFF800000> : vector<2x8xf32>
    %95 = vector.multi_reduction <maximumf>, %94, %cst_37 [2] : vector<2x8x8xf32> to vector<2x8xf32>
    %96 = vector.shape_cast %95 : vector<2x8xf32> to vector<2x8x1xf32>
    %97 = vector.broadcast %96 : vector<2x8x1xf32> to vector<2x8x8xf32>
    %98 = arith.subf %94, %97 : vector<2x8x8xf32>
    %99 = math.exp %98 : vector<2x8x8xf32>
    %cst_38 = arith.constant dense<0.000000e+00> : vector<2x8xf32>
    %100 = vector.multi_reduction <add>, %99, %cst_38 [2] : vector<2x8x8xf32> to vector<2x8xf32>
    %101 = vector.shape_cast %100 : vector<2x8xf32> to vector<2x8x1xf32>
    %102 = vector.broadcast %101 : vector<2x8x1xf32> to vector<2x8x8xf32>
    %103 = arith.divf %99, %102 : vector<2x8x8xf32>
    "tpu.trace_start"() <{level = 10 : i32, message = "bqk,bkd->bqd"}> : () -> ()
    %cst_39 = arith.constant dense<0.000000e+00> : vector<2x8x32xf32>
    %104 = tpu.matmul %103, %91, %cst_39 {dimension_numbers = #tpu.dot_dimension_numbers<[2], [1], [1], [2], [0, 0, 0, 1, 1, 2], [0], [0]>} : vector<2x8x8xf32>, vector<2x8x32xf32>, vector<2x8x32xf32> -> vector<2x8x32xf32>
    "tpu.trace_stop"() : () -> ()
    %105 = vector.shape_cast %104 : vector<2x8x32xf32> to vector<16x32xf32>
    %106 = vector.extract_strided_slice %15 {offsets = [96, 0], sizes = [32, 128], strides = [1, 1]} : vector<128x128xf32> to vector<32x128xf32>
    %cst_40 = arith.constant dense<0.000000e+00> : vector<16x128xf32>
    %107 = tpu.matmul %105, %106, %cst_40 {dimension_numbers = #tpu.dot_dimension_numbers<[1], [0], [0], [1], [0, 0, 1, 1], [], []>} : vector<16x32xf32>, vector<32x128xf32>, vector<16x128xf32> -> vector<16x128xf32>
    %108 = arith.addf %85, %107 : vector<16x128xf32>
    %c0_41 = arith.constant 0 : index
    %c0_42 = arith.constant 0 : index
    %c0_43 = arith.constant 0 : index
    %109 = vector.load %arg7[%c0_41, %c0_42, %c0_43] : memref<2x1x128xf32, #tpu.memory_space<vmem>>, vector<1x1x128xf32>
    %110 = vector.shape_cast %109 : vector<1x1x128xf32> to vector<1x128xf32>
    %111 = vector.broadcast %110 : vector<1x128xf32> to vector<16x128xf32>
    %112 = arith.addf %108, %111 : vector<16x128xf32>
    %113 = arith.addf %6, %112 : vector<16x128xf32>
    %c0_44 = arith.constant 0 : index
    %c0_45 = arith.constant 0 : index
    %c0_46 = arith.constant 0 : index
    %114 = vector.load %arg8[%c0_44, %c0_45, %c0_46] : memref<2x1x128xf32, #tpu.memory_space<vmem>>, vector<1x1x128xf32>
    %115 = vector.shape_cast %114 : vector<1x1x128xf32> to vector<1x128xf32>
    %c0_47 = arith.constant 0 : index
    %c0_48 = arith.constant 0 : index
    %c0_49 = arith.constant 0 : index
    %116 = vector.load %arg9[%c0_47, %c0_48, %c0_49] : memref<2x1x128xf32, #tpu.memory_space<vmem>>, vector<1x1x128xf32>
    %117 = vector.shape_cast %116 : vector<1x1x128xf32> to vector<1x128xf32>
    %cst_50 = arith.constant dense<0.000000e+00> : vector<16xf32>
    %118 = vector.multi_reduction <add>, %113, %cst_50 [1] : vector<16x128xf32> to vector<16xf32>
    %119 = vector.shape_cast %118 : vector<16xf32> to vector<16x1xf32>
    %cst_51 = arith.constant 1.280000e+02 : f32
    %120 = vector.broadcast %cst_51 : f32 to vector<16x1xf32>
    %121 = arith.divf %119, %120 : vector<16x1xf32>
    %122 = vector.broadcast %121 : vector<16x1xf32> to vector<16x128xf32>
    %123 = arith.subf %113, %122 : vector<16x128xf32>
    %124 = arith.mulf %123, %123 : vector<16x128xf32>
    %cst_52 = arith.constant dense<0.000000e+00> : vector<16xf32>
    %125 = vector.multi_reduction <add>, %124, %cst_52 [1] : vector<16x128xf32> to vector<16xf32>
    %126 = vector.shape_cast %125 : vector<16xf32> to vector<16x1xf32>
    %cst_53 = arith.constant 1.280000e+02 : f32
    %127 = vector.broadcast %cst_53 : f32 to vector<16x1xf32>
    %128 = arith.divf %126, %127 : vector<16x1xf32>
    %129 = vector.broadcast %121 : vector<16x1xf32> to vector<16x128xf32>
    %130 = arith.subf %113, %129 : vector<16x128xf32>
    %cst_54 = arith.constant 9.99999974E-6 : f32
    %131 = vector.broadcast %cst_54 : f32 to vector<16x1xf32>
    %132 = arith.addf %128, %131 : vector<16x1xf32>
    %133 = math.rsqrt %132 : vector<16x1xf32>
    %134 = vector.broadcast %133 : vector<16x1xf32> to vector<16x128xf32>
    %135 = arith.mulf %130, %134 : vector<16x128xf32>
    %136 = vector.broadcast %115 : vector<1x128xf32> to vector<16x128xf32>
    %137 = arith.mulf %135, %136 : vector<16x128xf32>
    %138 = vector.broadcast %117 : vector<1x128xf32> to vector<16x128xf32>
    %139 = arith.addf %137, %138 : vector<16x128xf32>
    %c0_55 = arith.constant 0 : index
    %c0_56 = arith.constant 0 : index
    %c0_57 = arith.constant 0 : index
    %140 = vector.load %arg10[%c0_55, %c0_56, %c0_57] : memref<2x128x2048xf32, #tpu.memory_space<vmem>>, vector<1x128x2048xf32>
    %141 = vector.shape_cast %140 : vector<1x128x2048xf32> to vector<128x2048xf32>
    %cst_58 = arith.constant dense<0.000000e+00> : vector<16x2048xf32>
    %142 = tpu.matmul %139, %141, %cst_58 {dimension_numbers = #tpu.dot_dimension_numbers<[1], [0], [0], [1], [0, 0, 1, 1], [], []>} : vector<16x128xf32>, vector<128x2048xf32>, vector<16x2048xf32> -> vector<16x2048xf32>
    %c0_59 = arith.constant 0 : index
    %c0_60 = arith.constant 0 : index
    %c0_61 = arith.constant 0 : index
    %143 = vector.load %arg11[%c0_59, %c0_60, %c0_61] : memref<2x1x2048xf32, #tpu.memory_space<vmem>>, vector<1x1x2048xf32>
    %144 = vector.shape_cast %143 : vector<1x1x2048xf32> to vector<1x2048xf32>
    %145 = vector.broadcast %144 : vector<1x2048xf32> to vector<16x2048xf32>
    %146 = arith.addf %142, %145 : vector<16x2048xf32>
    %cst_62 = arith.constant 0.000000e+00 : f32
    %147 = vector.broadcast %cst_62 : f32 to vector<16x2048xf32>
    %148 = arith.maximumf %146, %147 : vector<16x2048xf32>
    %c0_63 = arith.constant 0 : index
    %c0_64 = arith.constant 0 : index
    %c0_65 = arith.constant 0 : index
    %149 = vector.load %arg12[%c0_63, %c0_64, %c0_65] : memref<2x2048x128xf32, #tpu.memory_space<vmem>>, vector<1x2048x128xf32>
    %150 = vector.shape_cast %149 : vector<1x2048x128xf32> to vector<2048x128xf32>
    %cst_66 = arith.constant dense<0.000000e+00> : vector<16x128xf32>
    %151 = tpu.matmul %148, %150, %cst_66 {dimension_numbers = #tpu.dot_dimension_numbers<[1], [0], [0], [1], [0, 0, 1, 1], [], []>} : vector<16x2048xf32>, vector<2048x128xf32>, vector<16x128xf32> -> vector<16x128xf32>
    %c0_67 = arith.constant 0 : index
    %c0_68 = arith.constant 0 : index
    %c0_69 = arith.constant 0 : index
    %152 = vector.load %arg13[%c0_67, %c0_68, %c0_69] : memref<2x1x128xf32, #tpu.memory_space<vmem>>, vector<1x1x128xf32>
    %153 = vector.shape_cast %152 : vector<1x1x128xf32> to vector<1x128xf32>
    %154 = vector.broadcast %153 : vector<1x128xf32> to vector<16x128xf32>
    %155 = arith.addf %151, %154 : vector<16x128xf32>
    %156 = arith.addf %139, %155 : vector<16x128xf32>
    %c0_70 = arith.constant 0 : index
    %c0_71 = arith.constant 0 : index
    %c0_72 = arith.constant 0 : index
    %157 = vector.load %arg14[%c0_70, %c0_71, %c0_72] : memref<2x1x128xf32, #tpu.memory_space<vmem>>, vector<1x1x128xf32>
    %158 = vector.shape_cast %157 : vector<1x1x128xf32> to vector<1x128xf32>
    %c0_73 = arith.constant 0 : index
    %c0_74 = arith.constant 0 : index
    %c0_75 = arith.constant 0 : index
    %159 = vector.load %arg15[%c0_73, %c0_74, %c0_75] : memref<2x1x128xf32, #tpu.memory_space<vmem>>, vector<1x1x128xf32>
    %160 = vector.shape_cast %159 : vector<1x1x128xf32> to vector<1x128xf32>
    %cst_76 = arith.constant dense<0.000000e+00> : vector<16xf32>
    %161 = vector.multi_reduction <add>, %156, %cst_76 [1] : vector<16x128xf32> to vector<16xf32>
    %162 = vector.shape_cast %161 : vector<16xf32> to vector<16x1xf32>
    %cst_77 = arith.constant 1.280000e+02 : f32
    %163 = vector.broadcast %cst_77 : f32 to vector<16x1xf32>
    %164 = arith.divf %162, %163 : vector<16x1xf32>
    %165 = vector.broadcast %164 : vector<16x1xf32> to vector<16x128xf32>
    %166 = arith.subf %156, %165 : vector<16x128xf32>
    %167 = arith.mulf %166, %166 : vector<16x128xf32>
    %cst_78 = arith.constant dense<0.000000e+00> : vector<16xf32>
    %168 = vector.multi_reduction <add>, %167, %cst_78 [1] : vector<16x128xf32> to vector<16xf32>
    %169 = vector.shape_cast %168 : vector<16xf32> to vector<16x1xf32>
    %cst_79 = arith.constant 1.280000e+02 : f32
    %170 = vector.broadcast %cst_79 : f32 to vector<16x1xf32>
    %171 = arith.divf %169, %170 : vector<16x1xf32>
    %172 = vector.broadcast %164 : vector<16x1xf32> to vector<16x128xf32>
    %173 = arith.subf %156, %172 : vector<16x128xf32>
    %cst_80 = arith.constant 9.99999974E-6 : f32
    %174 = vector.broadcast %cst_80 : f32 to vector<16x1xf32>
    %175 = arith.addf %171, %174 : vector<16x1xf32>
    %176 = math.rsqrt %175 : vector<16x1xf32>
    %177 = vector.broadcast %176 : vector<16x1xf32> to vector<16x128xf32>
    %178 = arith.mulf %173, %177 : vector<16x128xf32>
    %179 = vector.broadcast %158 : vector<1x128xf32> to vector<16x128xf32>
    %180 = arith.mulf %178, %179 : vector<16x128xf32>
    %181 = vector.broadcast %160 : vector<1x128xf32> to vector<16x128xf32>
    %182 = arith.addf %180, %181 : vector<16x128xf32>
    %c1 = arith.constant 1 : index
    %c0_81 = arith.constant 0 : index
    %c0_82 = arith.constant 0 : index
    %183 = vector.load %arg4[%c1, %c0_81, %c0_82] : memref<2x128x384xf32, #tpu.memory_space<vmem>>, vector<1x128x384xf32>
    %184 = vector.shape_cast %183 : vector<1x128x384xf32> to vector<128x384xf32>
    %cst_83 = arith.constant dense<0.000000e+00> : vector<16x384xf32>
    %185 = tpu.matmul %182, %184, %cst_83 {dimension_numbers = #tpu.dot_dimension_numbers<[1], [0], [0], [1], [0, 0, 1, 1], [], []>} : vector<16x128xf32>, vector<128x384xf32>, vector<16x384xf32> -> vector<16x384xf32>
    %c1_84 = arith.constant 1 : index
    %c0_85 = arith.constant 0 : index
    %c0_86 = arith.constant 0 : index
    %186 = vector.load %arg5[%c1_84, %c0_85, %c0_86] : memref<2x1x384xf32, #tpu.memory_space<vmem>>, vector<1x1x384xf32>
    %187 = vector.shape_cast %186 : vector<1x1x384xf32> to vector<1x384xf32>
    %188 = vector.broadcast %187 : vector<1x384xf32> to vector<16x384xf32>
    %189 = arith.addf %185, %188 : vector<16x384xf32>
    %c1_87 = arith.constant 1 : index
    %c0_88 = arith.constant 0 : index
    %c0_89 = arith.constant 0 : index
    %190 = vector.load %arg6[%c1_87, %c0_88, %c0_89] : memref<2x128x128xf32, #tpu.memory_space<vmem>>, vector<1x128x128xf32>
    %191 = vector.shape_cast %190 : vector<1x128x128xf32> to vector<128x128xf32>
    %cst_90 = arith.constant 0.000000e+00 : f32
    %192 = vector.broadcast %cst_90 : f32 to vector<16x128xf32>
    %193 = vector.extract_strided_slice %189 {offsets = [0, 0], sizes = [16, 32], strides = [1, 1]} : vector<16x384xf32> to vector<16x32xf32>
    %194 = vector.shape_cast %193 : vector<16x32xf32> to vector<2x8x32xf32>
    %195 = vector.extract_strided_slice %189 {offsets = [0, 128], sizes = [16, 32], strides = [1, 1]} : vector<16x384xf32> to vector<16x32xf32>
    %196 = vector.shape_cast %195 : vector<16x32xf32> to vector<2x8x32xf32>
    %197 = vector.extract_strided_slice %189 {offsets = [0, 256], sizes = [16, 32], strides = [1, 1]} : vector<16x384xf32> to vector<16x32xf32>
    %198 = vector.shape_cast %197 : vector<16x32xf32> to vector<2x8x32xf32>
    "tpu.trace_start"() <{level = 10 : i32, message = "bqd,bkd->bqk"}> : () -> ()
    %cst_91 = arith.constant dense<0.000000e+00> : vector<2x8x8xf32>
    %199 = tpu.matmul %194, %196, %cst_91 {dimension_numbers = #tpu.dot_dimension_numbers<[2], [2], [1], [1], [0, 0, 0, 1, 1, 1], [0], [0]>} : vector<2x8x32xf32>, vector<2x8x32xf32>, vector<2x8x8xf32> -> vector<2x8x8xf32>
    "tpu.trace_stop"() : () -> ()
    %cst_92 = arith.constant 0.176776692 : f32
    %200 = vector.broadcast %cst_92 : f32 to vector<2x8x8xf32>
    %201 = arith.mulf %199, %200 : vector<2x8x8xf32>
    %cst_93 = arith.constant dense<0xFF800000> : vector<2x8xf32>
    %202 = vector.multi_reduction <maximumf>, %201, %cst_93 [2] : vector<2x8x8xf32> to vector<2x8xf32>
    %203 = vector.shape_cast %202 : vector<2x8xf32> to vector<2x8x1xf32>
    %204 = vector.broadcast %203 : vector<2x8x1xf32> to vector<2x8x8xf32>
    %205 = arith.subf %201, %204 : vector<2x8x8xf32>
    %206 = math.exp %205 : vector<2x8x8xf32>
    %cst_94 = arith.constant dense<0.000000e+00> : vector<2x8xf32>
    %207 = vector.multi_reduction <add>, %206, %cst_94 [2] : vector<2x8x8xf32> to vector<2x8xf32>
    %208 = vector.shape_cast %207 : vector<2x8xf32> to vector<2x8x1xf32>
    %209 = vector.broadcast %208 : vector<2x8x1xf32> to vector<2x8x8xf32>
    %210 = arith.divf %206, %209 : vector<2x8x8xf32>
    "tpu.trace_start"() <{level = 10 : i32, message = "bqk,bkd->bqd"}> : () -> ()
    %cst_95 = arith.constant dense<0.000000e+00> : vector<2x8x32xf32>
    %211 = tpu.matmul %210, %198, %cst_95 {dimension_numbers = #tpu.dot_dimension_numbers<[2], [1], [1], [2], [0, 0, 0, 1, 1, 2], [0], [0]>} : vector<2x8x8xf32>, vector<2x8x32xf32>, vector<2x8x32xf32> -> vector<2x8x32xf32>
    "tpu.trace_stop"() : () -> ()
    %212 = vector.shape_cast %211 : vector<2x8x32xf32> to vector<16x32xf32>
    %213 = vector.extract_strided_slice %191 {offsets = [0, 0], sizes = [32, 128], strides = [1, 1]} : vector<128x128xf32> to vector<32x128xf32>
    %cst_96 = arith.constant dense<0.000000e+00> : vector<16x128xf32>
    %214 = tpu.matmul %212, %213, %cst_96 {dimension_numbers = #tpu.dot_dimension_numbers<[1], [0], [0], [1], [0, 0, 1, 1], [], []>} : vector<16x32xf32>, vector<32x128xf32>, vector<16x128xf32> -> vector<16x128xf32>
    %215 = arith.addf %192, %214 : vector<16x128xf32>
    %216 = vector.extract_strided_slice %189 {offsets = [0, 32], sizes = [16, 32], strides = [1, 1]} : vector<16x384xf32> to vector<16x32xf32>
    %217 = vector.shape_cast %216 : vector<16x32xf32> to vector<2x8x32xf32>
    %218 = vector.extract_strided_slice %189 {offsets = [0, 160], sizes = [16, 32], strides = [1, 1]} : vector<16x384xf32> to vector<16x32xf32>
    %219 = vector.shape_cast %218 : vector<16x32xf32> to vector<2x8x32xf32>
    %220 = vector.extract_strided_slice %189 {offsets = [0, 288], sizes = [16, 32], strides = [1, 1]} : vector<16x384xf32> to vector<16x32xf32>
    %221 = vector.shape_cast %220 : vector<16x32xf32> to vector<2x8x32xf32>
    "tpu.trace_start"() <{level = 10 : i32, message = "bqd,bkd->bqk"}> : () -> ()
    %cst_97 = arith.constant dense<0.000000e+00> : vector<2x8x8xf32>
    %222 = tpu.matmul %217, %219, %cst_97 {dimension_numbers = #tpu.dot_dimension_numbers<[2], [2], [1], [1], [0, 0, 0, 1, 1, 1], [0], [0]>} : vector<2x8x32xf32>, vector<2x8x32xf32>, vector<2x8x8xf32> -> vector<2x8x8xf32>
    "tpu.trace_stop"() : () -> ()
    %cst_98 = arith.constant 0.176776692 : f32
    %223 = vector.broadcast %cst_98 : f32 to vector<2x8x8xf32>
    %224 = arith.mulf %222, %223 : vector<2x8x8xf32>
    %cst_99 = arith.constant dense<0xFF800000> : vector<2x8xf32>
    %225 = vector.multi_reduction <maximumf>, %224, %cst_99 [2] : vector<2x8x8xf32> to vector<2x8xf32>
    %226 = vector.shape_cast %225 : vector<2x8xf32> to vector<2x8x1xf32>
    %227 = vector.broadcast %226 : vector<2x8x1xf32> to vector<2x8x8xf32>
    %228 = arith.subf %224, %227 : vector<2x8x8xf32>
    %229 = math.exp %228 : vector<2x8x8xf32>
    %cst_100 = arith.constant dense<0.000000e+00> : vector<2x8xf32>
    %230 = vector.multi_reduction <add>, %229, %cst_100 [2] : vector<2x8x8xf32> to vector<2x8xf32>
    %231 = vector.shape_cast %230 : vector<2x8xf32> to vector<2x8x1xf32>
    %232 = vector.broadcast %231 : vector<2x8x1xf32> to vector<2x8x8xf32>
    %233 = arith.divf %229, %232 : vector<2x8x8xf32>
    "tpu.trace_start"() <{level = 10 : i32, message = "bqk,bkd->bqd"}> : () -> ()
    %cst_101 = arith.constant dense<0.000000e+00> : vector<2x8x32xf32>
    %234 = tpu.matmul %233, %221, %cst_101 {dimension_numbers = #tpu.dot_dimension_numbers<[2], [1], [1], [2], [0, 0, 0, 1, 1, 2], [0], [0]>} : vector<2x8x8xf32>, vector<2x8x32xf32>, vector<2x8x32xf32> -> vector<2x8x32xf32>
    "tpu.trace_stop"() : () -> ()
    %235 = vector.shape_cast %234 : vector<2x8x32xf32> to vector<16x32xf32>
    %236 = vector.extract_strided_slice %191 {offsets = [32, 0], sizes = [32, 128], strides = [1, 1]} : vector<128x128xf32> to vector<32x128xf32>
    %cst_102 = arith.constant dense<0.000000e+00> : vector<16x128xf32>
    %237 = tpu.matmul %235, %236, %cst_102 {dimension_numbers = #tpu.dot_dimension_numbers<[1], [0], [0], [1], [0, 0, 1, 1], [], []>} : vector<16x32xf32>, vector<32x128xf32>, vector<16x128xf32> -> vector<16x128xf32>
    %238 = arith.addf %215, %237 : vector<16x128xf32>
    %239 = vector.extract_strided_slice %189 {offsets = [0, 64], sizes = [16, 32], strides = [1, 1]} : vector<16x384xf32> to vector<16x32xf32>
    %240 = vector.shape_cast %239 : vector<16x32xf32> to vector<2x8x32xf32>
    %241 = vector.extract_strided_slice %189 {offsets = [0, 192], sizes = [16, 32], strides = [1, 1]} : vector<16x384xf32> to vector<16x32xf32>
    %242 = vector.shape_cast %241 : vector<16x32xf32> to vector<2x8x32xf32>
    %243 = vector.extract_strided_slice %189 {offsets = [0, 320], sizes = [16, 32], strides = [1, 1]} : vector<16x384xf32> to vector<16x32xf32>
    %244 = vector.shape_cast %243 : vector<16x32xf32> to vector<2x8x32xf32>
    "tpu.trace_start"() <{level = 10 : i32, message = "bqd,bkd->bqk"}> : () -> ()
    %cst_103 = arith.constant dense<0.000000e+00> : vector<2x8x8xf32>
    %245 = tpu.matmul %240, %242, %cst_103 {dimension_numbers = #tpu.dot_dimension_numbers<[2], [2], [1], [1], [0, 0, 0, 1, 1, 1], [0], [0]>} : vector<2x8x32xf32>, vector<2x8x32xf32>, vector<2x8x8xf32> -> vector<2x8x8xf32>
    "tpu.trace_stop"() : () -> ()
    %cst_104 = arith.constant 0.176776692 : f32
    %246 = vector.broadcast %cst_104 : f32 to vector<2x8x8xf32>
    %247 = arith.mulf %245, %246 : vector<2x8x8xf32>
    %cst_105 = arith.constant dense<0xFF800000> : vector<2x8xf32>
    %248 = vector.multi_reduction <maximumf>, %247, %cst_105 [2] : vector<2x8x8xf32> to vector<2x8xf32>
    %249 = vector.shape_cast %248 : vector<2x8xf32> to vector<2x8x1xf32>
    %250 = vector.broadcast %249 : vector<2x8x1xf32> to vector<2x8x8xf32>
    %251 = arith.subf %247, %250 : vector<2x8x8xf32>
    %252 = math.exp %251 : vector<2x8x8xf32>
    %cst_106 = arith.constant dense<0.000000e+00> : vector<2x8xf32>
    %253 = vector.multi_reduction <add>, %252, %cst_106 [2] : vector<2x8x8xf32> to vector<2x8xf32>
    %254 = vector.shape_cast %253 : vector<2x8xf32> to vector<2x8x1xf32>
    %255 = vector.broadcast %254 : vector<2x8x1xf32> to vector<2x8x8xf32>
    %256 = arith.divf %252, %255 : vector<2x8x8xf32>
    "tpu.trace_start"() <{level = 10 : i32, message = "bqk,bkd->bqd"}> : () -> ()
    %cst_107 = arith.constant dense<0.000000e+00> : vector<2x8x32xf32>
    %257 = tpu.matmul %256, %244, %cst_107 {dimension_numbers = #tpu.dot_dimension_numbers<[2], [1], [1], [2], [0, 0, 0, 1, 1, 2], [0], [0]>} : vector<2x8x8xf32>, vector<2x8x32xf32>, vector<2x8x32xf32> -> vector<2x8x32xf32>
    "tpu.trace_stop"() : () -> ()
    %258 = vector.shape_cast %257 : vector<2x8x32xf32> to vector<16x32xf32>
    %259 = vector.extract_strided_slice %191 {offsets = [64, 0], sizes = [32, 128], strides = [1, 1]} : vector<128x128xf32> to vector<32x128xf32>
    %cst_108 = arith.constant dense<0.000000e+00> : vector<16x128xf32>
    %260 = tpu.matmul %258, %259, %cst_108 {dimension_numbers = #tpu.dot_dimension_numbers<[1], [0], [0], [1], [0, 0, 1, 1], [], []>} : vector<16x32xf32>, vector<32x128xf32>, vector<16x128xf32> -> vector<16x128xf32>
    %261 = arith.addf %238, %260 : vector<16x128xf32>
    %262 = vector.extract_strided_slice %189 {offsets = [0, 96], sizes = [16, 32], strides = [1, 1]} : vector<16x384xf32> to vector<16x32xf32>
    %263 = vector.shape_cast %262 : vector<16x32xf32> to vector<2x8x32xf32>
    %264 = vector.extract_strided_slice %189 {offsets = [0, 224], sizes = [16, 32], strides = [1, 1]} : vector<16x384xf32> to vector<16x32xf32>
    %265 = vector.shape_cast %264 : vector<16x32xf32> to vector<2x8x32xf32>
    %266 = vector.extract_strided_slice %189 {offsets = [0, 352], sizes = [16, 32], strides = [1, 1]} : vector<16x384xf32> to vector<16x32xf32>
    %267 = vector.shape_cast %266 : vector<16x32xf32> to vector<2x8x32xf32>
    "tpu.trace_start"() <{level = 10 : i32, message = "bqd,bkd->bqk"}> : () -> ()
    %cst_109 = arith.constant dense<0.000000e+00> : vector<2x8x8xf32>
    %268 = tpu.matmul %263, %265, %cst_109 {dimension_numbers = #tpu.dot_dimension_numbers<[2], [2], [1], [1], [0, 0, 0, 1, 1, 1], [0], [0]>} : vector<2x8x32xf32>, vector<2x8x32xf32>, vector<2x8x8xf32> -> vector<2x8x8xf32>
    "tpu.trace_stop"() : () -> ()
    %cst_110 = arith.constant 0.176776692 : f32
    %269 = vector.broadcast %cst_110 : f32 to vector<2x8x8xf32>
    %270 = arith.mulf %268, %269 : vector<2x8x8xf32>
    %cst_111 = arith.constant dense<0xFF800000> : vector<2x8xf32>
    %271 = vector.multi_reduction <maximumf>, %270, %cst_111 [2] : vector<2x8x8xf32> to vector<2x8xf32>
    %272 = vector.shape_cast %271 : vector<2x8xf32> to vector<2x8x1xf32>
    %273 = vector.broadcast %272 : vector<2x8x1xf32> to vector<2x8x8xf32>
    %274 = arith.subf %270, %273 : vector<2x8x8xf32>
    %275 = math.exp %274 : vector<2x8x8xf32>
    %cst_112 = arith.constant dense<0.000000e+00> : vector<2x8xf32>
    %276 = vector.multi_reduction <add>, %275, %cst_112 [2] : vector<2x8x8xf32> to vector<2x8xf32>
    %277 = vector.shape_cast %276 : vector<2x8xf32> to vector<2x8x1xf32>
    %278 = vector.broadcast %277 : vector<2x8x1xf32> to vector<2x8x8xf32>
    %279 = arith.divf %275, %278 : vector<2x8x8xf32>
    "tpu.trace_start"() <{level = 10 : i32, message = "bqk,bkd->bqd"}> : () -> ()
    %cst_113 = arith.constant dense<0.000000e+00> : vector<2x8x32xf32>
    %280 = tpu.matmul %279, %267, %cst_113 {dimension_numbers = #tpu.dot_dimension_numbers<[2], [1], [1], [2], [0, 0, 0, 1, 1, 2], [0], [0]>} : vector<2x8x8xf32>, vector<2x8x32xf32>, vector<2x8x32xf32> -> vector<2x8x32xf32>
    "tpu.trace_stop"() : () -> ()
    %281 = vector.shape_cast %280 : vector<2x8x32xf32> to vector<16x32xf32>
    %282 = vector.extract_strided_slice %191 {offsets = [96, 0], sizes = [32, 128], strides = [1, 1]} : vector<128x128xf32> to vector<32x128xf32>
    %cst_114 = arith.constant dense<0.000000e+00> : vector<16x128xf32>
    %283 = tpu.matmul %281, %282, %cst_114 {dimension_numbers = #tpu.dot_dimension_numbers<[1], [0], [0], [1], [0, 0, 1, 1], [], []>} : vector<16x32xf32>, vector<32x128xf32>, vector<16x128xf32> -> vector<16x128xf32>
    %284 = arith.addf %261, %283 : vector<16x128xf32>
    %c1_115 = arith.constant 1 : index
    %c0_116 = arith.constant 0 : index
    %c0_117 = arith.constant 0 : index
    %285 = vector.load %arg7[%c1_115, %c0_116, %c0_117] : memref<2x1x128xf32, #tpu.memory_space<vmem>>, vector<1x1x128xf32>
    %286 = vector.shape_cast %285 : vector<1x1x128xf32> to vector<1x128xf32>
    %287 = vector.broadcast %286 : vector<1x128xf32> to vector<16x128xf32>
    %288 = arith.addf %284, %287 : vector<16x128xf32>
    %289 = arith.addf %182, %288 : vector<16x128xf32>
    %c1_118 = arith.constant 1 : index
    %c0_119 = arith.constant 0 : index
    %c0_120 = arith.constant 0 : index
    %290 = vector.load %arg8[%c1_118, %c0_119, %c0_120] : memref<2x1x128xf32, #tpu.memory_space<vmem>>, vector<1x1x128xf32>
    %291 = vector.shape_cast %290 : vector<1x1x128xf32> to vector<1x128xf32>
    %c1_121 = arith.constant 1 : index
    %c0_122 = arith.constant 0 : index
    %c0_123 = arith.constant 0 : index
    %292 = vector.load %arg9[%c1_121, %c0_122, %c0_123] : memref<2x1x128xf32, #tpu.memory_space<vmem>>, vector<1x1x128xf32>
    %293 = vector.shape_cast %292 : vector<1x1x128xf32> to vector<1x128xf32>
    %cst_124 = arith.constant dense<0.000000e+00> : vector<16xf32>
    %294 = vector.multi_reduction <add>, %289, %cst_124 [1] : vector<16x128xf32> to vector<16xf32>
    %295 = vector.shape_cast %294 : vector<16xf32> to vector<16x1xf32>
    %cst_125 = arith.constant 1.280000e+02 : f32
    %296 = vector.broadcast %cst_125 : f32 to vector<16x1xf32>
    %297 = arith.divf %295, %296 : vector<16x1xf32>
    %298 = vector.broadcast %297 : vector<16x1xf32> to vector<16x128xf32>
    %299 = arith.subf %289, %298 : vector<16x128xf32>
    %300 = arith.mulf %299, %299 : vector<16x128xf32>
    %cst_126 = arith.constant dense<0.000000e+00> : vector<16xf32>
    %301 = vector.multi_reduction <add>, %300, %cst_126 [1] : vector<16x128xf32> to vector<16xf32>
    %302 = vector.shape_cast %301 : vector<16xf32> to vector<16x1xf32>
    %cst_127 = arith.constant 1.280000e+02 : f32
    %303 = vector.broadcast %cst_127 : f32 to vector<16x1xf32>
    %304 = arith.divf %302, %303 : vector<16x1xf32>
    %305 = vector.broadcast %297 : vector<16x1xf32> to vector<16x128xf32>
    %306 = arith.subf %289, %305 : vector<16x128xf32>
    %cst_128 = arith.constant 9.99999974E-6 : f32
    %307 = vector.broadcast %cst_128 : f32 to vector<16x1xf32>
    %308 = arith.addf %304, %307 : vector<16x1xf32>
    %309 = math.rsqrt %308 : vector<16x1xf32>
    %310 = vector.broadcast %309 : vector<16x1xf32> to vector<16x128xf32>
    %311 = arith.mulf %306, %310 : vector<16x128xf32>
    %312 = vector.broadcast %291 : vector<1x128xf32> to vector<16x128xf32>
    %313 = arith.mulf %311, %312 : vector<16x128xf32>
    %314 = vector.broadcast %293 : vector<1x128xf32> to vector<16x128xf32>
    %315 = arith.addf %313, %314 : vector<16x128xf32>
    %c1_129 = arith.constant 1 : index
    %c0_130 = arith.constant 0 : index
    %c0_131 = arith.constant 0 : index
    %316 = vector.load %arg10[%c1_129, %c0_130, %c0_131] : memref<2x128x2048xf32, #tpu.memory_space<vmem>>, vector<1x128x2048xf32>
    %317 = vector.shape_cast %316 : vector<1x128x2048xf32> to vector<128x2048xf32>
    %cst_132 = arith.constant dense<0.000000e+00> : vector<16x2048xf32>
    %318 = tpu.matmul %315, %317, %cst_132 {dimension_numbers = #tpu.dot_dimension_numbers<[1], [0], [0], [1], [0, 0, 1, 1], [], []>} : vector<16x128xf32>, vector<128x2048xf32>, vector<16x2048xf32> -> vector<16x2048xf32>
    %c1_133 = arith.constant 1 : index
    %c0_134 = arith.constant 0 : index
    %c0_135 = arith.constant 0 : index
    %319 = vector.load %arg11[%c1_133, %c0_134, %c0_135] : memref<2x1x2048xf32, #tpu.memory_space<vmem>>, vector<1x1x2048xf32>
    %320 = vector.shape_cast %319 : vector<1x1x2048xf32> to vector<1x2048xf32>
    %321 = vector.broadcast %320 : vector<1x2048xf32> to vector<16x2048xf32>
    %322 = arith.addf %318, %321 : vector<16x2048xf32>
    %cst_136 = arith.constant 0.000000e+00 : f32
    %323 = vector.broadcast %cst_136 : f32 to vector<16x2048xf32>
    %324 = arith.maximumf %322, %323 : vector<16x2048xf32>
    %c1_137 = arith.constant 1 : index
    %c0_138 = arith.constant 0 : index
    %c0_139 = arith.constant 0 : index
    %325 = vector.load %arg12[%c1_137, %c0_138, %c0_139] : memref<2x2048x128xf32, #tpu.memory_space<vmem>>, vector<1x2048x128xf32>
    %326 = vector.shape_cast %325 : vector<1x2048x128xf32> to vector<2048x128xf32>
    %cst_140 = arith.constant dense<0.000000e+00> : vector<16x128xf32>
    %327 = tpu.matmul %324, %326, %cst_140 {dimension_numbers = #tpu.dot_dimension_numbers<[1], [0], [0], [1], [0, 0, 1, 1], [], []>} : vector<16x2048xf32>, vector<2048x128xf32>, vector<16x128xf32> -> vector<16x128xf32>
    %c1_141 = arith.constant 1 : index
    %c0_142 = arith.constant 0 : index
    %c0_143 = arith.constant 0 : index
    %328 = vector.load %arg13[%c1_141, %c0_142, %c0_143] : memref<2x1x128xf32, #tpu.memory_space<vmem>>, vector<1x1x128xf32>
    %329 = vector.shape_cast %328 : vector<1x1x128xf32> to vector<1x128xf32>
    %330 = vector.broadcast %329 : vector<1x128xf32> to vector<16x128xf32>
    %331 = arith.addf %327, %330 : vector<16x128xf32>
    %332 = arith.addf %315, %331 : vector<16x128xf32>
    %c1_144 = arith.constant 1 : index
    %c0_145 = arith.constant 0 : index
    %c0_146 = arith.constant 0 : index
    %333 = vector.load %arg14[%c1_144, %c0_145, %c0_146] : memref<2x1x128xf32, #tpu.memory_space<vmem>>, vector<1x1x128xf32>
    %334 = vector.shape_cast %333 : vector<1x1x128xf32> to vector<1x128xf32>
    %c1_147 = arith.constant 1 : index
    %c0_148 = arith.constant 0 : index
    %c0_149 = arith.constant 0 : index
    %335 = vector.load %arg15[%c1_147, %c0_148, %c0_149] : memref<2x1x128xf32, #tpu.memory_space<vmem>>, vector<1x1x128xf32>
    %336 = vector.shape_cast %335 : vector<1x1x128xf32> to vector<1x128xf32>
    %cst_150 = arith.constant dense<0.000000e+00> : vector<16xf32>
    %337 = vector.multi_reduction <add>, %332, %cst_150 [1] : vector<16x128xf32> to vector<16xf32>
    %338 = vector.shape_cast %337 : vector<16xf32> to vector<16x1xf32>
    %cst_151 = arith.constant 1.280000e+02 : f32
    %339 = vector.broadcast %cst_151 : f32 to vector<16x1xf32>
    %340 = arith.divf %338, %339 : vector<16x1xf32>
    %341 = vector.broadcast %340 : vector<16x1xf32> to vector<16x128xf32>
    %342 = arith.subf %332, %341 : vector<16x128xf32>
    %343 = arith.mulf %342, %342 : vector<16x128xf32>
    %cst_152 = arith.constant dense<0.000000e+00> : vector<16xf32>
    %344 = vector.multi_reduction <add>, %343, %cst_152 [1] : vector<16x128xf32> to vector<16xf32>
    %345 = vector.shape_cast %344 : vector<16xf32> to vector<16x1xf32>
    %cst_153 = arith.constant 1.280000e+02 : f32
    %346 = vector.broadcast %cst_153 : f32 to vector<16x1xf32>
    %347 = arith.divf %345, %346 : vector<16x1xf32>
    %348 = vector.broadcast %340 : vector<16x1xf32> to vector<16x128xf32>
    %349 = arith.subf %332, %348 : vector<16x128xf32>
    %cst_154 = arith.constant 9.99999974E-6 : f32
    %350 = vector.broadcast %cst_154 : f32 to vector<16x1xf32>
    %351 = arith.addf %347, %350 : vector<16x1xf32>
    %352 = math.rsqrt %351 : vector<16x1xf32>
    %353 = vector.broadcast %352 : vector<16x1xf32> to vector<16x128xf32>
    %354 = arith.mulf %349, %353 : vector<16x128xf32>
    %355 = vector.broadcast %334 : vector<1x128xf32> to vector<16x128xf32>
    %356 = arith.mulf %354, %355 : vector<16x128xf32>
    %357 = vector.broadcast %336 : vector<1x128xf32> to vector<16x128xf32>
    %358 = arith.addf %356, %357 : vector<16x128xf32>
    %359 = vector.shape_cast %358 : vector<16x128xf32> to vector<2x8x128xf32>
    %cst_155 = arith.constant dense<0.000000e+00> : vector<2x128xf32>
    %360 = vector.multi_reduction <add>, %359, %cst_155 [1] : vector<2x8x128xf32> to vector<2x128xf32>
    %cst_156 = arith.constant 8.000000e+00 : f32
    %361 = vector.broadcast %cst_156 : f32 to vector<2x128xf32>
    %362 = arith.divf %360, %361 : vector<2x128xf32>
    %c0_157 = arith.constant 0 : index
    %c0_158 = arith.constant 0 : index
    %363 = vector.load %arg16[%c0_157, %c0_158] : memref<128x128xf32, #tpu.memory_space<vmem>>, vector<128x128xf32>
    %cst_159 = arith.constant dense<0.000000e+00> : vector<2x128xf32>
    %364 = tpu.matmul %362, %363, %cst_159 {dimension_numbers = #tpu.dot_dimension_numbers<[1], [0], [0], [1], [0, 0, 1, 1], [], []>} : vector<2x128xf32>, vector<128x128xf32>, vector<2x128xf32> -> vector<2x128xf32>
    %c0_160 = arith.constant 0 : index
    %c0_161 = arith.constant 0 : index
    %365 = vector.load %arg17[%c0_160, %c0_161] : memref<1x128xf32, #tpu.memory_space<vmem>>, vector<1x128xf32>
    %366 = vector.broadcast %365 : vector<1x128xf32> to vector<2x128xf32>
    %367 = arith.addf %364, %366 : vector<2x128xf32>
    %368 = vector.shape_cast %367 : vector<2x128xf32> to vector<2x1x128xf32>
    %c0_162 = arith.constant 0 : index
    %c0_163 = arith.constant 0 : index
    %c0_164 = arith.constant 0 : index
    %369 = vector.load %arg18[%c0_162, %c0_163, %c0_164] : memref<2x1x128xf32, #tpu.memory_space<vmem>>, vector<2x1x128xf32>
    tpu.vector_store %arg18[%c0_162, %c0_163, %c0_164], %368 {strides = array<i32>} : memref<2x1x128xf32, #tpu.memory_space<vmem>>, vector<2x1x128xf32>,
    return
  }
  func.func @transform_0(%arg0: i32) -> (i32, i32, i32) {
    %c0_i32 = arith.constant 0 : i32
    %c0_i32_0 = arith.constant 0 : i32
    %c0_i32_1 = arith.constant 0 : i32
    return %arg0, %c0_i32, %c0_i32_0 : i32, i32, i32
  }
  func.func @transform_1(%arg0: i32) -> (i32, i32) {
    %c0_i32 = arith.constant 0 : i32
    %c0_i32_0 = arith.constant 0 : i32
    %c0_i32_1 = arith.constant 0 : i32
    return %c0_i32, %c0_i32_0 : i32, i32
  }
  func.func @transform_2(%arg0: i32) -> (i32, i32) {
    %c0_i32 = arith.constant 0 : i32
    %c0_i32_0 = arith.constant 0 : i32
    %c0_i32_1 = arith.constant 0 : i32
    return %c0_i32, %c0_i32_0 : i32, i32
  }
  func.func @transform_3(%arg0: i32) -> (i32, i32, i32) {
    %c0_i32 = arith.constant 0 : i32
    %c0_i32_0 = arith.constant 0 : i32
    %c0_i32_1 = arith.constant 0 : i32
    %c0_i32_2 = arith.constant 0 : i32
    return %c0_i32, %c0_i32_0, %c0_i32_1 : i32, i32, i32
  }
  func.func @transform_4(%arg0: i32) -> (i32, i32, i32) {
    %c0_i32 = arith.constant 0 : i32
    %c0_i32_0 = arith.constant 0 : i32
    %c0_i32_1 = arith.constant 0 : i32
    %c0_i32_2 = arith.constant 0 : i32
    return %c0_i32, %c0_i32_0, %c0_i32_1 : i32, i32, i32
  }
  func.func @transform_5(%arg0: i32) -> (i32, i32, i32) {
    %c0_i32 = arith.constant 0 : i32
    %c0_i32_0 = arith.constant 0 : i32
    %c0_i32_1 = arith.constant 0 : i32
    %c0_i32_2 = arith.constant 0 : i32
    return %c0_i32, %c0_i32_0, %c0_i32_1 : i32, i32, i32
  }
  func.func @transform_6(%arg0: i32) -> (i32, i32, i32) {
    %c0_i32 = arith.constant 0 : i32
    %c0_i32_0 = arith.constant 0 : i32
    %c0_i32_1 = arith.constant 0 : i32
    %c0_i32_2 = arith.constant 0 : i32
    return %c0_i32, %c0_i32_0, %c0_i32_1 : i32, i32, i32
  }
  func.func @transform_7(%arg0: i32) -> (i32, i32, i32) {
    %c0_i32 = arith.constant 0 : i32
    %c0_i32_0 = arith.constant 0 : i32
    %c0_i32_1 = arith.constant 0 : i32
    %c0_i32_2 = arith.constant 0 : i32
    return %c0_i32, %c0_i32_0, %c0_i32_1 : i32, i32, i32
  }
  func.func @transform_8(%arg0: i32) -> (i32, i32, i32) {
    %c0_i32 = arith.constant 0 : i32
    %c0_i32_0 = arith.constant 0 : i32
    %c0_i32_1 = arith.constant 0 : i32
    %c0_i32_2 = arith.constant 0 : i32
    return %c0_i32, %c0_i32_0, %c0_i32_1 : i32, i32, i32
  }
  func.func @transform_9(%arg0: i32) -> (i32, i32, i32) {
    %c0_i32 = arith.constant 0 : i32
    %c0_i32_0 = arith.constant 0 : i32
    %c0_i32_1 = arith.constant 0 : i32
    %c0_i32_2 = arith.constant 0 : i32
    return %c0_i32, %c0_i32_0, %c0_i32_1 : i32, i32, i32
  }
  func.func @transform_10(%arg0: i32) -> (i32, i32, i32) {
    %c0_i32 = arith.constant 0 : i32
    %c0_i32_0 = arith.constant 0 : i32
    %c0_i32_1 = arith.constant 0 : i32
    %c0_i32_2 = arith.constant 0 : i32
    return %c0_i32, %c0_i32_0, %c0_i32_1 : i32, i32, i32
  }
  func.func @transform_11(%arg0: i32) -> (i32, i32, i32) {
    %c0_i32 = arith.constant 0 : i32
    %c0_i32_0 = arith.constant 0 : i32
    %c0_i32_1 = arith.constant 0 : i32
    %c0_i32_2 = arith.constant 0 : i32
    return %c0_i32, %c0_i32_0, %c0_i32_1 : i32, i32, i32
  }
  func.func @transform_12(%arg0: i32) -> (i32, i32, i32) {
    %c0_i32 = arith.constant 0 : i32
    %c0_i32_0 = arith.constant 0 : i32
    %c0_i32_1 = arith.constant 0 : i32
    %c0_i32_2 = arith.constant 0 : i32
    return %c0_i32, %c0_i32_0, %c0_i32_1 : i32, i32, i32
  }
  func.func @transform_13(%arg0: i32) -> (i32, i32, i32) {
    %c0_i32 = arith.constant 0 : i32
    %c0_i32_0 = arith.constant 0 : i32
    %c0_i32_1 = arith.constant 0 : i32
    %c0_i32_2 = arith.constant 0 : i32
    return %c0_i32, %c0_i32_0, %c0_i32_1 : i32, i32, i32
  }
  func.func @transform_14(%arg0: i32) -> (i32, i32, i32) {
    %c0_i32 = arith.constant 0 : i32
    %c0_i32_0 = arith.constant 0 : i32
    %c0_i32_1 = arith.constant 0 : i32
    %c0_i32_2 = arith.constant 0 : i32
    return %c0_i32, %c0_i32_0, %c0_i32_1 : i32, i32, i32
  }
  func.func @transform_15(%arg0: i32) -> (i32, i32) {
    %c0_i32 = arith.constant 0 : i32
    %c0_i32_0 = arith.constant 0 : i32
    %c0_i32_1 = arith.constant 0 : i32
    return %c0_i32, %c0_i32_0 : i32, i32
  }
  func.func @transform_16(%arg0: i32) -> (i32, i32) {
    %c0_i32 = arith.constant 0 : i32
    %c0_i32_0 = arith.constant 0 : i32
    %c0_i32_1 = arith.constant 0 : i32
    return %c0_i32, %c0_i32_0 : i32, i32
  }
  func.func @transform_17(%arg0: i32) -> (i32, i32, i32) {
    %c0_i32 = arith.constant 0 : i32
    %c0_i32_0 = arith.constant 0 : i32
    %c0_i32_1 = arith.constant 0 : i32
    return %arg0, %c0_i32, %c0_i32_0 : i32, i32, i32
  }
}

</mosaic_0001>

<llo_original>
// kernel: event_transformer_forward.1
$region0: #{event_transformer_forward.1}
  #allocation0 [shape = 'u32[]', space=smem, size = 0x4, offset = 0x4, fixed_abs, tag = 'smem constant byte address 0x4 - core index']
  #allocation1 [shape = 'u32[144,128]{1,0:T(1,128)}', space=vmem, size = 0x12000, scoped, tag = 'internal scratch']
  %s0 = inlined_call_operand.vmem [shape: f32[2,8,8], index: 0, kind: input, shape index: {}]
  %s1 = inlined_call_operand.hbm [shape: f32[8,128], index: 1, kind: input, shape index: {}]
  %s2 = inlined_call_operand.hbm [shape: f32[1,128], index: 2, kind: input, shape index: {}]
  %s3 = inlined_call_operand.hbm [shape: f32[2,128,384], index: 3, kind: input, shape index: {}]
  %s4 = inlined_call_operand.hbm [shape: f32[2,1,384], index: 4, kind: input, shape index: {}]
  %s5 = inlined_call_operand.hbm [shape: f32[2,128,128], index: 5, kind: input, shape index: {}]
  %s6 = inlined_call_operand.hbm [shape: f32[2,1,128], index: 6, kind: input, shape index: {}]
  %s7 = inlined_call_operand.hbm [shape: f32[2,1,128], index: 7, kind: input, shape index: {}]
  %s8 = inlined_call_operand.hbm [shape: f32[2,1,128], index: 8, kind: input, shape index: {}]
  %s9 = inlined_call_operand.hbm [shape: f32[2,128,2048], index: 9, kind: input, shape index: {}]
  %s10 = inlined_call_operand.hbm [shape: f32[2,1,2048], index: 10, kind: input, shape index: {}]
  %s11 = inlined_call_operand.hbm [shape: f32[2,2048,128], index: 11, kind: input, shape index: {}]
  %s12 = inlined_call_operand.hbm [shape: f32[2,1,128], index: 12, kind: input, shape index: {}]
  %s13 = inlined_call_operand.hbm [shape: f32[2,1,128], index: 13, kind: input, shape index: {}]
  %s14 = inlined_call_operand.hbm [shape: f32[2,1,128], index: 14, kind: input, shape index: {}]
  %s15 = inlined_call_operand.hbm [shape: f32[128,128], index: 15, kind: input, shape index: {}]
  %s16 = inlined_call_operand.hbm [shape: f32[1,128], index: 16, kind: input, shape index: {}]
  %s17 = inlined_call_operand.hbm [shape: f32[2,1,128], index: 17, kind: output, shape index: {}]
  %s18 = sld [smem:[#allocation0]]
  $region142: #{event_transformer_forward.1} parent=0
    _
  %s20 = ssub.s32 1, %s18
  %s21 = scalar_select 0, %s20, %s18
  $region1: #{event_transformer_forward.1} parent=0
    #allocation2 [shape = 'u8[4096]{0}', space=vmem, size = 0x1000, scoped, tag = 'input window, operand 1, single buffered']
    #allocation3 [shape = 's32[1]{0}', space=sflag, size = 0x4, scoped, tag = 'scoped memory for event_transformer_forward.1']
    #allocation4 [shape = 's32[1]{0}', space=sflag, size = 0x4, scoped, tag = 'scoped memory for event_transformer_forward.1']
    #allocation5 [shape = 'u8[512]{0}', space=vmem, size = 0x400, scoped, tag = 'input window, operand 2, single buffered']
    #allocation6 [shape = 's32[1]{0}', space=sflag, size = 0x4, scoped, tag = 'scoped memory for event_transformer_forward.1']
    #allocation7 [shape = 'u8[393216]{0}', space=vmem, size = 0x60000, scoped, tag = 'input window, operand 3, single buffered']
    #allocation8 [shape = 'u8[3072]{0}', space=vmem, size = 0xc00, scoped, tag = 'input window, operand 4, single buffered']
    #allocation9 [shape = 's32[1]{0}', space=sflag, size = 0x4, scoped, tag = 'scoped memory for event_transformer_forward.1']
    #allocation10 [shape = 'u8[131072]{0}', space=vmem, size = 0x20000, scoped, tag = 'input window, operand 5, single buffered']
    #allocation11 [shape = 'u8[1024]{0}', space=vmem, size = 0x400, scoped, tag = 'input window, operand 6, single buffered']
    #allocation12 [shape = 's32[1]{0}', space=sflag, size = 0x4, scoped, tag = 'scoped memory for event_transformer_forward.1']
    #allocation13 [shape = 'u8[1024]{0}', space=vmem, size = 0x400, scoped, tag = 'input window, operand 7, single buffered']
    #allocation14 [shape = 'u8[1024]{0}', space=vmem, size = 0x400, scoped, tag = 'input window, operand 8, single buffered']
    #allocation15 [shape = 's32[1]{0}', space=sflag, size = 0x4, scoped, tag = 'scoped memory for event_transformer_forward.1']
    #allocation16 [shape = 'u8[2097152]{0}', space=vmem, size = 0x200000, scoped, tag = 'input window, operand 9, single buffered']
    #allocation17 [shape = 'u8[16384]{0}', space=vmem, size = 0x4000, scoped, tag = 'input window, operand 10, single buffered']
    #allocation18 [shape = 's32[1]{0}', space=sflag, size = 0x4, scoped, tag = 'scoped memory for event_transformer_forward.1']
    #allocation19 [shape = 'u8[2097152]{0}', space=vmem, size = 0x200000, scoped, tag = 'input window, operand 11, single buffered']
    #allocation20 [shape = 'u8[1024]{0}', space=vmem, size = 0x400, scoped, tag = 'input window, operand 12, single buffered']
    #allocation21 [shape = 's32[1]{0}', space=sflag, size = 0x4, scoped, tag = 'scoped memory for event_transformer_forward.1']
    #allocation22 [shape = 'u8[1024]{0}', space=vmem, size = 0x400, scoped, tag = 'input window, operand 13, single buffered']
    #allocation23 [shape = 'u8[1024]{0}', space=vmem, size = 0x400, scoped, tag = 'input window, operand 14, single buffered']
    #allocation24 [shape = 's32[1]{0}', space=sflag, size = 0x4, scoped, tag = 'scoped memory for event_transformer_forward.1']
    #allocation25 [shape = 'u8[65536]{0}', space=vmem, size = 0x10000, scoped, tag = 'input window, operand 15, single buffered']
    #allocation26 [shape = 'u8[512]{0}', space=vmem, size = 0x400, scoped, tag = 'input window, operand 16, single buffered']
    #allocation27 [shape = 's32[1]{0}', space=sflag, size = 0x4, scoped, tag = 'scoped memory for event_transformer_forward.1']
    #allocation28 [shape = 'u8[1024]{0}', space=vmem, size = 0x400, scoped, tag = 'output window, operand 0, single buffered']
    %22 = vsyncpa [#allocation3], 0
    %23 = vsyncpa [#allocation6], 0
    %24 = vsyncpa [#allocation9], 0
    %25 = vsyncpa [#allocation12], 0
    %26 = vsyncpa [#allocation15], 0
    %27 = vsyncpa [#allocation18], 0
    %28 = vsyncpa [#allocation21], 0
    %29 = vsyncpa [#allocation24], 0
    %30 = vsyncpa [#allocation27], 0
    %31 = vsyncpa [#allocation4], 0
    // Predicated region
    $region2: #{event_transformer_forward.1} parent=1 // pred_check
      _
    $region3: #{event_transformer_forward.1} parent=1 // pred_check_branch
      %33 = sbr.rel (0) target = $region5
    $region4: #{event_transformer_forward.1} parent=1 // pred_region
      _
    $region5: #{event_transformer_forward.1} parent=1 // pred_fallthru
      _
    // Predicated region
    $region6: #{event_transformer_forward.1} parent=1 // pred_check
      _
    $region7: #{event_transformer_forward.1} parent=1 // pred_check_branch
      %35 = sbr.rel (0) target = $region9
    $region8: #{event_transformer_forward.1} parent=1 // pred_region
      %s37 = ssub.s32 128, 128
      %38 = vsyncadd [#allocation3], %s37
      %s40 = sshll.u32 [#allocation2], 4
      %s41 = int_to_ptr.vmem [resolvable:$true] %s40
      %43 = dma.hbm_to_vmem [thread:$0]  %s1, 128, %s41, [#allocation3]
    $region9: #{event_transformer_forward.1} parent=1 // pred_fallthru
      _
    // Predicated region
    $region10: #{event_transformer_forward.1} parent=1 // pred_check
      _
    $region11: #{event_transformer_forward.1} parent=1 // pred_check_branch
      %45 = sbr.rel (0) target = $region13
    $region12: #{event_transformer_forward.1} parent=1 // pred_region
      %s47 = ssub.s32 16, 16
      %48 = vsyncadd [#allocation6], %s47
      %s50 = sshll.u32 [#allocation5], 4
      %s51 = int_to_ptr.vmem [resolvable:$true] %s50
      %53 = dma.hbm_to_vmem [thread:$0]  %s2, 16, %s51, [#allocation6]
    $region13: #{event_transformer_forward.1} parent=1 // pred_fallthru
      _
    // Predicated region
    $region14: #{event_transformer_forward.1} parent=1 // pred_check
      _
    $region15: #{event_transformer_forward.1} parent=1 // pred_check_branch
      %55 = sbr.rel (0) target = $region17
    $region16: #{event_transformer_forward.1} parent=1 // pred_region
      %s57 = ssub.s32 12288, 12288
      %58 = vsyncadd [#allocation6], %s57
      %s59 = sshll.u32 [#allocation7], 4
      %s60 = int_to_ptr.vmem [resolvable:$true] %s59
      %65 = dma.hbm_to_vmem [thread:$0]  %s3, 12288, %s60, [#allocation6], 384, 384, 24
    $region17: #{event_transformer_forward.1} parent=1 // pred_fallthru
      _
    // Predicated region
    $region18: #{event_transformer_forward.1} parent=1 // pred_check
      _
    $region19: #{event_transformer_forward.1} parent=1 // pred_check_branch
      %67 = sbr.rel (0) target = $region21
    $region20: #{event_transformer_forward.1} parent=1 // pred_region
      %s69 = ssub.s32 96, 96
      %70 = vsyncadd [#allocation9], %s69
      %s71 = sshll.u32 [#allocation8], 4
      %s72 = int_to_ptr.vmem [resolvable:$true] %s71
      %77 = dma.hbm_to_vmem [thread:$0]  %s4, 96, %s72, [#allocation9], 48, 48, 3
    $region21: #{event_transformer_forward.1} parent=1 // pred_fallthru
      _
    // Predicated region
    $region22: #{event_transformer_forward.1} parent=1 // pred_check
      _
    $region23: #{event_transformer_forward.1} parent=1 // pred_check_branch
      %79 = sbr.rel (0) target = $region25
    $region24: #{event_transformer_forward.1} parent=1 // pred_region
      %s81 = ssub.s32 4096, 4096
      %82 = vsyncadd [#allocation9], %s81
      %s83 = sshll.u32 [#allocation10], 4
      %s84 = int_to_ptr.vmem [resolvable:$true] %s83
      %89 = dma.hbm_to_vmem [thread:$0]  %s5, 4096, %s84, [#allocation9], 128, 128, 8
    $region25: #{event_transformer_forward.1} parent=1 // pred_fallthru
      _
    // Predicated region
    $region26: #{event_transformer_forward.1} parent=1 // pred_check
      _
    $region27: #{event_transformer_forward.1} parent=1 // pred_check_branch
      %91 = sbr.rel (0) target = $region29
    $region28: #{event_transformer_forward.1} parent=1 // pred_region
      %s93 = ssub.s32 32, 32
      %94 = vsyncadd [#allocation12], %s93
      %s95 = sshll.u32 [#allocation11], 4
      %s96 = int_to_ptr.vmem [resolvable:$true] %s95
      %101 = dma.hbm_to_vmem [thread:$0]  %s6, 32, %s96, [#allocation12], 16, 16, 1
    $region29: #{event_transformer_forward.1} parent=1 // pred_fallthru
      _
    // Predicated region
    $region30: #{event_transformer_forward.1} parent=1 // pred_check
      _
    $region31: #{event_transformer_forward.1} parent=1 // pred_check_branch
      %103 = sbr.rel (0) target = $region33
    $region32: #{event_transformer_forward.1} parent=1 // pred_region
      %s105 = ssub.s32 32, 32
      %106 = vsyncadd [#allocation12], %s105
      %s107 = sshll.u32 [#allocation13], 4
      %s108 = int_to_ptr.vmem [resolvable:$true] %s107
      %113 = dma.hbm_to_vmem [thread:$0]  %s7, 32, %s108, [#allocation12], 16, 16, 1
    $region33: #{event_transformer_forward.1} parent=1 // pred_fallthru
      _
    // Predicated region
    $region34: #{event_transformer_forward.1} parent=1 // pred_check
      _
    $region35: #{event_transformer_forward.1} parent=1 // pred_check_branch
      %115 = sbr.rel (0) target = $region37
    $region36: #{event_transformer_forward.1} parent=1 // pred_region
      %s117 = ssub.s32 32, 32
      %118 = vsyncadd [#allocation15], %s117
      %s119 = sshll.u32 [#allocation14], 4
      %s120 = int_to_ptr.vmem [resolvable:$true] %s119
      %125 = dma.hbm_to_vmem [thread:$0]  %s8, 32, %s120, [#allocation15], 16, 16, 1
    $region37: #{event_transformer_forward.1} parent=1 // pred_fallthru
      _
    // Predicated region
    $region38: #{event_transformer_forward.1} parent=1 // pred_check
      _
    $region39: #{event_transformer_forward.1} parent=1 // pred_check_branch
      %127 = sbr.rel (0) target = $region41
    $region40: #{event_transformer_forward.1} parent=1 // pred_region
      %s129 = ssub.s32 65536, 65536
      %130 = vsyncadd [#allocation15], %s129
      %s131 = sshll.u32 [#allocation16], 4
      %s132 = int_to_ptr.vmem [resolvable:$true] %s131
      %137 = dma.hbm_to_vmem [thread:$0]  %s9, 65536, %s132, [#allocation15], 2048, 2048, 128
    $region41: #{event_transformer_forward.1} parent=1 // pred_fallthru
      _
    // Predicated region
    $region42: #{event_transformer_forward.1} parent=1 // pred_check
      _
    $region43: #{event_transformer_forward.1} parent=1 // pred_check_branch
      %139 = sbr.rel (0) target = $region45
    $region44: #{event_transformer_forward.1} parent=1 // pred_region
      %s141 = ssub.s32 512, 512
      %142 = vsyncadd [#allocation18], %s141
      %s143 = sshll.u32 [#allocation17], 4
      %s144 = int_to_ptr.vmem [resolvable:$true] %s143
      %149 = dma.hbm_to_vmem [thread:$0]  %s10, 512, %s144, [#allocation18], 256, 256, 16
    $region45: #{event_transformer_forward.1} parent=1 // pred_fallthru
      _
    // Predicated region
    $region46: #{event_transformer_forward.1} parent=1 // pred_check
      _
    $region47: #{event_transformer_forward.1} parent=1 // pred_check_branch
      %151 = sbr.rel (0) target = $region49
    $region48: #{event_transformer_forward.1} parent=1 // pred_region
      %s153 = ssub.s32 65536, 65536
      %154 = vsyncadd [#allocation18], %s153
      %s155 = sshll.u32 [#allocation19], 4
      %s156 = int_to_ptr.vmem [resolvable:$true] %s155
      %161 = dma.hbm_to_vmem [thread:$0]  %s11, 65536, %s156, [#allocation18], 128, 128, 8
    $region49: #{event_transformer_forward.1} parent=1 // pred_fallthru
      _
    // Predicated region
    $region50: #{event_transformer_forward.1} parent=1 // pred_check
      _
    $region51: #{event_transformer_forward.1} parent=1 // pred_check_branch
      %163 = sbr.rel (0) target = $region53
    $region52: #{event_transformer_forward.1} parent=1 // pred_region
      %s165 = ssub.s32 32, 32
      %166 = vsyncadd [#allocation21], %s165
      %s167 = sshll.u32 [#allocation20], 4
      %s168 = int_to_ptr.vmem [resolvable:$true] %s167
      %173 = dma.hbm_to_vmem [thread:$0]  %s12, 32, %s168, [#allocation21], 16, 16, 1
    $region53: #{event_transformer_forward.1} parent=1 // pred_fallthru
      _
    // Predicated region
    $region54: #{event_transformer_forward.1} parent=1 // pred_check
      _
    $region55: #{event_transformer_forward.1} parent=1 // pred_check_branch
      %175 = sbr.rel (0) target = $region57
    $region56: #{event_transformer_forward.1} parent=1 // pred_region
      %s177 = ssub.s32 32, 32
      %178 = vsyncadd [#allocation21], %s177
      %s179 = sshll.u32 [#allocation22], 4
      %s180 = int_to_ptr.vmem [resolvable:$true] %s179
      %185 = dma.hbm_to_vmem [thread:$0]  %s13, 32, %s180, [#allocation21], 16, 16, 1
    $region57: #{event_transformer_forward.1} parent=1 // pred_fallthru
      _
    // Predicated region
    $region58: #{event_transformer_forward.1} parent=1 // pred_check
      _
    $region59: #{event_transformer_forward.1} parent=1 // pred_check_branch
      %187 = sbr.rel (0) target = $region61
    $region60: #{event_transformer_forward.1} parent=1 // pred_region
      %s189 = ssub.s32 32, 32
      %190 = vsyncadd [#allocation24], %s189
      %s191 = sshll.u32 [#allocation23], 4
      %s192 = int_to_ptr.vmem [resolvable:$true] %s191
      %197 = dma.hbm_to_vmem [thread:$0]  %s14, 32, %s192, [#allocation24], 16, 16, 1
    $region61: #{event_transformer_forward.1} parent=1 // pred_fallthru
      _
    // Predicated region
    $region62: #{event_transformer_forward.1} parent=1 // pred_check
      _
    $region63: #{event_transformer_forward.1} parent=1 // pred_check_branch
      %199 = sbr.rel (0) target = $region65
    $region64: #{event_transformer_forward.1} parent=1 // pred_region
      %s201 = ssub.s32 2048, 2048
      %202 = vsyncadd [#allocation24], %s201
      %s203 = sshll.u32 [#allocation25], 4
      %s204 = int_to_ptr.vmem [resolvable:$true] %s203
      %209 = dma.hbm_to_vmem [thread:$0]  %s15, 2048, %s204, [#allocation24], 128, 128, 8
    $region65: #{event_transformer_forward.1} parent=1 // pred_fallthru
      _
    // Predicated region
    $region66: #{event_transformer_forward.1} parent=1 // pred_check
      _
    $region67: #{event_transformer_forward.1} parent=1 // pred_check_branch
      %211 = sbr.rel (0) target = $region69
    $region68: #{event_transformer_forward.1} parent=1 // pred_region
      %s213 = ssub.s32 16, 16
      %214 = vsyncadd [#allocation27], %s213
      %s216 = sshll.u32 [#allocation26], 4
      %s217 = int_to_ptr.vmem [resolvable:$true] %s216
      %219 = dma.hbm_to_vmem [thread:$0]  %s16, 16, %s217, [#allocation27]
    $region69: #{event_transformer_forward.1} parent=1 // pred_fallthru
      _
    // Predicated region
    $region70: #{event_transformer_forward.1} parent=1 // pred_check
      _
    $region71: #{event_transformer_forward.1} parent=1 // pred_check_branch
      %221 = sbr.rel (0) target = $region73
    $region72: #{event_transformer_forward.1} parent=1 // pred_region
      %222 = dma.done [#allocation3], 128
    $region73: #{event_transformer_forward.1} parent=1 // pred_fallthru
      _
    // Predicated region
    $region74: #{event_transformer_forward.1} parent=1 // pred_check
      _
    $region75: #{event_transformer_forward.1} parent=1 // pred_check_branch
      %224 = sbr.rel (0) target = $region77
    $region76: #{event_transformer_forward.1} parent=1 // pred_region
      %225 = dma.done [#allocation6], 16
    $region77: #{event_transformer_forward.1} parent=1 // pred_fallthru
      _
    // Predicated region
    $region78: #{event_transformer_forward.1} parent=1 // pred_check
      _
    $region79: #{event_transformer_forward.1} parent=1 // pred_check_branch
      %227 = sbr.rel (0) target = $region81
    $region80: #{event_transformer_forward.1} parent=1 // pred_region
      %228 = dma.done [#allocation6], 12288
    $region81: #{event_transformer_forward.1} parent=1 // pred_fallthru
      _
    // Predicated region
    $region82: #{event_transformer_forward.1} parent=1 // pred_check
      _
    $region83: #{event_transformer_forward.1} parent=1 // pred_check_branch
      %230 = sbr.rel (0) target = $region85
    $region84: #{event_transformer_forward.1} parent=1 // pred_region
      %231 = dma.done [#allocation9], 96
    $region85: #{event_transformer_forward.1} parent=1 // pred_fallthru
      _
    // Predicated region
    $region86: #{event_transformer_forward.1} parent=1 // pred_check
      _
    $region87: #{event_transformer_forward.1} parent=1 // pred_check_branch
      %233 = sbr.rel (0) target = $region89
    $region88: #{event_transformer_forward.1} parent=1 // pred_region
      %234 = dma.done [#allocation9], 4096
    $region89: #{event_transformer_forward.1} parent=1 // pred_fallthru
      _
    // Predicated region
    $region90: #{event_transformer_forward.1} parent=1 // pred_check
      _
    $region91: #{event_transformer_forward.1} parent=1 // pred_check_branch
      %236 = sbr.rel (0) target = $region93
    $region92: #{event_transformer_forward.1} parent=1 // pred_region
      %237 = dma.done [#allocation12], 32
    $region93: #{event_transformer_forward.1} parent=1 // pred_fallthru
      _
    // Predicated region
    $region94: #{event_transformer_forward.1} parent=1 // pred_check
      _
    $region95: #{event_transformer_forward.1} parent=1 // pred_check_branch
      %239 = sbr.rel (0) target = $region97
    $region96: #{event_transformer_forward.1} parent=1 // pred_region
      %240 = dma.done [#allocation12], 32
    $region97: #{event_transformer_forward.1} parent=1 // pred_fallthru
      _
    // Predicated region
    $region98: #{event_transformer_forward.1} parent=1 // pred_check
      _
    $region99: #{event_transformer_forward.1} parent=1 // pred_check_branch
      %242 = sbr.rel (0) target = $region101
    $region100: #{event_transformer_forward.1} parent=1 // pred_region
      %243 = dma.done [#allocation15], 32
    $region101: #{event_transformer_forward.1} parent=1 // pred_fallthru
      _
    // Predicated region
    $region102: #{event_transformer_forward.1} parent=1 // pred_check
      _
    $region103: #{event_transformer_forward.1} parent=1 // pred_check_branch
      %245 = sbr.rel (0) target = $region105
    $region104: #{event_transformer_forward.1} parent=1 // pred_region
      %246 = dma.done [#allocation15], 65536
    $region105: #{event_transformer_forward.1} parent=1 // pred_fallthru
      _
    // Predicated region
    $region106: #{event_transformer_forward.1} parent=1 // pred_check
      _
    $region107: #{event_transformer_forward.1} parent=1 // pred_check_branch
      %248 = sbr.rel (0) target = $region109
    $region108: #{event_transformer_forward.1} parent=1 // pred_region
      %249 = dma.done [#allocation18], 512
    $region109: #{event_transformer_forward.1} parent=1 // pred_fallthru
      _
    // Predicated region
    $region110: #{event_transformer_forward.1} parent=1 // pred_check
      _
    $region111: #{event_transformer_forward.1} parent=1 // pred_check_branch
      %251 = sbr.rel (0) target = $region113
    $region112: #{event_transformer_forward.1} parent=1 // pred_region
      %252 = dma.done [#allocation18], 65536
    $region113: #{event_transformer_forward.1} parent=1 // pred_fallthru
      _
    // Predicated region
    $region114: #{event_transformer_forward.1} parent=1 // pred_check
      _
    $region115: #{event_transformer_forward.1} parent=1 // pred_check_branch
      %254 = sbr.rel (0) target = $region117
    $region116: #{event_transformer_forward.1} parent=1 // pred_region
      %255 = dma.done [#allocation21], 32
    $region117: #{event_transformer_forward.1} parent=1 // pred_fallthru
      _
    // Predicated region
    $region118: #{event_transformer_forward.1} parent=1 // pred_check
      _
    $region119: #{event_transformer_forward.1} parent=1 // pred_check_branch
      %257 = sbr.rel (0) target = $region121
    $region120: #{event_transformer_forward.1} parent=1 // pred_region
      %258 = dma.done [#allocation21], 32
    $region121: #{event_transformer_forward.1} parent=1 // pred_fallthru
      _
    // Predicated region
    $region122: #{event_transformer_forward.1} parent=1 // pred_check
      _
    $region123: #{event_transformer_forward.1} parent=1 // pred_check_branch
      %260 = sbr.rel (0) target = $region125
    $region124: #{event_transformer_forward.1} parent=1 // pred_region
      %261 = dma.done [#allocation24], 32
    $region125: #{event_transformer_forward.1} parent=1 // pred_fallthru
      _
    // Predicated region
    $region126: #{event_transformer_forward.1} parent=1 // pred_check
      _
    $region127: #{event_transformer_forward.1} parent=1 // pred_check_branch
      %263 = sbr.rel (0) target = $region129
    $region128: #{event_transformer_forward.1} parent=1 // pred_region
      %264 = dma.done [#allocation24], 2048
    $region129: #{event_transformer_forward.1} parent=1 // pred_fallthru
      _
    // Predicated region
    $region130: #{event_transformer_forward.1} parent=1 // pred_check
      _
    $region131: #{event_transformer_forward.1} parent=1 // pred_check_branch
      %266 = sbr.rel (0) target = $region133
    $region132: #{event_transformer_forward.1} parent=1 // pred_region
      %267 = dma.done [#allocation27], 16
    $region133: #{event_transformer_forward.1} parent=1 // pred_fallthru
      _
    %v268 = vld [vmem:[%s0] sm:$0xff]
    %v269 = vld [vmem:[%s0 + $0x8] sm:$0xff]
    %v270 = vld [vmem:[#allocation2] sm:$0xff]
    %v271 = vld [vmem:[#allocation5] sm:$0x1]
    %v273 = vlaneseq
    %v274 = vshrl.u32 %v273, 7
    %v275 = vsub.s32 0, %v274
    %v276 = vrot.slane %v271, %v275
    %vm278 = vcmask 64512
    %v280 = vsel %vm278, %v268, 0
    %v283 = vsel %vm278, %v269, 0
    %285 = vmatprep.subr.mxu0 0.0
    %286 = vmatpush1.msra.mxu0 %v270
    %287 = vmatprep.subr.mxu0 0.0
    %288 = vmatpush1.msra.mxu0 0.0
    %289 = vmatprep.subr.mxu0 0.0
    %290 = vmatpush1.msra.mxu0 0.0
    %291 = vmatprep.subr.mxu0 0.0
    %292 = vmatpush1.msra.mxu0 0.0
    %293 = vmatprep.subr.mxu0 0.0
    %294 = vmatpush1.msra.mxu0 0.0
    %295 = vmatprep.subr.mxu0 0.0
    %296 = vmatpush1.msra.mxu0 0.0
    %297 = vmatprep.subr.mxu0 0.0
    %298 = vmatpush1.msra.mxu0 0.0
    %299 = vmatprep.subr.mxu0 0.0
    %300 = vmatpush1.msra.mxu0 0.0
    %301 = vmatprep.subr.mxu0 0.0
    %302 = vmatpush1.msra.mxu0 0.0
    %303 = vmatprep.subr.mxu0 0.0
    %304 = vmatpush1.msra.mxu0 0.0
    %305 = vmatprep.subr.mxu0 0.0
    %306 = vmatpush1.msra.mxu0 0.0
    %307 = vmatprep.subr.mxu0 0.0
    %308 = vmatpush1.msra.mxu0 0.0
    %309 = vmatprep.subr.mxu0 0.0
    %310 = vmatpush1.msra.mxu0 0.0
    %311 = vmatprep.subr.mxu0 0.0
    %312 = vmatpush1.msra.mxu0 0.0
    %313 = vmatprep.subr.mxu0 0.0
    %314 = vmatpush1.msra.mxu0 0.0
    %315 = vmatprep.subr.mxu0 0.0
    %316 = vmatpush1.msra.mxu0 0.0
    %317 = vmatprep.subr.mxu0 0.0
    %318 = vmatpush1.msra.mxu0 0.0
    %319 = vmatprep.subr.mxu0 0.0
    %320 = vmatpush1.msra.mxu0 0.0
    %321 = vmatprep.subr.mxu0 0.0
    %322 = vmatpush1.msra.mxu0 0.0
    %323 = vmatprep.subr.mxu0 0.0
    %324 = vmatpush1.msra.mxu0 0.0
    %325 = vmatprep.subr.mxu0 0.0
    %326 = vmatpush1.msra.mxu0 0.0
    %327 = vmatprep.subr.mxu0 0.0
    %328 = vmatpush1.msra.mxu0 0.0
    %329 = vmatprep.subr.mxu0 0.0
    %330 = vmatpush1.msra.mxu0 0.0
    %331 = vmatprep.subr.mxu0 0.0
    %332 = vmatpush1.msra.mxu0 0.0
    %333 = vmatprep.subr.mxu0 0.0
    %334 = vmatpush1.msra.mxu0 0.0
    %335 = vmatprep.subr.mxu0 0.0
    %336 = vmatpush1.msra.mxu0 0.0
    %337 = vmatprep.subr.mxu0 0.0
    %338 = vmatpush1.msra.mxu0 0.0
    %339 = vmatprep.subr.mxu0 0.0
    %340 = vmatpush1.msra.mxu0 0.0
    %341 = vmatprep.subr.mxu0 0.0
    %342 = vmatpush1.msra.mxu0 0.0
    %343 = vmatprep.subr.mxu0 0.0
    %344 = vmatpush1.msra.mxu0 0.0
    %345 = vmatprep.subr.mxu0 0.0
    %346 = vmatpush1.msra.mxu0 0.0
    %347 = vmatprep.subr.mxu0 0.0
    %348 = vmatpush1.msra.mxu0 0.0
    %349 = vmatprep.mubr.f32.mxu0 0.0
    %350 = vmatmul.mubr.f32.gmra.mrb[0].mxu0 %v280
    %v351 = vpop.f32.mrb[0].mxu0
    %v352 = vadd.f32 %v276, %v351
    %v353 = vpop.f32.mrb[0].mxu0
    %354 = vmatprep.mubr.f32.mxu0 0.0
    %355 = vmatmul.mubr.f32.gmra.mrb[0].mxu0 %v283
    %v356 = vpop.f32.mrb[0].mxu0
    %v357 = vadd.f32 %v276, %v356
    %v358 = vpop.f32.mrb[0].mxu0
    %359 = vdwg.mxu0
    %v360 = vld [vmem:[#allocation7] sm:$0xff]
    %v361 = vld [vmem:[#allocation7 + $0x8] sm:$0xff]
    %v362 = vld [vmem:[#allocation7 + $0x10] sm:$0xff]
    %v363 = vld [vmem:[#allocation7 + $0x18] sm:$0xff]
    %v364 = vld [vmem:[#allocation7 + $0x20] sm:$0xff]
    %v365 = vld [vmem:[#allocation7 + $0x28] sm:$0xff]
    %v366 = vld [vmem:[#allocation7 + $0x30] sm:$0xff]
    %v367 = vld [vmem:[#allocation7 + $0x38] sm:$0xff]
    %v368 = vld [vmem:[#allocation7 + $0x40] sm:$0xff]
    %v369 = vld [vmem:[#allocation7 + $0x48] sm:$0xff]
    %v370 = vld [vmem:[#allocation7 + $0x50] sm:$0xff]
    %v371 = vld [vmem:[#allocation7 + $0x58] sm:$0xff]
    %v372 = vld [vmem:[#allocation7 + $0x60] sm:$0xff]
    %v373 = vld [vmem:[#allocation7 + $0x68] sm:$0xff]
    %v374 = vld [vmem:[#allocation7 + $0x70] sm:$0xff]
    %v375 = vld [vmem:[#allocation7 + $0x78] sm:$0xff]
    %v376 = vld [vmem:[#allocation7 + $0x80] sm:$0xff]
    %v377 = vld [vmem:[#allocation7 + $0x88] sm:$0xff]
    %v378 = vld [vmem:[#allocation7 + $0x90] sm:$0xff]
    %v379 = vld [vmem:[#allocation7 + $0x98] sm:$0xff]
    %v380 = vld [vmem:[#allocation7 + $0xa0] sm:$0xff]
    %v381 = vld [vmem:[#allocation7 + $0xa8] sm:$0xff]
    %v382 = vld [vmem:[#allocation7 + $0xb0] sm:$0xff]
    %v383 = vld [vmem:[#allocation7 + $0xb8] sm:$0xff]
    %v384 = vld [vmem:[#allocation7 + $0xc0] sm:$0xff]
    %v385 = vld [vmem:[#allocation7 + $0xc8] sm:$0xff]
    %v386 = vld [vmem:[#allocation7 + $0xd0] sm:$0xff]
    %v387 = vld [vmem:[#allocation7 + $0xd8] sm:$0xff]
    %v388 = vld [vmem:[#allocation7 + $0xe0] sm:$0xff]
    %v389 = vld [vmem:[#allocation7 + $0xe8] sm:$0xff]
    %v390 = vld [vmem:[#allocation7 + $0xf0] sm:$0xff]
    %v391 = vld [vmem:[#allocation7 + $0xf8] sm:$0xff]
    %v392 = vld [vmem:[#allocation7 + $0x100] sm:$0xff]
    %v393 = vld [vmem:[#allocation7 + $0x108] sm:$0xff]
    %v394 = vld [vmem:[#allocation7 + $0x110] sm:$0xff]
    %v395 = vld [vmem:[#allocation7 + $0x118] sm:$0xff]
    %v396 = vld [vmem:[#allocation7 + $0x120] sm:$0xff]
    %v397 = vld [vmem:[#allocation7 + $0x128] sm:$0xff]
    %v398 = vld [vmem:[#allocation7 + $0x130] sm:$0xff]
    %v399 = vld [vmem:[#allocation7 + $0x138] sm:$0xff]
    %v400 = vld [vmem:[#allocation7 + $0x140] sm:$0xff]
    %v401 = vld [vmem:[#allocation7 + $0x148] sm:$0xff]
    %v402 = vld [vmem:[#allocation7 + $0x150] sm:$0xff]
    %v403 = vld [vmem:[#allocation7 + $0x158] sm:$0xff]
    %v404 = vld [vmem:[#allocation7 + $0x160] sm:$0xff]
    %v405 = vld [vmem:[#allocation7 + $0x168] sm:$0xff]
    %v406 = vld [vmem:[#allocation7 + $0x170] sm:$0xff]
    %v407 = vld [vmem:[#allocation7 + $0x178] sm:$0xff]
    %v408 = vld [vmem:[#allocation8] sm:$0x7]
    %v410 = vlaneseq
    %v411 = vshrl.u32 %v410, 7
    %v412 = vsub.s32 0, %v411
    %v413 = vrot.slane %v408, %v412
    %v414 = vlaneseq
    %v415 = vshrl.u32 %v414, 7
    %v416 = vsub.s32 1, %v415
    %v417 = vrot.slane %v408, %v416
    %v418 = vlaneseq
    %v419 = vshrl.u32 %v418, 7
    %v420 = vsub.s32 2, %v419
    %v421 = vrot.slane %v408, %v420
    %425 = vmatprep.subr.mxu0 %v361
    %426 = vmatpush1.msra.mxu0 %v360
    %427 = vmatprep.subr.mxu0 %v364
    %428 = vmatpush1.msra.mxu0 %v363
    %429 = vmatprep.subr.mxu0 %v367
    %430 = vmatpush1.msra.mxu0 %v366
    %431 = vmatprep.subr.mxu0 %v370
    %432 = vmatpush1.msra.mxu0 %v369
    %433 = vmatprep.subr.mxu0 %v373
    %434 = vmatpush1.msra.mxu0 %v372
    %435 = vmatprep.subr.mxu0 %v376
    %436 = vmatpush1.msra.mxu0 %v375
    %437 = vmatprep.subr.mxu0 %v379
    %438 = vmatpush1.msra.mxu0 %v378
    %439 = vmatprep.subr.mxu0 %v382
    %440 = vmatpush1.msra.mxu0 %v381
    %441 = vmatprep.subr.mxu0 %v385
    %442 = vmatpush1.msra.mxu0 %v384
    %443 = vmatprep.subr.mxu0 %v388
    %444 = vmatpush1.msra.mxu0 %v387
    %445 = vmatprep.subr.mxu0 %v391
    %446 = vmatpush1.msra.mxu0 %v390
    %447 = vmatprep.subr.mxu0 %v394
    %448 = vmatpush1.msra.mxu0 %v393
    %449 = vmatprep.subr.mxu0 %v397
    %450 = vmatpush1.msra.mxu0 %v396
    %451 = vmatprep.subr.mxu0 %v400
    %452 = vmatpush1.msra.mxu0 %v399
    %453 = vmatprep.subr.mxu0 %v403
    %454 = vmatpush1.msra.mxu0 %v402
    %455 = vmatprep.subr.mxu0 %v406
    %456 = vmatpush1.msra.mxu0 %v405
    %457 = vmatprep.subr.mxu0 0.0
    %458 = vmatpush1.msra.mxu0 0.0
    %459 = vmatprep.subr.mxu0 0.0
    %460 = vmatpush1.msra.mxu0 0.0
    %461 = vmatprep.subr.mxu0 0.0
    %462 = vmatpush1.msra.mxu0 0.0
    %463 = vmatprep.subr.mxu0 0.0
    %464 = vmatpush1.msra.mxu0 0.0
    %465 = vmatprep.subr.mxu0 0.0
    %466 = vmatpush1.msra.mxu0 0.0
    %467 = vmatprep.subr.mxu0 0.0
    %468 = vmatpush1.msra.mxu0 0.0
    %469 = vmatprep.subr.mxu0 0.0
    %470 = vmatpush1.msra.mxu0 0.0
    %471 = vmatprep.subr.mxu0 0.0
    %472 = vmatpush1.msra.mxu0 0.0
    %473 = vmatprep.subr.mxu0 0.0
    %474 = vmatpush1.msra.mxu0 0.0
    %475 = vmatprep.subr.mxu0 0.0
    %476 = vmatpush1.msra.mxu0 0.0
    %477 = vmatprep.subr.mxu0 0.0
    %478 = vmatpush1.msra.mxu0 0.0
    %479 = vmatprep.subr.mxu0 0.0
    %480 = vmatpush1.msra.mxu0 0.0
    %481 = vmatprep.subr.mxu0 0.0
    %482 = vmatpush1.msra.mxu0 0.0
    %483 = vmatprep.subr.mxu0 0.0
    %484 = vmatpush1.msra.mxu0 0.0
    %485 = vmatprep.subr.mxu0 0.0
    %486 = vmatpush1.msra.mxu0 0.0
    %487 = vmatprep.subr.mxu0 0.0
    %488 = vmatpush1.msra.mxu0 0.0
    %489 = vmatprep.mubr.f32.mxu0 0.0
    %490 = vmatmul.mubr.f32.gmra.mrb[0].mxu0 %v352
    %v491 = vpop.f32.mrb[0].mxu0
    %v492 = vadd.f32 %v413, %v491
    %v493 = vpop.f32.mrb[0].mxu0
    %v494 = vadd.f32 %v417, %v493
    %495 = vmatprep.mubr.f32.mxu0 0.0
    %496 = vmatmul.mubr.f32.gmra.mrb[0].mxu0 %v357
    %v497 = vpop.f32.mrb[0].mxu0
    %v498 = vadd.f32 %v413, %v497
    %v499 = vpop.f32.mrb[0].mxu0
    %v500 = vadd.f32 %v417, %v499
    %501 = vdwg.mxu0
    %502 = vmatprep.subr.mxu0 0.0
    %503 = vmatpush1.msra.mxu0 %v362
    %504 = vmatprep.subr.mxu0 0.0
    %505 = vmatpush1.msra.mxu0 %v365
    %506 = vmatprep.subr.mxu0 0.0
    %507 = vmatpush1.msra.mxu0 %v368
    %508 = vmatprep.subr.mxu0 0.0
    %509 = vmatpush1.msra.mxu0 %v371
    %510 = vmatprep.subr.mxu0 0.0
    %511 = vmatpush1.msra.mxu0 %v374
    %512 = vmatprep.subr.mxu0 0.0
    %513 = vmatpush1.msra.mxu0 %v377
    %514 = vmatprep.subr.mxu0 0.0
    %515 = vmatpush1.msra.mxu0 %v380
    %516 = vmatprep.subr.mxu0 0.0
    %517 = vmatpush1.msra.mxu0 %v383
    %518 = vmatprep.subr.mxu0 0.0
    %519 = vmatpush1.msra.mxu0 %v386
    %520 = vmatprep.subr.mxu0 0.0
    %521 = vmatpush1.msra.mxu0 %v389
    %522 = vmatprep.subr.mxu0 0.0
    %523 = vmatpush1.msra.mxu0 %v392
    %524 = vmatprep.subr.mxu0 0.0
    %525 = vmatpush1.msra.mxu0 %v395
    %526 = vmatprep.subr.mxu0 0.0
    %527 = vmatpush1.msra.mxu0 %v398
    %528 = vmatprep.subr.mxu0 0.0
    %529 = vmatpush1.msra.mxu0 %v401
    %530 = vmatprep.subr.mxu0 0.0
    %531 = vmatpush1.msra.mxu0 %v404
    %532 = vmatprep.subr.mxu0 0.0
    %533 = vmatpush1.msra.mxu0 %v407
    %534 = vmatprep.subr.mxu0 0.0
    %535 = vmatpush1.msra.mxu0 0.0
    %536 = vmatprep.subr.mxu0 0.0
    %537 = vmatpush1.msra.mxu0 0.0
    %538 = vmatprep.subr.mxu0 0.0
    %539 = vmatpush1.msra.mxu0 0.0
    %540 = vmatprep.subr.mxu0 0.0
    %541 = vmatpush1.msra.mxu0 0.0
    %542 = vmatprep.subr.mxu0 0.0
    %543 = vmatpush1.msra.mxu0 0.0
    %544 = vmatprep.subr.mxu0 0.0
    %545 = vmatpush1.msra.mxu0 0.0
    %546 = vmatprep.subr.mxu0 0.0
    %547 = vmatpush1.msra.mxu0 0.0
    %548 = vmatprep.subr.mxu0 0.0
    %549 = vmatpush1.msra.mxu0 0.0
    %550 = vmatprep.subr.mxu0 0.0
    %551 = vmatpush1.msra.mxu0 0.0
    %552 = vmatprep.subr.mxu0 0.0
    %553 = vmatpush1.msra.mxu0 0.0
    %554 = vmatprep.subr.mxu0 0.0
    %555 = vmatpush1.msra.mxu0 0.0
    %556 = vmatprep.subr.mxu0 0.0
    %557 = vmatpush1.msra.mxu0 0.0
    %558 = vmatprep.subr.mxu0 0.0
    %559 = vmatpush1.msra.mxu0 0.0
    %560 = vmatprep.subr.mxu0 0.0
    %561 = vmatpush1.msra.mxu0 0.0
    %562 = vmatprep.subr.mxu0 0.0
    %563 = vmatpush1.msra.mxu0 0.0
    %564 = vmatprep.subr.mxu0 0.0
    %565 = vmatpush1.msra.mxu0 0.0
    %566 = vmatprep.mubr.f32.mxu0 0.0
    %567 = vmatmul.mubr.f32.gmra.mrb[0].mxu0 %v352
    %v568 = vpop.f32.mrb[0].mxu0
    %v569 = vadd.f32 %v421, %v568
    %v570 = vpop.f32.mrb[0].mxu0
    %571 = vmatprep.mubr.f32.mxu0 0.0
    %572 = vmatmul.mubr.f32.gmra.mrb[0].mxu0 %v357
    %v573 = vpop.f32.mrb[0].mxu0
    %v574 = vadd.f32 %v421, %v573
    %v575 = vpop.f32.mrb[0].mxu0
    %576 = vdwg.mxu0
    %v577 = vld [vmem:[#allocation10] sm:$0xff]
    %v578 = vld [vmem:[#allocation10 + $0x8] sm:$0xff]
    %v579 = vld [vmem:[#allocation10 + $0x10] sm:$0xff]
    %v580 = vld [vmem:[#allocation10 + $0x18] sm:$0xff]
    %v581 = vld [vmem:[#allocation10 + $0x20] sm:$0xff]
    %v582 = vld [vmem:[#allocation10 + $0x28] sm:$0xff]
    %v583 = vld [vmem:[#allocation10 + $0x30] sm:$0xff]
    %v584 = vld [vmem:[#allocation10 + $0x38] sm:$0xff]
    %v585 = vld [vmem:[#allocation10 + $0x40] sm:$0xff]
    %v586 = vld [vmem:[#allocation10 + $0x48] sm:$0xff]
    %v587 = vld [vmem:[#allocation10 + $0x50] sm:$0xff]
    %v588 = vld [vmem:[#allocation10 + $0x58] sm:$0xff]
    %v589 = vld [vmem:[#allocation10 + $0x60] sm:$0xff]
    %v590 = vld [vmem:[#allocation10 + $0x68] sm:$0xff]
    %v591 = vld [vmem:[#allocation10 + $0x70] sm:$0xff]
    %v592 = vld [vmem:[#allocation10 + $0x78] sm:$0xff]
    %vm593 = vcmask 261120
    %v595 = vsel %vm593, %v492, 0
    %v598 = vsel %vm593, %v494, 0
    %600 = vmatprep.subr.mxu0 0.0
    %601 = vmatpush1.xpose.msra.mxu0 %v598
    %602 = vmatprep.subr.mxu0 0.0
    %603 = vmatpush1.xpose.msra.mxu0 0.0
    %604 = vmatprep.subr.mxu0 0.0
    %605 = vmatpush1.xpose.msra.mxu0 0.0
    %606 = vmatprep.subr.mxu0 0.0
    %607 = vmatpush1.xpose.msra.mxu0 0.0
    %608 = vmatprep.subr.mxu0 0.0
    %609 = vmatpush1.xpose.msra.mxu0 0.0
    %610 = vmatprep.subr.mxu0 0.0
    %611 = vmatpush1.xpose.msra.mxu0 0.0
    %612 = vmatprep.subr.mxu0 0.0
    %613 = vmatpush1.xpose.msra.mxu0 0.0
    %614 = vmatprep.subr.mxu0 0.0
    %615 = vmatpush1.xpose.msra.mxu0 0.0
    %616 = vmatprep.subr.mxu0 0.0
    %617 = vmatpush1.xpose.msra.mxu0 0.0
    %618 = vmatprep.subr.mxu0 0.0
    %619 = vmatpush1.xpose.msra.mxu0 0.0
    %620 = vmatprep.subr.mxu0 0.0
    %621 = vmatpush1.xpose.msra.mxu0 0.0
    %622 = vmatprep.subr.mxu0 0.0
    %623 = vmatpush1.xpose.msra.mxu0 0.0
    %624 = vmatprep.subr.mxu0 0.0
    %625 = vmatpush1.xpose.msra.mxu0 0.0
    %626 = vmatprep.subr.mxu0 0.0
    %627 = vmatpush1.xpose.msra.mxu0 0.0
    %628 = vmatprep.subr.mxu0 0.0
    %629 = vmatpush1.xpose.msra.mxu0 0.0
    %630 = vmatprep.subr.mxu0 0.0
    %631 = vmatpush1.xpose.msra.mxu0 0.0
    %632 = vmatprep.subr.mxu0 0.0
    %633 = vmatpush1.xpose.msra.mxu0 0.0
    %634 = vmatprep.subr.mxu0 0.0
    %635 = vmatpush1.xpose.msra.mxu0 0.0
    %636 = vmatprep.subr.mxu0 0.0
    %637 = vmatpush1.xpose.msra.mxu0 0.0
    %638 = vmatprep.subr.mxu0 0.0
    %639 = vmatpush1.xpose.msra.mxu0 0.0
    %640 = vmatprep.subr.mxu0 0.0
    %641 = vmatpush1.xpose.msra.mxu0 0.0
    %642 = vmatprep.subr.mxu0 0.0
    %643 = vmatpush1.xpose.msra.mxu0 0.0
    %644 = vmatprep.subr.mxu0 0.0
    %645 = vmatpush1.xpose.msra.mxu0 0.0
    %646 = vmatprep.subr.mxu0 0.0
    %647 = vmatpush1.xpose.msra.mxu0 0.0
    %648 = vmatprep.subr.mxu0 0.0
    %649 = vmatpush1.xpose.msra.mxu0 0.0
    %650 = vmatprep.subr.mxu0 0.0
    %651 = vmatpush1.xpose.msra.mxu0 0.0
    %652 = vmatprep.subr.mxu0 0.0
    %653 = vmatpush1.xpose.msra.mxu0 0.0
    %654 = vmatprep.subr.mxu0 0.0
    %655 = vmatpush1.xpose.msra.mxu0 0.0
    %656 = vmatprep.subr.mxu0 0.0
    %657 = vmatpush1.xpose.msra.mxu0 0.0
    %658 = vmatprep.subr.mxu0 0.0
    %659 = vmatpush1.xpose.msra.mxu0 0.0
    %660 = vmatprep.subr.mxu0 0.0
    %661 = vmatpush1.xpose.msra.mxu0 0.0
    %662 = vmatprep.subr.mxu0 0.0
    %663 = vmatpush1.xpose.msra.mxu0 0.0
    %664 = vmatprep.mubr.f32.mxu0 0.0
    %665 = vmatmul.mubr.f32.gmra.mrb[0].mxu0 %v595
    %v666 = vpop.f32.mrb[0].mxu0
    %v667 = vadd.f32 0.0, %v666
    %v668 = vpop.f32.mrb[0].mxu0
    %669 = vdwg.mxu0
    %v671 = vsel %vm593, %v498, 0
    %v674 = vsel %vm593, %v500, 0
    %676 = vmatprep.subr.mxu0 0.0
    %677 = vmatpush1.xpose.msra.mxu0 %v674
    %678 = vmatprep.subr.mxu0 0.0
    %679 = vmatpush1.xpose.msra.mxu0 0.0
    %680 = vmatprep.subr.mxu0 0.0
    %681 = vmatpush1.xpose.msra.mxu0 0.0
    %682 = vmatprep.subr.mxu0 0.0
    %683 = vmatpush1.xpose.msra.mxu0 0.0
    %684 = vmatprep.subr.mxu0 0.0
    %685 = vmatpush1.xpose.msra.mxu0 0.0
    %686 = vmatprep.subr.mxu0 0.0
    %687 = vmatpush1.xpose.msra.mxu0 0.0
    %688 = vmatprep.subr.mxu0 0.0
    %689 = vmatpush1.xpose.msra.mxu0 0.0
    %690 = vmatprep.subr.mxu0 0.0
    %691 = vmatpush1.xpose.msra.mxu0 0.0
    %692 = vmatprep.subr.mxu0 0.0
    %693 = vmatpush1.xpose.msra.mxu0 0.0
    %694 = vmatprep.subr.mxu0 0.0
    %695 = vmatpush1.xpose.msra.mxu0 0.0
    %696 = vmatprep.subr.mxu0 0.0
    %697 = vmatpush1.xpose.msra.mxu0 0.0
    %698 = vmatprep.subr.mxu0 0.0
    %699 = vmatpush1.xpose.msra.mxu0 0.0
    %700 = vmatprep.subr.mxu0 0.0
    %701 = vmatpush1.xpose.msra.mxu0 0.0
    %702 = vmatprep.subr.mxu0 0.0
    %703 = vmatpush1.xpose.msra.mxu0 0.0
    %704 = vmatprep.subr.mxu0 0.0
    %705 = vmatpush1.xpose.msra.mxu0 0.0
    %706 = vmatprep.subr.mxu0 0.0
    %707 = vmatpush1.xpose.msra.mxu0 0.0
    %708 = vmatprep.subr.mxu0 0.0
    %709 = vmatpush1.xpose.msra.mxu0 0.0
    %710 = vmatprep.subr.mxu0 0.0
    %711 = vmatpush1.xpose.msra.mxu0 0.0
    %712 = vmatprep.subr.mxu0 0.0
    %713 = vmatpush1.xpose.msra.mxu0 0.0
    %714 = vmatprep.subr.mxu0 0.0
    %715 = vmatpush1.xpose.msra.mxu0 0.0
    %716 = vmatprep.subr.mxu0 0.0
    %717 = vmatpush1.xpose.msra.mxu0 0.0
    %718 = vmatprep.subr.mxu0 0.0
    %719 = vmatpush1.xpose.msra.mxu0 0.0
    %720 = vmatprep.subr.mxu0 0.0
    %721 = vmatpush1.xpose.msra.mxu0 0.0
    %722 = vmatprep.subr.mxu0 0.0
    %723 = vmatpush1.xpose.msra.mxu0 0.0
    %724 = vmatprep.subr.mxu0 0.0
    %725 = vmatpush1.xpose.msra.mxu0 0.0
    %726 = vmatprep.subr.mxu0 0.0
    %727 = vmatpush1.xpose.msra.mxu0 0.0
    %728 = vmatprep.subr.mxu0 0.0
    %729 = vmatpush1.xpose.msra.mxu0 0.0
    %730 = vmatprep.subr.mxu0 0.0
    %731 = vmatpush1.xpose.msra.mxu0 0.0
    %732 = vmatprep.subr.mxu0 0.0
    %733 = vmatpush1.xpose.msra.mxu0 0.0
    %734 = vmatprep.subr.mxu0 0.0
    %735 = vmatpush1.xpose.msra.mxu0 0.0
    %736 = vmatprep.subr.mxu0 0.0
    %737 = vmatpush1.xpose.msra.mxu0 0.0
    %738 = vmatprep.subr.mxu0 0.0
    %739 = vmatpush1.xpose.msra.mxu0 0.0
    %740 = vmatprep.mubr.f32.mxu0 0.0
    %741 = vmatmul.mubr.f32.gmra.mrb[0].mxu0 %v671
    %v742 = vpop.f32.mrb[0].mxu0
    %v743 = vadd.f32 0.0, %v742
    %v744 = vpop.f32.mrb[0].mxu0
    %745 = vdwg.mxu0
    %v746 = vmul.f32 %v667, 0.17677669
    %v747 = vmul.f32 %v743, 0.17677669
    %v748 = vsel %vm278, %v746, -inf
    %749 = vmax.xlane.f32.xlu0 %v748
    %v750 = vpop.xlane.xlu0 %749
    %v751 = vsel %vm278, %v747, -inf
    %752 = vmax.xlane.f32.xlu0 %v751
    %v753 = vpop.xlane.xlu0 %752
    %v754 = vsub.f32 %v746, %v750
    %v755 = vsub.f32 %v747, %v753
    %v756 = vmul.f32 %v754, 1.442695
    %v757 = vpow.pop %v756
    %v758 = vmul.f32 %v755, 1.442695
    %v759 = vpow.pop %v758
    %v760 = vsel %vm278, %v757, 0.0
    %761 = vadd.xlane.f32.xlu0 %v760
    %v762 = vpop.xlane.xlu0 %761
    %v763 = vsel %vm278, %v759, 0.0
    %764 = vadd.xlane.f32.xlu0 %v763
    %v765 = vpop.xlane.xlu0 %764
    %v766 = vrcp.pop %v762
    %v767 = vmul.f32 %v757, %v766
    %v768 = vrcp.pop %v765
    %v769 = vmul.f32 %v759, %v768
    %v771 = vsel %vm278, %v767, 0
    %773 = vmatprep.subr.mxu0 0.0
    %774 = vmatpush1.msra.mxu0 %v569
    %775 = vmatprep.subr.mxu0 0.0
    %776 = vmatpush1.msra.mxu0 0.0
    %777 = vmatprep.subr.mxu0 0.0
    %778 = vmatpush1.msra.mxu0 0.0
    %779 = vmatprep.subr.mxu0 0.0
    %780 = vmatpush1.msra.mxu0 0.0
    %781 = vmatprep.subr.mxu0 0.0
    %782 = vmatpush1.msra.mxu0 0.0
    %783 = vmatprep.subr.mxu0 0.0
    %784 = vmatpush1.msra.mxu0 0.0
    %785 = vmatprep.subr.mxu0 0.0
    %786 = vmatpush1.msra.mxu0 0.0
    %787 = vmatprep.subr.mxu0 0.0
    %788 = vmatpush1.msra.mxu0 0.0
    %789 = vmatprep.subr.mxu0 0.0
    %790 = vmatpush1.msra.mxu0 0.0
    %791 = vmatprep.subr.mxu0 0.0
    %792 = vmatpush1.msra.mxu0 0.0
    %793 = vmatprep.subr.mxu0 0.0
    %794 = vmatpush1.msra.mxu0 0.0
    %795 = vmatprep.subr.mxu0 0.0
    %796 = vmatpush1.msra.mxu0 0.0
    %797 = vmatprep.subr.mxu0 0.0
    %798 = vmatpush1.msra.mxu0 0.0
    %799 = vmatprep.subr.mxu0 0.0
    %800 = vmatpush1.msra.mxu0 0.0
    %801 = vmatprep.subr.mxu0 0.0
    %802 = vmatpush1.msra.mxu0 0.0
    %803 = vmatprep.subr.mxu0 0.0
    %804 = vmatpush1.msra.mxu0 0.0
    %805 = vmatprep.subr.mxu0 0.0
    %806 = vmatpush1.msra.mxu0 0.0
    %807 = vmatprep.subr.mxu0 0.0
    %808 = vmatpush1.msra.mxu0 0.0
    %809 = vmatprep.subr.mxu0 0.0
    %810 = vmatpush1.msra.mxu0 0.0
    %811 = vmatprep.subr.mxu0 0.0
    %812 = vmatpush1.msra.mxu0 0.0
    %813 = vmatprep.subr.mxu0 0.0
    %814 = vmatpush1.msra.mxu0 0.0
    %815 = vmatprep.subr.mxu0 0.0
    %816 = vmatpush1.msra.mxu0 0.0
    %817 = vmatprep.subr.mxu0 0.0
    %818 = vmatpush1.msra.mxu0 0.0
    %819 = vmatprep.subr.mxu0 0.0
    %820 = vmatpush1.msra.mxu0 0.0
    %821 = vmatprep.subr.mxu0 0.0
    %822 = vmatpush1.msra.mxu0 0.0
    %823 = vmatprep.subr.mxu0 0.0
    %824 = vmatpush1.msra.mxu0 0.0
    %825 = vmatprep.subr.mxu0 0.0
    %826 = vmatpush1.msra.mxu0 0.0
    %827 = vmatprep.subr.mxu0 0.0
    %828 = vmatpush1.msra.mxu0 0.0
    %829 = vmatprep.subr.mxu0 0.0
    %830 = vmatpush1.msra.mxu0 0.0
    %831 = vmatprep.subr.mxu0 0.0
    %832 = vmatpush1.msra.mxu0 0.0
    %833 = vmatprep.subr.mxu0 0.0
    %834 = vmatpush1.msra.mxu0 0.0
    %835 = vmatprep.subr.mxu0 0.0
    %836 = vmatpush1.msra.mxu0 0.0
    %837 = vmatprep.mubr.f32.mxu0 0.0
    %838 = vmatmul.mubr.f32.gmra.mrb[0].mxu0 %v771
    %v839 = vpop.f32.mrb[0].mxu0
    %v840 = vadd.f32 0.0, %v839
    %v841 = vpop.f32.mrb[0].mxu0
    %842 = vdwg.mxu0
    %v844 = vsel %vm278, %v769, 0
    %846 = vmatprep.subr.mxu0 0.0
    %847 = vmatpush1.msra.mxu0 %v574
    %848 = vmatprep.subr.mxu0 0.0
    %849 = vmatpush1.msra.mxu0 0.0
    %850 = vmatprep.subr.mxu0 0.0
    %851 = vmatpush1.msra.mxu0 0.0
    %852 = vmatprep.subr.mxu0 0.0
    %853 = vmatpush1.msra.mxu0 0.0
    %854 = vmatprep.subr.mxu0 0.0
    %855 = vmatpush1.msra.mxu0 0.0
    %856 = vmatprep.subr.mxu0 0.0
    %857 = vmatpush1.msra.mxu0 0.0
    %858 = vmatprep.subr.mxu0 0.0
    %859 = vmatpush1.msra.mxu0 0.0
    %860 = vmatprep.subr.mxu0 0.0
    %861 = vmatpush1.msra.mxu0 0.0
    %862 = vmatprep.subr.mxu0 0.0
    %863 = vmatpush1.msra.mxu0 0.0
    %864 = vmatprep.subr.mxu0 0.0
    %865 = vmatpush1.msra.mxu0 0.0
    %866 = vmatprep.subr.mxu0 0.0
    %867 = vmatpush1.msra.mxu0 0.0
    %868 = vmatprep.subr.mxu0 0.0
    %869 = vmatpush1.msra.mxu0 0.0
    %870 = vmatprep.subr.mxu0 0.0
    %871 = vmatpush1.msra.mxu0 0.0
    %872 = vmatprep.subr.mxu0 0.0
    %873 = vmatpush1.msra.mxu0 0.0
    %874 = vmatprep.subr.mxu0 0.0
    %875 = vmatpush1.msra.mxu0 0.0
    %876 = vmatprep.subr.mxu0 0.0
    %877 = vmatpush1.msra.mxu0 0.0
    %878 = vmatprep.subr.mxu0 0.0
    %879 = vmatpush1.msra.mxu0 0.0
    %880 = vmatprep.subr.mxu0 0.0
    %881 = vmatpush1.msra.mxu0 0.0
    %882 = vmatprep.subr.mxu0 0.0
    %883 = vmatpush1.msra.mxu0 0.0
    %884 = vmatprep.subr.mxu0 0.0
    %885 = vmatpush1.msra.mxu0 0.0
    %886 = vmatprep.subr.mxu0 0.0
    %887 = vmatpush1.msra.mxu0 0.0
    %888 = vmatprep.subr.mxu0 0.0
    %889 = vmatpush1.msra.mxu0 0.0
    %890 = vmatprep.subr.mxu0 0.0
    %891 = vmatpush1.msra.mxu0 0.0
    %892 = vmatprep.subr.mxu0 0.0
    %893 = vmatpush1.msra.mxu0 0.0
    %894 = vmatprep.subr.mxu0 0.0
    %895 = vmatpush1.msra.mxu0 0.0
    %896 = vmatprep.subr.mxu0 0.0
    %897 = vmatpush1.msra.mxu0 0.0
    %898 = vmatprep.subr.mxu0 0.0
    %899 = vmatpush1.msra.mxu0 0.0
    %900 = vmatprep.subr.mxu0 0.0
    %901 = vmatpush1.msra.mxu0 0.0
    %902 = vmatprep.subr.mxu0 0.0
    %903 = vmatpush1.msra.mxu0 0.0
    %904 = vmatprep.subr.mxu0 0.0
    %905 = vmatpush1.msra.mxu0 0.0
    %906 = vmatprep.subr.mxu0 0.0
    %907 = vmatpush1.msra.mxu0 0.0
    %908 = vmatprep.subr.mxu0 0.0
    %909 = vmatpush1.msra.mxu0 0.0
    %910 = vmatprep.mubr.f32.mxu0 0.0
    %911 = vmatmul.mubr.f32.gmra.mrb[0].mxu0 %v844
    %v912 = vpop.f32.mrb[0].mxu0
    %v913 = vadd.f32 0.0, %v912
    %v914 = vpop.f32.mrb[0].mxu0
    %915 = vdwg.mxu0
    %916 = vrot.lane.b32.xlu0 %v492, 96
    %v917 = vpop.permute.xlu0 %916
    %918 = vrot.lane.b32.xlu0 %v494, 96
    %v919 = vpop.permute.xlu0 %918
    %v920 = vsel %vm593, %v917, 0
    %v922 = vsel %vm593, %v919, 0
    %924 = vmatprep.subr.mxu0 0.0
    %925 = vmatpush1.xpose.msra.mxu0 %v922
    %926 = vmatprep.subr.mxu0 0.0
    %927 = vmatpush1.xpose.msra.mxu0 0.0
    %928 = vmatprep.subr.mxu0 0.0
    %929 = vmatpush1.xpose.msra.mxu0 0.0
    %930 = vmatprep.subr.mxu0 0.0
    %931 = vmatpush1.xpose.msra.mxu0 0.0
    %932 = vmatprep.subr.mxu0 0.0
    %933 = vmatpush1.xpose.msra.mxu0 0.0
    %934 = vmatprep.subr.mxu0 0.0
    %935 = vmatpush1.xpose.msra.mxu0 0.0
    %936 = vmatprep.subr.mxu0 0.0
    %937 = vmatpush1.xpose.msra.mxu0 0.0
    %938 = vmatprep.subr.mxu0 0.0
    %939 = vmatpush1.xpose.msra.mxu0 0.0
    %940 = vmatprep.subr.mxu0 0.0
    %941 = vmatpush1.xpose.msra.mxu0 0.0
    %942 = vmatprep.subr.mxu0 0.0
    %943 = vmatpush1.xpose.msra.mxu0 0.0
    %944 = vmatprep.subr.mxu0 0.0
    %945 = vmatpush1.xpose.msra.mxu0 0.0
    %946 = vmatprep.subr.mxu0 0.0
    %947 = vmatpush1.xpose.msra.mxu0 0.0
    %948 = vmatprep.subr.mxu0 0.0
    %949 = vmatpush1.xpose.msra.mxu0 0.0
    %950 = vmatprep.subr.mxu0 0.0
    %951 = vmatpush1.xpose.msra.mxu0 0.0
    %952 = vmatprep.subr.mxu0 0.0
    %953 = vmatpush1.xpose.msra.mxu0 0.0
    %954 = vmatprep.subr.mxu0 0.0
    %955 = vmatpush1.xpose.msra.mxu0 0.0
    %956 = vmatprep.subr.mxu0 0.0
    %957 = vmatpush1.xpose.msra.mxu0 0.0
    %958 = vmatprep.subr.mxu0 0.0
    %959 = vmatpush1.xpose.msra.mxu0 0.0
    %960 = vmatprep.subr.mxu0 0.0
    %961 = vmatpush1.xpose.msra.mxu0 0.0
    %962 = vmatprep.subr.mxu0 0.0
    %963 = vmatpush1.xpose.msra.mxu0 0.0
    %964 = vmatprep.subr.mxu0 0.0
    %965 = vmatpush1.xpose.msra.mxu0 0.0
    %966 = vmatprep.subr.mxu0 0.0
    %967 = vmatpush1.xpose.msra.mxu0 0.0
    %968 = vmatprep.subr.mxu0 0.0
    %969 = vmatpush1.xpose.msra.mxu0 0.0
    %970 = vmatprep.subr.mxu0 0.0
    %971 = vmatpush1.xpose.msra.mxu0 0.0
    %972 = vmatprep.subr.mxu0 0.0
    %973 = vmatpush1.xpose.msra.mxu0 0.0
    %974 = vmatprep.subr.mxu0 0.0
    %975 = vmatpush1.xpose.msra.mxu0 0.0
    %976 = vmatprep.subr.mxu0 0.0
    %977 = vmatpush1.xpose.msra.mxu0 0.0
    %978 = vmatprep.subr.mxu0 0.0
    %979 = vmatpush1.xpose.msra.mxu0 0.0
    %980 = vmatprep.subr.mxu0 0.0
    %981 = vmatpush1.xpose.msra.mxu0 0.0
    %982 = vmatprep.subr.mxu0 0.0
    %983 = vmatpush1.xpose.msra.mxu0 0.0
    %984 = vmatprep.subr.mxu0 0.0
    %985 = vmatpush1.xpose.msra.mxu0 0.0
    %986 = vmatprep.subr.mxu0 0.0
    %987 = vmatpush1.xpose.msra.mxu0 0.0
    %988 = vmatprep.mubr.f32.mxu0 0.0
    %989 = vmatmul.mubr.f32.gmra.mrb[0].mxu0 %v920
    %v990 = vpop.f32.mrb[0].mxu0
    %v991 = vadd.f32 0.0, %v990
    %v992 = vpop.f32.mrb[0].mxu0
    %993 = vdwg.mxu0
    %994 = vrot.lane.b32.xlu0 %v498, 96
    %v995 = vpop.permute.xlu0 %994
    %996 = vrot.lane.b32.xlu0 %v500, 96
    %v997 = vpop.permute.xlu0 %996
    %v998 = vsel %vm593, %v995, 0
    %v1000 = vsel %vm593, %v997, 0
    %1002 = vmatprep.subr.mxu0 0.0
    %1003 = vmatpush1.xpose.msra.mxu0 %v1000
    %1004 = vmatprep.subr.mxu0 0.0
    %1005 = vmatpush1.xpose.msra.mxu0 0.0
    %1006 = vmatprep.subr.mxu0 0.0
    %1007 = vmatpush1.xpose.msra.mxu0 0.0
    %1008 = vmatprep.subr.mxu0 0.0
    %1009 = vmatpush1.xpose.msra.mxu0 0.0
    %1010 = vmatprep.subr.mxu0 0.0
    %1011 = vmatpush1.xpose.msra.mxu0 0.0
    %1012 = vmatprep.subr.mxu0 0.0
    %1013 = vmatpush1.xpose.msra.mxu0 0.0
    %1014 = vmatprep.subr.mxu0 0.0
    %1015 = vmatpush1.xpose.msra.mxu0 0.0
    %1016 = vmatprep.subr.mxu0 0.0
    %1017 = vmatpush1.xpose.msra.mxu0 0.0
    %1018 = vmatprep.subr.mxu0 0.0
    %1019 = vmatpush1.xpose.msra.mxu0 0.0
    %1020 = vmatprep.subr.mxu0 0.0
    %1021 = vmatpush1.xpose.msra.mxu0 0.0
    %1022 = vmatprep.subr.mxu0 0.0
    %1023 = vmatpush1.xpose.msra.mxu0 0.0
    %1024 = vmatprep.subr.mxu0 0.0
    %1025 = vmatpush1.xpose.msra.mxu0 0.0
    %1026 = vmatprep.subr.mxu0 0.0
    %1027 = vmatpush1.xpose.msra.mxu0 0.0
    %1028 = vmatprep.subr.mxu0 0.0
    %1029 = vmatpush1.xpose.msra.mxu0 0.0
    %1030 = vmatprep.subr.mxu0 0.0
    %1031 = vmatpush1.xpose.msra.mxu0 0.0
    %1032 = vmatprep.subr.mxu0 0.0
    %1033 = vmatpush1.xpose.msra.mxu0 0.0
    %1034 = vmatprep.subr.mxu0 0.0
    %1035 = vmatpush1.xpose.msra.mxu0 0.0
    %1036 = vmatprep.subr.mxu0 0.0
    %1037 = vmatpush1.xpose.msra.mxu0 0.0
    %1038 = vmatprep.subr.mxu0 0.0
    %1039 = vmatpush1.xpose.msra.mxu0 0.0
    %1040 = vmatprep.subr.mxu0 0.0
    %1041 = vmatpush1.xpose.msra.mxu0 0.0
    %1042 = vmatprep.subr.mxu0 0.0
    %1043 = vmatpush1.xpose.msra.mxu0 0.0
    %1044 = vmatprep.subr.mxu0 0.0
    %1045 = vmatpush1.xpose.msra.mxu0 0.0
    %1046 = vmatprep.subr.mxu0 0.0
    %1047 = vmatpush1.xpose.msra.mxu0 0.0
    %1048 = vmatprep.subr.mxu0 0.0
    %1049 = vmatpush1.xpose.msra.mxu0 0.0
    %1050 = vmatprep.subr.mxu0 0.0
    %1051 = vmatpush1.xpose.msra.mxu0 0.0
    %1052 = vmatprep.subr.mxu0 0.0
    %1053 = vmatpush1.xpose.msra.mxu0 0.0
    %1054 = vmatprep.subr.mxu0 0.0
    %1055 = vmatpush1.xpose.msra.mxu0 0.0
    %1056 = vmatprep.subr.mxu0 0.0
    %1057 = vmatpush1.xpose.msra.mxu0 0.0
    %1058 = vmatprep.subr.mxu0 0.0
    %1059 = vmatpush1.xpose.msra.mxu0 0.0
    %1060 = vmatprep.subr.mxu0 0.0
    %1061 = vmatpush1.xpose.msra.mxu0 0.0
    %1062 = vmatprep.subr.mxu0 0.0
    %1063 = vmatpush1.xpose.msra.mxu0 0.0
    %1064 = vmatprep.subr.mxu0 0.0
    %1065 = vmatpush1.xpose.msra.mxu0 0.0
    %1066 = vmatprep.mubr.f32.mxu0 0.0
    %1067 = vmatmul.mubr.f32.gmra.mrb[0].mxu0 %v998
    %v1068 = vpop.f32.mrb[0].mxu0
    %v1069 = vadd.f32 0.0, %v1068
    %v1070 = vpop.f32.mrb[0].mxu0
    %1071 = vdwg.mxu0
    %v1072 = vmul.f32 %v991, 0.17677669
    %v1073 = vmul.f32 %v1069, 0.17677669
    %v1074 = vsel %vm278, %v1072, -inf
    %1075 = vmax.xlane.f32.xlu0 %v1074
    %v1076 = vpop.xlane.xlu0 %1075
    %v1077 = vsel %vm278, %v1073, -inf
    %1078 = vmax.xlane.f32.xlu0 %v1077
    %v1079 = vpop.xlane.xlu0 %1078
    %v1080 = vsub.f32 %v1072, %v1076
    %v1081 = vsub.f32 %v1073, %v1079
    %v1082 = vmul.f32 %v1080, 1.442695
    %v1083 = vpow.pop %v1082
    %v1084 = vmul.f32 %v1081, 1.442695
    %v1085 = vpow.pop %v1084
    %v1086 = vsel %vm278, %v1083, 0.0
    %1087 = vadd.xlane.f32.xlu0 %v1086
    %v1088 = vpop.xlane.xlu0 %1087
    %v1089 = vsel %vm278, %v1085, 0.0
    %1090 = vadd.xlane.f32.xlu0 %v1089
    %v1091 = vpop.xlane.xlu0 %1090
    %v1092 = vrcp.pop %v1088
    %v1093 = vmul.f32 %v1083, %v1092
    %v1094 = vrcp.pop %v1091
    %v1095 = vmul.f32 %v1085, %v1094
    %1097 = vrot.lane.b32.xlu0 %v569, 96
    %v1098 = vpop.permute.xlu0 %1097
    %v1101 = vsel %vm278, %v1093, 0
    %1103 = vmatprep.subr.mxu0 0.0
    %1104 = vmatpush1.msra.mxu0 %v1098
    %1105 = vmatprep.subr.mxu0 0.0
    %1106 = vmatpush1.msra.mxu0 0.0
    %1107 = vmatprep.subr.mxu0 0.0
    %1108 = vmatpush1.msra.mxu0 0.0
    %1109 = vmatprep.subr.mxu0 0.0
    %1110 = vmatpush1.msra.mxu0 0.0
    %1111 = vmatprep.subr.mxu0 0.0
    %1112 = vmatpush1.msra.mxu0 0.0
    %1113 = vmatprep.subr.mxu0 0.0
    %1114 = vmatpush1.msra.mxu0 0.0
    %1115 = vmatprep.subr.mxu0 0.0
    %1116 = vmatpush1.msra.mxu0 0.0
    %1117 = vmatprep.subr.mxu0 0.0
    %1118 = vmatpush1.msra.mxu0 0.0
    %1119 = vmatprep.subr.mxu0 0.0
    %1120 = vmatpush1.msra.mxu0 0.0
    %1121 = vmatprep.subr.mxu0 0.0
    %1122 = vmatpush1.msra.mxu0 0.0
    %1123 = vmatprep.subr.mxu0 0.0
    %1124 = vmatpush1.msra.mxu0 0.0
    %1125 = vmatprep.subr.mxu0 0.0
    %1126 = vmatpush1.msra.mxu0 0.0
    %1127 = vmatprep.subr.mxu0 0.0
    %1128 = vmatpush1.msra.mxu0 0.0
    %1129 = vmatprep.subr.mxu0 0.0
    %1130 = vmatpush1.msra.mxu0 0.0
    %1131 = vmatprep.subr.mxu0 0.0
    %1132 = vmatpush1.msra.mxu0 0.0
    %1133 = vmatprep.subr.mxu0 0.0
    %1134 = vmatpush1.msra.mxu0 0.0
    %1135 = vmatprep.subr.mxu0 0.0
    %1136 = vmatpush1.msra.mxu0 0.0
    %1137 = vmatprep.subr.mxu0 0.0
    %1138 = vmatpush1.msra.mxu0 0.0
    %1139 = vmatprep.subr.mxu0 0.0
    %1140 = vmatpush1.msra.mxu0 0.0
    %1141 = vmatprep.subr.mxu0 0.0
    %1142 = vmatpush1.msra.mxu0 0.0
    %1143 = vmatprep.subr.mxu0 0.0
    %1144 = vmatpush1.msra.mxu0 0.0
    %1145 = vmatprep.subr.mxu0 0.0
    %1146 = vmatpush1.msra.mxu0 0.0
    %1147 = vmatprep.subr.mxu0 0.0
    %1148 = vmatpush1.msra.mxu0 0.0
    %1149 = vmatprep.subr.mxu0 0.0
    %1150 = vmatpush1.msra.mxu0 0.0
    %1151 = vmatprep.subr.mxu0 0.0
    %1152 = vmatpush1.msra.mxu0 0.0
    %1153 = vmatprep.subr.mxu0 0.0
    %1154 = vmatpush1.msra.mxu0 0.0
    %1155 = vmatprep.subr.mxu0 0.0
    %1156 = vmatpush1.msra.mxu0 0.0
    %1157 = vmatprep.subr.mxu0 0.0
    %1158 = vmatpush1.msra.mxu0 0.0
    %1159 = vmatprep.subr.mxu0 0.0
    %1160 = vmatpush1.msra.mxu0 0.0
    %1161 = vmatprep.subr.mxu0 0.0
    %1162 = vmatpush1.msra.mxu0 0.0
    %1163 = vmatprep.subr.mxu0 0.0
    %1164 = vmatpush1.msra.mxu0 0.0
    %1165 = vmatprep.subr.mxu0 0.0
    %1166 = vmatpush1.msra.mxu0 0.0
    %1167 = vmatprep.mubr.f32.mxu0 0.0
    %1168 = vmatmul.mubr.f32.gmra.mrb[0].mxu0 %v1101
    %v1169 = vpop.f32.mrb[0].mxu0
    %v1170 = vadd.f32 0.0, %v1169
    %v1171 = vpop.f32.mrb[0].mxu0
    %1172 = vdwg.mxu0
    %1174 = vrot.lane.b32.xlu0 %v574, 96
    %v1175 = vpop.permute.xlu0 %1174
    %v1178 = vsel %vm278, %v1095, 0
    %1180 = vmatprep.subr.mxu0 0.0
    %1181 = vmatpush1.msra.mxu0 %v1175
    %1182 = vmatprep.subr.mxu0 0.0
    %1183 = vmatpush1.msra.mxu0 0.0
    %1184 = vmatprep.subr.mxu0 0.0
    %1185 = vmatpush1.msra.mxu0 0.0
    %1186 = vmatprep.subr.mxu0 0.0
    %1187 = vmatpush1.msra.mxu0 0.0
    %1188 = vmatprep.subr.mxu0 0.0
    %1189 = vmatpush1.msra.mxu0 0.0
    %1190 = vmatprep.subr.mxu0 0.0
    %1191 = vmatpush1.msra.mxu0 0.0
    %1192 = vmatprep.subr.mxu0 0.0
    %1193 = vmatpush1.msra.mxu0 0.0
    %1194 = vmatprep.subr.mxu0 0.0
    %1195 = vmatpush1.msra.mxu0 0.0
    %1196 = vmatprep.subr.mxu0 0.0
    %1197 = vmatpush1.msra.mxu0 0.0
    %1198 = vmatprep.subr.mxu0 0.0
    %1199 = vmatpush1.msra.mxu0 0.0
    %1200 = vmatprep.subr.mxu0 0.0
    %1201 = vmatpush1.msra.mxu0 0.0
    %1202 = vmatprep.subr.mxu0 0.0
    %1203 = vmatpush1.msra.mxu0 0.0
    %1204 = vmatprep.subr.mxu0 0.0
    %1205 = vmatpush1.msra.mxu0 0.0
    %1206 = vmatprep.subr.mxu0 0.0
    %1207 = vmatpush1.msra.mxu0 0.0
    %1208 = vmatprep.subr.mxu0 0.0
    %1209 = vmatpush1.msra.mxu0 0.0
    %1210 = vmatprep.subr.mxu0 0.0
    %1211 = vmatpush1.msra.mxu0 0.0
    %1212 = vmatprep.subr.mxu0 0.0
    %1213 = vmatpush1.msra.mxu0 0.0
    %1214 = vmatprep.subr.mxu0 0.0
    %1215 = vmatpush1.msra.mxu0 0.0
    %1216 = vmatprep.subr.mxu0 0.0
    %1217 = vmatpush1.msra.mxu0 0.0
    %1218 = vmatprep.subr.mxu0 0.0
    %1219 = vmatpush1.msra.mxu0 0.0
    %1220 = vmatprep.subr.mxu0 0.0
    %1221 = vmatpush1.msra.mxu0 0.0
    %1222 = vmatprep.subr.mxu0 0.0
    %1223 = vmatpush1.msra.mxu0 0.0
    %1224 = vmatprep.subr.mxu0 0.0
    %1225 = vmatpush1.msra.mxu0 0.0
    %1226 = vmatprep.subr.mxu0 0.0
    %1227 = vmatpush1.msra.mxu0 0.0
    %1228 = vmatprep.subr.mxu0 0.0
    %1229 = vmatpush1.msra.mxu0 0.0
    %1230 = vmatprep.subr.mxu0 0.0
    %1231 = vmatpush1.msra.mxu0 0.0
    %1232 = vmatprep.subr.mxu0 0.0
    %1233 = vmatpush1.msra.mxu0 0.0
    %1234 = vmatprep.subr.mxu0 0.0
    %1235 = vmatpush1.msra.mxu0 0.0
    %1236 = vmatprep.subr.mxu0 0.0
    %1237 = vmatpush1.msra.mxu0 0.0
    %1238 = vmatprep.subr.mxu0 0.0
    %1239 = vmatpush1.msra.mxu0 0.0
    %1240 = vmatprep.subr.mxu0 0.0
    %1241 = vmatpush1.msra.mxu0 0.0
    %1242 = vmatprep.subr.mxu0 0.0
    %1243 = vmatpush1.msra.mxu0 0.0
    %1244 = vmatprep.mubr.f32.mxu0 0.0
    %1245 = vmatmul.mubr.f32.gmra.mrb[0].mxu0 %v1178
    %v1246 = vpop.f32.mrb[0].mxu0
    %v1247 = vadd.f32 0.0, %v1246
    %v1248 = vpop.f32.mrb[0].mxu0
    %1249 = vdwg.mxu0
    %v1251 = vsel %vm593, %v1170, 0
    %v1254 = vsel %vm593, %v1247, 0
    %1256 = vmatprep.subr.mxu0 0.0
    %1257 = vmatpush1.msra.mxu0 %v581
    %1258 = vmatprep.subr.mxu0 0.0
    %1259 = vmatpush1.msra.mxu0 %v582
    %1260 = vmatprep.subr.mxu0 0.0
    %1261 = vmatpush1.msra.mxu0 %v583
    %1262 = vmatprep.subr.mxu0 0.0
    %1263 = vmatpush1.msra.mxu0 %v584
    %1264 = vmatprep.subr.mxu0 0.0
    %1265 = vmatpush1.msra.mxu0 0.0
    %1266 = vmatprep.subr.mxu0 0.0
    %1267 = vmatpush1.msra.mxu0 0.0
    %1268 = vmatprep.subr.mxu0 0.0
    %1269 = vmatpush1.msra.mxu0 0.0
    %1270 = vmatprep.subr.mxu0 0.0
    %1271 = vmatpush1.msra.mxu0 0.0
    %1272 = vmatprep.subr.mxu0 0.0
    %1273 = vmatpush1.msra.mxu0 0.0
    %1274 = vmatprep.subr.mxu0 0.0
    %1275 = vmatpush1.msra.mxu0 0.0
    %1276 = vmatprep.subr.mxu0 0.0
    %1277 = vmatpush1.msra.mxu0 0.0
    %1278 = vmatprep.subr.mxu0 0.0
    %1279 = vmatpush1.msra.mxu0 0.0
    %1280 = vmatprep.subr.mxu0 0.0
    %1281 = vmatpush1.msra.mxu0 0.0
    %1282 = vmatprep.subr.mxu0 0.0
    %1283 = vmatpush1.msra.mxu0 0.0
    %1284 = vmatprep.subr.mxu0 0.0
    %1285 = vmatpush1.msra.mxu0 0.0
    %1286 = vmatprep.subr.mxu0 0.0
    %1287 = vmatpush1.msra.mxu0 0.0
    %1288 = vmatprep.subr.mxu0 0.0
    %1289 = vmatpush1.msra.mxu0 0.0
    %1290 = vmatprep.subr.mxu0 0.0
    %1291 = vmatpush1.msra.mxu0 0.0
    %1292 = vmatprep.subr.mxu0 0.0
    %1293 = vmatpush1.msra.mxu0 0.0
    %1294 = vmatprep.subr.mxu0 0.0
    %1295 = vmatpush1.msra.mxu0 0.0
    %1296 = vmatprep.subr.mxu0 0.0
    %1297 = vmatpush1.msra.mxu0 0.0
    %1298 = vmatprep.subr.mxu0 0.0
    %1299 = vmatpush1.msra.mxu0 0.0
    %1300 = vmatprep.subr.mxu0 0.0
    %1301 = vmatpush1.msra.mxu0 0.0
    %1302 = vmatprep.subr.mxu0 0.0
    %1303 = vmatpush1.msra.mxu0 0.0
    %1304 = vmatprep.subr.mxu0 0.0
    %1305 = vmatpush1.msra.mxu0 0.0
    %1306 = vmatprep.subr.mxu0 0.0
    %1307 = vmatpush1.msra.mxu0 0.0
    %1308 = vmatprep.subr.mxu0 0.0
    %1309 = vmatpush1.msra.mxu0 0.0
    %1310 = vmatprep.subr.mxu0 0.0
    %1311 = vmatpush1.msra.mxu0 0.0
    %1312 = vmatprep.subr.mxu0 0.0
    %1313 = vmatpush1.msra.mxu0 0.0
    %1314 = vmatprep.subr.mxu0 0.0
    %1315 = vmatpush1.msra.mxu0 0.0
    %1316 = vmatprep.subr.mxu0 0.0
    %1317 = vmatpush1.msra.mxu0 0.0
    %1318 = vmatprep.subr.mxu0 0.0
    %1319 = vmatpush1.msra.mxu0 0.0
    %1320 = vmatprep.mubr.f32.mxu0 0.0
    %1321 = vmatmul.mubr.f32.gmra.mrb[0].mxu0 %v1251
    %v1322 = vpop.f32.mrb[0].mxu0
    %v1323 = vadd.f32 0.0, %v1322
    %v1324 = vpop.f32.mrb[0].mxu0
    %1325 = vmatprep.mubr.f32.mxu0 0.0
    %1326 = vmatmul.mubr.f32.gmra.mrb[0].mxu0 %v1254
    %v1327 = vpop.f32.mrb[0].mxu0
    %v1328 = vadd.f32 0.0, %v1327
    %v1329 = vpop.f32.mrb[0].mxu0
    %1330 = vdwg.mxu0
    %v1332 = vsel %vm593, %v840, 0
    %v1335 = vsel %vm593, %v913, 0
    %1337 = vmatprep.subr.mxu0 0.0
    %1338 = vmatpush1.msra.mxu0 %v577
    %1339 = vmatprep.subr.mxu0 0.0
    %1340 = vmatpush1.msra.mxu0 %v578
    %1341 = vmatprep.subr.mxu0 0.0
    %1342 = vmatpush1.msra.mxu0 %v579
    %1343 = vmatprep.subr.mxu0 0.0
    %1344 = vmatpush1.msra.mxu0 %v580
    %1345 = vmatprep.subr.mxu0 0.0
    %1346 = vmatpush1.msra.mxu0 0.0
    %1347 = vmatprep.subr.mxu0 0.0
    %1348 = vmatpush1.msra.mxu0 0.0
    %1349 = vmatprep.subr.mxu0 0.0
    %1350 = vmatpush1.msra.mxu0 0.0
    %1351 = vmatprep.subr.mxu0 0.0
    %1352 = vmatpush1.msra.mxu0 0.0
    %1353 = vmatprep.subr.mxu0 0.0
    %1354 = vmatpush1.msra.mxu0 0.0
    %1355 = vmatprep.subr.mxu0 0.0
    %1356 = vmatpush1.msra.mxu0 0.0
    %1357 = vmatprep.subr.mxu0 0.0
    %1358 = vmatpush1.msra.mxu0 0.0
    %1359 = vmatprep.subr.mxu0 0.0
    %1360 = vmatpush1.msra.mxu0 0.0
    %1361 = vmatprep.subr.mxu0 0.0
    %1362 = vmatpush1.msra.mxu0 0.0
    %1363 = vmatprep.subr.mxu0 0.0
    %1364 = vmatpush1.msra.mxu0 0.0
    %1365 = vmatprep.subr.mxu0 0.0
    %1366 = vmatpush1.msra.mxu0 0.0
    %1367 = vmatprep.subr.mxu0 0.0
    %1368 = vmatpush1.msra.mxu0 0.0
    %1369 = vmatprep.subr.mxu0 0.0
    %1370 = vmatpush1.msra.mxu0 0.0
    %1371 = vmatprep.subr.mxu0 0.0
    %1372 = vmatpush1.msra.mxu0 0.0
    %1373 = vmatprep.subr.mxu0 0.0
    %1374 = vmatpush1.msra.mxu0 0.0
    %1375 = vmatprep.subr.mxu0 0.0
    %1376 = vmatpush1.msra.mxu0 0.0
    %1377 = vmatprep.subr.mxu0 0.0
    %1378 = vmatpush1.msra.mxu0 0.0
    %1379 = vmatprep.subr.mxu0 0.0
    %1380 = vmatpush1.msra.mxu0 0.0
    %1381 = vmatprep.subr.mxu0 0.0
    %1382 = vmatpush1.msra.mxu0 0.0
    %1383 = vmatprep.subr.mxu0 0.0
    %1384 = vmatpush1.msra.mxu0 0.0
    %1385 = vmatprep.subr.mxu0 0.0
    %1386 = vmatpush1.msra.mxu0 0.0
    %1387 = vmatprep.subr.mxu0 0.0
    %1388 = vmatpush1.msra.mxu0 0.0
    %1389 = vmatprep.subr.mxu0 0.0
    %1390 = vmatpush1.msra.mxu0 0.0
    %1391 = vmatprep.subr.mxu0 0.0
    %1392 = vmatpush1.msra.mxu0 0.0
    %1393 = vmatprep.subr.mxu0 0.0
    %1394 = vmatpush1.msra.mxu0 0.0
    %1395 = vmatprep.subr.mxu0 0.0
    %1396 = vmatpush1.msra.mxu0 0.0
    %1397 = vmatprep.subr.mxu0 0.0
    %1398 = vmatpush1.msra.mxu0 0.0
    %1399 = vmatprep.subr.mxu0 0.0
    %1400 = vmatpush1.msra.mxu0 0.0
    %1401 = vmatprep.mubr.f32.mxu0 0.0
    %1402 = vmatmul.mubr.f32.gmra.mrb[0].mxu0 %v1332
    %v1403 = vpop.f32.mrb[0].mxu0
    %v1404 = vadd.f32 %v1323, %v1403
    %v1405 = vpop.f32.mrb[0].mxu0
    %1406 = vmatprep.mubr.f32.mxu0 0.0
    %1407 = vmatmul.mubr.f32.gmra.mrb[0].mxu0 %v1335
    %v1408 = vpop.f32.mrb[0].mxu0
    %v1409 = vadd.f32 %v1328, %v1408
    %v1410 = vpop.f32.mrb[0].mxu0
    %1411 = vdwg.mxu0
    %1412 = vrot.lane.b32.xlu0 %v492, 64
    %v1413 = vpop.permute.xlu0 %1412
    %1414 = vrot.lane.b32.xlu0 %v494, 64
    %v1415 = vpop.permute.xlu0 %1414
    %v1416 = vsel %vm593, %v1413, 0
    %v1418 = vsel %vm593, %v1415, 0
    %1420 = vmatprep.subr.mxu0 0.0
    %1421 = vmatpush1.xpose.msra.mxu0 %v1418
    %1422 = vmatprep.subr.mxu0 0.0
    %1423 = vmatpush1.xpose.msra.mxu0 0.0
    %1424 = vmatprep.subr.mxu0 0.0
    %1425 = vmatpush1.xpose.msra.mxu0 0.0
    %1426 = vmatprep.subr.mxu0 0.0
    %1427 = vmatpush1.xpose.msra.mxu0 0.0
    %1428 = vmatprep.subr.mxu0 0.0
    %1429 = vmatpush1.xpose.msra.mxu0 0.0
    %1430 = vmatprep.subr.mxu0 0.0
    %1431 = vmatpush1.xpose.msra.mxu0 0.0
    %1432 = vmatprep.subr.mxu0 0.0
    %1433 = vmatpush1.xpose.msra.mxu0 0.0
    %1434 = vmatprep.subr.mxu0 0.0
    %1435 = vmatpush1.xpose.msra.mxu0 0.0
    %1436 = vmatprep.subr.mxu0 0.0
    %1437 = vmatpush1.xpose.msra.mxu0 0.0
    %1438 = vmatprep.subr.mxu0 0.0
    %1439 = vmatpush1.xpose.msra.mxu0 0.0
    %1440 = vmatprep.subr.mxu0 0.0
    %1441 = vmatpush1.xpose.msra.mxu0 0.0
    %1442 = vmatprep.subr.mxu0 0.0
    %1443 = vmatpush1.xpose.msra.mxu0 0.0
    %1444 = vmatprep.subr.mxu0 0.0
    %1445 = vmatpush1.xpose.msra.mxu0 0.0
    %1446 = vmatprep.subr.mxu0 0.0
    %1447 = vmatpush1.xpose.msra.mxu0 0.0
    %1448 = vmatprep.subr.mxu0 0.0
    %1449 = vmatpush1.xpose.msra.mxu0 0.0
    %1450 = vmatprep.subr.mxu0 0.0
    %1451 = vmatpush1.xpose.msra.mxu0 0.0
    %1452 = vmatprep.subr.mxu0 0.0
    %1453 = vmatpush1.xpose.msra.mxu0 0.0
    %1454 = vmatprep.subr.mxu0 0.0
    %1455 = vmatpush1.xpose.msra.mxu0 0.0
    %1456 = vmatprep.subr.mxu0 0.0
    %1457 = vmatpush1.xpose.msra.mxu0 0.0
    %1458 = vmatprep.subr.mxu0 0.0
    %1459 = vmatpush1.xpose.msra.mxu0 0.0
    %1460 = vmatprep.subr.mxu0 0.0
    %1461 = vmatpush1.xpose.msra.mxu0 0.0
    %1462 = vmatprep.subr.mxu0 0.0
    %1463 = vmatpush1.xpose.msra.mxu0 0.0
    %1464 = vmatprep.subr.mxu0 0.0
    %1465 = vmatpush1.xpose.msra.mxu0 0.0
    %1466 = vmatprep.subr.mxu0 0.0
    %1467 = vmatpush1.xpose.msra.mxu0 0.0
    %1468 = vmatprep.subr.mxu0 0.0
    %1469 = vmatpush1.xpose.msra.mxu0 0.0
    %1470 = vmatprep.subr.mxu0 0.0
    %1471 = vmatpush1.xpose.msra.mxu0 0.0
    %1472 = vmatprep.subr.mxu0 0.0
    %1473 = vmatpush1.xpose.msra.mxu0 0.0
    %1474 = vmatprep.subr.mxu0 0.0
    %1475 = vmatpush1.xpose.msra.mxu0 0.0
    %1476 = vmatprep.subr.mxu0 0.0
    %1477 = vmatpush1.xpose.msra.mxu0 0.0
    %1478 = vmatprep.subr.mxu0 0.0
    %1479 = vmatpush1.xpose.msra.mxu0 0.0
    %1480 = vmatprep.subr.mxu0 0.0
    %1481 = vmatpush1.xpose.msra.mxu0 0.0
    %1482 = vmatprep.subr.mxu0 0.0
    %1483 = vmatpush1.xpose.msra.mxu0 0.0
    %1484 = vmatprep.mubr.f32.mxu0 0.0
    %1485 = vmatmul.mubr.f32.gmra.mrb[0].mxu0 %v1416
    %v1486 = vpop.f32.mrb[0].mxu0
    %v1487 = vadd.f32 0.0, %v1486
    %v1488 = vpop.f32.mrb[0].mxu0
    %1489 = vdwg.mxu0
    %1490 = vrot.lane.b32.xlu0 %v498, 64
    %v1491 = vpop.permute.xlu0 %1490
    %1492 = vrot.lane.b32.xlu0 %v500, 64
    %v1493 = vpop.permute.xlu0 %1492
    %v1494 = vsel %vm593, %v1491, 0
    %v1496 = vsel %vm593, %v1493, 0
    %1498 = vmatprep.subr.mxu0 0.0
    %1499 = vmatpush1.xpose.msra.mxu0 %v1496
    %1500 = vmatprep.subr.mxu0 0.0
    %1501 = vmatpush1.xpose.msra.mxu0 0.0
    %1502 = vmatprep.subr.mxu0 0.0
    %1503 = vmatpush1.xpose.msra.mxu0 0.0
    %1504 = vmatprep.subr.mxu0 0.0
    %1505 = vmatpush1.xpose.msra.mxu0 0.0
    %1506 = vmatprep.subr.mxu0 0.0
    %1507 = vmatpush1.xpose.msra.mxu0 0.0
    %1508 = vmatprep.subr.mxu0 0.0
    %1509 = vmatpush1.xpose.msra.mxu0 0.0
    %1510 = vmatprep.subr.mxu0 0.0
    %1511 = vmatpush1.xpose.msra.mxu0 0.0
    %1512 = vmatprep.subr.mxu0 0.0
    %1513 = vmatpush1.xpose.msra.mxu0 0.0
    %1514 = vmatprep.subr.mxu0 0.0
    %1515 = vmatpush1.xpose.msra.mxu0 0.0
    %1516 = vmatprep.subr.mxu0 0.0
    %1517 = vmatpush1.xpose.msra.mxu0 0.0
    %1518 = vmatprep.subr.mxu0 0.0
    %1519 = vmatpush1.xpose.msra.mxu0 0.0
    %1520 = vmatprep.subr.mxu0 0.0
    %1521 = vmatpush1.xpose.msra.mxu0 0.0
    %1522 = vmatprep.subr.mxu0 0.0
    %1523 = vmatpush1.xpose.msra.mxu0 0.0
    %1524 = vmatprep.subr.mxu0 0.0
    %1525 = vmatpush1.xpose.msra.mxu0 0.0
    %1526 = vmatprep.subr.mxu0 0.0
    %1527 = vmatpush1.xpose.msra.mxu0 0.0
    %1528 = vmatprep.subr.mxu0 0.0
    %1529 = vmatpush1.xpose.msra.mxu0 0.0
    %1530 = vmatprep.subr.mxu0 0.0
    %1531 = vmatpush1.xpose.msra.mxu0 0.0
    %1532 = vmatprep.subr.mxu0 0.0
    %1533 = vmatpush1.xpose.msra.mxu0 0.0
    %1534 = vmatprep.subr.mxu0 0.0
    %1535 = vmatpush1.xpose.msra.mxu0 0.0
    %1536 = vmatprep.subr.mxu0 0.0
    %1537 = vmatpush1.xpose.msra.mxu0 0.0
    %1538 = vmatprep.subr.mxu0 0.0
    %1539 = vmatpush1.xpose.msra.mxu0 0.0
    %1540 = vmatprep.subr.mxu0 0.0
    %1541 = vmatpush1.xpose.msra.mxu0 0.0
    %1542 = vmatprep.subr.mxu0 0.0
    %1543 = vmatpush1.xpose.msra.mxu0 0.0
    %1544 = vmatprep.subr.mxu0 0.0
    %1545 = vmatpush1.xpose.msra.mxu0 0.0
    %1546 = vmatprep.subr.mxu0 0.0
    %1547 = vmatpush1.xpose.msra.mxu0 0.0
    %1548 = vmatprep.subr.mxu0 0.0
    %1549 = vmatpush1.xpose.msra.mxu0 0.0
    %1550 = vmatprep.subr.mxu0 0.0
    %1551 = vmatpush1.xpose.msra.mxu0 0.0
    %1552 = vmatprep.subr.mxu0 0.0
    %1553 = vmatpush1.xpose.msra.mxu0 0.0
    %1554 = vmatprep.subr.mxu0 0.0
    %1555 = vmatpush1.xpose.msra.mxu0 0.0
    %1556 = vmatprep.subr.mxu0 0.0
    %1557 = vmatpush1.xpose.msra.mxu0 0.0
    %1558 = vmatprep.subr.mxu0 0.0
    %1559 = vmatpush1.xpose.msra.mxu0 0.0
    %1560 = vmatprep.subr.mxu0 0.0
    %1561 = vmatpush1.xpose.msra.mxu0 0.0
    %1562 = vmatprep.mubr.f32.mxu0 0.0
    %1563 = vmatmul.mubr.f32.gmra.mrb[0].mxu0 %v1494
    %v1564 = vpop.f32.mrb[0].mxu0
    %v1565 = vadd.f32 0.0, %v1564
    %v1566 = vpop.f32.mrb[0].mxu0
    %1567 = vdwg.mxu0
    %v1568 = vmul.f32 %v1487, 0.17677669
    %v1569 = vmul.f32 %v1565, 0.17677669
    %v1570 = vsel %vm278, %v1568, -inf
    %1571 = vmax.xlane.f32.xlu0 %v1570
    %v1572 = vpop.xlane.xlu0 %1571
    %v1573 = vsel %vm278, %v1569, -inf
    %1574 = vmax.xlane.f32.xlu0 %v1573
    %v1575 = vpop.xlane.xlu0 %1574
    %v1576 = vsub.f32 %v1568, %v1572
    %v1577 = vsub.f32 %v1569, %v1575
    %v1578 = vmul.f32 %v1576, 1.442695
    %v1579 = vpow.pop %v1578
    %v1580 = vmul.f32 %v1577, 1.442695
    %v1581 = vpow.pop %v1580
    %v1582 = vsel %vm278, %v1579, 0.0
    %1583 = vadd.xlane.f32.xlu0 %v1582
    %v1584 = vpop.xlane.xlu0 %1583
    %v1585 = vsel %vm278, %v1581, 0.0
    %1586 = vadd.xlane.f32.xlu0 %v1585
    %v1587 = vpop.xlane.xlu0 %1586
    %v1588 = vrcp.pop %v1584
    %v1589 = vmul.f32 %v1579, %v1588
    %v1590 = vrcp.pop %v1587
    %v1591 = vmul.f32 %v1581, %v1590
    %1592 = vrot.lane.b32.xlu0 %v569, 64
    %v1593 = vpop.permute.xlu0 %1592
    %v1596 = vsel %vm278, %v1589, 0
    %1598 = vmatprep.subr.mxu0 0.0
    %1599 = vmatpush1.msra.mxu0 %v1593
    %1600 = vmatprep.subr.mxu0 0.0
    %1601 = vmatpush1.msra.mxu0 0.0
    %1602 = vmatprep.subr.mxu0 0.0
    %1603 = vmatpush1.msra.mxu0 0.0
    %1604 = vmatprep.subr.mxu0 0.0
    %1605 = vmatpush1.msra.mxu0 0.0
    %1606 = vmatprep.subr.mxu0 0.0
    %1607 = vmatpush1.msra.mxu0 0.0
    %1608 = vmatprep.subr.mxu0 0.0
    %1609 = vmatpush1.msra.mxu0 0.0
    %1610 = vmatprep.subr.mxu0 0.0
    %1611 = vmatpush1.msra.mxu0 0.0
    %1612 = vmatprep.subr.mxu0 0.0
    %1613 = vmatpush1.msra.mxu0 0.0
    %1614 = vmatprep.subr.mxu0 0.0
    %1615 = vmatpush1.msra.mxu0 0.0
    %1616 = vmatprep.subr.mxu0 0.0
    %1617 = vmatpush1.msra.mxu0 0.0
    %1618 = vmatprep.subr.mxu0 0.0
    %1619 = vmatpush1.msra.mxu0 0.0
    %1620 = vmatprep.subr.mxu0 0.0
    %1621 = vmatpush1.msra.mxu0 0.0
    %1622 = vmatprep.subr.mxu0 0.0
    %1623 = vmatpush1.msra.mxu0 0.0
    %1624 = vmatprep.subr.mxu0 0.0
    %1625 = vmatpush1.msra.mxu0 0.0
    %1626 = vmatprep.subr.mxu0 0.0
    %1627 = vmatpush1.msra.mxu0 0.0
    %1628 = vmatprep.subr.mxu0 0.0
    %1629 = vmatpush1.msra.mxu0 0.0
    %1630 = vmatprep.subr.mxu0 0.0
    %1631 = vmatpush1.msra.mxu0 0.0
    %1632 = vmatprep.subr.mxu0 0.0
    %1633 = vmatpush1.msra.mxu0 0.0
    %1634 = vmatprep.subr.mxu0 0.0
    %1635 = vmatpush1.msra.mxu0 0.0
    %1636 = vmatprep.subr.mxu0 0.0
    %1637 = vmatpush1.msra.mxu0 0.0
    %1638 = vmatprep.subr.mxu0 0.0
    %1639 = vmatpush1.msra.mxu0 0.0
    %1640 = vmatprep.subr.mxu0 0.0
    %1641 = vmatpush1.msra.mxu0 0.0
    %1642 = vmatprep.subr.mxu0 0.0
    %1643 = vmatpush1.msra.mxu0 0.0
    %1644 = vmatprep.subr.mxu0 0.0
    %1645 = vmatpush1.msra.mxu0 0.0
    %1646 = vmatprep.subr.mxu0 0.0
    %1647 = vmatpush1.msra.mxu0 0.0
    %1648 = vmatprep.subr.mxu0 0.0
    %1649 = vmatpush1.msra.mxu0 0.0
    %1650 = vmatprep.subr.mxu0 0.0
    %1651 = vmatpush1.msra.mxu0 0.0
    %1652 = vmatprep.subr.mxu0 0.0
    %1653 = vmatpush1.msra.mxu0 0.0
    %1654 = vmatprep.subr.mxu0 0.0
    %1655 = vmatpush1.msra.mxu0 0.0
    %1656 = vmatprep.subr.mxu0 0.0
    %1657 = vmatpush1.msra.mxu0 0.0
    %1658 = vmatprep.subr.mxu0 0.0
    %1659 = vmatpush1.msra.mxu0 0.0
    %1660 = vmatprep.subr.mxu0 0.0
    %1661 = vmatpush1.msra.mxu0 0.0
    %1662 = vmatprep.mubr.f32.mxu0 0.0
    %1663 = vmatmul.mubr.f32.gmra.mrb[0].mxu0 %v1596
    %v1664 = vpop.f32.mrb[0].mxu0
    %v1665 = vadd.f32 0.0, %v1664
    %v1666 = vpop.f32.mrb[0].mxu0
    %1667 = vdwg.mxu0
    %1668 = vrot.lane.b32.xlu0 %v574, 64
    %v1669 = vpop.permute.xlu0 %1668
    %v1672 = vsel %vm278, %v1591, 0
    %1674 = vmatprep.subr.mxu0 0.0
    %1675 = vmatpush1.msra.mxu0 %v1669
    %1676 = vmatprep.subr.mxu0 0.0
    %1677 = vmatpush1.msra.mxu0 0.0
    %1678 = vmatprep.subr.mxu0 0.0
    %1679 = vmatpush1.msra.mxu0 0.0
    %1680 = vmatprep.subr.mxu0 0.0
    %1681 = vmatpush1.msra.mxu0 0.0
    %1682 = vmatprep.subr.mxu0 0.0
    %1683 = vmatpush1.msra.mxu0 0.0
    %1684 = vmatprep.subr.mxu0 0.0
    %1685 = vmatpush1.msra.mxu0 0.0
    %1686 = vmatprep.subr.mxu0 0.0
    %1687 = vmatpush1.msra.mxu0 0.0
    %1688 = vmatprep.subr.mxu0 0.0
    %1689 = vmatpush1.msra.mxu0 0.0
    %1690 = vmatprep.subr.mxu0 0.0
    %1691 = vmatpush1.msra.mxu0 0.0
    %1692 = vmatprep.subr.mxu0 0.0
    %1693 = vmatpush1.msra.mxu0 0.0
    %1694 = vmatprep.subr.mxu0 0.0
    %1695 = vmatpush1.msra.mxu0 0.0
    %1696 = vmatprep.subr.mxu0 0.0
    %1697 = vmatpush1.msra.mxu0 0.0
    %1698 = vmatprep.subr.mxu0 0.0
    %1699 = vmatpush1.msra.mxu0 0.0
    %1700 = vmatprep.subr.mxu0 0.0
    %1701 = vmatpush1.msra.mxu0 0.0
    %1702 = vmatprep.subr.mxu0 0.0
    %1703 = vmatpush1.msra.mxu0 0.0
    %1704 = vmatprep.subr.mxu0 0.0
    %1705 = vmatpush1.msra.mxu0 0.0
    %1706 = vmatprep.subr.mxu0 0.0
    %1707 = vmatpush1.msra.mxu0 0.0
    %1708 = vmatprep.subr.mxu0 0.0
    %1709 = vmatpush1.msra.mxu0 0.0
    %1710 = vmatprep.subr.mxu0 0.0
    %1711 = vmatpush1.msra.mxu0 0.0
    %1712 = vmatprep.subr.mxu0 0.0
    %1713 = vmatpush1.msra.mxu0 0.0
    %1714 = vmatprep.subr.mxu0 0.0
    %1715 = vmatpush1.msra.mxu0 0.0
    %1716 = vmatprep.subr.mxu0 0.0
    %1717 = vmatpush1.msra.mxu0 0.0
    %1718 = vmatprep.subr.mxu0 0.0
    %1719 = vmatpush1.msra.mxu0 0.0
    %1720 = vmatprep.subr.mxu0 0.0
    %1721 = vmatpush1.msra.mxu0 0.0
    %1722 = vmatprep.subr.mxu0 0.0
    %1723 = vmatpush1.msra.mxu0 0.0
    %1724 = vmatprep.subr.mxu0 0.0
    %1725 = vmatpush1.msra.mxu0 0.0
    %1726 = vmatprep.subr.mxu0 0.0
    %1727 = vmatpush1.msra.mxu0 0.0
    %1728 = vmatprep.subr.mxu0 0.0
    %1729 = vmatpush1.msra.mxu0 0.0
    %1730 = vmatprep.subr.mxu0 0.0
    %1731 = vmatpush1.msra.mxu0 0.0
    %1732 = vmatprep.subr.mxu0 0.0
    %1733 = vmatpush1.msra.mxu0 0.0
    %1734 = vmatprep.subr.mxu0 0.0
    %1735 = vmatpush1.msra.mxu0 0.0
    %1736 = vmatprep.subr.mxu0 0.0
    %1737 = vmatpush1.msra.mxu0 0.0
    %1738 = vmatprep.mubr.f32.mxu0 0.0
    %1739 = vmatmul.mubr.f32.gmra.mrb[0].mxu0 %v1672
    %v1740 = vpop.f32.mrb[0].mxu0
    %v1741 = vadd.f32 0.0, %v1740
    %v1742 = vpop.f32.mrb[0].mxu0
    %1743 = vdwg.mxu0
    %v1745 = vsel %vm593, %v1665, 0
    %v1748 = vsel %vm593, %v1741, 0
    %1750 = vmatprep.subr.mxu0 0.0
    %1751 = vmatpush1.msra.mxu0 %v585
    %1752 = vmatprep.subr.mxu0 0.0
    %1753 = vmatpush1.msra.mxu0 %v586
    %1754 = vmatprep.subr.mxu0 0.0
    %1755 = vmatpush1.msra.mxu0 %v587
    %1756 = vmatprep.subr.mxu0 0.0
    %1757 = vmatpush1.msra.mxu0 %v588
    %1758 = vmatprep.subr.mxu0 0.0
    %1759 = vmatpush1.msra.mxu0 0.0
    %1760 = vmatprep.subr.mxu0 0.0
    %1761 = vmatpush1.msra.mxu0 0.0
    %1762 = vmatprep.subr.mxu0 0.0
    %1763 = vmatpush1.msra.mxu0 0.0
    %1764 = vmatprep.subr.mxu0 0.0
    %1765 = vmatpush1.msra.mxu0 0.0
    %1766 = vmatprep.subr.mxu0 0.0
    %1767 = vmatpush1.msra.mxu0 0.0
    %1768 = vmatprep.subr.mxu0 0.0
    %1769 = vmatpush1.msra.mxu0 0.0
    %1770 = vmatprep.subr.mxu0 0.0
    %1771 = vmatpush1.msra.mxu0 0.0
    %1772 = vmatprep.subr.mxu0 0.0
    %1773 = vmatpush1.msra.mxu0 0.0
    %1774 = vmatprep.subr.mxu0 0.0
    %1775 = vmatpush1.msra.mxu0 0.0
    %1776 = vmatprep.subr.mxu0 0.0
    %1777 = vmatpush1.msra.mxu0 0.0
    %1778 = vmatprep.subr.mxu0 0.0
    %1779 = vmatpush1.msra.mxu0 0.0
    %1780 = vmatprep.subr.mxu0 0.0
    %1781 = vmatpush1.msra.mxu0 0.0
    %1782 = vmatprep.subr.mxu0 0.0
    %1783 = vmatpush1.msra.mxu0 0.0
    %1784 = vmatprep.subr.mxu0 0.0
    %1785 = vmatpush1.msra.mxu0 0.0
    %1786 = vmatprep.subr.mxu0 0.0
    %1787 = vmatpush1.msra.mxu0 0.0
    %1788 = vmatprep.subr.mxu0 0.0
    %1789 = vmatpush1.msra.mxu0 0.0
    %1790 = vmatprep.subr.mxu0 0.0
    %1791 = vmatpush1.msra.mxu0 0.0
    %1792 = vmatprep.subr.mxu0 0.0
    %1793 = vmatpush1.msra.mxu0 0.0
    %1794 = vmatprep.subr.mxu0 0.0
    %1795 = vmatpush1.msra.mxu0 0.0
    %1796 = vmatprep.subr.mxu0 0.0
    %1797 = vmatpush1.msra.mxu0 0.0
    %1798 = vmatprep.subr.mxu0 0.0
    %1799 = vmatpush1.msra.mxu0 0.0
    %1800 = vmatprep.subr.mxu0 0.0
    %1801 = vmatpush1.msra.mxu0 0.0
    %1802 = vmatprep.subr.mxu0 0.0
    %1803 = vmatpush1.msra.mxu0 0.0
    %1804 = vmatprep.subr.mxu0 0.0
    %1805 = vmatpush1.msra.mxu0 0.0
    %1806 = vmatprep.subr.mxu0 0.0
    %1807 = vmatpush1.msra.mxu0 0.0
    %1808 = vmatprep.subr.mxu0 0.0
    %1809 = vmatpush1.msra.mxu0 0.0
    %1810 = vmatprep.subr.mxu0 0.0
    %1811 = vmatpush1.msra.mxu0 0.0
    %1812 = vmatprep.subr.mxu0 0.0
    %1813 = vmatpush1.msra.mxu0 0.0
    %1814 = vmatprep.mubr.f32.mxu0 0.0
    %1815 = vmatmul.mubr.f32.gmra.mrb[0].mxu0 %v1745
    %v1816 = vpop.f32.mrb[0].mxu0
    %v1817 = vadd.f32 0.0, %v1816
    %v1818 = vpop.f32.mrb[0].mxu0
    %1819 = vmatprep.mubr.f32.mxu0 0.0
    %1820 = vmatmul.mubr.f32.gmra.mrb[0].mxu0 %v1748
    %v1821 = vpop.f32.mrb[0].mxu0
    %v1822 = vadd.f32 0.0, %v1821
    %v1823 = vpop.f32.mrb[0].mxu0
    %1824 = vdwg.mxu0
    %v1825 = vadd.f32 %v1404, %v1817
    %v1826 = vadd.f32 %v1409, %v1822
    %1827 = vrot.lane.b32.xlu0 %v492, 32
    %v1828 = vpop.permute.xlu0 %1827
    %1829 = vrot.lane.b32.xlu0 %v494, 32
    %v1830 = vpop.permute.xlu0 %1829
    %v1831 = vsel %vm593, %v1828, 0
    %v1833 = vsel %vm593, %v1830, 0
    %1835 = vmatprep.subr.mxu0 0.0
    %1836 = vmatpush1.xpose.msra.mxu0 %v1833
    %1837 = vmatprep.subr.mxu0 0.0
    %1838 = vmatpush1.xpose.msra.mxu0 0.0
    %1839 = vmatprep.subr.mxu0 0.0
    %1840 = vmatpush1.xpose.msra.mxu0 0.0
    %1841 = vmatprep.subr.mxu0 0.0
    %1842 = vmatpush1.xpose.msra.mxu0 0.0
    %1843 = vmatprep.subr.mxu0 0.0
    %1844 = vmatpush1.xpose.msra.mxu0 0.0
    %1845 = vmatprep.subr.mxu0 0.0
    %1846 = vmatpush1.xpose.msra.mxu0 0.0
    %1847 = vmatprep.subr.mxu0 0.0
    %1848 = vmatpush1.xpose.msra.mxu0 0.0
    %1849 = vmatprep.subr.mxu0 0.0
    %1850 = vmatpush1.xpose.msra.mxu0 0.0
    %1851 = vmatprep.subr.mxu0 0.0
    %1852 = vmatpush1.xpose.msra.mxu0 0.0
    %1853 = vmatprep.subr.mxu0 0.0
    %1854 = vmatpush1.xpose.msra.mxu0 0.0
    %1855 = vmatprep.subr.mxu0 0.0
    %1856 = vmatpush1.xpose.msra.mxu0 0.0
    %1857 = vmatprep.subr.mxu0 0.0
    %1858 = vmatpush1.xpose.msra.mxu0 0.0
    %1859 = vmatprep.subr.mxu0 0.0
    %1860 = vmatpush1.xpose.msra.mxu0 0.0
    %1861 = vmatprep.subr.mxu0 0.0
    %1862 = vmatpush1.xpose.msra.mxu0 0.0
    %1863 = vmatprep.subr.mxu0 0.0
    %1864 = vmatpush1.xpose.msra.mxu0 0.0
    %1865 = vmatprep.subr.mxu0 0.0
    %1866 = vmatpush1.xpose.msra.mxu0 0.0
    %1867 = vmatprep.subr.mxu0 0.0
    %1868 = vmatpush1.xpose.msra.mxu0 0.0
    %1869 = vmatprep.subr.mxu0 0.0
    %1870 = vmatpush1.xpose.msra.mxu0 0.0
    %1871 = vmatprep.subr.mxu0 0.0
    %1872 = vmatpush1.xpose.msra.mxu0 0.0
    %1873 = vmatprep.subr.mxu0 0.0
    %1874 = vmatpush1.xpose.msra.mxu0 0.0
    %1875 = vmatprep.subr.mxu0 0.0
    %1876 = vmatpush1.xpose.msra.mxu0 0.0
    %1877 = vmatprep.subr.mxu0 0.0
    %1878 = vmatpush1.xpose.msra.mxu0 0.0
    %1879 = vmatprep.subr.mxu0 0.0
    %1880 = vmatpush1.xpose.msra.mxu0 0.0
    %1881 = vmatprep.subr.mxu0 0.0
    %1882 = vmatpush1.xpose.msra.mxu0 0.0
    %1883 = vmatprep.subr.mxu0 0.0
    %1884 = vmatpush1.xpose.msra.mxu0 0.0
    %1885 = vmatprep.subr.mxu0 0.0
    %1886 = vmatpush1.xpose.msra.mxu0 0.0
    %1887 = vmatprep.subr.mxu0 0.0
    %1888 = vmatpush1.xpose.msra.mxu0 0.0
    %1889 = vmatprep.subr.mxu0 0.0
    %1890 = vmatpush1.xpose.msra.mxu0 0.0
    %1891 = vmatprep.subr.mxu0 0.0
    %1892 = vmatpush1.xpose.msra.mxu0 0.0
    %1893 = vmatprep.subr.mxu0 0.0
    %1894 = vmatpush1.xpose.msra.mxu0 0.0
    %1895 = vmatprep.subr.mxu0 0.0
    %1896 = vmatpush1.xpose.msra.mxu0 0.0
    %1897 = vmatprep.subr.mxu0 0.0
    %1898 = vmatpush1.xpose.msra.mxu0 0.0
    %1899 = vmatprep.mubr.f32.mxu0 0.0
    %1900 = vmatmul.mubr.f32.gmra.mrb[0].mxu0 %v1831
    %v1901 = vpop.f32.mrb[0].mxu0
    %v1902 = vadd.f32 0.0, %v1901
    %v1903 = vpop.f32.mrb[0].mxu0
    %1904 = vdwg.mxu0
    %1905 = vrot.lane.b32.xlu0 %v498, 32
    %v1906 = vpop.permute.xlu0 %1905
    %1907 = vrot.lane.b32.xlu0 %v500, 32
    %v1908 = vpop.permute.xlu0 %1907
    %v1909 = vsel %vm593, %v1906, 0
    %v1911 = vsel %vm593, %v1908, 0
    %1913 = vmatprep.subr.mxu0 0.0
    %1914 = vmatpush1.xpose.msra.mxu0 %v1911
    %1915 = vmatprep.subr.mxu0 0.0
    %1916 = vmatpush1.xpose.msra.mxu0 0.0
    %1917 = vmatprep.subr.mxu0 0.0
    %1918 = vmatpush1.xpose.msra.mxu0 0.0
    %1919 = vmatprep.subr.mxu0 0.0
    %1920 = vmatpush1.xpose.msra.mxu0 0.0
    %1921 = vmatprep.subr.mxu0 0.0
    %1922 = vmatpush1.xpose.msra.mxu0 0.0
    %1923 = vmatprep.subr.mxu0 0.0
    %1924 = vmatpush1.xpose.msra.mxu0 0.0
    %1925 = vmatprep.subr.mxu0 0.0
    %1926 = vmatpush1.xpose.msra.mxu0 0.0
    %1927 = vmatprep.subr.mxu0 0.0
    %1928 = vmatpush1.xpose.msra.mxu0 0.0
    %1929 = vmatprep.subr.mxu0 0.0
    %1930 = vmatpush1.xpose.msra.mxu0 0.0
    %1931 = vmatprep.subr.mxu0 0.0
    %1932 = vmatpush1.xpose.msra.mxu0 0.0
    %1933 = vmatprep.subr.mxu0 0.0
    %1934 = vmatpush1.xpose.msra.mxu0 0.0
    %1935 = vmatprep.subr.mxu0 0.0
    %1936 = vmatpush1.xpose.msra.mxu0 0.0
    %1937 = vmatprep.subr.mxu0 0.0
    %1938 = vmatpush1.xpose.msra.mxu0 0.0
    %1939 = vmatprep.subr.mxu0 0.0
    %1940 = vmatpush1.xpose.msra.mxu0 0.0
    %1941 = vmatprep.subr.mxu0 0.0
    %1942 = vmatpush1.xpose.msra.mxu0 0.0
    %1943 = vmatprep.subr.mxu0 0.0
    %1944 = vmatpush1.xpose.msra.mxu0 0.0
    %1945 = vmatprep.subr.mxu0 0.0
    %1946 = vmatpush1.xpose.msra.mxu0 0.0
    %1947 = vmatprep.subr.mxu0 0.0
    %1948 = vmatpush1.xpose.msra.mxu0 0.0
    %1949 = vmatprep.subr.mxu0 0.0
    %1950 = vmatpush1.xpose.msra.mxu0 0.0
    %1951 = vmatprep.subr.mxu0 0.0
    %1952 = vmatpush1.xpose.msra.mxu0 0.0
    %1953 = vmatprep.subr.mxu0 0.0
    %1954 = vmatpush1.xpose.msra.mxu0 0.0
    %1955 = vmatprep.subr.mxu0 0.0
    %1956 = vmatpush1.xpose.msra.mxu0 0.0
    %1957 = vmatprep.subr.mxu0 0.0
    %1958 = vmatpush1.xpose.msra.mxu0 0.0
    %1959 = vmatprep.subr.mxu0 0.0
    %1960 = vmatpush1.xpose.msra.mxu0 0.0
    %1961 = vmatprep.subr.mxu0 0.0
    %1962 = vmatpush1.xpose.msra.mxu0 0.0
    %1963 = vmatprep.subr.mxu0 0.0
    %1964 = vmatpush1.xpose.msra.mxu0 0.0
    %1965 = vmatprep.subr.mxu0 0.0
    %1966 = vmatpush1.xpose.msra.mxu0 0.0
    %1967 = vmatprep.subr.mxu0 0.0
    %1968 = vmatpush1.xpose.msra.mxu0 0.0
    %1969 = vmatprep.subr.mxu0 0.0
    %1970 = vmatpush1.xpose.msra.mxu0 0.0
    %1971 = vmatprep.subr.mxu0 0.0
    %1972 = vmatpush1.xpose.msra.mxu0 0.0
    %1973 = vmatprep.subr.mxu0 0.0
    %1974 = vmatpush1.xpose.msra.mxu0 0.0
    %1975 = vmatprep.subr.mxu0 0.0
    %1976 = vmatpush1.xpose.msra.mxu0 0.0
    %1977 = vmatprep.mubr.f32.mxu0 0.0
    %1978 = vmatmul.mubr.f32.gmra.mrb[0].mxu0 %v1909
    %v1979 = vpop.f32.mrb[0].mxu0
    %v1980 = vadd.f32 0.0, %v1979
    %v1981 = vpop.f32.mrb[0].mxu0
    %1982 = vdwg.mxu0
    %v1983 = vmul.f32 %v1902, 0.17677669
    %v1984 = vmul.f32 %v1980, 0.17677669
    %v1985 = vsel %vm278, %v1983, -inf
    %1986 = vmax.xlane.f32.xlu0 %v1985
    %v1987 = vpop.xlane.xlu0 %1986
    %v1988 = vsel %vm278, %v1984, -inf
    %1989 = vmax.xlane.f32.xlu0 %v1988
    %v1990 = vpop.xlane.xlu0 %1989
    %v1991 = vsub.f32 %v1983, %v1987
    %v1992 = vsub.f32 %v1984, %v1990
    %v1993 = vmul.f32 %v1991, 1.442695
    %v1994 = vpow.pop %v1993
    %v1995 = vmul.f32 %v1992, 1.442695
    %v1996 = vpow.pop %v1995
    %v1997 = vsel %vm278, %v1994, 0.0
    %1998 = vadd.xlane.f32.xlu0 %v1997
    %v1999 = vpop.xlane.xlu0 %1998
    %v2000 = vsel %vm278, %v1996, 0.0
    %2001 = vadd.xlane.f32.xlu0 %v2000
    %v2002 = vpop.xlane.xlu0 %2001
    %v2003 = vrcp.pop %v1999
    %v2004 = vmul.f32 %v1994, %v2003
    %v2005 = vrcp.pop %v2002
    %v2006 = vmul.f32 %v1996, %v2005
    %2007 = vrot.lane.b32.xlu0 %v569, 32
    %v2008 = vpop.permute.xlu0 %2007
    %v2011 = vsel %vm278, %v2004, 0
    %2013 = vmatprep.subr.mxu0 0.0
    %2014 = vmatpush1.msra.mxu0 %v2008
    %2015 = vmatprep.subr.mxu0 0.0
    %2016 = vmatpush1.msra.mxu0 0.0
    %2017 = vmatprep.subr.mxu0 0.0
    %2018 = vmatpush1.msra.mxu0 0.0
    %2019 = vmatprep.subr.mxu0 0.0
    %2020 = vmatpush1.msra.mxu0 0.0
    %2021 = vmatprep.subr.mxu0 0.0
    %2022 = vmatpush1.msra.mxu0 0.0
    %2023 = vmatprep.subr.mxu0 0.0
    %2024 = vmatpush1.msra.mxu0 0.0
    %2025 = vmatprep.subr.mxu0 0.0
    %2026 = vmatpush1.msra.mxu0 0.0
    %2027 = vmatprep.subr.mxu0 0.0
    %2028 = vmatpush1.msra.mxu0 0.0
    %2029 = vmatprep.subr.mxu0 0.0
    %2030 = vmatpush1.msra.mxu0 0.0
    %2031 = vmatprep.subr.mxu0 0.0
    %2032 = vmatpush1.msra.mxu0 0.0
    %2033 = vmatprep.subr.mxu0 0.0
    %2034 = vmatpush1.msra.mxu0 0.0
    %2035 = vmatprep.subr.mxu0 0.0
    %2036 = vmatpush1.msra.mxu0 0.0
    %2037 = vmatprep.subr.mxu0 0.0
    %2038 = vmatpush1.msra.mxu0 0.0
    %2039 = vmatprep.subr.mxu0 0.0
    %2040 = vmatpush1.msra.mxu0 0.0
    %2041 = vmatprep.subr.mxu0 0.0
    %2042 = vmatpush1.msra.mxu0 0.0
    %2043 = vmatprep.subr.mxu0 0.0
    %2044 = vmatpush1.msra.mxu0 0.0
    %2045 = vmatprep.subr.mxu0 0.0
    %2046 = vmatpush1.msra.mxu0 0.0
    %2047 = vmatprep.subr.mxu0 0.0
    %2048 = vmatpush1.msra.mxu0 0.0
    %2049 = vmatprep.subr.mxu0 0.0
    %2050 = vmatpush1.msra.mxu0 0.0
    %2051 = vmatprep.subr.mxu0 0.0
    %2052 = vmatpush1.msra.mxu0 0.0
    %2053 = vmatprep.subr.mxu0 0.0
    %2054 = vmatpush1.msra.mxu0 0.0
    %2055 = vmatprep.subr.mxu0 0.0
    %2056 = vmatpush1.msra.mxu0 0.0
    %2057 = vmatprep.subr.mxu0 0.0
    %2058 = vmatpush1.msra.mxu0 0.0
    %2059 = vmatprep.subr.mxu0 0.0
    %2060 = vmatpush1.msra.mxu0 0.0
    %2061 = vmatprep.subr.mxu0 0.0
    %2062 = vmatpush1.msra.mxu0 0.0
    %2063 = vmatprep.subr.mxu0 0.0
    %2064 = vmatpush1.msra.mxu0 0.0
    %2065 = vmatprep.subr.mxu0 0.0
    %2066 = vmatpush1.msra.mxu0 0.0
    %2067 = vmatprep.subr.mxu0 0.0
    %2068 = vmatpush1.msra.mxu0 0.0
    %2069 = vmatprep.subr.mxu0 0.0
    %2070 = vmatpush1.msra.mxu0 0.0
    %2071 = vmatprep.subr.mxu0 0.0
    %2072 = vmatpush1.msra.mxu0 0.0
    %2073 = vmatprep.subr.mxu0 0.0
    %2074 = vmatpush1.msra.mxu0 0.0
    %2075 = vmatprep.subr.mxu0 0.0
    %2076 = vmatpush1.msra.mxu0 0.0
    %2077 = vmatprep.mubr.f32.mxu0 0.0
    %2078 = vmatmul.mubr.f32.gmra.mrb[0].mxu0 %v2011
    %v2079 = vpop.f32.mrb[0].mxu0
    %v2080 = vadd.f32 0.0, %v2079
    %v2081 = vpop.f32.mrb[0].mxu0
    %2082 = vdwg.mxu0
    %2083 = vrot.lane.b32.xlu0 %v574, 32
    %v2084 = vpop.permute.xlu0 %2083
    %v2087 = vsel %vm278, %v2006, 0
    %2089 = vmatprep.subr.mxu0 0.0
    %2090 = vmatpush1.msra.mxu0 %v2084
    %2091 = vmatprep.subr.mxu0 0.0
    %2092 = vmatpush1.msra.mxu0 0.0
    %2093 = vmatprep.subr.mxu0 0.0
    %2094 = vmatpush1.msra.mxu0 0.0
    %2095 = vmatprep.subr.mxu0 0.0
    %2096 = vmatpush1.msra.mxu0 0.0
    %2097 = vmatprep.subr.mxu0 0.0
    %2098 = vmatpush1.msra.mxu0 0.0
    %2099 = vmatprep.subr.mxu0 0.0
    %2100 = vmatpush1.msra.mxu0 0.0
    %2101 = vmatprep.subr.mxu0 0.0
    %2102 = vmatpush1.msra.mxu0 0.0
    %2103 = vmatprep.subr.mxu0 0.0
    %2104 = vmatpush1.msra.mxu0 0.0
    %2105 = vmatprep.subr.mxu0 0.0
    %2106 = vmatpush1.msra.mxu0 0.0
    %2107 = vmatprep.subr.mxu0 0.0
    %2108 = vmatpush1.msra.mxu0 0.0
    %2109 = vmatprep.subr.mxu0 0.0
    %2110 = vmatpush1.msra.mxu0 0.0
    %2111 = vmatprep.subr.mxu0 0.0
    %2112 = vmatpush1.msra.mxu0 0.0
    %2113 = vmatprep.subr.mxu0 0.0
    %2114 = vmatpush1.msra.mxu0 0.0
    %2115 = vmatprep.subr.mxu0 0.0
    %2116 = vmatpush1.msra.mxu0 0.0
    %2117 = vmatprep.subr.mxu0 0.0
    %2118 = vmatpush1.msra.mxu0 0.0
    %2119 = vmatprep.subr.mxu0 0.0
    %2120 = vmatpush1.msra.mxu0 0.0
    %2121 = vmatprep.subr.mxu0 0.0
    %2122 = vmatpush1.msra.mxu0 0.0
    %2123 = vmatprep.subr.mxu0 0.0
    %2124 = vmatpush1.msra.mxu0 0.0
    %2125 = vmatprep.subr.mxu0 0.0
    %2126 = vmatpush1.msra.mxu0 0.0
    %2127 = vmatprep.subr.mxu0 0.0
    %2128 = vmatpush1.msra.mxu0 0.0
    %2129 = vmatprep.subr.mxu0 0.0
    %2130 = vmatpush1.msra.mxu0 0.0
    %2131 = vmatprep.subr.mxu0 0.0
    %2132 = vmatpush1.msra.mxu0 0.0
    %2133 = vmatprep.subr.mxu0 0.0
    %2134 = vmatpush1.msra.mxu0 0.0
    %2135 = vmatprep.subr.mxu0 0.0
    %2136 = vmatpush1.msra.mxu0 0.0
    %2137 = vmatprep.subr.mxu0 0.0
    %2138 = vmatpush1.msra.mxu0 0.0
    %2139 = vmatprep.subr.mxu0 0.0
    %2140 = vmatpush1.msra.mxu0 0.0
    %2141 = vmatprep.subr.mxu0 0.0
    %2142 = vmatpush1.msra.mxu0 0.0
    %2143 = vmatprep.subr.mxu0 0.0
    %2144 = vmatpush1.msra.mxu0 0.0
    %2145 = vmatprep.subr.mxu0 0.0
    %2146 = vmatpush1.msra.mxu0 0.0
    %2147 = vmatprep.subr.mxu0 0.0
    %2148 = vmatpush1.msra.mxu0 0.0
    %2149 = vmatprep.subr.mxu0 0.0
    %2150 = vmatpush1.msra.mxu0 0.0
    %2151 = vmatprep.subr.mxu0 0.0
    %2152 = vmatpush1.msra.mxu0 0.0
    %2153 = vmatprep.mubr.f32.mxu0 0.0
    %2154 = vmatmul.mubr.f32.gmra.mrb[0].mxu0 %v2087
    %v2155 = vpop.f32.mrb[0].mxu0
    %v2156 = vadd.f32 0.0, %v2155
    %v2157 = vpop.f32.mrb[0].mxu0
    %2158 = vdwg.mxu0
    %v2160 = vsel %vm593, %v2080, 0
    %v2163 = vsel %vm593, %v2156, 0
    %2165 = vmatprep.subr.mxu0 0.0
    %2166 = vmatpush1.msra.mxu0 %v589
    %2167 = vmatprep.subr.mxu0 0.0
    %2168 = vmatpush1.msra.mxu0 %v590
    %2169 = vmatprep.subr.mxu0 0.0
    %2170 = vmatpush1.msra.mxu0 %v591
    %2171 = vmatprep.subr.mxu0 0.0
    %2172 = vmatpush1.msra.mxu0 %v592
    %2173 = vmatprep.subr.mxu0 0.0
    %2174 = vmatpush1.msra.mxu0 0.0
    %2175 = vmatprep.subr.mxu0 0.0
    %2176 = vmatpush1.msra.mxu0 0.0
    %2177 = vmatprep.subr.mxu0 0.0
    %2178 = vmatpush1.msra.mxu0 0.0
    %2179 = vmatprep.subr.mxu0 0.0
    %2180 = vmatpush1.msra.mxu0 0.0
    %2181 = vmatprep.subr.mxu0 0.0
    %2182 = vmatpush1.msra.mxu0 0.0
    %2183 = vmatprep.subr.mxu0 0.0
    %2184 = vmatpush1.msra.mxu0 0.0
    %2185 = vmatprep.subr.mxu0 0.0
    %2186 = vmatpush1.msra.mxu0 0.0
    %2187 = vmatprep.subr.mxu0 0.0
    %2188 = vmatpush1.msra.mxu0 0.0
    %2189 = vmatprep.subr.mxu0 0.0
    %2190 = vmatpush1.msra.mxu0 0.0
    %2191 = vmatprep.subr.mxu0 0.0
    %2192 = vmatpush1.msra.mxu0 0.0
    %2193 = vmatprep.subr.mxu0 0.0
    %2194 = vmatpush1.msra.mxu0 0.0
    %2195 = vmatprep.subr.mxu0 0.0
    %2196 = vmatpush1.msra.mxu0 0.0
    %2197 = vmatprep.subr.mxu0 0.0
    %2198 = vmatpush1.msra.mxu0 0.0
    %2199 = vmatprep.subr.mxu0 0.0
    %2200 = vmatpush1.msra.mxu0 0.0
    %2201 = vmatprep.subr.mxu0 0.0
    %2202 = vmatpush1.msra.mxu0 0.0
    %2203 = vmatprep.subr.mxu0 0.0
    %2204 = vmatpush1.msra.mxu0 0.0
    %2205 = vmatprep.subr.mxu0 0.0
    %2206 = vmatpush1.msra.mxu0 0.0
    %2207 = vmatprep.subr.mxu0 0.0
    %2208 = vmatpush1.msra.mxu0 0.0
    %2209 = vmatprep.subr.mxu0 0.0
    %2210 = vmatpush1.msra.mxu0 0.0
    %2211 = vmatprep.subr.mxu0 0.0
    %2212 = vmatpush1.msra.mxu0 0.0
    %2213 = vmatprep.subr.mxu0 0.0
    %2214 = vmatpush1.msra.mxu0 0.0
    %2215 = vmatprep.subr.mxu0 0.0
    %2216 = vmatpush1.msra.mxu0 0.0
    %2217 = vmatprep.subr.mxu0 0.0
    %2218 = vmatpush1.msra.mxu0 0.0
    %2219 = vmatprep.subr.mxu0 0.0
    %2220 = vmatpush1.msra.mxu0 0.0
    %2221 = vmatprep.subr.mxu0 0.0
    %2222 = vmatpush1.msra.mxu0 0.0
    %2223 = vmatprep.subr.mxu0 0.0
    %2224 = vmatpush1.msra.mxu0 0.0
    %2225 = vmatprep.subr.mxu0 0.0
    %2226 = vmatpush1.msra.mxu0 0.0
    %2227 = vmatprep.subr.mxu0 0.0
    %2228 = vmatpush1.msra.mxu0 0.0
    %2229 = vmatprep.mubr.f32.mxu0 0.0
    %2230 = vmatmul.mubr.f32.gmra.mrb[0].mxu0 %v2160
    %v2231 = vpop.f32.mrb[0].mxu0
    %v2232 = vadd.f32 0.0, %v2231
    %v2233 = vpop.f32.mrb[0].mxu0
    %2234 = vmatprep.mubr.f32.mxu0 0.0
    %2235 = vmatmul.mubr.f32.gmra.mrb[0].mxu0 %v2163
    %v2236 = vpop.f32.mrb[0].mxu0
    %v2237 = vadd.f32 0.0, %v2236
    %v2238 = vpop.f32.mrb[0].mxu0
    %2239 = vdwg.mxu0
    %v2240 = vadd.f32 %v1825, %v2232
    %v2241 = vadd.f32 %v1826, %v2237
    %v2242 = vld [vmem:[#allocation11] sm:$0x1]
    %v2244 = vlaneseq
    %v2245 = vshrl.u32 %v2244, 7
    %v2246 = vsub.s32 0, %v2245
    %v2247 = vrot.slane %v2242, %v2246
    %v2249 = vadd.f32 %v2240, %v2247
    %v2250 = vadd.f32 %v2241, %v2247
    %v2251 = vadd.f32 %v352, %v2249
    %v2252 = vadd.f32 %v357, %v2250
    %v2253 = vld [vmem:[#allocation13] sm:$0x1]
    %v2254 = vld [vmem:[#allocation14] sm:$0x1]
    %2255 = vadd.xlane.f32.xlu0 %v2251
    %v2256 = vpop.xlane.xlu0 %2255
    %2257 = vadd.xlane.f32.xlu0 %v2252
    %v2258 = vpop.xlane.xlu0 %2257
    %v2259 = vrcp.pop 128.0
    %v2260 = vmul.f32 %v2256, %v2259
    %v2261 = vmul.f32 %v2258, %v2259
    %v2262 = vsub.f32 %v2251, %v2260
    %v2263 = vsub.f32 %v2252, %v2261
    %v2264 = vmul.f32 %v2262, %v2262
    %v2265 = vmul.f32 %v2263, %v2263
    %2266 = vadd.xlane.f32.xlu0 %v2264
    %v2267 = vpop.xlane.xlu0 %2266
    %2268 = vadd.xlane.f32.xlu0 %v2265
    %v2269 = vpop.xlane.xlu0 %2268
    %v2270 = vmul.f32 %v2267, %v2259
    %v2271 = vmul.f32 %v2269, %v2259
    %v2272 = vadd.f32 %v2270, 1e-05
    %v2273 = vadd.f32 %v2271, 1e-05
    %v2274 = vrsqrt.pop %v2272
    %v2275 = vrsqrt.pop %v2273
    %v2276 = vmul.f32 %v2262, %v2274
    %v2277 = vmul.f32 %v2263, %v2275
    %v2279 = vlaneseq
    %v2280 = vshrl.u32 %v2279, 7
    %v2281 = vsub.s32 0, %v2280
    %v2282 = vrot.slane %v2253, %v2281
    %v2284 = vmul.f32 %v2276, %v2282
    %v2285 = vmul.f32 %v2277, %v2282
    %v2287 = vlaneseq
    %v2288 = vshrl.u32 %v2287, 7
    %v2289 = vsub.s32 0, %v2288
    %v2290 = vrot.slane %v2254, %v2289
    %v2292 = vadd.f32 %v2284, %v2290
    %v2293 = vadd.f32 %v2285, %v2290
    %v2294 = vld [vmem:[#allocation16] sm:$0xff]
    %v2295 = vld [vmem:[#allocation16 + $0x8] sm:$0xff]
    %v2296 = vld [vmem:[#allocation16 + $0x10] sm:$0xff]
    %v2297 = vld [vmem:[#allocation16 + $0x18] sm:$0xff]
    %v2298 = vld [vmem:[#allocation16 + $0x20] sm:$0xff]
    %v2299 = vld [vmem:[#allocation16 + $0x28] sm:$0xff]
    %v2300 = vld [vmem:[#allocation16 + $0x30] sm:$0xff]
    %v2301 = vld [vmem:[#allocation16 + $0x38] sm:$0xff]
    %v2302 = vld [vmem:[#allocation16 + $0x40] sm:$0xff]
    %v2303 = vld [vmem:[#allocation16 + $0x48] sm:$0xff]
    %v2304 = vld [vmem:[#allocation16 + $0x50] sm:$0xff]
    %v2305 = vld [vmem:[#allocation16 + $0x58] sm:$0xff]
    %v2306 = vld [vmem:[#allocation16 + $0x60] sm:$0xff]
    %v2307 = vld [vmem:[#allocation16 + $0x68] sm:$0xff]
    %v2308 = vld [vmem:[#allocation16 + $0x70] sm:$0xff]
    %v2309 = vld [vmem:[#allocation16 + $0x78] sm:$0xff]
    %v2310 = vld [vmem:[#allocation16 + $0x80] sm:$0xff]
    %v2311 = vld [vmem:[#allocation16 + $0x88] sm:$0xff]
    %v2312 = vld [vmem:[#allocation16 + $0x90] sm:$0xff]
    %v2313 = vld [vmem:[#allocation16 + $0x98] sm:$0xff]
    %v2314 = vld [vmem:[#allocation16 + $0xa0] sm:$0xff]
    %v2315 = vld [vmem:[#allocation16 + $0xa8] sm:$0xff]
    %v2316 = vld [vmem:[#allocation16 + $0xb0] sm:$0xff]
    %v2317 = vld [vmem:[#allocation16 + $0xb8] sm:$0xff]
    %v2318 = vld [vmem:[#allocation16 + $0xc0] sm:$0xff]
    %v2319 = vld [vmem:[#allocation16 + $0xc8] sm:$0xff]
    %v2320 = vld [vmem:[#allocation16 + $0xd0] sm:$0xff]
    %v2321 = vld [vmem:[#allocation16 + $0xd8] sm:$0xff]
    %v2322 = vld [vmem:[#allocation16 + $0xe0] sm:$0xff]
    %v2323 = vld [vmem:[#allocation16 + $0xe8] sm:$0xff]
    %v2324 = vld [vmem:[#allocation16 + $0xf0] sm:$0xff]
    %v2325 = vld [vmem:[#allocation16 + $0xf8] sm:$0xff]
    %v2326 = vld [vmem:[#allocation16 + $0x100] sm:$0xff]
    %v2327 = vld [vmem:[#allocation16 + $0x108] sm:$0xff]
    %v2328 = vld [vmem:[#allocation16 + $0x110] sm:$0xff]
    %v2329 = vld [vmem:[#allocation16 + $0x118] sm:$0xff]
    %v2330 = vld [vmem:[#allocation16 + $0x120] sm:$0xff]
    %v2331 = vld [vmem:[#allocation16 + $0x128] sm:$0xff]
    %v2332 = vld [vmem:[#allocation16 + $0x130] sm:$0xff]
    %v2333 = vld [vmem:[#allocation16 + $0x138] sm:$0xff]
    %v2334 = vld [vmem:[#allocation16 + $0x140] sm:$0xff]
    %v2335 = vld [vmem:[#allocation16 + $0x148] sm:$0xff]
    %v2336 = vld [vmem:[#allocation16 + $0x150] sm:$0xff]
    %v2337 = vld [vmem:[#allocation16 + $0x158] sm:$0xff]
    %v2338 = vld [vmem:[#allocation16 + $0x160] sm:$0xff]
    %v2339 = vld [vmem:[#allocation16 + $0x168] sm:$0xff]
    %v2340 = vld [vmem:[#allocation16 + $0x170] sm:$0xff]
    %v2341 = vld [vmem:[#allocation16 + $0x178] sm:$0xff]
    %v2342 = vld [vmem:[#allocation16 + $0x180] sm:$0xff]
    %v2343 = vld [vmem:[#allocation16 + $0x188] sm:$0xff]
    %v2344 = vld [vmem:[#allocation16 + $0x190] sm:$0xff]
    %v2345 = vld [vmem:[#allocation16 + $0x198] sm:$0xff]
    %v2346 = vld [vmem:[#allocation16 + $0x1a0] sm:$0xff]
    %v2347 = vld [vmem:[#allocation16 + $0x1a8] sm:$0xff]
    %v2348 = vld [vmem:[#allocation16 + $0x1b0] sm:$0xff]
    %v2349 = vld [vmem:[#allocation16 + $0x1b8] sm:$0xff]
    %v2350 = vld [vmem:[#allocation16 + $0x1c0] sm:$0xff]
    %v2351 = vld [vmem:[#allocation16 + $0x1c8] sm:$0xff]
    %v2352 = vld [vmem:[#allocation16 + $0x1d0] sm:$0xff]
    %v2353 = vld [vmem:[#allocation16 + $0x1d8] sm:$0xff]
    %v2354 = vld [vmem:[#allocation16 + $0x1e0] sm:$0xff]
    %v2355 = vld [vmem:[#allocation16 + $0x1e8] sm:$0xff]
    %v2356 = vld [vmem:[#allocation16 + $0x1f0] sm:$0xff]
    %v2357 = vld [vmem:[#allocation16 + $0x1f8] sm:$0xff]
    %v2358 = vld [vmem:[#allocation16 + $0x200] sm:$0xff]
    %v2359 = vld [vmem:[#allocation16 + $0x208] sm:$0xff]
    %v2360 = vld [vmem:[#allocation16 + $0x210] sm:$0xff]
    %v2361 = vld [vmem:[#allocation16 + $0x218] sm:$0xff]
    %v2362 = vld [vmem:[#allocation16 + $0x220] sm:$0xff]
    %v2363 = vld [vmem:[#allocation16 + $0x228] sm:$0xff]
    %v2364 = vld [vmem:[#allocation16 + $0x230] sm:$0xff]
    %v2365 = vld [vmem:[#allocation16 + $0x238] sm:$0xff]
    %v2366 = vld [vmem:[#allocation16 + $0x240] sm:$0xff]
    %v2367 = vld [vmem:[#allocation16 + $0x248] sm:$0xff]
    %v2368 = vld [vmem:[#allocation16 + $0x250] sm:$0xff]
    %v2369 = vld [vmem:[#allocation16 + $0x258] sm:$0xff]
    %v2370 = vld [vmem:[#allocation16 + $0x260] sm:$0xff]
    %v2371 = vld [vmem:[#allocation16 + $0x268] sm:$0xff]
    %v2372 = vld [vmem:[#allocation16 + $0x270] sm:$0xff]
    %v2373 = vld [vmem:[#allocation16 + $0x278] sm:$0xff]
    %v2374 = vld [vmem:[#allocation16 + $0x280] sm:$0xff]
    %v2375 = vld [vmem:[#allocation16 + $0x288] sm:$0xff]
    %v2376 = vld [vmem:[#allocation16 + $0x290] sm:$0xff]
    %v2377 = vld [vmem:[#allocation16 + $0x298] sm:$0xff]
    %v2378 = vld [vmem:[#allocation16 + $0x2a0] sm:$0xff]
    %v2379 = vld [vmem:[#allocation16 + $0x2a8] sm:$0xff]
    %v2380 = vld [vmem:[#allocation16 + $0x2b0] sm:$0xff]
    %v2381 = vld [vmem:[#allocation16 + $0x2b8] sm:$0xff]
    %v2382 = vld [vmem:[#allocation16 + $0x2c0] sm:$0xff]
    %v2383 = vld [vmem:[#allocation16 + $0x2c8] sm:$0xff]
    %v2384 = vld [vmem:[#allocation16 + $0x2d0] sm:$0xff]
    %v2385 = vld [vmem:[#allocation16 + $0x2d8] sm:$0xff]
    %v2386 = vld [vmem:[#allocation16 + $0x2e0] sm:$0xff]
    %v2387 = vld [vmem:[#allocation16 + $0x2e8] sm:$0xff]
    %v2388 = vld [vmem:[#allocation16 + $0x2f0] sm:$0xff]
    %v2389 = vld [vmem:[#allocation16 + $0x2f8] sm:$0xff]
    %v2390 = vld [vmem:[#allocation16 + $0x300] sm:$0xff]
    %v2391 = vld [vmem:[#allocation16 + $0x308] sm:$0xff]
    %v2392 = vld [vmem:[#allocation16 + $0x310] sm:$0xff]
    %v2393 = vld [vmem:[#allocation16 + $0x318] sm:$0xff]
    %v2394 = vld [vmem:[#allocation16 + $0x320] sm:$0xff]
    %v2395 = vld [vmem:[#allocation16 + $0x328] sm:$0xff]
    %v2396 = vld [vmem:[#allocation16 + $0x330] sm:$0xff]
    %v2397 = vld [vmem:[#allocation16 + $0x338] sm:$0xff]
    %v2398 = vld [vmem:[#allocation16 + $0x340] sm:$0xff]
    %v2399 = vld [vmem:[#allocation16 + $0x348] sm:$0xff]
    %v2400 = vld [vmem:[#allocation16 + $0x350] sm:$0xff]
    %v2401 = vld [vmem:[#allocation16 + $0x358] sm:$0xff]
    %v2402 = vld [vmem:[#allocation16 + $0x360] sm:$0xff]
    %v2403 = vld [vmem:[#allocation16 + $0x368] sm:$0xff]
    %v2404 = vld [vmem:[#allocation16 + $0x370] sm:$0xff]
    %v2405 = vld [vmem:[#allocation16 + $0x378] sm:$0xff]
    %v2406 = vld [vmem:[#allocation16 + $0x380] sm:$0xff]
    %v2407 = vld [vmem:[#allocation16 + $0x388] sm:$0xff]
    %v2408 = vld [vmem:[#allocation16 + $0x390] sm:$0xff]
    %v2409 = vld [vmem:[#allocation16 + $0x398] sm:$0xff]
    %v2410 = vld [vmem:[#allocation16 + $0x3a0] sm:$0xff]
    %v2411 = vld [vmem:[#allocation16 + $0x3a8] sm:$0xff]
    %v2412 = vld [vmem:[#allocation16 + $0x3b0] sm:$0xff]
    %v2413 = vld [vmem:[#allocation16 + $0x3b8] sm:$0xff]
    %v2414 = vld [vmem:[#allocation16 + $0x3c0] sm:$0xff]
    %v2415 = vld [vmem:[#allocation16 + $0x3c8] sm:$0xff]
    %v2416 = vld [vmem:[#allocation16 + $0x3d0] sm:$0xff]
    %v2417 = vld [vmem:[#allocation16 + $0x3d8] sm:$0xff]
    %v2418 = vld [vmem:[#allocation16 + $0x3e0] sm:$0xff]
    %v2419 = vld [vmem:[#allocation16 + $0x3e8] sm:$0xff]
    %v2420 = vld [vmem:[#allocation16 + $0x3f0] sm:$0xff]
    %v2421 = vld [vmem:[#allocation16 + $0x3f8] sm:$0xff]
    %v2422 = vld [vmem:[#allocation16 + $0x400] sm:$0xff]
    %v2423 = vld [vmem:[#allocation16 + $0x408] sm:$0xff]
    %v2424 = vld [vmem:[#allocation16 + $0x410] sm:$0xff]
    %v2425 = vld [vmem:[#allocation16 + $0x418] sm:$0xff]
    %v2426 = vld [vmem:[#allocation16 + $0x420] sm:$0xff]
    %v2427 = vld [vmem:[#allocation16 + $0x428] sm:$0xff]
    %v2428 = vld [vmem:[#allocation16 + $0x430] sm:$0xff]
    %v2429 = vld [vmem:[#allocation16 + $0x438] sm:$0xff]
    %v2430 = vld [vmem:[#allocation16 + $0x440] sm:$0xff]
    %v2431 = vld [vmem:[#allocation16 + $0x448] sm:$0xff]
    %v2432 = vld [vmem:[#allocation16 + $0x450] sm:$0xff]
    %v2433 = vld [vmem:[#allocation16 + $0x458] sm:$0xff]
    %v2434 = vld [vmem:[#allocation16 + $0x460] sm:$0xff]
    %v2435 = vld [vmem:[#allocation16 + $0x468] sm:$0xff]
    %v2436 = vld [vmem:[#allocation16 + $0x470] sm:$0xff]
    %v2437 = vld [vmem:[#allocation16 + $0x478] sm:$0xff]
    %v2438 = vld [vmem:[#allocation16 + $0x480] sm:$0xff]
    %v2439 = vld [vmem:[#allocation16 + $0x488] sm:$0xff]
    %v2440 = vld [vmem:[#allocation16 + $0x490] sm:$0xff]
    %v2441 = vld [vmem:[#allocation16 + $0x498] sm:$0xff]
    %v2442 = vld [vmem:[#allocation16 + $0x4a0] sm:$0xff]
    %v2443 = vld [vmem:[#allocation16 + $0x4a8] sm:$0xff]
    %v2444 = vld [vmem:[#allocation16 + $0x4b0] sm:$0xff]
    %v2445 = vld [vmem:[#allocation16 + $0x4b8] sm:$0xff]
    %v2446 = vld [vmem:[#allocation16 + $0x4c0] sm:$0xff]
    %v2447 = vld [vmem:[#allocation16 + $0x4c8] sm:$0xff]
    %v2448 = vld [vmem:[#allocation16 + $0x4d0] sm:$0xff]
    %v2449 = vld [vmem:[#allocation16 + $0x4d8] sm:$0xff]
    %v2450 = vld [vmem:[#allocation16 + $0x4e0] sm:$0xff]
    %v2451 = vld [vmem:[#allocation16 + $0x4e8] sm:$0xff]
    %v2452 = vld [vmem:[#allocation16 + $0x4f0] sm:$0xff]
    %v2453 = vld [vmem:[#allocation16 + $0x4f8] sm:$0xff]
    %v2454 = vld [vmem:[#allocation16 + $0x500] sm:$0xff]
    %v2455 = vld [vmem:[#allocation16 + $0x508] sm:$0xff]
    %v2456 = vld [vmem:[#allocation16 + $0x510] sm:$0xff]
    %v2457 = vld [vmem:[#allocation16 + $0x518] sm:$0xff]
    %v2458 = vld [vmem:[#allocation16 + $0x520] sm:$0xff]
    %v2459 = vld [vmem:[#allocation16 + $0x528] sm:$0xff]
    %v2460 = vld [vmem:[#allocation16 + $0x530] sm:$0xff]
    %v2461 = vld [vmem:[#allocation16 + $0x538] sm:$0xff]
    %v2462 = vld [vmem:[#allocation16 + $0x540] sm:$0xff]
    %v2463 = vld [vmem:[#allocation16 + $0x548] sm:$0xff]
    %v2464 = vld [vmem:[#allocation16 + $0x550] sm:$0xff]
    %v2465 = vld [vmem:[#allocation16 + $0x558] sm:$0xff]
    %v2466 = vld [vmem:[#allocation16 + $0x560] sm:$0xff]
    %v2467 = vld [vmem:[#allocation16 + $0x568] sm:$0xff]
    %v2468 = vld [vmem:[#allocation16 + $0x570] sm:$0xff]
    %v2469 = vld [vmem:[#allocation16 + $0x578] sm:$0xff]
    %v2470 = vld [vmem:[#allocation16 + $0x580] sm:$0xff]
    %v2471 = vld [vmem:[#allocation16 + $0x588] sm:$0xff]
    %v2472 = vld [vmem:[#allocation16 + $0x590] sm:$0xff]
    %v2473 = vld [vmem:[#allocation16 + $0x598] sm:$0xff]
    %v2474 = vld [vmem:[#allocation16 + $0x5a0] sm:$0xff]
    %v2475 = vld [vmem:[#allocation16 + $0x5a8] sm:$0xff]
    %v2476 = vld [vmem:[#allocation16 + $0x5b0] sm:$0xff]
    %v2477 = vld [vmem:[#allocation16 + $0x5b8] sm:$0xff]
    %v2478 = vld [vmem:[#allocation16 + $0x5c0] sm:$0xff]
    %v2479 = vld [vmem:[#allocation16 + $0x5c8] sm:$0xff]
    %v2480 = vld [vmem:[#allocation16 + $0x5d0] sm:$0xff]
    %v2481 = vld [vmem:[#allocation16 + $0x5d8] sm:$0xff]
    %v2482 = vld [vmem:[#allocation16 + $0x5e0] sm:$0xff]
    %v2483 = vld [vmem:[#allocation16 + $0x5e8] sm:$0xff]
    %v2484 = vld [vmem:[#allocation16 + $0x5f0] sm:$0xff]
    %v2485 = vld [vmem:[#allocation16 + $0x5f8] sm:$0xff]
    %v2486 = vld [vmem:[#allocation16 + $0x600] sm:$0xff]
    %v2487 = vld [vmem:[#allocation16 + $0x608] sm:$0xff]
    %v2488 = vld [vmem:[#allocation16 + $0x610] sm:$0xff]
    %v2489 = vld [vmem:[#allocation16 + $0x618] sm:$0xff]
    %v2490 = vld [vmem:[#allocation16 + $0x620] sm:$0xff]
    %v2491 = vld [vmem:[#allocation16 + $0x628] sm:$0xff]
    %v2492 = vld [vmem:[#allocation16 + $0x630] sm:$0xff]
    %v2493 = vld [vmem:[#allocation16 + $0x638] sm:$0xff]
    %v2494 = vld [vmem:[#allocation16 + $0x640] sm:$0xff]
    %v2495 = vld [vmem:[#allocation16 + $0x648] sm:$0xff]
    %v2496 = vld [vmem:[#allocation16 + $0x650] sm:$0xff]
    %v2497 = vld [vmem:[#allocation16 + $0x658] sm:$0xff]
    %v2498 = vld [vmem:[#allocation16 + $0x660] sm:$0xff]
    %v2499 = vld [vmem:[#allocation16 + $0x668] sm:$0xff]
    %v2500 = vld [vmem:[#allocation16 + $0x670] sm:$0xff]
    %v2501 = vld [vmem:[#allocation16 + $0x678] sm:$0xff]
    %v2502 = vld [vmem:[#allocation16 + $0x680] sm:$0xff]
    %v2503 = vld [vmem:[#allocation16 + $0x688] sm:$0xff]
    %v2504 = vld [vmem:[#allocation16 + $0x690] sm:$0xff]
    %v2505 = vld [vmem:[#allocation16 + $0x698] sm:$0xff]
    %v2506 = vld [vmem:[#allocation16 + $0x6a0] sm:$0xff]
    %v2507 = vld [vmem:[#allocation16 + $0x6a8] sm:$0xff]
    %v2508 = vld [vmem:[#allocation16 + $0x6b0] sm:$0xff]
    %v2509 = vld [vmem:[#allocation16 + $0x6b8] sm:$0xff]
    %v2510 = vld [vmem:[#allocation16 + $0x6c0] sm:$0xff]
    %v2511 = vld [vmem:[#allocation16 + $0x6c8] sm:$0xff]
    %v2512 = vld [vmem:[#allocation16 + $0x6d0] sm:$0xff]
    %v2513 = vld [vmem:[#allocation16 + $0x6d8] sm:$0xff]
    %v2514 = vld [vmem:[#allocation16 + $0x6e0] sm:$0xff]
    %v2515 = vld [vmem:[#allocation16 + $0x6e8] sm:$0xff]
    %v2516 = vld [vmem:[#allocation16 + $0x6f0] sm:$0xff]
    %v2517 = vld [vmem:[#allocation16 + $0x6f8] sm:$0xff]
    %v2518 = vld [vmem:[#allocation16 + $0x700] sm:$0xff]
    %v2519 = vld [vmem:[#allocation16 + $0x708] sm:$0xff]
    %v2520 = vld [vmem:[#allocation16 + $0x710] sm:$0xff]
    %v2521 = vld [vmem:[#allocation16 + $0x718] sm:$0xff]
    %v2522 = vld [vmem:[#allocation16 + $0x720] sm:$0xff]
    %v2523 = vld [vmem:[#allocation16 + $0x728] sm:$0xff]
    %v2524 = vld [vmem:[#allocation16 + $0x730] sm:$0xff]
    %v2525 = vld [vmem:[#allocation16 + $0x738] sm:$0xff]
    %v2526 = vld [vmem:[#allocation16 + $0x740] sm:$0xff]
    %v2527 = vld [vmem:[#allocation16 + $0x748] sm:$0xff]
    %v2528 = vld [vmem:[#allocation16 + $0x750] sm:$0xff]
    %v2529 = vld [vmem:[#allocation16 + $0x758] sm:$0xff]
    %v2530 = vld [vmem:[#allocation16 + $0x760] sm:$0xff]
    %v2531 = vld [vmem:[#allocation16 + $0x768] sm:$0xff]
    %v2532 = vld [vmem:[#allocation16 + $0x770] sm:$0xff]
    %v2533 = vld [vmem:[#allocation16 + $0x778] sm:$0xff]
    %v2534 = vld [vmem:[#allocation16 + $0x780] sm:$0xff]
    %v2535 = vld [vmem:[#allocation16 + $0x788] sm:$0xff]
    %v2536 = vld [vmem:[#allocation16 + $0x790] sm:$0xff]
    %v2537 = vld [vmem:[#allocation16 + $0x798] sm:$0xff]
    %v2538 = vld [vmem:[#allocation16 + $0x7a0] sm:$0xff]
    %v2539 = vld [vmem:[#allocation16 + $0x7a8] sm:$0xff]
    %v2540 = vld [vmem:[#allocation16 + $0x7b0] sm:$0xff]
    %v2541 = vld [vmem:[#allocation16 + $0x7b8] sm:$0xff]
    %v2542 = vld [vmem:[#allocation16 + $0x7c0] sm:$0xff]
    %v2543 = vld [vmem:[#allocation16 + $0x7c8] sm:$0xff]
    %v2544 = vld [vmem:[#allocation16 + $0x7d0] sm:$0xff]
    %v2545 = vld [vmem:[#allocation16 + $0x7d8] sm:$0xff]
    %v2546 = vld [vmem:[#allocation16 + $0x7e0] sm:$0xff]
    %v2547 = vld [vmem:[#allocation16 + $0x7e8] sm:$0xff]
    %v2548 = vld [vmem:[#allocation16 + $0x7f0] sm:$0xff]
    %v2549 = vld [vmem:[#allocation16 + $0x7f8] sm:$0xff]
    %v2550 = vld [vmem:[#allocation17] sm:$0xff]
    %v2551 = vld [vmem:[#allocation17 + $0x8] sm:$0xff]
    %v2554 = vlaneseq
    %v2555 = vshrl.u32 %v2554, 7
    %v2556 = vsub.s32 0, %v2555
    %v2557 = vrot.slane %v2550, %v2556
    %v2558 = vlaneseq
    %v2559 = vshrl.u32 %v2558, 7
    %v2560 = vsub.s32 1, %v2559
    %v2561 = vrot.slane %v2550, %v2560
    %v2562 = vlaneseq
    %v2563 = vshrl.u32 %v2562, 7
    %v2564 = vsub.s32 2, %v2563
    %v2565 = vrot.slane %v2550, %v2564
    %v2566 = vlaneseq
    %v2567 = vshrl.u32 %v2566, 7
    %v2568 = vsub.s32 3, %v2567
    %v2569 = vrot.slane %v2550, %v2568
    %v2570 = vlaneseq
    %v2571 = vshrl.u32 %v2570, 7
    %v2572 = vsub.s32 4, %v2571
    %v2573 = vrot.slane %v2550, %v2572
    %v2574 = vlaneseq
    %v2575 = vshrl.u32 %v2574, 7
    %v2576 = vsub.s32 5, %v2575
    %v2577 = vrot.slane %v2550, %v2576
    %v2578 = vlaneseq
    %v2579 = vshrl.u32 %v2578, 7
    %v2580 = vsub.s32 6, %v2579
    %v2581 = vrot.slane %v2550, %v2580
    %v2582 = vlaneseq
    %v2583 = vshrl.u32 %v2582, 7
    %v2584 = vsub.s32 7, %v2583
    %v2585 = vrot.slane %v2550, %v2584
    %v2586 = vlaneseq
    %v2587 = vshrl.u32 %v2586, 7
    %v2588 = vsub.s32 0, %v2587
    %v2589 = vrot.slane %v2551, %v2588
    %v2590 = vlaneseq
    %v2591 = vshrl.u32 %v2590, 7
    %v2592 = vsub.s32 1, %v2591
    %v2593 = vrot.slane %v2551, %v2592
    %v2594 = vlaneseq
    %v2595 = vshrl.u32 %v2594, 7
    %v2596 = vsub.s32 2, %v2595
    %v2597 = vrot.slane %v2551, %v2596
    %v2598 = vlaneseq
    %v2599 = vshrl.u32 %v2598, 7
    %v2600 = vsub.s32 3, %v2599
    %v2601 = vrot.slane %v2551, %v2600
    %v2602 = vlaneseq
    %v2603 = vshrl.u32 %v2602, 7
    %v2604 = vsub.s32 4, %v2603
    %v2605 = vrot.slane %v2551, %v2604
    %v2606 = vlaneseq
    %v2607 = vshrl.u32 %v2606, 7
    %v2608 = vsub.s32 5, %v2607
    %v2609 = vrot.slane %v2551, %v2608
    %v2610 = vlaneseq
    %v2611 = vshrl.u32 %v2610, 7
    %v2612 = vsub.s32 6, %v2611
    %v2613 = vrot.slane %v2551, %v2612
    %v2614 = vlaneseq
    %v2615 = vshrl.u32 %v2614, 7
    %v2616 = vsub.s32 7, %v2615
    %v2617 = vrot.slane %v2551, %v2616
    %2634 = vmatprep.subr.mxu0 %v2295
    %2635 = vmatpush1.msra.mxu0 %v2294
    %2636 = vmatprep.subr.mxu0 %v2311
    %2637 = vmatpush1.msra.mxu0 %v2310
    %2638 = vmatprep.subr.mxu0 %v2327
    %2639 = vmatpush1.msra.mxu0 %v2326
    %2640 = vmatprep.subr.mxu0 %v2343
    %2641 = vmatpush1.msra.mxu0 %v2342
    %2642 = vmatprep.subr.mxu0 %v2359
    %2643 = vmatpush1.msra.mxu0 %v2358
    %2644 = vmatprep.subr.mxu0 %v2375
    %2645 = vmatpush1.msra.mxu0 %v2374
    %2646 = vmatprep.subr.mxu0 %v2391
    %2647 = vmatpush1.msra.mxu0 %v2390
    %2648 = vmatprep.subr.mxu0 %v2407
    %2649 = vmatpush1.msra.mxu0 %v2406
    %2650 = vmatprep.subr.mxu0 %v2423
    %2651 = vmatpush1.msra.mxu0 %v2422
    %2652 = vmatprep.subr.mxu0 %v2439
    %2653 = vmatpush1.msra.mxu0 %v2438
    %2654 = vmatprep.subr.mxu0 %v2455
    %2655 = vmatpush1.msra.mxu0 %v2454
    %2656 = vmatprep.subr.mxu0 %v2471
    %2657 = vmatpush1.msra.mxu0 %v2470
    %2658 = vmatprep.subr.mxu0 %v2487
    %2659 = vmatpush1.msra.mxu0 %v2486
    %2660 = vmatprep.subr.mxu0 %v2503
    %2661 = vmatpush1.msra.mxu0 %v2502
    %2662 = vmatprep.subr.mxu0 %v2519
    %2663 = vmatpush1.msra.mxu0 %v2518
    %2664 = vmatprep.subr.mxu0 %v2535
    %2665 = vmatpush1.msra.mxu0 %v2534
    %2666 = vmatprep.subr.mxu0 0.0
    %2667 = vmatpush1.msra.mxu0 0.0
    %2668 = vmatprep.subr.mxu0 0.0
    %2669 = vmatpush1.msra.mxu0 0.0
    %2670 = vmatprep.subr.mxu0 0.0
    %2671 = vmatpush1.msra.mxu0 0.0
    %2672 = vmatprep.subr.mxu0 0.0
    %2673 = vmatpush1.msra.mxu0 0.0
    %2674 = vmatprep.subr.mxu0 0.0
    %2675 = vmatpush1.msra.mxu0 0.0
    %2676 = vmatprep.subr.mxu0 0.0
    %2677 = vmatpush1.msra.mxu0 0.0
    %2678 = vmatprep.subr.mxu0 0.0
    %2679 = vmatpush1.msra.mxu0 0.0
    %2680 = vmatprep.subr.mxu0 0.0
    %2681 = vmatpush1.msra.mxu0 0.0
    %2682 = vmatprep.subr.mxu0 0.0
    %2683 = vmatpush1.msra.mxu0 0.0
    %2684 = vmatprep.subr.mxu0 0.0
    %2685 = vmatpush1.msra.mxu0 0.0
    %2686 = vmatprep.subr.mxu0 0.0
    %2687 = vmatpush1.msra.mxu0 0.0
    %2688 = vmatprep.subr.mxu0 0.0
    %2689 = vmatpush1.msra.mxu0 0.0
    %2690 = vmatprep.subr.mxu0 0.0
    %2691 = vmatpush1.msra.mxu0 0.0
    %2692 = vmatprep.subr.mxu0 0.0
    %2693 = vmatpush1.msra.mxu0 0.0
    %2694 = vmatprep.subr.mxu0 0.0
    %2695 = vmatpush1.msra.mxu0 0.0
    %2696 = vmatprep.subr.mxu0 0.0
    %2697 = vmatpush1.msra.mxu0 0.0
    %2698 = vmatprep.mubr.f32.mxu0 0.0
    %2699 = vmatmul.mubr.f32.gmra.mrb[0].mxu0 %v2292
    %v2700 = vpop.f32.mrb[0].mxu0
    %v2701 = vadd.f32 %v2557, %v2700
    %v2702 = vpop.f32.mrb[0].mxu0
    %v2703 = vadd.f32 %v2561, %v2702
    %2704 = vmatprep.mubr.f32.mxu0 0.0
    %2705 = vmatmul.mubr.f32.gmra.mrb[0].mxu0 %v2293
    %v2706 = vpop.f32.mrb[0].mxu0
    %v2707 = vadd.f32 %v2557, %v2706
    %v2708 = vpop.f32.mrb[0].mxu0
    %v2709 = vadd.f32 %v2561, %v2708
    %2710 = vdwg.mxu0
    %2711 = vmatprep.subr.mxu0 %v2297
    %2712 = vmatpush1.msra.mxu0 %v2296
    %2713 = vmatprep.subr.mxu0 %v2313
    %2714 = vmatpush1.msra.mxu0 %v2312
    %2715 = vmatprep.subr.mxu0 %v2329
    %2716 = vmatpush1.msra.mxu0 %v2328
    %2717 = vmatprep.subr.mxu0 %v2345
    %2718 = vmatpush1.msra.mxu0 %v2344
    %2719 = vmatprep.subr.mxu0 %v2361
    %2720 = vmatpush1.msra.mxu0 %v2360
    %2721 = vmatprep.subr.mxu0 %v2377
    %2722 = vmatpush1.msra.mxu0 %v2376
    %2723 = vmatprep.subr.mxu0 %v2393
    %2724 = vmatpush1.msra.mxu0 %v2392
    %2725 = vmatprep.subr.mxu0 %v2409
    %2726 = vmatpush1.msra.mxu0 %v2408
    %2727 = vmatprep.subr.mxu0 %v2425
    %2728 = vmatpush1.msra.mxu0 %v2424
    %2729 = vmatprep.subr.mxu0 %v2441
    %2730 = vmatpush1.msra.mxu0 %v2440
    %2731 = vmatprep.subr.mxu0 %v2457
    %2732 = vmatpush1.msra.mxu0 %v2456
    %2733 = vmatprep.subr.mxu0 %v2473
    %2734 = vmatpush1.msra.mxu0 %v2472
    %2735 = vmatprep.subr.mxu0 %v2489
    %2736 = vmatpush1.msra.mxu0 %v2488
    %2737 = vmatprep.subr.mxu0 %v2505
    %2738 = vmatpush1.msra.mxu0 %v2504
    %2739 = vmatprep.subr.mxu0 %v2521
    %2740 = vmatpush1.msra.mxu0 %v2520
    %2741 = vmatprep.subr.mxu0 %v2537
    %2742 = vmatpush1.msra.mxu0 %v2536
    %2743 = vmatprep.subr.mxu0 0.0
    %2744 = vmatpush1.msra.mxu0 0.0
    %2745 = vmatprep.subr.mxu0 0.0
    %2746 = vmatpush1.msra.mxu0 0.0
    %2747 = vmatprep.subr.mxu0 0.0
    %2748 = vmatpush1.msra.mxu0 0.0
    %2749 = vmatprep.subr.mxu0 0.0
    %2750 = vmatpush1.msra.mxu0 0.0
    %2751 = vmatprep.subr.mxu0 0.0
    %2752 = vmatpush1.msra.mxu0 0.0
    %2753 = vmatprep.subr.mxu0 0.0
    %2754 = vmatpush1.msra.mxu0 0.0
    %2755 = vmatprep.subr.mxu0 0.0
    %2756 = vmatpush1.msra.mxu0 0.0
    %2757 = vmatprep.subr.mxu0 0.0
    %2758 = vmatpush1.msra.mxu0 0.0
    %2759 = vmatprep.subr.mxu0 0.0
    %2760 = vmatpush1.msra.mxu0 0.0
    %2761 = vmatprep.subr.mxu0 0.0
    %2762 = vmatpush1.msra.mxu0 0.0
    %2763 = vmatprep.subr.mxu0 0.0
    %2764 = vmatpush1.msra.mxu0 0.0
    %2765 = vmatprep.subr.mxu0 0.0
    %2766 = vmatpush1.msra.mxu0 0.0
    %2767 = vmatprep.subr.mxu0 0.0
    %2768 = vmatpush1.msra.mxu0 0.0
    %2769 = vmatprep.subr.mxu0 0.0
    %2770 = vmatpush1.msra.mxu0 0.0
    %2771 = vmatprep.subr.mxu0 0.0
    %2772 = vmatpush1.msra.mxu0 0.0
    %2773 = vmatprep.subr.mxu0 0.0
    %2774 = vmatpush1.msra.mxu0 0.0
    %2775 = vmatprep.mubr.f32.mxu0 0.0
    %2776 = vmatmul.mubr.f32.gmra.mrb[0].mxu0 %v2292
    %v2777 = vpop.f32.mrb[0].mxu0
    %v2778 = vadd.f32 %v2565, %v2777
    %v2779 = vpop.f32.mrb[0].mxu0
    %v2780 = vadd.f32 %v2569, %v2779
    %2781 = vmatprep.mubr.f32.mxu0 0.0
    %2782 = vmatmul.mubr.f32.gmra.mrb[0].mxu0 %v2293
    %v2783 = vpop.f32.mrb[0].mxu0
    %v2784 = vadd.f32 %v2565, %v2783
    %v2785 = vpop.f32.mrb[0].mxu0
    %v2786 = vadd.f32 %v2569, %v2785
    %2787 = vdwg.mxu0
    %2788 = vmatprep.subr.mxu0 %v2299
    %2789 = vmatpush1.msra.mxu0 %v2298
    %2790 = vmatprep.subr.mxu0 %v2315
    %2791 = vmatpush1.msra.mxu0 %v2314
    %2792 = vmatprep.subr.mxu0 %v2331
    %2793 = vmatpush1.msra.mxu0 %v2330
    %2794 = vmatprep.subr.mxu0 %v2347
    %2795 = vmatpush1.msra.mxu0 %v2346
    %2796 = vmatprep.subr.mxu0 %v2363
    %2797 = vmatpush1.msra.mxu0 %v2362
    %2798 = vmatprep.subr.mxu0 %v2379
    %2799 = vmatpush1.msra.mxu0 %v2378
    %2800 = vmatprep.subr.mxu0 %v2395
    %2801 = vmatpush1.msra.mxu0 %v2394
    %2802 = vmatprep.subr.mxu0 %v2411
    %2803 = vmatpush1.msra.mxu0 %v2410
    %2804 = vmatprep.subr.mxu0 %v2427
    %2805 = vmatpush1.msra.mxu0 %v2426
    %2806 = vmatprep.subr.mxu0 %v2443
    %2807 = vmatpush1.msra.mxu0 %v2442
    %2808 = vmatprep.subr.mxu0 %v2459
    %2809 = vmatpush1.msra.mxu0 %v2458
    %2810 = vmatprep.subr.mxu0 %v2475
    %2811 = vmatpush1.msra.mxu0 %v2474
    %2812 = vmatprep.subr.mxu0 %v2491
    %2813 = vmatpush1.msra.mxu0 %v2490
    %2814 = vmatprep.subr.mxu0 %v2507
    %2815 = vmatpush1.msra.mxu0 %v2506
    %2816 = vmatprep.subr.mxu0 %v2523
    %2817 = vmatpush1.msra.mxu0 %v2522
    %2818 = vmatprep.subr.mxu0 %v2539
    %2819 = vmatpush1.msra.mxu0 %v2538
    %2820 = vmatprep.subr.mxu0 0.0
    %2821 = vmatpush1.msra.mxu0 0.0
    %2822 = vmatprep.subr.mxu0 0.0
    %2823 = vmatpush1.msra.mxu0 0.0
    %2824 = vmatprep.subr.mxu0 0.0
    %2825 = vmatpush1.msra.mxu0 0.0
    %2826 = vmatprep.subr.mxu0 0.0
    %2827 = vmatpush1.msra.mxu0 0.0
    %2828 = vmatprep.subr.mxu0 0.0
    %2829 = vmatpush1.msra.mxu0 0.0
    %2830 = vmatprep.subr.mxu0 0.0
    %2831 = vmatpush1.msra.mxu0 0.0
    %2832 = vmatprep.subr.mxu0 0.0
    %2833 = vmatpush1.msra.mxu0 0.0
    %2834 = vmatprep.subr.mxu0 0.0
    %2835 = vmatpush1.msra.mxu0 0.0
    %2836 = vmatprep.subr.mxu0 0.0
    %2837 = vmatpush1.msra.mxu0 0.0
    %2838 = vmatprep.subr.mxu0 0.0
    %2839 = vmatpush1.msra.mxu0 0.0
    %2840 = vmatprep.subr.mxu0 0.0
    %2841 = vmatpush1.msra.mxu0 0.0
    %2842 = vmatprep.subr.mxu0 0.0
    %2843 = vmatpush1.msra.mxu0 0.0
    %2844 = vmatprep.subr.mxu0 0.0
    %2845 = vmatpush1.msra.mxu0 0.0
    %2846 = vmatprep.subr.mxu0 0.0
    %2847 = vmatpush1.msra.mxu0 0.0
    %2848 = vmatprep.subr.mxu0 0.0
    %2849 = vmatpush1.msra.mxu0 0.0
    %2850 = vmatprep.subr.mxu0 0.0
    %2851 = vmatpush1.msra.mxu0 0.0
    %2852 = vmatprep.mubr.f32.mxu0 0.0
    %2853 = vmatmul.mubr.f32.gmra.mrb[0].mxu0 %v2292
    %v2854 = vpop.f32.mrb[0].mxu0
    %v2855 = vadd.f32 %v2573, %v2854
    %v2856 = vpop.f32.mrb[0].mxu0
    %v2857 = vadd.f32 %v2577, %v2856
    %2858 = vmatprep.mubr.f32.mxu0 0.0
    %2859 = vmatmul.mubr.f32.gmra.mrb[0].mxu0 %v2293
    %v2860 = vpop.f32.mrb[0].mxu0
    %v2861 = vadd.f32 %v2573, %v2860
    %v2862 = vpop.f32.mrb[0].mxu0
    %v2863 = vadd.f32 %v2577, %v2862
    %2864 = vdwg.mxu0
    %2865 = vmatprep.subr.mxu0 %v2301
    %2866 = vmatpush1.msra.mxu0 %v2300
    %2867 = vmatprep.subr.mxu0 %v2317
    %2868 = vmatpush1.msra.mxu0 %v2316
    %2869 = vmatprep.subr.mxu0 %v2333
    %2870 = vmatpush1.msra.mxu0 %v2332
    %2871 = vmatprep.subr.mxu0 %v2349
    %2872 = vmatpush1.msra.mxu0 %v2348
    %2873 = vmatprep.subr.mxu0 %v2365
    %2874 = vmatpush1.msra.mxu0 %v2364
    %2875 = vmatprep.subr.mxu0 %v2381
    %2876 = vmatpush1.msra.mxu0 %v2380
    %2877 = vmatprep.subr.mxu0 %v2397
    %2878 = vmatpush1.msra.mxu0 %v2396
    %2879 = vmatprep.subr.mxu0 %v2413
    %2880 = vmatpush1.msra.mxu0 %v2412
    %2881 = vmatprep.subr.mxu0 %v2429
    %2882 = vmatpush1.msra.mxu0 %v2428
    %2883 = vmatprep.subr.mxu0 %v2445
    %2884 = vmatpush1.msra.mxu0 %v2444
    %2885 = vmatprep.subr.mxu0 %v2461
    %2886 = vmatpush1.msra.mxu0 %v2460
    %2887 = vmatprep.subr.mxu0 %v2477
    %2888 = vmatpush1.msra.mxu0 %v2476
    %2889 = vmatprep.subr.mxu0 %v2493
    %2890 = vmatpush1.msra.mxu0 %v2492
    %2891 = vmatprep.subr.mxu0 %v2509
    %2892 = vmatpush1.msra.mxu0 %v2508
    %2893 = vmatprep.subr.mxu0 %v2525
    %2894 = vmatpush1.msra.mxu0 %v2524
    %2895 = vmatprep.subr.mxu0 %v2541
    %2896 = vmatpush1.msra.mxu0 %v2540
    %2897 = vmatprep.subr.mxu0 0.0
    %2898 = vmatpush1.msra.mxu0 0.0
    %2899 = vmatprep.subr.mxu0 0.0
    %2900 = vmatpush1.msra.mxu0 0.0
    %2901 = vmatprep.subr.mxu0 0.0
    %2902 = vmatpush1.msra.mxu0 0.0
    %2903 = vmatprep.subr.mxu0 0.0
    %2904 = vmatpush1.msra.mxu0 0.0
    %2905 = vmatprep.subr.mxu0 0.0
    %2906 = vmatpush1.msra.mxu0 0.0
    %2907 = vmatprep.subr.mxu0 0.0
    %2908 = vmatpush1.msra.mxu0 0.0
    %2909 = vmatprep.subr.mxu0 0.0
    %2910 = vmatpush1.msra.mxu0 0.0
    %2911 = vmatprep.subr.mxu0 0.0
    %2912 = vmatpush1.msra.mxu0 0.0
    %2913 = vmatprep.subr.mxu0 0.0
    %2914 = vmatpush1.msra.mxu0 0.0
    %2915 = vmatprep.subr.mxu0 0.0
    %2916 = vmatpush1.msra.mxu0 0.0
    %2917 = vmatprep.subr.mxu0 0.0
    %2918 = vmatpush1.msra.mxu0 0.0
    %2919 = vmatprep.subr.mxu0 0.0
    %2920 = vmatpush1.msra.mxu0 0.0
    %2921 = vmatprep.subr.mxu0 0.0
    %2922 = vmatpush1.msra.mxu0 0.0
    %2923 = vmatprep.subr.mxu0 0.0
    %2924 = vmatpush1.msra.mxu0 0.0
    %2925 = vmatprep.subr.mxu0 0.0
    %2926 = vmatpush1.msra.mxu0 0.0
    %2927 = vmatprep.subr.mxu0 0.0
    %2928 = vmatpush1.msra.mxu0 0.0
    %2929 = vmatprep.mubr.f32.mxu0 0.0
    %2930 = vmatmul.mubr.f32.gmra.mrb[0].mxu0 %v2292
    %v2931 = vpop.f32.mrb[0].mxu0
    %v2932 = vadd.f32 %v2581, %v2931
    %v2933 = vpop.f32.mrb[0].mxu0
    %v2934 = vadd.f32 %v2585, %v2933
    %2935 = vmatprep.mubr.f32.mxu0 0.0
    %2936 = vmatmul.mubr.f32.gmra.mrb[0].mxu0 %v2293
    %v2937 = vpop.f32.mrb[0].mxu0
    %v2938 = vadd.f32 %v2581, %v2937
    %v2939 = vpop.f32.mrb[0].mxu0
    %v2940 = vadd.f32 %v2585, %v2939
    %2941 = vdwg.mxu0
    %2942 = vmatprep.subr.mxu0 %v2303
    %2943 = vmatpush1.msra.mxu0 %v2302
    %2944 = vmatprep.subr.mxu0 %v2319
    %2945 = vmatpush1.msra.mxu0 %v2318
    %2946 = vmatprep.subr.mxu0 %v2335
    %2947 = vmatpush1.msra.mxu0 %v2334
    %2948 = vmatprep.subr.mxu0 %v2351
    %2949 = vmatpush1.msra.mxu0 %v2350
    %2950 = vmatprep.subr.mxu0 %v2367
    %2951 = vmatpush1.msra.mxu0 %v2366
    %2952 = vmatprep.subr.mxu0 %v2383
    %2953 = vmatpush1.msra.mxu0 %v2382
    %2954 = vmatprep.subr.mxu0 %v2399
    %2955 = vmatpush1.msra.mxu0 %v2398
    %2956 = vmatprep.subr.mxu0 %v2415
    %2957 = vmatpush1.msra.mxu0 %v2414
    %2958 = vmatprep.subr.mxu0 %v2431
    %2959 = vmatpush1.msra.mxu0 %v2430
    %2960 = vmatprep.subr.mxu0 %v2447
    %2961 = vmatpush1.msra.mxu0 %v2446
    %2962 = vmatprep.subr.mxu0 %v2463
    %2963 = vmatpush1.msra.mxu0 %v2462
    %2964 = vmatprep.subr.mxu0 %v2479
    %2965 = vmatpush1.msra.mxu0 %v2478
    %2966 = vmatprep.subr.mxu0 %v2495
    %2967 = vmatpush1.msra.mxu0 %v2494
    %2968 = vmatprep.subr.mxu0 %v2511
    %2969 = vmatpush1.msra.mxu0 %v2510
    %2970 = vmatprep.subr.mxu0 %v2527
    %2971 = vmatpush1.msra.mxu0 %v2526
    %2972 = vmatprep.subr.mxu0 %v2543
    %2973 = vmatpush1.msra.mxu0 %v2542
    %2974 = vmatprep.subr.mxu0 0.0
    %2975 = vmatpush1.msra.mxu0 0.0
    %2976 = vmatprep.subr.mxu0 0.0
    %2977 = vmatpush1.msra.mxu0 0.0
    %2978 = vmatprep.subr.mxu0 0.0
    %2979 = vmatpush1.msra.mxu0 0.0
    %2980 = vmatprep.subr.mxu0 0.0
    %2981 = vmatpush1.msra.mxu0 0.0
    %2982 = vmatprep.subr.mxu0 0.0
    %2983 = vmatpush1.msra.mxu0 0.0
    %2984 = vmatprep.subr.mxu0 0.0
    %2985 = vmatpush1.msra.mxu0 0.0
    %2986 = vmatprep.subr.mxu0 0.0
    %2987 = vmatpush1.msra.mxu0 0.0
    %2988 = vmatprep.subr.mxu0 0.0
    %2989 = vmatpush1.msra.mxu0 0.0
    %2990 = vmatprep.subr.mxu0 0.0
    %2991 = vmatpush1.msra.mxu0 0.0
    %2992 = vmatprep.subr.mxu0 0.0
    %2993 = vmatpush1.msra.mxu0 0.0
    %2994 = vmatprep.subr.mxu0 0.0
    %2995 = vmatpush1.msra.mxu0 0.0
    %2996 = vmatprep.subr.mxu0 0.0
    %2997 = vmatpush1.msra.mxu0 0.0
    %2998 = vmatprep.subr.mxu0 0.0
    %2999 = vmatpush1.msra.mxu0 0.0
    %3000 = vmatprep.subr.mxu0 0.0
    %3001 = vmatpush1.msra.mxu0 0.0
    %3002 = vmatprep.subr.mxu0 0.0
    %3003 = vmatpush1.msra.mxu0 0.0
    %3004 = vmatprep.subr.mxu0 0.0
    %3005 = vmatpush1.msra.mxu0 0.0
    %3006 = vmatprep.mubr.f32.mxu0 0.0
    %3007 = vmatmul.mubr.f32.gmra.mrb[0].mxu0 %v2292
    %v3008 = vpop.f32.mrb[0].mxu0
    %v3009 = vadd.f32 %v2589, %v3008
    %v3010 = vpop.f32.mrb[0].mxu0
    %v3011 = vadd.f32 %v2593, %v3010
    %3012 = vmatprep.mubr.f32.mxu0 0.0
    %3013 = vmatmul.mubr.f32.gmra.mrb[0].mxu0 %v2293
    %v3014 = vpop.f32.mrb[0].mxu0
    %v3015 = vadd.f32 %v2589, %v3014
    %v3016 = vpop.f32.mrb[0].mxu0
    %v3017 = vadd.f32 %v2593, %v3016
    %3018 = vdwg.mxu0
    %3019 = vmatprep.subr.mxu0 %v2305
    %3020 = vmatpush1.msra.mxu0 %v2304
    %3021 = vmatprep.subr.mxu0 %v2321
    %3022 = vmatpush1.msra.mxu0 %v2320
    %3023 = vmatprep.subr.mxu0 %v2337
    %3024 = vmatpush1.msra.mxu0 %v2336
    %3025 = vmatprep.subr.mxu0 %v2353
    %3026 = vmatpush1.msra.mxu0 %v2352
    %3027 = vmatprep.subr.mxu0 %v2369
    %3028 = vmatpush1.msra.mxu0 %v2368
    %3029 = vmatprep.subr.mxu0 %v2385
    %3030 = vmatpush1.msra.mxu0 %v2384
    %3031 = vmatprep.subr.mxu0 %v2401
    %3032 = vmatpush1.msra.mxu0 %v2400
    %3033 = vmatprep.subr.mxu0 %v2417
    %3034 = vmatpush1.msra.mxu0 %v2416
    %3035 = vmatprep.subr.mxu0 %v2433
    %3036 = vmatpush1.msra.mxu0 %v2432
    %3037 = vmatprep.subr.mxu0 %v2449
    %3038 = vmatpush1.msra.mxu0 %v2448
    %3039 = vmatprep.subr.mxu0 %v2465
    %3040 = vmatpush1.msra.mxu0 %v2464
    %3041 = vmatprep.subr.mxu0 %v2481
    %3042 = vmatpush1.msra.mxu0 %v2480
    %3043 = vmatprep.subr.mxu0 %v2497
    %3044 = vmatpush1.msra.mxu0 %v2496
    %3045 = vmatprep.subr.mxu0 %v2513
    %3046 = vmatpush1.msra.mxu0 %v2512
    %3047 = vmatprep.subr.mxu0 %v2529
    %3048 = vmatpush1.msra.mxu0 %v2528
    %3049 = vmatprep.subr.mxu0 %v2545
    %3050 = vmatpush1.msra.mxu0 %v2544
    %3051 = vmatprep.subr.mxu0 0.0
    %3052 = vmatpush1.msra.mxu0 0.0
    %3053 = vmatprep.subr.mxu0 0.0
    %3054 = vmatpush1.msra.mxu0 0.0
    %3055 = vmatprep.subr.mxu0 0.0
    %3056 = vmatpush1.msra.mxu0 0.0
    %3057 = vmatprep.subr.mxu0 0.0
    %3058 = vmatpush1.msra.mxu0 0.0
    %3059 = vmatprep.subr.mxu0 0.0
    %3060 = vmatpush1.msra.mxu0 0.0
    %3061 = vmatprep.subr.mxu0 0.0
    %3062 = vmatpush1.msra.mxu0 0.0
    %3063 = vmatprep.subr.mxu0 0.0
    %3064 = vmatpush1.msra.mxu0 0.0
    %3065 = vmatprep.subr.mxu0 0.0
    %3066 = vmatpush1.msra.mxu0 0.0
    %3067 = vmatprep.subr.mxu0 0.0
    %3068 = vmatpush1.msra.mxu0 0.0
    %3069 = vmatprep.subr.mxu0 0.0
    %3070 = vmatpush1.msra.mxu0 0.0
    %3071 = vmatprep.subr.mxu0 0.0
    %3072 = vmatpush1.msra.mxu0 0.0
    %3073 = vmatprep.subr.mxu0 0.0
    %3074 = vmatpush1.msra.mxu0 0.0
    %3075 = vmatprep.subr.mxu0 0.0
    %3076 = vmatpush1.msra.mxu0 0.0
    %3077 = vmatprep.subr.mxu0 0.0
    %3078 = vmatpush1.msra.mxu0 0.0
    %3079 = vmatprep.subr.mxu0 0.0
    %3080 = vmatpush1.msra.mxu0 0.0
    %3081 = vmatprep.subr.mxu0 0.0
    %3082 = vmatpush1.msra.mxu0 0.0
    %3083 = vmatprep.mubr.f32.mxu0 0.0
    %3084 = vmatmul.mubr.f32.gmra.mrb[0].mxu0 %v2292
    %v3085 = vpop.f32.mrb[0].mxu0
    %v3086 = vadd.f32 %v2597, %v3085
    %v3087 = vpop.f32.mrb[0].mxu0
    %v3088 = vadd.f32 %v2601, %v3087
    %3089 = vmatprep.mubr.f32.mxu0 0.0
    %3090 = vmatmul.mubr.f32.gmra.mrb[0].mxu0 %v2293
    %v3091 = vpop.f32.mrb[0].mxu0
    %v3092 = vadd.f32 %v2597, %v3091
    %v3093 = vpop.f32.mrb[0].mxu0
    %v3094 = vadd.f32 %v2601, %v3093
    %3095 = vdwg.mxu0
    %3096 = vmatprep.subr.mxu0 %v2307
    %3097 = vmatpush1.msra.mxu0 %v2306
    %3098 = vmatprep.subr.mxu0 %v2323
    %3099 = vmatpush1.msra.mxu0 %v2322
    %3100 = vmatprep.subr.mxu0 %v2339
    %3101 = vmatpush1.msra.mxu0 %v2338
    %3102 = vmatprep.subr.mxu0 %v2355
    %3103 = vmatpush1.msra.mxu0 %v2354
    %3104 = vmatprep.subr.mxu0 %v2371
    %3105 = vmatpush1.msra.mxu0 %v2370
    %3106 = vmatprep.subr.mxu0 %v2387
    %3107 = vmatpush1.msra.mxu0 %v2386
    %3108 = vmatprep.subr.mxu0 %v2403
    %3109 = vmatpush1.msra.mxu0 %v2402
    %3110 = vmatprep.subr.mxu0 %v2419
    %3111 = vmatpush1.msra.mxu0 %v2418
    %3112 = vmatprep.subr.mxu0 %v2435
    %3113 = vmatpush1.msra.mxu0 %v2434
    %3114 = vmatprep.subr.mxu0 %v2451
    %3115 = vmatpush1.msra.mxu0 %v2450
    %3116 = vmatprep.subr.mxu0 %v2467
    %3117 = vmatpush1.msra.mxu0 %v2466
    %3118 = vmatprep.subr.mxu0 %v2483
    %3119 = vmatpush1.msra.mxu0 %v2482
    %3120 = vmatprep.subr.mxu0 %v2499
    %3121 = vmatpush1.msra.mxu0 %v2498
    %3122 = vmatprep.subr.mxu0 %v2515
    %3123 = vmatpush1.msra.mxu0 %v2514
    %3124 = vmatprep.subr.mxu0 %v2531
    %3125 = vmatpush1.msra.mxu0 %v2530
    %3126 = vmatprep.subr.mxu0 %v2547
    %3127 = vmatpush1.msra.mxu0 %v2546
    %3128 = vmatprep.subr.mxu0 0.0
    %3129 = vmatpush1.msra.mxu0 0.0
    %3130 = vmatprep.subr.mxu0 0.0
    %3131 = vmatpush1.msra.mxu0 0.0
    %3132 = vmatprep.subr.mxu0 0.0
    %3133 = vmatpush1.msra.mxu0 0.0
    %3134 = vmatprep.subr.mxu0 0.0
    %3135 = vmatpush1.msra.mxu0 0.0
    %3136 = vmatprep.subr.mxu0 0.0
    %3137 = vmatpush1.msra.mxu0 0.0
    %3138 = vmatprep.subr.mxu0 0.0
    %3139 = vmatpush1.msra.mxu0 0.0
    %3140 = vmatprep.subr.mxu0 0.0
    %3141 = vmatpush1.msra.mxu0 0.0
    %3142 = vmatprep.subr.mxu0 0.0
    %3143 = vmatpush1.msra.mxu0 0.0
    %3144 = vmatprep.subr.mxu0 0.0
    %3145 = vmatpush1.msra.mxu0 0.0
    %3146 = vmatprep.subr.mxu0 0.0
    %3147 = vmatpush1.msra.mxu0 0.0
    %3148 = vmatprep.subr.mxu0 0.0
    %3149 = vmatpush1.msra.mxu0 0.0
    %3150 = vmatprep.subr.mxu0 0.0
    %3151 = vmatpush1.msra.mxu0 0.0
    %3152 = vmatprep.subr.mxu0 0.0
    %3153 = vmatpush1.msra.mxu0 0.0
    %3154 = vmatprep.subr.mxu0 0.0
    %3155 = vmatpush1.msra.mxu0 0.0
    %3156 = vmatprep.subr.mxu0 0.0
    %3157 = vmatpush1.msra.mxu0 0.0
    %3158 = vmatprep.subr.mxu0 0.0
    %3159 = vmatpush1.msra.mxu0 0.0
    %3160 = vmatprep.mubr.f32.mxu0 0.0
    %3161 = vmatmul.mubr.f32.gmra.mrb[0].mxu0 %v2292
    %v3162 = vpop.f32.mrb[0].mxu0
    %v3163 = vadd.f32 %v2605, %v3162
    %v3164 = vpop.f32.mrb[0].mxu0
    %v3165 = vadd.f32 %v2609, %v3164
    %3166 = vmatprep.mubr.f32.mxu0 0.0
    %3167 = vmatmul.mubr.f32.gmra.mrb[0].mxu0 %v2293
    %v3168 = vpop.f32.mrb[0].mxu0
    %v3169 = vadd.f32 %v2605, %v3168
    %v3170 = vpop.f32.mrb[0].mxu0
    %v3171 = vadd.f32 %v2609, %v3170
    %3172 = vdwg.mxu0
    %3173 = vmatprep.subr.mxu0 %v2309
    %3174 = vmatpush1.msra.mxu0 %v2308
    %3175 = vmatprep.subr.mxu0 %v2325
    %3176 = vmatpush1.msra.mxu0 %v2324
    %3177 = vmatprep.subr.mxu0 %v2341
    %3178 = vmatpush1.msra.mxu0 %v2340
    %3179 = vmatprep.subr.mxu0 %v2357
    %3180 = vmatpush1.msra.mxu0 %v2356
    %3181 = vmatprep.subr.mxu0 %v2373
    %3182 = vmatpush1.msra.mxu0 %v2372
    %3183 = vmatprep.subr.mxu0 %v2389
    %3184 = vmatpush1.msra.mxu0 %v2388
    %3185 = vmatprep.subr.mxu0 %v2405
    %3186 = vmatpush1.msra.mxu0 %v2404
    %3187 = vmatprep.subr.mxu0 %v2421
    %3188 = vmatpush1.msra.mxu0 %v2420
    %3189 = vmatprep.subr.mxu0 %v2437
    %3190 = vmatpush1.msra.mxu0 %v2436
    %3191 = vmatprep.subr.mxu0 %v2453
    %3192 = vmatpush1.msra.mxu0 %v2452
    %3193 = vmatprep.subr.mxu0 %v2469
    %3194 = vmatpush1.msra.mxu0 %v2468
    %3195 = vmatprep.subr.mxu0 %v2485
    %3196 = vmatpush1.msra.mxu0 %v2484
    %3197 = vmatprep.subr.mxu0 %v2501
    %3198 = vmatpush1.msra.mxu0 %v2500
    %3199 = vmatprep.subr.mxu0 %v2517
    %3200 = vmatpush1.msra.mxu0 %v2516
    %3201 = vmatprep.subr.mxu0 %v2533
    %3202 = vmatpush1.msra.mxu0 %v2532
    %3203 = vmatprep.subr.mxu0 %v2549
    %3204 = vmatpush1.msra.mxu0 %v2548
    %3205 = vmatprep.subr.mxu0 0.0
    %3206 = vmatpush1.msra.mxu0 0.0
    %3207 = vmatprep.subr.mxu0 0.0
    %3208 = vmatpush1.msra.mxu0 0.0
    %3209 = vmatprep.subr.mxu0 0.0
    %3210 = vmatpush1.msra.mxu0 0.0
    %3211 = vmatprep.subr.mxu0 0.0
    %3212 = vmatpush1.msra.mxu0 0.0
    %3213 = vmatprep.subr.mxu0 0.0
    %3214 = vmatpush1.msra.mxu0 0.0
    %3215 = vmatprep.subr.mxu0 0.0
    %3216 = vmatpush1.msra.mxu0 0.0
    %3217 = vmatprep.subr.mxu0 0.0
    %3218 = vmatpush1.msra.mxu0 0.0
    %3219 = vmatprep.subr.mxu0 0.0
    %3220 = vmatpush1.msra.mxu0 0.0
    %3221 = vmatprep.subr.mxu0 0.0
    %3222 = vmatpush1.msra.mxu0 0.0
    %3223 = vmatprep.subr.mxu0 0.0
    %3224 = vmatpush1.msra.mxu0 0.0
    %3225 = vmatprep.subr.mxu0 0.0
    %3226 = vmatpush1.msra.mxu0 0.0
    %3227 = vmatprep.subr.mxu0 0.0
    %3228 = vmatpush1.msra.mxu0 0.0
    %3229 = vmatprep.subr.mxu0 0.0
    %3230 = vmatpush1.msra.mxu0 0.0
    %3231 = vmatprep.subr.mxu0 0.0
    %3232 = vmatpush1.msra.mxu0 0.0
    %3233 = vmatprep.subr.mxu0 0.0
    %3234 = vmatpush1.msra.mxu0 0.0
    %3235 = vmatprep.subr.mxu0 0.0
    %3236 = vmatpush1.msra.mxu0 0.0
    %3237 = vmatprep.mubr.f32.mxu0 0.0
    %3238 = vmatmul.mubr.f32.gmra.mrb[0].mxu0 %v2292
    %v3239 = vpop.f32.mrb[0].mxu0
    %v3240 = vadd.f32 %v2613, %v3239
    %v3241 = vpop.f32.mrb[0].mxu0
    %v3242 = vadd.f32 %v2617, %v3241
    %3243 = vmatprep.mubr.f32.mxu0 0.0
    %3244 = vmatmul.mubr.f32.gmra.mrb[0].mxu0 %v2293
    %v3245 = vpop.f32.mrb[0].mxu0
    %v3246 = vadd.f32 %v2613, %v3245
    %v3247 = vpop.f32.mrb[0].mxu0
    %v3248 = vadd.f32 %v2617, %v3247
    %3249 = vdwg.mxu0
    %v3250 = vmax.f32 %v2701, 0.0
    %v3251 = vmax.f32 %v2703, 0.0
    %v3252 = vmax.f32 %v2778, 0.0
    %v3253 = vmax.f32 %v2780, 0.0
    %v3254 = vmax.f32 %v2855, 0.0
    %v3255 = vmax.f32 %v2857, 0.0
    %v3256 = vmax.f32 %v2932, 0.0
    %v3257 = vmax.f32 %v2934, 0.0
    %v3258 = vmax.f32 %v3009, 0.0
    %v3259 = vmax.f32 %v3011, 0.0
    %v3260 = vmax.f32 %v3086, 0.0
    %v3261 = vmax.f32 %v3088, 0.0
    %v3262 = vmax.f32 %v3163, 0.0
    %v3263 = vmax.f32 %v3165, 0.0
    %v3264 = vmax.f32 %v3240, 0.0
    %v3265 = vmax.f32 %v3242, 0.0
    %v3266 = vmax.f32 %v2707, 0.0
    %v3267 = vmax.f32 %v2709, 0.0
    %v3268 = vmax.f32 %v2784, 0.0
    %v3269 = vmax.f32 %v2786, 0.0
    %v3270 = vmax.f32 %v2861, 0.0
    %v3271 = vmax.f32 %v2863, 0.0
    %v3272 = vmax.f32 %v2938, 0.0
    %v3273 = vmax.f32 %v2940, 0.0
    %v3274 = vmax.f32 %v3015, 0.0
    %v3275 = vmax.f32 %v3017, 0.0
    %v3276 = vmax.f32 %v3092, 0.0
    %v3277 = vmax.f32 %v3094, 0.0
    %v3278 = vmax.f32 %v3169, 0.0
    %v3279 = vmax.f32 %v3171, 0.0
    %v3280 = vmax.f32 %v3246, 0.0
    %v3281 = vmax.f32 %v3248, 0.0
    %v3282 = vld [vmem:[#allocation19] sm:$0xff]
    %v3283 = vld [vmem:[#allocation19 + $0x8] sm:$0xff]
    %v3284 = vld [vmem:[#allocation19 + $0x10] sm:$0xff]
    %v3285 = vld [vmem:[#allocation19 + $0x18] sm:$0xff]
    %v3286 = vld [vmem:[#allocation19 + $0x20] sm:$0xff]
    %v3287 = vld [vmem:[#allocation19 + $0x28] sm:$0xff]
    %v3288 = vld [vmem:[#allocation19 + $0x30] sm:$0xff]
    %v3289 = vld [vmem:[#allocation19 + $0x38] sm:$0xff]
    %v3290 = vld [vmem:[#allocation19 + $0x40] sm:$0xff]
    %v3291 = vld [vmem:[#allocation19 + $0x48] sm:$0xff]
    %v3292 = vld [vmem:[#allocation19 + $0x50] sm:$0xff]
    %v3293 = vld [vmem:[#allocation19 + $0x58] sm:$0xff]
    %v3294 = vld [vmem:[#allocation19 + $0x60] sm:$0xff]
    %v3295 = vld [vmem:[#allocation19 + $0x68] sm:$0xff]
    %v3296 = vld [vmem:[#allocation19 + $0x70] sm:$0xff]
    %v3297 = vld [vmem:[#allocation19 + $0x78] sm:$0xff]
    %v3298 = vld [vmem:[#allocation19 + $0x80] sm:$0xff]
    %v3299 = vld [vmem:[#allocation19 + $0x88] sm:$0xff]
    %v3300 = vld [vmem:[#allocation19 + $0x90] sm:$0xff]
    %v3301 = vld [vmem:[#allocation19 + $0x98] sm:$0xff]
    %v3302 = vld [vmem:[#allocation19 + $0xa0] sm:$0xff]
    %v3303 = vld [vmem:[#allocation19 + $0xa8] sm:$0xff]
    %v3304 = vld [vmem:[#allocation19 + $0xb0] sm:$0xff]
    %v3305 = vld [vmem:[#allocation19 + $0xb8] sm:$0xff]
    %v3306 = vld [vmem:[#allocation19 + $0xc0] sm:$0xff]
    %v3307 = vld [vmem:[#allocation19 + $0xc8] sm:$0xff]
    %v3308 = vld [vmem:[#allocation19 + $0xd0] sm:$0xff]
    %v3309 = vld [vmem:[#allocation19 + $0xd8] sm:$0xff]
    %v3310 = vld [vmem:[#allocation19 + $0xe0] sm:$0xff]
    %v3311 = vld [vmem:[#allocation19 + $0xe8] sm:$0xff]
    %v3312 = vld [vmem:[#allocation19 + $0xf0] sm:$0xff]
    %v3313 = vld [vmem:[#allocation19 + $0xf8] sm:$0xff]
    %v3314 = vld [vmem:[#allocation19 + $0x100] sm:$0xff]
    %v3315 = vld [vmem:[#allocation19 + $0x108] sm:$0xff]
    %v3316 = vld [vmem:[#allocation19 + $0x110] sm:$0xff]
    %v3317 = vld [vmem:[#allocation19 + $0x118] sm:$0xff]
    %v3318 = vld [vmem:[#allocation19 + $0x120] sm:$0xff]
    %v3319 = vld [vmem:[#allocation19 + $0x128] sm:$0xff]
    %v3320 = vld [vmem:[#allocation19 + $0x130] sm:$0xff]
    %v3321 = vld [vmem:[#allocation19 + $0x138] sm:$0xff]
    %v3322 = vld [vmem:[#allocation19 + $0x140] sm:$0xff]
    %v3323 = vld [vmem:[#allocation19 + $0x148] sm:$0xff]
    %v3324 = vld [vmem:[#allocation19 + $0x150] sm:$0xff]
    %v3325 = vld [vmem:[#allocation19 + $0x158] sm:$0xff]
    %v3326 = vld [vmem:[#allocation19 + $0x160] sm:$0xff]
    %v3327 = vld [vmem:[#allocation19 + $0x168] sm:$0xff]
    %v3328 = vld [vmem:[#allocation19 + $0x170] sm:$0xff]
    %v3329 = vld [vmem:[#allocation19 + $0x178] sm:$0xff]
    %v3330 = vld [vmem:[#allocation19 + $0x180] sm:$0xff]
    %v3331 = vld [vmem:[#allocation19 + $0x188] sm:$0xff]
    %v3332 = vld [vmem:[#allocation19 + $0x190] sm:$0xff]
    %v3333 = vld [vmem:[#allocation19 + $0x198] sm:$0xff]
    %v3334 = vld [vmem:[#allocation19 + $0x1a0] sm:$0xff]
    %v3335 = vld [vmem:[#allocation19 + $0x1a8] sm:$0xff]
    %v3336 = vld [vmem:[#allocation19 + $0x1b0] sm:$0xff]
    %v3337 = vld [vmem:[#allocation19 + $0x1b8] sm:$0xff]
    %v3338 = vld [vmem:[#allocation19 + $0x1c0] sm:$0xff]
    %v3339 = vld [vmem:[#allocation19 + $0x1c8] sm:$0xff]
    %v3340 = vld [vmem:[#allocation19 + $0x1d0] sm:$0xff]
    %v3341 = vld [vmem:[#allocation19 + $0x1d8] sm:$0xff]
    %v3342 = vld [vmem:[#allocation19 + $0x1e0] sm:$0xff]
    %v3343 = vld [vmem:[#allocation19 + $0x1e8] sm:$0xff]
    %v3344 = vld [vmem:[#allocation19 + $0x1f0] sm:$0xff]
    %v3345 = vld [vmem:[#allocation19 + $0x1f8] sm:$0xff]
    %v3346 = vld [vmem:[#allocation19 + $0x200] sm:$0xff]
    %v3347 = vld [vmem:[#allocation19 + $0x208] sm:$0xff]
    %v3348 = vld [vmem:[#allocation19 + $0x210] sm:$0xff]
    %v3349 = vld [vmem:[#allocation19 + $0x218] sm:$0xff]
    %v3350 = vld [vmem:[#allocation19 + $0x220] sm:$0xff]
    %v3351 = vld [vmem:[#allocation19 + $0x228] sm:$0xff]
    %v3352 = vld [vmem:[#allocation19 + $0x230] sm:$0xff]
    %v3353 = vld [vmem:[#allocation19 + $0x238] sm:$0xff]
    %v3354 = vld [vmem:[#allocation19 + $0x240] sm:$0xff]
    %v3355 = vld [vmem:[#allocation19 + $0x248] sm:$0xff]
    %v3356 = vld [vmem:[#allocation19 + $0x250] sm:$0xff]
    %v3357 = vld [vmem:[#allocation19 + $0x258] sm:$0xff]
    %v3358 = vld [vmem:[#allocation19 + $0x260] sm:$0xff]
    %v3359 = vld [vmem:[#allocation19 + $0x268] sm:$0xff]
    %v3360 = vld [vmem:[#allocation19 + $0x270] sm:$0xff]
    %v3361 = vld [vmem:[#allocation19 + $0x278] sm:$0xff]
    %v3362 = vld [vmem:[#allocation19 + $0x280] sm:$0xff]
    %v3363 = vld [vmem:[#allocation19 + $0x288] sm:$0xff]
    %v3364 = vld [vmem:[#allocation19 + $0x290] sm:$0xff]
    %v3365 = vld [vmem:[#allocation19 + $0x298] sm:$0xff]
    %v3366 = vld [vmem:[#allocation19 + $0x2a0] sm:$0xff]
    %v3367 = vld [vmem:[#allocation19 + $0x2a8] sm:$0xff]
    %v3368 = vld [vmem:[#allocation19 + $0x2b0] sm:$0xff]
    %v3369 = vld [vmem:[#allocation19 + $0x2b8] sm:$0xff]
    %v3370 = vld [vmem:[#allocation19 + $0x2c0] sm:$0xff]
    %v3371 = vld [vmem:[#allocation19 + $0x2c8] sm:$0xff]
    %v3372 = vld [vmem:[#allocation19 + $0x2d0] sm:$0xff]
    %v3373 = vld [vmem:[#allocation19 + $0x2d8] sm:$0xff]
    %v3374 = vld [vmem:[#allocation19 + $0x2e0] sm:$0xff]
    %v3375 = vld [vmem:[#allocation19 + $0x2e8] sm:$0xff]
    %v3376 = vld [vmem:[#allocation19 + $0x2f0] sm:$0xff]
    %v3377 = vld [vmem:[#allocation19 + $0x2f8] sm:$0xff]
    %v3378 = vld [vmem:[#allocation19 + $0x300] sm:$0xff]
    %v3379 = vld [vmem:[#allocation19 + $0x308] sm:$0xff]
    %v3380 = vld [vmem:[#allocation19 + $0x310] sm:$0xff]
    %v3381 = vld [vmem:[#allocation19 + $0x318] sm:$0xff]
    %v3382 = vld [vmem:[#allocation19 + $0x320] sm:$0xff]
    %v3383 = vld [vmem:[#allocation19 + $0x328] sm:$0xff]
    %v3384 = vld [vmem:[#allocation19 + $0x330] sm:$0xff]
    %v3385 = vld [vmem:[#allocation19 + $0x338] sm:$0xff]
    %v3386 = vld [vmem:[#allocation19 + $0x340] sm:$0xff]
    %v3387 = vld [vmem:[#allocation19 + $0x348] sm:$0xff]
    %v3388 = vld [vmem:[#allocation19 + $0x350] sm:$0xff]
    %v3389 = vld [vmem:[#allocation19 + $0x358] sm:$0xff]
    %v3390 = vld [vmem:[#allocation19 + $0x360] sm:$0xff]
    %v3391 = vld [vmem:[#allocation19 + $0x368] sm:$0xff]
    %v3392 = vld [vmem:[#allocation19 + $0x370] sm:$0xff]
    %v3393 = vld [vmem:[#allocation19 + $0x378] sm:$0xff]
    %v3394 = vld [vmem:[#allocation19 + $0x380] sm:$0xff]
    %v3395 = vld [vmem:[#allocation19 + $0x388] sm:$0xff]
    %v3396 = vld [vmem:[#allocation19 + $0x390] sm:$0xff]
    %v3397 = vld [vmem:[#allocation19 + $0x398] sm:$0xff]
    %v3398 = vld [vmem:[#allocation19 + $0x3a0] sm:$0xff]
    %v3399 = vld [vmem:[#allocation19 + $0x3a8] sm:$0xff]
    %v3400 = vld [vmem:[#allocation19 + $0x3b0] sm:$0xff]
    %v3401 = vld [vmem:[#allocation19 + $0x3b8] sm:$0xff]
    %v3402 = vld [vmem:[#allocation19 + $0x3c0] sm:$0xff]
    %v3403 = vld [vmem:[#allocation19 + $0x3c8] sm:$0xff]
    %v3404 = vld [vmem:[#allocation19 + $0x3d0] sm:$0xff]
    %v3405 = vld [vmem:[#allocation19 + $0x3d8] sm:$0xff]
    %v3406 = vld [vmem:[#allocation19 + $0x3e0] sm:$0xff]
    %v3407 = vld [vmem:[#allocation19 + $0x3e8] sm:$0xff]
    %v3408 = vld [vmem:[#allocation19 + $0x3f0] sm:$0xff]
    %v3409 = vld [vmem:[#allocation19 + $0x3f8] sm:$0xff]
    %v3410 = vld [vmem:[#allocation19 + $0x400] sm:$0xff]
    %v3411 = vld [vmem:[#allocation19 + $0x408] sm:$0xff]
    %v3412 = vld [vmem:[#allocation19 + $0x410] sm:$0xff]
    %v3413 = vld [vmem:[#allocation19 + $0x418] sm:$0xff]
    %v3414 = vld [vmem:[#allocation19 + $0x420] sm:$0xff]
    %v3415 = vld [vmem:[#allocation19 + $0x428] sm:$0xff]
    %v3416 = vld [vmem:[#allocation19 + $0x430] sm:$0xff]
    %v3417 = vld [vmem:[#allocation19 + $0x438] sm:$0xff]
    %v3418 = vld [vmem:[#allocation19 + $0x440] sm:$0xff]
    %v3419 = vld [vmem:[#allocation19 + $0x448] sm:$0xff]
    %v3420 = vld [vmem:[#allocation19 + $0x450] sm:$0xff]
    %v3421 = vld [vmem:[#allocation19 + $0x458] sm:$0xff]
    %v3422 = vld [vmem:[#allocation19 + $0x460] sm:$0xff]
    %v3423 = vld [vmem:[#allocation19 + $0x468] sm:$0xff]
    %v3424 = vld [vmem:[#allocation19 + $0x470] sm:$0xff]
    %v3425 = vld [vmem:[#allocation19 + $0x478] sm:$0xff]
    %v3426 = vld [vmem:[#allocation19 + $0x480] sm:$0xff]
    %v3427 = vld [vmem:[#allocation19 + $0x488] sm:$0xff]
    %v3428 = vld [vmem:[#allocation19 + $0x490] sm:$0xff]
    %v3429 = vld [vmem:[#allocation19 + $0x498] sm:$0xff]
    %v3430 = vld [vmem:[#allocation19 + $0x4a0] sm:$0xff]
    %v3431 = vld [vmem:[#allocation19 + $0x4a8] sm:$0xff]
    %v3432 = vld [vmem:[#allocation19 + $0x4b0] sm:$0xff]
    %v3433 = vld [vmem:[#allocation19 + $0x4b8] sm:$0xff]
    %v3434 = vld [vmem:[#allocation19 + $0x4c0] sm:$0xff]
    %v3435 = vld [vmem:[#allocation19 + $0x4c8] sm:$0xff]
    %v3436 = vld [vmem:[#allocation19 + $0x4d0] sm:$0xff]
    %v3437 = vld [vmem:[#allocation19 + $0x4d8] sm:$0xff]
    %v3438 = vld [vmem:[#allocation19 + $0x4e0] sm:$0xff]
    %v3439 = vld [vmem:[#allocation19 + $0x4e8] sm:$0xff]
    %v3440 = vld [vmem:[#allocation19 + $0x4f0] sm:$0xff]
    %v3441 = vld [vmem:[#allocation19 + $0x4f8] sm:$0xff]
    %v3442 = vld [vmem:[#allocation19 + $0x500] sm:$0xff]
    %v3443 = vld [vmem:[#allocation19 + $0x508] sm:$0xff]
    %v3444 = vld [vmem:[#allocation19 + $0x510] sm:$0xff]
    %v3445 = vld [vmem:[#allocation19 + $0x518] sm:$0xff]
    %v3446 = vld [vmem:[#allocation19 + $0x520] sm:$0xff]
    %v3447 = vld [vmem:[#allocation19 + $0x528] sm:$0xff]
    %v3448 = vld [vmem:[#allocation19 + $0x530] sm:$0xff]
    %v3449 = vld [vmem:[#allocation19 + $0x538] sm:$0xff]
    %v3450 = vld [vmem:[#allocation19 + $0x540] sm:$0xff]
    %v3451 = vld [vmem:[#allocation19 + $0x548] sm:$0xff]
    %v3452 = vld [vmem:[#allocation19 + $0x550] sm:$0xff]
    %v3453 = vld [vmem:[#allocation19 + $0x558] sm:$0xff]
    %v3454 = vld [vmem:[#allocation19 + $0x560] sm:$0xff]
    %v3455 = vld [vmem:[#allocation19 + $0x568] sm:$0xff]
    %v3456 = vld [vmem:[#allocation19 + $0x570] sm:$0xff]
    %v3457 = vld [vmem:[#allocation19 + $0x578] sm:$0xff]
    %v3458 = vld [vmem:[#allocation19 + $0x580] sm:$0xff]
    %v3459 = vld [vmem:[#allocation19 + $0x588] sm:$0xff]
    %v3460 = vld [vmem:[#allocation19 + $0x590] sm:$0xff]
    %v3461 = vld [vmem:[#allocation19 + $0x598] sm:$0xff]
    %v3462 = vld [vmem:[#allocation19 + $0x5a0] sm:$0xff]
    %v3463 = vld [vmem:[#allocation19 + $0x5a8] sm:$0xff]
    %v3464 = vld [vmem:[#allocation19 + $0x5b0] sm:$0xff]
    %v3465 = vld [vmem:[#allocation19 + $0x5b8] sm:$0xff]
    %v3466 = vld [vmem:[#allocation19 + $0x5c0] sm:$0xff]
    %v3467 = vld [vmem:[#allocation19 + $0x5c8] sm:$0xff]
    %v3468 = vld [vmem:[#allocation19 + $0x5d0] sm:$0xff]
    %v3469 = vld [vmem:[#allocation19 + $0x5d8] sm:$0xff]
    %v3470 = vld [vmem:[#allocation19 + $0x5e0] sm:$0xff]
    %v3471 = vld [vmem:[#allocation19 + $0x5e8] sm:$0xff]
    %v3472 = vld [vmem:[#allocation19 + $0x5f0] sm:$0xff]
    %v3473 = vld [vmem:[#allocation19 + $0x5f8] sm:$0xff]
    %v3474 = vld [vmem:[#allocation19 + $0x600] sm:$0xff]
    %v3475 = vld [vmem:[#allocation19 + $0x608] sm:$0xff]
    %v3476 = vld [vmem:[#allocation19 + $0x610] sm:$0xff]
    %v3477 = vld [vmem:[#allocation19 + $0x618] sm:$0xff]
    %v3478 = vld [vmem:[#allocation19 + $0x620] sm:$0xff]
    %v3479 = vld [vmem:[#allocation19 + $0x628] sm:$0xff]
    %v3480 = vld [vmem:[#allocation19 + $0x630] sm:$0xff]
    %v3481 = vld [vmem:[#allocation19 + $0x638] sm:$0xff]
    %v3482 = vld [vmem:[#allocation19 + $0x640] sm:$0xff]
    %v3483 = vld [vmem:[#allocation19 + $0x648] sm:$0xff]
    %v3484 = vld [vmem:[#allocation19 + $0x650] sm:$0xff]
    %v3485 = vld [vmem:[#allocation19 + $0x658] sm:$0xff]
    %v3486 = vld [vmem:[#allocation19 + $0x660] sm:$0xff]
    %v3487 = vld [vmem:[#allocation19 + $0x668] sm:$0xff]
    %v3488 = vld [vmem:[#allocation19 + $0x670] sm:$0xff]
    %v3489 = vld [vmem:[#allocation19 + $0x678] sm:$0xff]
    %v3490 = vld [vmem:[#allocation19 + $0x680] sm:$0xff]
    %v3491 = vld [vmem:[#allocation19 + $0x688] sm:$0xff]
    %v3492 = vld [vmem:[#allocation19 + $0x690] sm:$0xff]
    %v3493 = vld [vmem:[#allocation19 + $0x698] sm:$0xff]
    %v3494 = vld [vmem:[#allocation19 + $0x6a0] sm:$0xff]
    %v3495 = vld [vmem:[#allocation19 + $0x6a8] sm:$0xff]
    %v3496 = vld [vmem:[#allocation19 + $0x6b0] sm:$0xff]
    %v3497 = vld [vmem:[#allocation19 + $0x6b8] sm:$0xff]
    %v3498 = vld [vmem:[#allocation19 + $0x6c0] sm:$0xff]
    %v3499 = vld [vmem:[#allocation19 + $0x6c8] sm:$0xff]
    %v3500 = vld [vmem:[#allocation19 + $0x6d0] sm:$0xff]
    %v3501 = vld [vmem:[#allocation19 + $0x6d8] sm:$0xff]
    %v3502 = vld [vmem:[#allocation19 + $0x6e0] sm:$0xff]
    %v3503 = vld [vmem:[#allocation19 + $0x6e8] sm:$0xff]
    %v3504 = vld [vmem:[#allocation19 + $0x6f0] sm:$0xff]
    %v3505 = vld [vmem:[#allocation19 + $0x6f8] sm:$0xff]
    %v3506 = vld [vmem:[#allocation19 + $0x700] sm:$0xff]
    %v3507 = vld [vmem:[#allocation19 + $0x708] sm:$0xff]
    %v3508 = vld [vmem:[#allocation19 + $0x710] sm:$0xff]
    %v3509 = vld [vmem:[#allocation19 + $0x718] sm:$0xff]
    %v3510 = vld [vmem:[#allocation19 + $0x720] sm:$0xff]
    %v3511 = vld [vmem:[#allocation19 + $0x728] sm:$0xff]
    %v3512 = vld [vmem:[#allocation19 + $0x730] sm:$0xff]
    %v3513 = vld [vmem:[#allocation19 + $0x738] sm:$0xff]
    %v3514 = vld [vmem:[#allocation19 + $0x740] sm:$0xff]
    %v3515 = vld [vmem:[#allocation19 + $0x748] sm:$0xff]
    %v3516 = vld [vmem:[#allocation19 + $0x750] sm:$0xff]
    %v3517 = vld [vmem:[#allocation19 + $0x758] sm:$0xff]
    %v3518 = vld [vmem:[#allocation19 + $0x760] sm:$0xff]
    %v3519 = vld [vmem:[#allocation19 + $0x768] sm:$0xff]
    %v3520 = vld [vmem:[#allocation19 + $0x770] sm:$0xff]
    %v3521 = vld [vmem:[#allocation19 + $0x778] sm:$0xff]
    %v3522 = vld [vmem:[#allocation19 + $0x780] sm:$0xff]
    %v3523 = vld [vmem:[#allocation19 + $0x788] sm:$0xff]
    %v3524 = vld [vmem:[#allocation19 + $0x790] sm:$0xff]
    %v3525 = vld [vmem:[#allocation19 + $0x798] sm:$0xff]
    %v3526 = vld [vmem:[#allocation19 + $0x7a0] sm:$0xff]
    %v3527 = vld [vmem:[#allocation19 + $0x7a8] sm:$0xff]
    %v3528 = vld [vmem:[#allocation19 + $0x7b0] sm:$0xff]
    %v3529 = vld [vmem:[#allocation19 + $0x7b8] sm:$0xff]
    %v3530 = vld [vmem:[#allocation19 + $0x7c0] sm:$0xff]
    %v3531 = vld [vmem:[#allocation19 + $0x7c8] sm:$0xff]
    %v3532 = vld [vmem:[#allocation19 + $0x7d0] sm:$0xff]
    %v3533 = vld [vmem:[#allocation19 + $0x7d8] sm:$0xff]
    %v3534 = vld [vmem:[#allocation19 + $0x7e0] sm:$0xff]
    %v3535 = vld [vmem:[#allocation19 + $0x7e8] sm:$0xff]
    %v3536 = vld [vmem:[#allocation19 + $0x7f0] sm:$0xff]
    %v3537 = vld [vmem:[#allocation19 + $0x7f8] sm:$0xff]
    %v3538 = vld [vmem:[#allocation20] sm:$0x1]
    %v3540 = vlaneseq
    %v3541 = vshrl.u32 %v3540, 7
    %v3542 = vsub.s32 0, %v3541
    %v3543 = vrot.slane %v3538, %v3542
    %3545 = vmatprep.subr.mxu0 0.0
    %3546 = vmatpush1.msra.mxu0 %v3282
    %3547 = vmatprep.subr.mxu0 0.0
    %3548 = vmatpush1.msra.mxu0 %v3283
    %3549 = vmatprep.subr.mxu0 0.0
    %3550 = vmatpush1.msra.mxu0 %v3284
    %3551 = vmatprep.subr.mxu0 0.0
    %3552 = vmatpush1.msra.mxu0 %v3285
    %3553 = vmatprep.subr.mxu0 0.0
    %3554 = vmatpush1.msra.mxu0 %v3286
    %3555 = vmatprep.subr.mxu0 0.0
    %3556 = vmatpush1.msra.mxu0 %v3287
    %3557 = vmatprep.subr.mxu0 0.0
    %3558 = vmatpush1.msra.mxu0 %v3288
    %3559 = vmatprep.subr.mxu0 0.0
    %3560 = vmatpush1.msra.mxu0 %v3289
    %3561 = vmatprep.subr.mxu0 0.0
    %3562 = vmatpush1.msra.mxu0 %v3290
    %3563 = vmatprep.subr.mxu0 0.0
    %3564 = vmatpush1.msra.mxu0 %v3291
    %3565 = vmatprep.subr.mxu0 0.0
    %3566 = vmatpush1.msra.mxu0 %v3292
    %3567 = vmatprep.subr.mxu0 0.0
    %3568 = vmatpush1.msra.mxu0 %v3293
    %3569 = vmatprep.subr.mxu0 0.0
    %3570 = vmatpush1.msra.mxu0 %v3294
    %3571 = vmatprep.subr.mxu0 0.0
    %3572 = vmatpush1.msra.mxu0 %v3295
    %3573 = vmatprep.subr.mxu0 0.0
    %3574 = vmatpush1.msra.mxu0 %v3296
    %3575 = vmatprep.subr.mxu0 0.0
    %3576 = vmatpush1.msra.mxu0 %v3297
    %3577 = vmatprep.subr.mxu0 0.0
    %3578 = vmatpush1.msra.mxu0 %v3298
    %3579 = vmatprep.subr.mxu0 0.0
    %3580 = vmatpush1.msra.mxu0 %v3299
    %3581 = vmatprep.subr.mxu0 0.0
    %3582 = vmatpush1.msra.mxu0 %v3300
    %3583 = vmatprep.subr.mxu0 0.0
    %3584 = vmatpush1.msra.mxu0 %v3301
    %3585 = vmatprep.subr.mxu0 0.0
    %3586 = vmatpush1.msra.mxu0 %v3302
    %3587 = vmatprep.subr.mxu0 0.0
    %3588 = vmatpush1.msra.mxu0 %v3303
    %3589 = vmatprep.subr.mxu0 0.0
    %3590 = vmatpush1.msra.mxu0 %v3304
    %3591 = vmatprep.subr.mxu0 0.0
    %3592 = vmatpush1.msra.mxu0 %v3305
    %3593 = vmatprep.subr.mxu0 0.0
    %3594 = vmatpush1.msra.mxu0 %v3306
    %3595 = vmatprep.subr.mxu0 0.0
    %3596 = vmatpush1.msra.mxu0 %v3307
    %3597 = vmatprep.subr.mxu0 0.0
    %3598 = vmatpush1.msra.mxu0 %v3308
    %3599 = vmatprep.subr.mxu0 0.0
    %3600 = vmatpush1.msra.mxu0 %v3309
    %3601 = vmatprep.subr.mxu0 0.0
    %3602 = vmatpush1.msra.mxu0 %v3310
    %3603 = vmatprep.subr.mxu0 0.0
    %3604 = vmatpush1.msra.mxu0 %v3311
    %3605 = vmatprep.subr.mxu0 0.0
    %3606 = vmatpush1.msra.mxu0 %v3312
    %3607 = vmatprep.subr.mxu0 0.0
    %3608 = vmatpush1.msra.mxu0 %v3313
    %3609 = vmatprep.mubr.f32.mxu0 %v3251
    %3610 = vmatmul.mubr.f32.gmra.mrb[0].mxu0 %v3250
    %v3611 = vpop.f32.mrb[0].mxu0
    %v3612 = vadd.f32 %v3543, %v3611
    %v3613 = vpop.f32.mrb[0].mxu0
    %3614 = vmatprep.mubr.f32.mxu0 %v3267
    %3615 = vmatmul.mubr.f32.gmra.mrb[0].mxu0 %v3266
    %v3616 = vpop.f32.mrb[0].mxu0
    %v3617 = vadd.f32 %v3543, %v3616
    %v3618 = vpop.f32.mrb[0].mxu0
    %3619 = vdwg.mxu0
    %3620 = vmatprep.subr.mxu0 0.0
    %3621 = vmatpush1.msra.mxu0 %v3314
    %3622 = vmatprep.subr.mxu0 0.0
    %3623 = vmatpush1.msra.mxu0 %v3315
    %3624 = vmatprep.subr.mxu0 0.0
    %3625 = vmatpush1.msra.mxu0 %v3316
    %3626 = vmatprep.subr.mxu0 0.0
    %3627 = vmatpush1.msra.mxu0 %v3317
    %3628 = vmatprep.subr.mxu0 0.0
    %3629 = vmatpush1.msra.mxu0 %v3318
    %3630 = vmatprep.subr.mxu0 0.0
    %3631 = vmatpush1.msra.mxu0 %v3319
    %3632 = vmatprep.subr.mxu0 0.0
    %3633 = vmatpush1.msra.mxu0 %v3320
    %3634 = vmatprep.subr.mxu0 0.0
    %3635 = vmatpush1.msra.mxu0 %v3321
    %3636 = vmatprep.subr.mxu0 0.0
    %3637 = vmatpush1.msra.mxu0 %v3322
    %3638 = vmatprep.subr.mxu0 0.0
    %3639 = vmatpush1.msra.mxu0 %v3323
    %3640 = vmatprep.subr.mxu0 0.0
    %3641 = vmatpush1.msra.mxu0 %v3324
    %3642 = vmatprep.subr.mxu0 0.0
    %3643 = vmatpush1.msra.mxu0 %v3325
    %3644 = vmatprep.subr.mxu0 0.0
    %3645 = vmatpush1.msra.mxu0 %v3326
    %3646 = vmatprep.subr.mxu0 0.0
    %3647 = vmatpush1.msra.mxu0 %v3327
    %3648 = vmatprep.subr.mxu0 0.0
    %3649 = vmatpush1.msra.mxu0 %v3328
    %3650 = vmatprep.subr.mxu0 0.0
    %3651 = vmatpush1.msra.mxu0 %v3329
    %3652 = vmatprep.subr.mxu0 0.0
    %3653 = vmatpush1.msra.mxu0 %v3330
    %3654 = vmatprep.subr.mxu0 0.0
    %3655 = vmatpush1.msra.mxu0 %v3331
    %3656 = vmatprep.subr.mxu0 0.0
    %3657 = vmatpush1.msra.mxu0 %v3332
    %3658 = vmatprep.subr.mxu0 0.0
    %3659 = vmatpush1.msra.mxu0 %v3333
    %3660 = vmatprep.subr.mxu0 0.0
    %3661 = vmatpush1.msra.mxu0 %v3334
    %3662 = vmatprep.subr.mxu0 0.0
    %3663 = vmatpush1.msra.mxu0 %v3335
    %3664 = vmatprep.subr.mxu0 0.0
    %3665 = vmatpush1.msra.mxu0 %v3336
    %3666 = vmatprep.subr.mxu0 0.0
    %3667 = vmatpush1.msra.mxu0 %v3337
    %3668 = vmatprep.subr.mxu0 0.0
    %3669 = vmatpush1.msra.mxu0 %v3338
    %3670 = vmatprep.subr.mxu0 0.0
    %3671 = vmatpush1.msra.mxu0 %v3339
    %3672 = vmatprep.subr.mxu0 0.0
    %3673 = vmatpush1.msra.mxu0 %v3340
    %3674 = vmatprep.subr.mxu0 0.0
    %3675 = vmatpush1.msra.mxu0 %v3341
    %3676 = vmatprep.subr.mxu0 0.0
    %3677 = vmatpush1.msra.mxu0 %v3342
    %3678 = vmatprep.subr.mxu0 0.0
    %3679 = vmatpush1.msra.mxu0 %v3343
    %3680 = vmatprep.subr.mxu0 0.0
    %3681 = vmatpush1.msra.mxu0 %v3344
    %3682 = vmatprep.subr.mxu0 0.0
    %3683 = vmatpush1.msra.mxu0 %v3345
    %3684 = vmatprep.mubr.f32.mxu0 %v3253
    %3685 = vmatmul.mubr.f32.gmra.mrb[0].mxu0 %v3252
    %v3686 = vpop.f32.mrb[0].mxu0
    %v3687 = vadd.f32 %v3612, %v3686
    %v3688 = vpop.f32.mrb[0].mxu0
    %3689 = vmatprep.mubr.f32.mxu0 %v3269
    %3690 = vmatmul.mubr.f32.gmra.mrb[0].mxu0 %v3268
    %v3691 = vpop.f32.mrb[0].mxu0
    %v3692 = vadd.f32 %v3617, %v3691
    %v3693 = vpop.f32.mrb[0].mxu0
    %3694 = vdwg.mxu0
    %3695 = vmatprep.subr.mxu0 0.0
    %3696 = vmatpush1.msra.mxu0 %v3346
    %3697 = vmatprep.subr.mxu0 0.0
    %3698 = vmatpush1.msra.mxu0 %v3347
    %3699 = vmatprep.subr.mxu0 0.0
    %3700 = vmatpush1.msra.mxu0 %v3348
    %3701 = vmatprep.subr.mxu0 0.0
    %3702 = vmatpush1.msra.mxu0 %v3349
    %3703 = vmatprep.subr.mxu0 0.0
    %3704 = vmatpush1.msra.mxu0 %v3350
    %3705 = vmatprep.subr.mxu0 0.0
    %3706 = vmatpush1.msra.mxu0 %v3351
    %3707 = vmatprep.subr.mxu0 0.0
    %3708 = vmatpush1.msra.mxu0 %v3352
    %3709 = vmatprep.subr.mxu0 0.0
    %3710 = vmatpush1.msra.mxu0 %v3353
    %3711 = vmatprep.subr.mxu0 0.0
    %3712 = vmatpush1.msra.mxu0 %v3354
    %3713 = vmatprep.subr.mxu0 0.0
    %3714 = vmatpush1.msra.mxu0 %v3355
    %3715 = vmatprep.subr.mxu0 0.0
    %3716 = vmatpush1.msra.mxu0 %v3356
    %3717 = vmatprep.subr.mxu0 0.0
    %3718 = vmatpush1.msra.mxu0 %v3357
    %3719 = vmatprep.subr.mxu0 0.0
    %3720 = vmatpush1.msra.mxu0 %v3358
    %3721 = vmatprep.subr.mxu0 0.0
    %3722 = vmatpush1.msra.mxu0 %v3359
    %3723 = vmatprep.subr.mxu0 0.0
    %3724 = vmatpush1.msra.mxu0 %v3360
    %3725 = vmatprep.subr.mxu0 0.0
    %3726 = vmatpush1.msra.mxu0 %v3361
    %3727 = vmatprep.subr.mxu0 0.0
    %3728 = vmatpush1.msra.mxu0 %v3362
    %3729 = vmatprep.subr.mxu0 0.0
    %3730 = vmatpush1.msra.mxu0 %v3363
    %3731 = vmatprep.subr.mxu0 0.0
    %3732 = vmatpush1.msra.mxu0 %v3364
    %3733 = vmatprep.subr.mxu0 0.0
    %3734 = vmatpush1.msra.mxu0 %v3365
    %3735 = vmatprep.subr.mxu0 0.0
    %3736 = vmatpush1.msra.mxu0 %v3366
    %3737 = vmatprep.subr.mxu0 0.0
    %3738 = vmatpush1.msra.mxu0 %v3367
    %3739 = vmatprep.subr.mxu0 0.0
    %3740 = vmatpush1.msra.mxu0 %v3368
    %3741 = vmatprep.subr.mxu0 0.0
    %3742 = vmatpush1.msra.mxu0 %v3369
    %3743 = vmatprep.subr.mxu0 0.0
    %3744 = vmatpush1.msra.mxu0 %v3370
    %3745 = vmatprep.subr.mxu0 0.0
    %3746 = vmatpush1.msra.mxu0 %v3371
    %3747 = vmatprep.subr.mxu0 0.0
    %3748 = vmatpush1.msra.mxu0 %v3372
    %3749 = vmatprep.subr.mxu0 0.0
    %3750 = vmatpush1.msra.mxu0 %v3373
    %3751 = vmatprep.subr.mxu0 0.0
    %3752 = vmatpush1.msra.mxu0 %v3374
    %3753 = vmatprep.subr.mxu0 0.0
    %3754 = vmatpush1.msra.mxu0 %v3375
    %3755 = vmatprep.subr.mxu0 0.0
    %3756 = vmatpush1.msra.mxu0 %v3376
    %3757 = vmatprep.subr.mxu0 0.0
    %3758 = vmatpush1.msra.mxu0 %v3377
    %3759 = vmatprep.mubr.f32.mxu0 %v3255
    %3760 = vmatmul.mubr.f32.gmra.mrb[0].mxu0 %v3254
    %v3761 = vpop.f32.mrb[0].mxu0
    %v3762 = vadd.f32 %v3687, %v3761
    %v3763 = vpop.f32.mrb[0].mxu0
    %3764 = vmatprep.mubr.f32.mxu0 %v3271
    %3765 = vmatmul.mubr.f32.gmra.mrb[0].mxu0 %v3270
    %v3766 = vpop.f32.mrb[0].mxu0
    %v3767 = vadd.f32 %v3692, %v3766
    %v3768 = vpop.f32.mrb[0].mxu0
    %3769 = vdwg.mxu0
    %3770 = vmatprep.subr.mxu0 0.0
    %3771 = vmatpush1.msra.mxu0 %v3378
    %3772 = vmatprep.subr.mxu0 0.0
    %3773 = vmatpush1.msra.mxu0 %v3379
    %3774 = vmatprep.subr.mxu0 0.0
    %3775 = vmatpush1.msra.mxu0 %v3380
    %3776 = vmatprep.subr.mxu0 0.0
    %3777 = vmatpush1.msra.mxu0 %v3381
    %3778 = vmatprep.subr.mxu0 0.0
    %3779 = vmatpush1.msra.mxu0 %v3382
    %3780 = vmatprep.subr.mxu0 0.0
    %3781 = vmatpush1.msra.mxu0 %v3383
    %3782 = vmatprep.subr.mxu0 0.0
    %3783 = vmatpush1.msra.mxu0 %v3384
    %3784 = vmatprep.subr.mxu0 0.0
    %3785 = vmatpush1.msra.mxu0 %v3385
    %3786 = vmatprep.subr.mxu0 0.0
    %3787 = vmatpush1.msra.mxu0 %v3386
    %3788 = vmatprep.subr.mxu0 0.0
    %3789 = vmatpush1.msra.mxu0 %v3387
    %3790 = vmatprep.subr.mxu0 0.0
    %3791 = vmatpush1.msra.mxu0 %v3388
    %3792 = vmatprep.subr.mxu0 0.0
    %3793 = vmatpush1.msra.mxu0 %v3389
    %3794 = vmatprep.subr.mxu0 0.0
    %3795 = vmatpush1.msra.mxu0 %v3390
    %3796 = vmatprep.subr.mxu0 0.0
    %3797 = vmatpush1.msra.mxu0 %v3391
    %3798 = vmatprep.subr.mxu0 0.0
    %3799 = vmatpush1.msra.mxu0 %v3392
    %3800 = vmatprep.subr.mxu0 0.0
    %3801 = vmatpush1.msra.mxu0 %v3393
    %3802 = vmatprep.subr.mxu0 0.0
    %3803 = vmatpush1.msra.mxu0 %v3394
    %3804 = vmatprep.subr.mxu0 0.0
    %3805 = vmatpush1.msra.mxu0 %v3395
    %3806 = vmatprep.subr.mxu0 0.0
    %3807 = vmatpush1.msra.mxu0 %v3396
    %3808 = vmatprep.subr.mxu0 0.0
    %3809 = vmatpush1.msra.mxu0 %v3397
    %3810 = vmatprep.subr.mxu0 0.0
    %3811 = vmatpush1.msra.mxu0 %v3398
    %3812 = vmatprep.subr.mxu0 0.0
    %3813 = vmatpush1.msra.mxu0 %v3399
    %3814 = vmatprep.subr.mxu0 0.0
    %3815 = vmatpush1.msra.mxu0 %v3400
    %3816 = vmatprep.subr.mxu0 0.0
    %3817 = vmatpush1.msra.mxu0 %v3401
    %3818 = vmatprep.subr.mxu0 0.0
    %3819 = vmatpush1.msra.mxu0 %v3402
    %3820 = vmatprep.subr.mxu0 0.0
    %3821 = vmatpush1.msra.mxu0 %v3403
    %3822 = vmatprep.subr.mxu0 0.0
    %3823 = vmatpush1.msra.mxu0 %v3404
    %3824 = vmatprep.subr.mxu0 0.0
    %3825 = vmatpush1.msra.mxu0 %v3405
    %3826 = vmatprep.subr.mxu0 0.0
    %3827 = vmatpush1.msra.mxu0 %v3406
    %3828 = vmatprep.subr.mxu0 0.0
    %3829 = vmatpush1.msra.mxu0 %v3407
    %3830 = vmatprep.subr.mxu0 0.0
    %3831 = vmatpush1.msra.mxu0 %v3408
    %3832 = vmatprep.subr.mxu0 0.0
    %3833 = vmatpush1.msra.mxu0 %v3409
    %3834 = vmatprep.mubr.f32.mxu0 %v3257
    %3835 = vmatmul.mubr.f32.gmra.mrb[0].mxu0 %v3256
    %v3836 = vpop.f32.mrb[0].mxu0
    %v3837 = vadd.f32 %v3762, %v3836
    %v3838 = vpop.f32.mrb[0].mxu0
    %3839 = vmatprep.mubr.f32.mxu0 %v3273
    %3840 = vmatmul.mubr.f32.gmra.mrb[0].mxu0 %v3272
    %v3841 = vpop.f32.mrb[0].mxu0
    %v3842 = vadd.f32 %v3767, %v3841
    %v3843 = vpop.f32.mrb[0].mxu0
    %3844 = vdwg.mxu0
    %3845 = vmatprep.subr.mxu0 0.0
    %3846 = vmatpush1.msra.mxu0 %v3410
    %3847 = vmatprep.subr.mxu0 0.0
    %3848 = vmatpush1.msra.mxu0 %v3411
    %3849 = vmatprep.subr.mxu0 0.0
    %3850 = vmatpush1.msra.mxu0 %v3412
    %3851 = vmatprep.subr.mxu0 0.0
    %3852 = vmatpush1.msra.mxu0 %v3413
    %3853 = vmatprep.subr.mxu0 0.0
    %3854 = vmatpush1.msra.mxu0 %v3414
    %3855 = vmatprep.subr.mxu0 0.0
    %3856 = vmatpush1.msra.mxu0 %v3415
    %3857 = vmatprep.subr.mxu0 0.0
    %3858 = vmatpush1.msra.mxu0 %v3416
    %3859 = vmatprep.subr.mxu0 0.0
    %3860 = vmatpush1.msra.mxu0 %v3417
    %3861 = vmatprep.subr.mxu0 0.0
    %3862 = vmatpush1.msra.mxu0 %v3418
    %3863 = vmatprep.subr.mxu0 0.0
    %3864 = vmatpush1.msra.mxu0 %v3419
    %3865 = vmatprep.subr.mxu0 0.0
    %3866 = vmatpush1.msra.mxu0 %v3420
    %3867 = vmatprep.subr.mxu0 0.0
    %3868 = vmatpush1.msra.mxu0 %v3421
    %3869 = vmatprep.subr.mxu0 0.0
    %3870 = vmatpush1.msra.mxu0 %v3422
    %3871 = vmatprep.subr.mxu0 0.0
    %3872 = vmatpush1.msra.mxu0 %v3423
    %3873 = vmatprep.subr.mxu0 0.0
    %3874 = vmatpush1.msra.mxu0 %v3424
    %3875 = vmatprep.subr.mxu0 0.0
    %3876 = vmatpush1.msra.mxu0 %v3425
    %3877 = vmatprep.subr.mxu0 0.0
    %3878 = vmatpush1.msra.mxu0 %v3426
    %3879 = vmatprep.subr.mxu0 0.0
    %3880 = vmatpush1.msra.mxu0 %v3427
    %3881 = vmatprep.subr.mxu0 0.0
    %3882 = vmatpush1.msra.mxu0 %v3428
    %3883 = vmatprep.subr.mxu0 0.0
    %3884 = vmatpush1.msra.mxu0 %v3429
    %3885 = vmatprep.subr.mxu0 0.0
    %3886 = vmatpush1.msra.mxu0 %v3430
    %3887 = vmatprep.subr.mxu0 0.0
    %3888 = vmatpush1.msra.mxu0 %v3431
    %3889 = vmatprep.subr.mxu0 0.0
    %3890 = vmatpush1.msra.mxu0 %v3432
    %3891 = vmatprep.subr.mxu0 0.0
    %3892 = vmatpush1.msra.mxu0 %v3433
    %3893 = vmatprep.subr.mxu0 0.0
    %3894 = vmatpush1.msra.mxu0 %v3434
    %3895 = vmatprep.subr.mxu0 0.0
    %3896 = vmatpush1.msra.mxu0 %v3435
    %3897 = vmatprep.subr.mxu0 0.0
    %3898 = vmatpush1.msra.mxu0 %v3436
    %3899 = vmatprep.subr.mxu0 0.0
    %3900 = vmatpush1.msra.mxu0 %v3437
    %3901 = vmatprep.subr.mxu0 0.0
    %3902 = vmatpush1.msra.mxu0 %v3438
    %3903 = vmatprep.subr.mxu0 0.0
    %3904 = vmatpush1.msra.mxu0 %v3439
    %3905 = vmatprep.subr.mxu0 0.0
    %3906 = vmatpush1.msra.mxu0 %v3440
    %3907 = vmatprep.subr.mxu0 0.0
    %3908 = vmatpush1.msra.mxu0 %v3441
    %3909 = vmatprep.mubr.f32.mxu0 %v3259
    %3910 = vmatmul.mubr.f32.gmra.mrb[0].mxu0 %v3258
    %v3911 = vpop.f32.mrb[0].mxu0
    %v3912 = vadd.f32 %v3837, %v3911
    %v3913 = vpop.f32.mrb[0].mxu0
    %3914 = vmatprep.mubr.f32.mxu0 %v3275
    %3915 = vmatmul.mubr.f32.gmra.mrb[0].mxu0 %v3274
    %v3916 = vpop.f32.mrb[0].mxu0
    %v3917 = vadd.f32 %v3842, %v3916
    %v3918 = vpop.f32.mrb[0].mxu0
    %3919 = vdwg.mxu0
    %3920 = vmatprep.subr.mxu0 0.0
    %3921 = vmatpush1.msra.mxu0 %v3442
    %3922 = vmatprep.subr.mxu0 0.0
    %3923 = vmatpush1.msra.mxu0 %v3443
    %3924 = vmatprep.subr.mxu0 0.0
    %3925 = vmatpush1.msra.mxu0 %v3444
    %3926 = vmatprep.subr.mxu0 0.0
    %3927 = vmatpush1.msra.mxu0 %v3445
    %3928 = vmatprep.subr.mxu0 0.0
    %3929 = vmatpush1.msra.mxu0 %v3446
    %3930 = vmatprep.subr.mxu0 0.0
    %3931 = vmatpush1.msra.mxu0 %v3447
    %3932 = vmatprep.subr.mxu0 0.0
    %3933 = vmatpush1.msra.mxu0 %v3448
    %3934 = vmatprep.subr.mxu0 0.0
    %3935 = vmatpush1.msra.mxu0 %v3449
    %3936 = vmatprep.subr.mxu0 0.0
    %3937 = vmatpush1.msra.mxu0 %v3450
    %3938 = vmatprep.subr.mxu0 0.0
    %3939 = vmatpush1.msra.mxu0 %v3451
    %3940 = vmatprep.subr.mxu0 0.0
    %3941 = vmatpush1.msra.mxu0 %v3452
    %3942 = vmatprep.subr.mxu0 0.0
    %3943 = vmatpush1.msra.mxu0 %v3453
    %3944 = vmatprep.subr.mxu0 0.0
    %3945 = vmatpush1.msra.mxu0 %v3454
    %3946 = vmatprep.subr.mxu0 0.0
    %3947 = vmatpush1.msra.mxu0 %v3455
    %3948 = vmatprep.subr.mxu0 0.0
    %3949 = vmatpush1.msra.mxu0 %v3456
    %3950 = vmatprep.subr.mxu0 0.0
    %3951 = vmatpush1.msra.mxu0 %v3457
    %3952 = vmatprep.subr.mxu0 0.0
    %3953 = vmatpush1.msra.mxu0 %v3458
    %3954 = vmatprep.subr.mxu0 0.0
    %3955 = vmatpush1.msra.mxu0 %v3459
    %3956 = vmatprep.subr.mxu0 0.0
    %3957 = vmatpush1.msra.mxu0 %v3460
    %3958 = vmatprep.subr.mxu0 0.0
    %3959 = vmatpush1.msra.mxu0 %v3461
    %3960 = vmatprep.subr.mxu0 0.0
    %3961 = vmatpush1.msra.mxu0 %v3462
    %3962 = vmatprep.subr.mxu0 0.0
    %3963 = vmatpush1.msra.mxu0 %v3463
    %3964 = vmatprep.subr.mxu0 0.0
    %3965 = vmatpush1.msra.mxu0 %v3464
    %3966 = vmatprep.subr.mxu0 0.0
    %3967 = vmatpush1.msra.mxu0 %v3465
    %3968 = vmatprep.subr.mxu0 0.0
    %3969 = vmatpush1.msra.mxu0 %v3466
    %3970 = vmatprep.subr.mxu0 0.0
    %3971 = vmatpush1.msra.mxu0 %v3467
    %3972 = vmatprep.subr.mxu0 0.0
    %3973 = vmatpush1.msra.mxu0 %v3468
    %3974 = vmatprep.subr.mxu0 0.0
    %3975 = vmatpush1.msra.mxu0 %v3469
    %3976 = vmatprep.subr.mxu0 0.0
    %3977 = vmatpush1.msra.mxu0 %v3470
    %3978 = vmatprep.subr.mxu0 0.0
    %3979 = vmatpush1.msra.mxu0 %v3471
    %3980 = vmatprep.subr.mxu0 0.0
    %3981 = vmatpush1.msra.mxu0 %v3472
    %3982 = vmatprep.subr.mxu0 0.0
    %3983 = vmatpush1.msra.mxu0 %v3473
    %3984 = vmatprep.mubr.f32.mxu0 %v3261
    %3985 = vmatmul.mubr.f32.gmra.mrb[0].mxu0 %v3260
    %v3986 = vpop.f32.mrb[0].mxu0
    %v3987 = vadd.f32 %v3912, %v3986
    %v3988 = vpop.f32.mrb[0].mxu0
    %3989 = vmatprep.mubr.f32.mxu0 %v3277
    %3990 = vmatmul.mubr.f32.gmra.mrb[0].mxu0 %v3276
    %v3991 = vpop.f32.mrb[0].mxu0
    %v3992 = vadd.f32 %v3917, %v3991
    %v3993 = vpop.f32.mrb[0].mxu0
    %3994 = vdwg.mxu0
    %3995 = vmatprep.subr.mxu0 0.0
    %3996 = vmatpush1.msra.mxu0 %v3474
    %3997 = vmatprep.subr.mxu0 0.0
    %3998 = vmatpush1.msra.mxu0 %v3475
    %3999 = vmatprep.subr.mxu0 0.0
    %4000 = vmatpush1.msra.mxu0 %v3476
    %4001 = vmatprep.subr.mxu0 0.0
    %4002 = vmatpush1.msra.mxu0 %v3477
    %4003 = vmatprep.subr.mxu0 0.0
    %4004 = vmatpush1.msra.mxu0 %v3478
    %4005 = vmatprep.subr.mxu0 0.0
    %4006 = vmatpush1.msra.mxu0 %v3479
    %4007 = vmatprep.subr.mxu0 0.0
    %4008 = vmatpush1.msra.mxu0 %v3480
    %4009 = vmatprep.subr.mxu0 0.0
    %4010 = vmatpush1.msra.mxu0 %v3481
    %4011 = vmatprep.subr.mxu0 0.0
    %4012 = vmatpush1.msra.mxu0 %v3482
    %4013 = vmatprep.subr.mxu0 0.0
    %4014 = vmatpush1.msra.mxu0 %v3483
    %4015 = vmatprep.subr.mxu0 0.0
    %4016 = vmatpush1.msra.mxu0 %v3484
    %4017 = vmatprep.subr.mxu0 0.0
    %4018 = vmatpush1.msra.mxu0 %v3485
    %4019 = vmatprep.subr.mxu0 0.0
    %4020 = vmatpush1.msra.mxu0 %v3486
    %4021 = vmatprep.subr.mxu0 0.0
    %4022 = vmatpush1.msra.mxu0 %v3487
    %4023 = vmatprep.subr.mxu0 0.0
    %4024 = vmatpush1.msra.mxu0 %v3488
    %4025 = vmatprep.subr.mxu0 0.0
    %4026 = vmatpush1.msra.mxu0 %v3489
    %4027 = vmatprep.subr.mxu0 0.0
    %4028 = vmatpush1.msra.mxu0 %v3490
    %4029 = vmatprep.subr.mxu0 0.0
    %4030 = vmatpush1.msra.mxu0 %v3491
    %4031 = vmatprep.subr.mxu0 0.0
    %4032 = vmatpush1.msra.mxu0 %v3492
    %4033 = vmatprep.subr.mxu0 0.0
    %4034 = vmatpush1.msra.mxu0 %v3493
    %4035 = vmatprep.subr.mxu0 0.0
    %4036 = vmatpush1.msra.mxu0 %v3494
    %4037 = vmatprep.subr.mxu0 0.0
    %4038 = vmatpush1.msra.mxu0 %v3495
    %4039 = vmatprep.subr.mxu0 0.0
    %4040 = vmatpush1.msra.mxu0 %v3496
    %4041 = vmatprep.subr.mxu0 0.0
    %4042 = vmatpush1.msra.mxu0 %v3497
    %4043 = vmatprep.subr.mxu0 0.0
    %4044 = vmatpush1.msra.mxu0 %v3498
    %4045 = vmatprep.subr.mxu0 0.0
    %4046 = vmatpush1.msra.mxu0 %v3499
    %4047 = vmatprep.subr.mxu0 0.0
    %4048 = vmatpush1.msra.mxu0 %v3500
    %4049 = vmatprep.subr.mxu0 0.0
    %4050 = vmatpush1.msra.mxu0 %v3501
    %4051 = vmatprep.subr.mxu0 0.0
    %4052 = vmatpush1.msra.mxu0 %v3502
    %4053 = vmatprep.subr.mxu0 0.0
    %4054 = vmatpush1.msra.mxu0 %v3503
    %4055 = vmatprep.subr.mxu0 0.0
    %4056 = vmatpush1.msra.mxu0 %v3504
    %4057 = vmatprep.subr.mxu0 0.0
    %4058 = vmatpush1.msra.mxu0 %v3505
    %4059 = vmatprep.mubr.f32.mxu0 %v3263
    %4060 = vmatmul.mubr.f32.gmra.mrb[0].mxu0 %v3262
    %v4061 = vpop.f32.mrb[0].mxu0
    %v4062 = vadd.f32 %v3987, %v4061
    %v4063 = vpop.f32.mrb[0].mxu0
    %4064 = vmatprep.mubr.f32.mxu0 %v3279
    %4065 = vmatmul.mubr.f32.gmra.mrb[0].mxu0 %v3278
    %v4066 = vpop.f32.mrb[0].mxu0
    %v4067 = vadd.f32 %v3992, %v4066
    %v4068 = vpop.f32.mrb[0].mxu0
    %4069 = vdwg.mxu0
    %4070 = vmatprep.subr.mxu0 0.0
    %4071 = vmatpush1.msra.mxu0 %v3506
    %4072 = vmatprep.subr.mxu0 0.0
    %4073 = vmatpush1.msra.mxu0 %v3507
    %4074 = vmatprep.subr.mxu0 0.0
    %4075 = vmatpush1.msra.mxu0 %v3508
    %4076 = vmatprep.subr.mxu0 0.0
    %4077 = vmatpush1.msra.mxu0 %v3509
    %4078 = vmatprep.subr.mxu0 0.0
    %4079 = vmatpush1.msra.mxu0 %v3510
    %4080 = vmatprep.subr.mxu0 0.0
    %4081 = vmatpush1.msra.mxu0 %v3511
    %4082 = vmatprep.subr.mxu0 0.0
    %4083 = vmatpush1.msra.mxu0 %v3512
    %4084 = vmatprep.subr.mxu0 0.0
    %4085 = vmatpush1.msra.mxu0 %v3513
    %4086 = vmatprep.subr.mxu0 0.0
    %4087 = vmatpush1.msra.mxu0 %v3514
    %4088 = vmatprep.subr.mxu0 0.0
    %4089 = vmatpush1.msra.mxu0 %v3515
    %4090 = vmatprep.subr.mxu0 0.0
    %4091 = vmatpush1.msra.mxu0 %v3516
    %4092 = vmatprep.subr.mxu0 0.0
    %4093 = vmatpush1.msra.mxu0 %v3517
    %4094 = vmatprep.subr.mxu0 0.0
    %4095 = vmatpush1.msra.mxu0 %v3518
    %4096 = vmatprep.subr.mxu0 0.0
    %4097 = vmatpush1.msra.mxu0 %v3519
    %4098 = vmatprep.subr.mxu0 0.0
    %4099 = vmatpush1.msra.mxu0 %v3520
    %4100 = vmatprep.subr.mxu0 0.0
    %4101 = vmatpush1.msra.mxu0 %v3521
    %4102 = vmatprep.subr.mxu0 0.0
    %4103 = vmatpush1.msra.mxu0 %v3522
    %4104 = vmatprep.subr.mxu0 0.0
    %4105 = vmatpush1.msra.mxu0 %v3523
    %4106 = vmatprep.subr.mxu0 0.0
    %4107 = vmatpush1.msra.mxu0 %v3524
    %4108 = vmatprep.subr.mxu0 0.0
    %4109 = vmatpush1.msra.mxu0 %v3525
    %4110 = vmatprep.subr.mxu0 0.0
    %4111 = vmatpush1.msra.mxu0 %v3526
    %4112 = vmatprep.subr.mxu0 0.0
    %4113 = vmatpush1.msra.mxu0 %v3527
    %4114 = vmatprep.subr.mxu0 0.0
    %4115 = vmatpush1.msra.mxu0 %v3528
    %4116 = vmatprep.subr.mxu0 0.0
    %4117 = vmatpush1.msra.mxu0 %v3529
    %4118 = vmatprep.subr.mxu0 0.0
    %4119 = vmatpush1.msra.mxu0 %v3530
    %4120 = vmatprep.subr.mxu0 0.0
    %4121 = vmatpush1.msra.mxu0 %v3531
    %4122 = vmatprep.subr.mxu0 0.0
    %4123 = vmatpush1.msra.mxu0 %v3532
    %4124 = vmatprep.subr.mxu0 0.0
    %4125 = vmatpush1.msra.mxu0 %v3533
    %4126 = vmatprep.subr.mxu0 0.0
    %4127 = vmatpush1.msra.mxu0 %v3534
    %4128 = vmatprep.subr.mxu0 0.0
    %4129 = vmatpush1.msra.mxu0 %v3535
    %4130 = vmatprep.subr.mxu0 0.0
    %4131 = vmatpush1.msra.mxu0 %v3536
    %4132 = vmatprep.subr.mxu0 0.0
    %4133 = vmatpush1.msra.mxu0 %v3537
    %4134 = vmatprep.mubr.f32.mxu0 %v3265
    %4135 = vmatmul.mubr.f32.gmra.mrb[0].mxu0 %v3264
    %v4136 = vpop.f32.mrb[0].mxu0
    %v4137 = vadd.f32 %v4062, %v4136
    %v4138 = vpop.f32.mrb[0].mxu0
    %4139 = vmatprep.mubr.f32.mxu0 %v3281
    %4140 = vmatmul.mubr.f32.gmra.mrb[0].mxu0 %v3280
    %v4141 = vpop.f32.mrb[0].mxu0
    %v4142 = vadd.f32 %v4067, %v4141
    %v4143 = vpop.f32.mrb[0].mxu0
    %4144 = vdwg.mxu0
    %v4145 = vadd.f32 %v2292, %v4137
    %v4146 = vadd.f32 %v2293, %v4142
    %v4147 = vld [vmem:[#allocation22] sm:$0x1]
    %v4148 = vld [vmem:[#allocation23] sm:$0x1]
    %4149 = vadd.xlane.f32.xlu0 %v4145
    %v4150 = vpop.xlane.xlu0 %4149
    %4151 = vadd.xlane.f32.xlu0 %v4146
    %v4152 = vpop.xlane.xlu0 %4151
    %v4153 = vmul.f32 %v4150, %v2259
    %v4154 = vmul.f32 %v4152, %v2259
    %v4155 = vsub.f32 %v4145, %v4153
    %v4156 = vsub.f32 %v4146, %v4154
    %v4157 = vmul.f32 %v4155, %v4155
    %v4158 = vmul.f32 %v4156, %v4156
    %4159 = vadd.xlane.f32.xlu0 %v4157
    %v4160 = vpop.xlane.xlu0 %4159
    %4161 = vadd.xlane.f32.xlu0 %v4158
    %v4162 = vpop.xlane.xlu0 %4161
    %v4163 = vmul.f32 %v4160, %v2259
    %v4164 = vmul.f32 %v4162, %v2259
    %v4165 = vadd.f32 %v4163, 1e-05
    %v4166 = vadd.f32 %v4164, 1e-05
    %v4167 = vrsqrt.pop %v4165
    %v4168 = vrsqrt.pop %v4166
    %v4169 = vmul.f32 %v4155, %v4167
    %v4170 = vmul.f32 %v4156, %v4168
    %v4172 = vlaneseq
    %v4173 = vshrl.u32 %v4172, 7
    %v4174 = vsub.s32 0, %v4173
    %v4175 = vrot.slane %v4147, %v4174
    %v4177 = vmul.f32 %v4169, %v4175
    %v4178 = vmul.f32 %v4170, %v4175
    %v4180 = vlaneseq
    %v4181 = vshrl.u32 %v4180, 7
    %v4182 = vsub.s32 0, %v4181
    %v4183 = vrot.slane %v4148, %v4182
    %v4185 = vadd.f32 %v4177, %v4183
    %v4186 = vadd.f32 %v4178, %v4183
    %s4187 = scalar_lea.vmem [#allocation7], 384
    %v4188 = vld [vmem:[%s4187] sm:$0xff]
    %v4189 = vld [vmem:[%s4187 + $0x8] sm:$0xff]
    %v4190 = vld [vmem:[%s4187 + $0x10] sm:$0xff]
    %v4191 = vld [vmem:[%s4187 + $0x18] sm:$0xff]
    %v4192 = vld [vmem:[%s4187 + $0x20] sm:$0xff]
    %v4193 = vld [vmem:[%s4187 + $0x28] sm:$0xff]
    %v4194 = vld [vmem:[%s4187 + $0x30] sm:$0xff]
    %v4195 = vld [vmem:[%s4187 + $0x38] sm:$0xff]
    %v4196 = vld [vmem:[%s4187 + $0x40] sm:$0xff]
    %v4197 = vld [vmem:[%s4187 + $0x48] sm:$0xff]
    %v4198 = vld [vmem:[%s4187 + $0x50] sm:$0xff]
    %v4199 = vld [vmem:[%s4187 + $0x58] sm:$0xff]
    %v4200 = vld [vmem:[%s4187 + $0x60] sm:$0xff]
    %v4201 = vld [vmem:[%s4187 + $0x68] sm:$0xff]
    %v4202 = vld [vmem:[%s4187 + $0x70] sm:$0xff]
    %v4203 = vld [vmem:[%s4187 + $0x78] sm:$0xff]
    %v4204 = vld [vmem:[%s4187 + $0x80] sm:$0xff]
    %v4205 = vld [vmem:[%s4187 + $0x88] sm:$0xff]
    %v4206 = vld [vmem:[%s4187 + $0x90] sm:$0xff]
    %v4207 = vld [vmem:[%s4187 + $0x98] sm:$0xff]
    %v4208 = vld [vmem:[%s4187 + $0xa0] sm:$0xff]
    %v4209 = vld [vmem:[%s4187 + $0xa8] sm:$0xff]
    %v4210 = vld [vmem:[%s4187 + $0xb0] sm:$0xff]
    %v4211 = vld [vmem:[%s4187 + $0xb8] sm:$0xff]
    %v4212 = vld [vmem:[%s4187 + $0xc0] sm:$0xff]
    %v4213 = vld [vmem:[%s4187 + $0xc8] sm:$0xff]
    %v4214 = vld [vmem:[%s4187 + $0xd0] sm:$0xff]
    %v4215 = vld [vmem:[%s4187 + $0xd8] sm:$0xff]
    %v4216 = vld [vmem:[%s4187 + $0xe0] sm:$0xff]
    %v4217 = vld [vmem:[%s4187 + $0xe8] sm:$0xff]
    %v4218 = vld [vmem:[%s4187 + $0xf0] sm:$0xff]
    %v4219 = vld [vmem:[%s4187 + $0xf8] sm:$0xff]
    %v4220 = vld [vmem:[%s4187 + $0x100] sm:$0xff]
    %v4221 = vld [vmem:[%s4187 + $0x108] sm:$0xff]
    %v4222 = vld [vmem:[%s4187 + $0x110] sm:$0xff]
    %v4223 = vld [vmem:[%s4187 + $0x118] sm:$0xff]
    %v4224 = vld [vmem:[%s4187 + $0x120] sm:$0xff]
    %v4225 = vld [vmem:[%s4187 + $0x128] sm:$0xff]
    %v4226 = vld [vmem:[%s4187 + $0x130] sm:$0xff]
    %v4227 = vld [vmem:[%s4187 + $0x138] sm:$0xff]
    %v4228 = vld [vmem:[%s4187 + $0x140] sm:$0xff]
    %v4229 = vld [vmem:[%s4187 + $0x148] sm:$0xff]
    %v4230 = vld [vmem:[%s4187 + $0x150] sm:$0xff]
    %v4231 = vld [vmem:[%s4187 + $0x158] sm:$0xff]
    %v4232 = vld [vmem:[%s4187 + $0x160] sm:$0xff]
    %v4233 = vld [vmem:[%s4187 + $0x168] sm:$0xff]
    %v4234 = vld [vmem:[%s4187 + $0x170] sm:$0xff]
    %v4235 = vld [vmem:[%s4187 + $0x178] sm:$0xff]
    %s4236 = scalar_lea.vmem [#allocation8], 3
    %v4237 = vld [vmem:[%s4236] sm:$0x7]
    %v4239 = vlaneseq
    %v4240 = vshrl.u32 %v4239, 7
    %v4241 = vsub.s32 0, %v4240
    %v4242 = vrot.slane %v4237, %v4241
    %v4243 = vlaneseq
    %v4244 = vshrl.u32 %v4243, 7
    %v4245 = vsub.s32 1, %v4244
    %v4246 = vrot.slane %v4237, %v4245
    %v4247 = vlaneseq
    %v4248 = vshrl.u32 %v4247, 7
    %v4249 = vsub.s32 2, %v4248
    %v4250 = vrot.slane %v4237, %v4249
    %4254 = vmatprep.subr.mxu0 %v4189
    %4255 = vmatpush1.msra.mxu0 %v4188
    %4256 = vmatprep.subr.mxu0 %v4192
    %4257 = vmatpush1.msra.mxu0 %v4191
    %4258 = vmatprep.subr.mxu0 %v4195
    %4259 = vmatpush1.msra.mxu0 %v4194
    %4260 = vmatprep.subr.mxu0 %v4198
    %4261 = vmatpush1.msra.mxu0 %v4197
    %4262 = vmatprep.subr.mxu0 %v4201
    %4263 = vmatpush1.msra.mxu0 %v4200
    %4264 = vmatprep.subr.mxu0 %v4204
    %4265 = vmatpush1.msra.mxu0 %v4203
    %4266 = vmatprep.subr.mxu0 %v4207
    %4267 = vmatpush1.msra.mxu0 %v4206
    %4268 = vmatprep.subr.mxu0 %v4210
    %4269 = vmatpush1.msra.mxu0 %v4209
    %4270 = vmatprep.subr.mxu0 %v4213
    %4271 = vmatpush1.msra.mxu0 %v4212
    %4272 = vmatprep.subr.mxu0 %v4216
    %4273 = vmatpush1.msra.mxu0 %v4215
    %4274 = vmatprep.subr.mxu0 %v4219
    %4275 = vmatpush1.msra.mxu0 %v4218
    %4276 = vmatprep.subr.mxu0 %v4222
    %4277 = vmatpush1.msra.mxu0 %v4221
    %4278 = vmatprep.subr.mxu0 %v4225
    %4279 = vmatpush1.msra.mxu0 %v4224
    %4280 = vmatprep.subr.mxu0 %v4228
    %4281 = vmatpush1.msra.mxu0 %v4227
    %4282 = vmatprep.subr.mxu0 %v4231
    %4283 = vmatpush1.msra.mxu0 %v4230
    %4284 = vmatprep.subr.mxu0 %v4234
    %4285 = vmatpush1.msra.mxu0 %v4233
    %4286 = vmatprep.subr.mxu0 0.0
    %4287 = vmatpush1.msra.mxu0 0.0
    %4288 = vmatprep.subr.mxu0 0.0
    %4289 = vmatpush1.msra.mxu0 0.0
    %4290 = vmatprep.subr.mxu0 0.0
    %4291 = vmatpush1.msra.mxu0 0.0
    %4292 = vmatprep.subr.mxu0 0.0
    %4293 = vmatpush1.msra.mxu0 0.0
    %4294 = vmatprep.subr.mxu0 0.0
    %4295 = vmatpush1.msra.mxu0 0.0
    %4296 = vmatprep.subr.mxu0 0.0
    %4297 = vmatpush1.msra.mxu0 0.0
    %4298 = vmatprep.subr.mxu0 0.0
    %4299 = vmatpush1.msra.mxu0 0.0
    %4300 = vmatprep.subr.mxu0 0.0
    %4301 = vmatpush1.msra.mxu0 0.0
    %4302 = vmatprep.subr.mxu0 0.0
    %4303 = vmatpush1.msra.mxu0 0.0
    %4304 = vmatprep.subr.mxu0 0.0
    %4305 = vmatpush1.msra.mxu0 0.0
    %4306 = vmatprep.subr.mxu0 0.0
    %4307 = vmatpush1.msra.mxu0 0.0
    %4308 = vmatprep.subr.mxu0 0.0
    %4309 = vmatpush1.msra.mxu0 0.0
    %4310 = vmatprep.subr.mxu0 0.0
    %4311 = vmatpush1.msra.mxu0 0.0
    %4312 = vmatprep.subr.mxu0 0.0
    %4313 = vmatpush1.msra.mxu0 0.0
    %4314 = vmatprep.subr.mxu0 0.0
    %4315 = vmatpush1.msra.mxu0 0.0
    %4316 = vmatprep.subr.mxu0 0.0
    %4317 = vmatpush1.msra.mxu0 0.0
    %4318 = vmatprep.mubr.f32.mxu0 0.0
    %4319 = vmatmul.mubr.f32.gmra.mrb[0].mxu0 %v4185
    %v4320 = vpop.f32.mrb[0].mxu0
    %v4321 = vadd.f32 %v4242, %v4320
    %v4322 = vpop.f32.mrb[0].mxu0
    %v4323 = vadd.f32 %v4246, %v4322
    %4324 = vmatprep.mubr.f32.mxu0 0.0
    %4325 = vmatmul.mubr.f32.gmra.mrb[0].mxu0 %v4186
    %v4326 = vpop.f32.mrb[0].mxu0
    %v4327 = vadd.f32 %v4242, %v4326
    %v4328 = vpop.f32.mrb[0].mxu0
    %v4329 = vadd.f32 %v4246, %v4328
    %4330 = vdwg.mxu0
    %4331 = vmatprep.subr.mxu0 0.0
    %4332 = vmatpush1.msra.mxu0 %v4190
    %4333 = vmatprep.subr.mxu0 0.0
    %4334 = vmatpush1.msra.mxu0 %v4193
    %4335 = vmatprep.subr.mxu0 0.0
    %4336 = vmatpush1.msra.mxu0 %v4196
    %4337 = vmatprep.subr.mxu0 0.0
    %4338 = vmatpush1.msra.mxu0 %v4199
    %4339 = vmatprep.subr.mxu0 0.0
    %4340 = vmatpush1.msra.mxu0 %v4202
    %4341 = vmatprep.subr.mxu0 0.0
    %4342 = vmatpush1.msra.mxu0 %v4205
    %4343 = vmatprep.subr.mxu0 0.0
    %4344 = vmatpush1.msra.mxu0 %v4208
    %4345 = vmatprep.subr.mxu0 0.0
    %4346 = vmatpush1.msra.mxu0 %v4211
    %4347 = vmatprep.subr.mxu0 0.0
    %4348 = vmatpush1.msra.mxu0 %v4214
    %4349 = vmatprep.subr.mxu0 0.0
    %4350 = vmatpush1.msra.mxu0 %v4217
    %4351 = vmatprep.subr.mxu0 0.0
    %4352 = vmatpush1.msra.mxu0 %v4220
    %4353 = vmatprep.subr.mxu0 0.0
    %4354 = vmatpush1.msra.mxu0 %v4223
    %4355 = vmatprep.subr.mxu0 0.0
    %4356 = vmatpush1.msra.mxu0 %v4226
    %4357 = vmatprep.subr.mxu0 0.0
    %4358 = vmatpush1.msra.mxu0 %v4229
    %4359 = vmatprep.subr.mxu0 0.0
    %4360 = vmatpush1.msra.mxu0 %v4232
    %4361 = vmatprep.subr.mxu0 0.0
    %4362 = vmatpush1.msra.mxu0 %v4235
    %4363 = vmatprep.subr.mxu0 0.0
    %4364 = vmatpush1.msra.mxu0 0.0
    %4365 = vmatprep.subr.mxu0 0.0
    %4366 = vmatpush1.msra.mxu0 0.0
    %4367 = vmatprep.subr.mxu0 0.0
    %4368 = vmatpush1.msra.mxu0 0.0
    %4369 = vmatprep.subr.mxu0 0.0
    %4370 = vmatpush1.msra.mxu0 0.0
    %4371 = vmatprep.subr.mxu0 0.0
    %4372 = vmatpush1.msra.mxu0 0.0
    %4373 = vmatprep.subr.mxu0 0.0
    %4374 = vmatpush1.msra.mxu0 0.0
    %4375 = vmatprep.subr.mxu0 0.0
    %4376 = vmatpush1.msra.mxu0 0.0
    %4377 = vmatprep.subr.mxu0 0.0
    %4378 = vmatpush1.msra.mxu0 0.0
    %4379 = vmatprep.subr.mxu0 0.0
    %4380 = vmatpush1.msra.mxu0 0.0
    %4381 = vmatprep.subr.mxu0 0.0
    %4382 = vmatpush1.msra.mxu0 0.0
    %4383 = vmatprep.subr.mxu0 0.0
    %4384 = vmatpush1.msra.mxu0 0.0
    %4385 = vmatprep.subr.mxu0 0.0
    %4386 = vmatpush1.msra.mxu0 0.0
    %4387 = vmatprep.subr.mxu0 0.0
    %4388 = vmatpush1.msra.mxu0 0.0
    %4389 = vmatprep.subr.mxu0 0.0
    %4390 = vmatpush1.msra.mxu0 0.0
    %4391 = vmatprep.subr.mxu0 0.0
    %4392 = vmatpush1.msra.mxu0 0.0
    %4393 = vmatprep.subr.mxu0 0.0
    %4394 = vmatpush1.msra.mxu0 0.0
    %4395 = vmatprep.mubr.f32.mxu0 0.0
    %4396 = vmatmul.mubr.f32.gmra.mrb[0].mxu0 %v4185
    %v4397 = vpop.f32.mrb[0].mxu0
    %v4398 = vadd.f32 %v4250, %v4397
    %v4399 = vpop.f32.mrb[0].mxu0
    %4400 = vmatprep.mubr.f32.mxu0 0.0
    %4401 = vmatmul.mubr.f32.gmra.mrb[0].mxu0 %v4186
    %v4402 = vpop.f32.mrb[0].mxu0
    %v4403 = vadd.f32 %v4250, %v4402
    %v4404 = vpop.f32.mrb[0].mxu0
    %4405 = vdwg.mxu0
    %s4406 = scalar_lea.vmem [#allocation10], 128
    %v4407 = vld [vmem:[%s4406] sm:$0xff]
    %v4408 = vld [vmem:[%s4406 + $0x8] sm:$0xff]
    %v4409 = vld [vmem:[%s4406 + $0x10] sm:$0xff]
    %v4410 = vld [vmem:[%s4406 + $0x18] sm:$0xff]
    %v4411 = vld [vmem:[%s4406 + $0x20] sm:$0xff]
    %v4412 = vld [vmem:[%s4406 + $0x28] sm:$0xff]
    %v4413 = vld [vmem:[%s4406 + $0x30] sm:$0xff]
    %v4414 = vld [vmem:[%s4406 + $0x38] sm:$0xff]
    %v4415 = vld [vmem:[%s4406 + $0x40] sm:$0xff]
    %v4416 = vld [vmem:[%s4406 + $0x48] sm:$0xff]
    %v4417 = vld [vmem:[%s4406 + $0x50] sm:$0xff]
    %v4418 = vld [vmem:[%s4406 + $0x58] sm:$0xff]
    %v4419 = vld [vmem:[%s4406 + $0x60] sm:$0xff]
    %v4420 = vld [vmem:[%s4406 + $0x68] sm:$0xff]
    %v4421 = vld [vmem:[%s4406 + $0x70] sm:$0xff]
    %v4422 = vld [vmem:[%s4406 + $0x78] sm:$0xff]
    %v4424 = vsel %vm593, %v4321, 0
    %v4427 = vsel %vm593, %v4323, 0
    %4429 = vmatprep.subr.mxu0 0.0
    %4430 = vmatpush1.xpose.msra.mxu0 %v4427
    %4431 = vmatprep.subr.mxu0 0.0
    %4432 = vmatpush1.xpose.msra.mxu0 0.0
    %4433 = vmatprep.subr.mxu0 0.0
    %4434 = vmatpush1.xpose.msra.mxu0 0.0
    %4435 = vmatprep.subr.mxu0 0.0
    %4436 = vmatpush1.xpose.msra.mxu0 0.0
    %4437 = vmatprep.subr.mxu0 0.0
    %4438 = vmatpush1.xpose.msra.mxu0 0.0
    %4439 = vmatprep.subr.mxu0 0.0
    %4440 = vmatpush1.xpose.msra.mxu0 0.0
    %4441 = vmatprep.subr.mxu0 0.0
    %4442 = vmatpush1.xpose.msra.mxu0 0.0
    %4443 = vmatprep.subr.mxu0 0.0
    %4444 = vmatpush1.xpose.msra.mxu0 0.0
    %4445 = vmatprep.subr.mxu0 0.0
    %4446 = vmatpush1.xpose.msra.mxu0 0.0
    %4447 = vmatprep.subr.mxu0 0.0
    %4448 = vmatpush1.xpose.msra.mxu0 0.0
    %4449 = vmatprep.subr.mxu0 0.0
    %4450 = vmatpush1.xpose.msra.mxu0 0.0
    %4451 = vmatprep.subr.mxu0 0.0
    %4452 = vmatpush1.xpose.msra.mxu0 0.0
    %4453 = vmatprep.subr.mxu0 0.0
    %4454 = vmatpush1.xpose.msra.mxu0 0.0
    %4455 = vmatprep.subr.mxu0 0.0
    %4456 = vmatpush1.xpose.msra.mxu0 0.0
    %4457 = vmatprep.subr.mxu0 0.0
    %4458 = vmatpush1.xpose.msra.mxu0 0.0
    %4459 = vmatprep.subr.mxu0 0.0
    %4460 = vmatpush1.xpose.msra.mxu0 0.0
    %4461 = vmatprep.subr.mxu0 0.0
    %4462 = vmatpush1.xpose.msra.mxu0 0.0
    %4463 = vmatprep.subr.mxu0 0.0
    %4464 = vmatpush1.xpose.msra.mxu0 0.0
    %4465 = vmatprep.subr.mxu0 0.0
    %4466 = vmatpush1.xpose.msra.mxu0 0.0
    %4467 = vmatprep.subr.mxu0 0.0
    %4468 = vmatpush1.xpose.msra.mxu0 0.0
    %4469 = vmatprep.subr.mxu0 0.0
    %4470 = vmatpush1.xpose.msra.mxu0 0.0
    %4471 = vmatprep.subr.mxu0 0.0
    %4472 = vmatpush1.xpose.msra.mxu0 0.0
    %4473 = vmatprep.subr.mxu0 0.0
    %4474 = vmatpush1.xpose.msra.mxu0 0.0
    %4475 = vmatprep.subr.mxu0 0.0
    %4476 = vmatpush1.xpose.msra.mxu0 0.0
    %4477 = vmatprep.subr.mxu0 0.0
    %4478 = vmatpush1.xpose.msra.mxu0 0.0
    %4479 = vmatprep.subr.mxu0 0.0
    %4480 = vmatpush1.xpose.msra.mxu0 0.0
    %4481 = vmatprep.subr.mxu0 0.0
    %4482 = vmatpush1.xpose.msra.mxu0 0.0
    %4483 = vmatprep.subr.mxu0 0.0
    %4484 = vmatpush1.xpose.msra.mxu0 0.0
    %4485 = vmatprep.subr.mxu0 0.0
    %4486 = vmatpush1.xpose.msra.mxu0 0.0
    %4487 = vmatprep.subr.mxu0 0.0
    %4488 = vmatpush1.xpose.msra.mxu0 0.0
    %4489 = vmatprep.subr.mxu0 0.0
    %4490 = vmatpush1.xpose.msra.mxu0 0.0
    %4491 = vmatprep.subr.mxu0 0.0
    %4492 = vmatpush1.xpose.msra.mxu0 0.0
    %4493 = vmatprep.mubr.f32.mxu0 0.0
    %4494 = vmatmul.mubr.f32.gmra.mrb[0].mxu0 %v4424
    %v4495 = vpop.f32.mrb[0].mxu0
    %v4496 = vadd.f32 0.0, %v4495
    %v4497 = vpop.f32.mrb[0].mxu0
    %4498 = vdwg.mxu0
    %v4500 = vsel %vm593, %v4327, 0
    %v4503 = vsel %vm593, %v4329, 0
    %4505 = vmatprep.subr.mxu0 0.0
    %4506 = vmatpush1.xpose.msra.mxu0 %v4503
    %4507 = vmatprep.subr.mxu0 0.0
    %4508 = vmatpush1.xpose.msra.mxu0 0.0
    %4509 = vmatprep.subr.mxu0 0.0
    %4510 = vmatpush1.xpose.msra.mxu0 0.0
    %4511 = vmatprep.subr.mxu0 0.0
    %4512 = vmatpush1.xpose.msra.mxu0 0.0
    %4513 = vmatprep.subr.mxu0 0.0
    %4514 = vmatpush1.xpose.msra.mxu0 0.0
    %4515 = vmatprep.subr.mxu0 0.0
    %4516 = vmatpush1.xpose.msra.mxu0 0.0
    %4517 = vmatprep.subr.mxu0 0.0
    %4518 = vmatpush1.xpose.msra.mxu0 0.0
    %4519 = vmatprep.subr.mxu0 0.0
    %4520 = vmatpush1.xpose.msra.mxu0 0.0
    %4521 = vmatprep.subr.mxu0 0.0
    %4522 = vmatpush1.xpose.msra.mxu0 0.0
    %4523 = vmatprep.subr.mxu0 0.0
    %4524 = vmatpush1.xpose.msra.mxu0 0.0
    %4525 = vmatprep.subr.mxu0 0.0
    %4526 = vmatpush1.xpose.msra.mxu0 0.0
    %4527 = vmatprep.subr.mxu0 0.0
    %4528 = vmatpush1.xpose.msra.mxu0 0.0
    %4529 = vmatprep.subr.mxu0 0.0
    %4530 = vmatpush1.xpose.msra.mxu0 0.0
    %4531 = vmatprep.subr.mxu0 0.0
    %4532 = vmatpush1.xpose.msra.mxu0 0.0
    %4533 = vmatprep.subr.mxu0 0.0
    %4534 = vmatpush1.xpose.msra.mxu0 0.0
    %4535 = vmatprep.subr.mxu0 0.0
    %4536 = vmatpush1.xpose.msra.mxu0 0.0
    %4537 = vmatprep.subr.mxu0 0.0
    %4538 = vmatpush1.xpose.msra.mxu0 0.0
    %4539 = vmatprep.subr.mxu0 0.0
    %4540 = vmatpush1.xpose.msra.mxu0 0.0
    %4541 = vmatprep.subr.mxu0 0.0
    %4542 = vmatpush1.xpose.msra.mxu0 0.0
    %4543 = vmatprep.subr.mxu0 0.0
    %4544 = vmatpush1.xpose.msra.mxu0 0.0
    %4545 = vmatprep.subr.mxu0 0.0
    %4546 = vmatpush1.xpose.msra.mxu0 0.0
    %4547 = vmatprep.subr.mxu0 0.0
    %4548 = vmatpush1.xpose.msra.mxu0 0.0
    %4549 = vmatprep.subr.mxu0 0.0
    %4550 = vmatpush1.xpose.msra.mxu0 0.0
    %4551 = vmatprep.subr.mxu0 0.0
    %4552 = vmatpush1.xpose.msra.mxu0 0.0
    %4553 = vmatprep.subr.mxu0 0.0
    %4554 = vmatpush1.xpose.msra.mxu0 0.0
    %4555 = vmatprep.subr.mxu0 0.0
    %4556 = vmatpush1.xpose.msra.mxu0 0.0
    %4557 = vmatprep.subr.mxu0 0.0
    %4558 = vmatpush1.xpose.msra.mxu0 0.0
    %4559 = vmatprep.subr.mxu0 0.0
    %4560 = vmatpush1.xpose.msra.mxu0 0.0
    %4561 = vmatprep.subr.mxu0 0.0
    %4562 = vmatpush1.xpose.msra.mxu0 0.0
    %4563 = vmatprep.subr.mxu0 0.0
    %4564 = vmatpush1.xpose.msra.mxu0 0.0
    %4565 = vmatprep.subr.mxu0 0.0
    %4566 = vmatpush1.xpose.msra.mxu0 0.0
    %4567 = vmatprep.subr.mxu0 0.0
    %4568 = vmatpush1.xpose.msra.mxu0 0.0
    %4569 = vmatprep.mubr.f32.mxu0 0.0
    %4570 = vmatmul.mubr.f32.gmra.mrb[0].mxu0 %v4500
    %v4571 = vpop.f32.mrb[0].mxu0
    %v4572 = vadd.f32 0.0, %v4571
    %v4573 = vpop.f32.mrb[0].mxu0
    %4574 = vdwg.mxu0
    %v4575 = vmul.f32 %v4496, 0.17677669
    %v4576 = vmul.f32 %v4572, 0.17677669
    %v4577 = vsel %vm278, %v4575, -inf
    %4578 = vmax.xlane.f32.xlu0 %v4577
    %v4579 = vpop.xlane.xlu0 %4578
    %v4580 = vsel %vm278, %v4576, -inf
    %4581 = vmax.xlane.f32.xlu0 %v4580
    %v4582 = vpop.xlane.xlu0 %4581
    %v4583 = vsub.f32 %v4575, %v4579
    %v4584 = vsub.f32 %v4576, %v4582
    %v4585 = vmul.f32 %v4583, 1.442695
    %v4586 = vpow.pop %v4585
    %v4587 = vmul.f32 %v4584, 1.442695
    %v4588 = vpow.pop %v4587
    %v4589 = vsel %vm278, %v4586, 0.0
    %4590 = vadd.xlane.f32.xlu0 %v4589
    %v4591 = vpop.xlane.xlu0 %4590
    %v4592 = vsel %vm278, %v4588, 0.0
    %4593 = vadd.xlane.f32.xlu0 %v4592
    %v4594 = vpop.xlane.xlu0 %4593
    %v4595 = vrcp.pop %v4591
    %v4596 = vmul.f32 %v4586, %v4595
    %v4597 = vrcp.pop %v4594
    %v4598 = vmul.f32 %v4588, %v4597
    %v4600 = vsel %vm278, %v4596, 0
    %4602 = vmatprep.subr.mxu0 0.0
    %4603 = vmatpush1.msra.mxu0 %v4398
    %4604 = vmatprep.subr.mxu0 0.0
    %4605 = vmatpush1.msra.mxu0 0.0
    %4606 = vmatprep.subr.mxu0 0.0
    %4607 = vmatpush1.msra.mxu0 0.0
    %4608 = vmatprep.subr.mxu0 0.0
    %4609 = vmatpush1.msra.mxu0 0.0
    %4610 = vmatprep.subr.mxu0 0.0
    %4611 = vmatpush1.msra.mxu0 0.0
    %4612 = vmatprep.subr.mxu0 0.0
    %4613 = vmatpush1.msra.mxu0 0.0
    %4614 = vmatprep.subr.mxu0 0.0
    %4615 = vmatpush1.msra.mxu0 0.0
    %4616 = vmatprep.subr.mxu0 0.0
    %4617 = vmatpush1.msra.mxu0 0.0
    %4618 = vmatprep.subr.mxu0 0.0
    %4619 = vmatpush1.msra.mxu0 0.0
    %4620 = vmatprep.subr.mxu0 0.0
    %4621 = vmatpush1.msra.mxu0 0.0
    %4622 = vmatprep.subr.mxu0 0.0
    %4623 = vmatpush1.msra.mxu0 0.0
    %4624 = vmatprep.subr.mxu0 0.0
    %4625 = vmatpush1.msra.mxu0 0.0
    %4626 = vmatprep.subr.mxu0 0.0
    %4627 = vmatpush1.msra.mxu0 0.0
    %4628 = vmatprep.subr.mxu0 0.0
    %4629 = vmatpush1.msra.mxu0 0.0
    %4630 = vmatprep.subr.mxu0 0.0
    %4631 = vmatpush1.msra.mxu0 0.0
    %4632 = vmatprep.subr.mxu0 0.0
    %4633 = vmatpush1.msra.mxu0 0.0
    %4634 = vmatprep.subr.mxu0 0.0
    %4635 = vmatpush1.msra.mxu0 0.0
    %4636 = vmatprep.subr.mxu0 0.0
    %4637 = vmatpush1.msra.mxu0 0.0
    %4638 = vmatprep.subr.mxu0 0.0
    %4639 = vmatpush1.msra.mxu0 0.0
    %4640 = vmatprep.subr.mxu0 0.0
    %4641 = vmatpush1.msra.mxu0 0.0
    %4642 = vmatprep.subr.mxu0 0.0
    %4643 = vmatpush1.msra.mxu0 0.0
    %4644 = vmatprep.subr.mxu0 0.0
    %4645 = vmatpush1.msra.mxu0 0.0
    %4646 = vmatprep.subr.mxu0 0.0
    %4647 = vmatpush1.msra.mxu0 0.0
    %4648 = vmatprep.subr.mxu0 0.0
    %4649 = vmatpush1.msra.mxu0 0.0
    %4650 = vmatprep.subr.mxu0 0.0
    %4651 = vmatpush1.msra.mxu0 0.0
    %4652 = vmatprep.subr.mxu0 0.0
    %4653 = vmatpush1.msra.mxu0 0.0
    %4654 = vmatprep.subr.mxu0 0.0
    %4655 = vmatpush1.msra.mxu0 0.0
    %4656 = vmatprep.subr.mxu0 0.0
    %4657 = vmatpush1.msra.mxu0 0.0
    %4658 = vmatprep.subr.mxu0 0.0
    %4659 = vmatpush1.msra.mxu0 0.0
    %4660 = vmatprep.subr.mxu0 0.0
    %4661 = vmatpush1.msra.mxu0 0.0
    %4662 = vmatprep.subr.mxu0 0.0
    %4663 = vmatpush1.msra.mxu0 0.0
    %4664 = vmatprep.subr.mxu0 0.0
    %4665 = vmatpush1.msra.mxu0 0.0
    %4666 = vmatprep.mubr.f32.mxu0 0.0
    %4667 = vmatmul.mubr.f32.gmra.mrb[0].mxu0 %v4600
    %v4668 = vpop.f32.mrb[0].mxu0
    %v4669 = vadd.f32 0.0, %v4668
    %v4670 = vpop.f32.mrb[0].mxu0
    %4671 = vdwg.mxu0
    %v4673 = vsel %vm278, %v4598, 0
    %4675 = vmatprep.subr.mxu0 0.0
    %4676 = vmatpush1.msra.mxu0 %v4403
    %4677 = vmatprep.subr.mxu0 0.0
    %4678 = vmatpush1.msra.mxu0 0.0
    %4679 = vmatprep.subr.mxu0 0.0
    %4680 = vmatpush1.msra.mxu0 0.0
    %4681 = vmatprep.subr.mxu0 0.0
    %4682 = vmatpush1.msra.mxu0 0.0
    %4683 = vmatprep.subr.mxu0 0.0
    %4684 = vmatpush1.msra.mxu0 0.0
    %4685 = vmatprep.subr.mxu0 0.0
    %4686 = vmatpush1.msra.mxu0 0.0
    %4687 = vmatprep.subr.mxu0 0.0
    %4688 = vmatpush1.msra.mxu0 0.0
    %4689 = vmatprep.subr.mxu0 0.0
    %4690 = vmatpush1.msra.mxu0 0.0
    %4691 = vmatprep.subr.mxu0 0.0
    %4692 = vmatpush1.msra.mxu0 0.0
    %4693 = vmatprep.subr.mxu0 0.0
    %4694 = vmatpush1.msra.mxu0 0.0
    %4695 = vmatprep.subr.mxu0 0.0
    %4696 = vmatpush1.msra.mxu0 0.0
    %4697 = vmatprep.subr.mxu0 0.0
    %4698 = vmatpush1.msra.mxu0 0.0
    %4699 = vmatprep.subr.mxu0 0.0
    %4700 = vmatpush1.msra.mxu0 0.0
    %4701 = vmatprep.subr.mxu0 0.0
    %4702 = vmatpush1.msra.mxu0 0.0
    %4703 = vmatprep.subr.mxu0 0.0
    %4704 = vmatpush1.msra.mxu0 0.0
    %4705 = vmatprep.subr.mxu0 0.0
    %4706 = vmatpush1.msra.mxu0 0.0
    %4707 = vmatprep.subr.mxu0 0.0
    %4708 = vmatpush1.msra.mxu0 0.0
    %4709 = vmatprep.subr.mxu0 0.0
    %4710 = vmatpush1.msra.mxu0 0.0
    %4711 = vmatprep.subr.mxu0 0.0
    %4712 = vmatpush1.msra.mxu0 0.0
    %4713 = vmatprep.subr.mxu0 0.0
    %4714 = vmatpush1.msra.mxu0 0.0
    %4715 = vmatprep.subr.mxu0 0.0
    %4716 = vmatpush1.msra.mxu0 0.0
    %4717 = vmatprep.subr.mxu0 0.0
    %4718 = vmatpush1.msra.mxu0 0.0
    %4719 = vmatprep.subr.mxu0 0.0
    %4720 = vmatpush1.msra.mxu0 0.0
    %4721 = vmatprep.subr.mxu0 0.0
    %4722 = vmatpush1.msra.mxu0 0.0
    %4723 = vmatprep.subr.mxu0 0.0
    %4724 = vmatpush1.msra.mxu0 0.0
    %4725 = vmatprep.subr.mxu0 0.0
    %4726 = vmatpush1.msra.mxu0 0.0
    %4727 = vmatprep.subr.mxu0 0.0
    %4728 = vmatpush1.msra.mxu0 0.0
    %4729 = vmatprep.subr.mxu0 0.0
    %4730 = vmatpush1.msra.mxu0 0.0
    %4731 = vmatprep.subr.mxu0 0.0
    %4732 = vmatpush1.msra.mxu0 0.0
    %4733 = vmatprep.subr.mxu0 0.0
    %4734 = vmatpush1.msra.mxu0 0.0
    %4735 = vmatprep.subr.mxu0 0.0
    %4736 = vmatpush1.msra.mxu0 0.0
    %4737 = vmatprep.subr.mxu0 0.0
    %4738 = vmatpush1.msra.mxu0 0.0
    %4739 = vmatprep.mubr.f32.mxu0 0.0
    %4740 = vmatmul.mubr.f32.gmra.mrb[0].mxu0 %v4673
    %v4741 = vpop.f32.mrb[0].mxu0
    %v4742 = vadd.f32 0.0, %v4741
    %v4743 = vpop.f32.mrb[0].mxu0
    %4744 = vdwg.mxu0
    %4745 = vrot.lane.b32.xlu0 %v4321, 96
    %v4746 = vpop.permute.xlu0 %4745
    %4747 = vrot.lane.b32.xlu0 %v4323, 96
    %v4748 = vpop.permute.xlu0 %4747
    %v4749 = vsel %vm593, %v4746, 0
    %v4751 = vsel %vm593, %v4748, 0
    %4753 = vmatprep.subr.mxu0 0.0
    %4754 = vmatpush1.xpose.msra.mxu0 %v4751
    %4755 = vmatprep.subr.mxu0 0.0
    %4756 = vmatpush1.xpose.msra.mxu0 0.0
    %4757 = vmatprep.subr.mxu0 0.0
    %4758 = vmatpush1.xpose.msra.mxu0 0.0
    %4759 = vmatprep.subr.mxu0 0.0
    %4760 = vmatpush1.xpose.msra.mxu0 0.0
    %4761 = vmatprep.subr.mxu0 0.0
    %4762 = vmatpush1.xpose.msra.mxu0 0.0
    %4763 = vmatprep.subr.mxu0 0.0
    %4764 = vmatpush1.xpose.msra.mxu0 0.0
    %4765 = vmatprep.subr.mxu0 0.0
    %4766 = vmatpush1.xpose.msra.mxu0 0.0
    %4767 = vmatprep.subr.mxu0 0.0
    %4768 = vmatpush1.xpose.msra.mxu0 0.0
    %4769 = vmatprep.subr.mxu0 0.0
    %4770 = vmatpush1.xpose.msra.mxu0 0.0
    %4771 = vmatprep.subr.mxu0 0.0
    %4772 = vmatpush1.xpose.msra.mxu0 0.0
    %4773 = vmatprep.subr.mxu0 0.0
    %4774 = vmatpush1.xpose.msra.mxu0 0.0
    %4775 = vmatprep.subr.mxu0 0.0
    %4776 = vmatpush1.xpose.msra.mxu0 0.0
    %4777 = vmatprep.subr.mxu0 0.0
    %4778 = vmatpush1.xpose.msra.mxu0 0.0
    %4779 = vmatprep.subr.mxu0 0.0
    %4780 = vmatpush1.xpose.msra.mxu0 0.0
    %4781 = vmatprep.subr.mxu0 0.0
    %4782 = vmatpush1.xpose.msra.mxu0 0.0
    %4783 = vmatprep.subr.mxu0 0.0
    %4784 = vmatpush1.xpose.msra.mxu0 0.0
    %4785 = vmatprep.subr.mxu0 0.0
    %4786 = vmatpush1.xpose.msra.mxu0 0.0
    %4787 = vmatprep.subr.mxu0 0.0
    %4788 = vmatpush1.xpose.msra.mxu0 0.0
    %4789 = vmatprep.subr.mxu0 0.0
    %4790 = vmatpush1.xpose.msra.mxu0 0.0
    %4791 = vmatprep.subr.mxu0 0.0
    %4792 = vmatpush1.xpose.msra.mxu0 0.0
    %4793 = vmatprep.subr.mxu0 0.0
    %4794 = vmatpush1.xpose.msra.mxu0 0.0
    %4795 = vmatprep.subr.mxu0 0.0
    %4796 = vmatpush1.xpose.msra.mxu0 0.0
    %4797 = vmatprep.subr.mxu0 0.0
    %4798 = vmatpush1.xpose.msra.mxu0 0.0
    %4799 = vmatprep.subr.mxu0 0.0
    %4800 = vmatpush1.xpose.msra.mxu0 0.0
    %4801 = vmatprep.subr.mxu0 0.0
    %4802 = vmatpush1.xpose.msra.mxu0 0.0
    %4803 = vmatprep.subr.mxu0 0.0
    %4804 = vmatpush1.xpose.msra.mxu0 0.0
    %4805 = vmatprep.subr.mxu0 0.0
    %4806 = vmatpush1.xpose.msra.mxu0 0.0
    %4807 = vmatprep.subr.mxu0 0.0
    %4808 = vmatpush1.xpose.msra.mxu0 0.0
    %4809 = vmatprep.subr.mxu0 0.0
    %4810 = vmatpush1.xpose.msra.mxu0 0.0
    %4811 = vmatprep.subr.mxu0 0.0
    %4812 = vmatpush1.xpose.msra.mxu0 0.0
    %4813 = vmatprep.subr.mxu0 0.0
    %4814 = vmatpush1.xpose.msra.mxu0 0.0
    %4815 = vmatprep.subr.mxu0 0.0
    %4816 = vmatpush1.xpose.msra.mxu0 0.0
    %4817 = vmatprep.mubr.f32.mxu0 0.0
    %4818 = vmatmul.mubr.f32.gmra.mrb[0].mxu0 %v4749
    %v4819 = vpop.f32.mrb[0].mxu0
    %v4820 = vadd.f32 0.0, %v4819
    %v4821 = vpop.f32.mrb[0].mxu0
    %4822 = vdwg.mxu0
    %4823 = vrot.lane.b32.xlu0 %v4327, 96
    %v4824 = vpop.permute.xlu0 %4823
    %4825 = vrot.lane.b32.xlu0 %v4329, 96
    %v4826 = vpop.permute.xlu0 %4825
    %v4827 = vsel %vm593, %v4824, 0
    %v4829 = vsel %vm593, %v4826, 0
    %4831 = vmatprep.subr.mxu0 0.0
    %4832 = vmatpush1.xpose.msra.mxu0 %v4829
    %4833 = vmatprep.subr.mxu0 0.0
    %4834 = vmatpush1.xpose.msra.mxu0 0.0
    %4835 = vmatprep.subr.mxu0 0.0
    %4836 = vmatpush1.xpose.msra.mxu0 0.0
    %4837 = vmatprep.subr.mxu0 0.0
    %4838 = vmatpush1.xpose.msra.mxu0 0.0
    %4839 = vmatprep.subr.mxu0 0.0
    %4840 = vmatpush1.xpose.msra.mxu0 0.0
    %4841 = vmatprep.subr.mxu0 0.0
    %4842 = vmatpush1.xpose.msra.mxu0 0.0
    %4843 = vmatprep.subr.mxu0 0.0
    %4844 = vmatpush1.xpose.msra.mxu0 0.0
    %4845 = vmatprep.subr.mxu0 0.0
    %4846 = vmatpush1.xpose.msra.mxu0 0.0
    %4847 = vmatprep.subr.mxu0 0.0
    %4848 = vmatpush1.xpose.msra.mxu0 0.0
    %4849 = vmatprep.subr.mxu0 0.0
    %4850 = vmatpush1.xpose.msra.mxu0 0.0
    %4851 = vmatprep.subr.mxu0 0.0
    %4852 = vmatpush1.xpose.msra.mxu0 0.0
    %4853 = vmatprep.subr.mxu0 0.0
    %4854 = vmatpush1.xpose.msra.mxu0 0.0
    %4855 = vmatprep.subr.mxu0 0.0
    %4856 = vmatpush1.xpose.msra.mxu0 0.0
    %4857 = vmatprep.subr.mxu0 0.0
    %4858 = vmatpush1.xpose.msra.mxu0 0.0
    %4859 = vmatprep.subr.mxu0 0.0
    %4860 = vmatpush1.xpose.msra.mxu0 0.0
    %4861 = vmatprep.subr.mxu0 0.0
    %4862 = vmatpush1.xpose.msra.mxu0 0.0
    %4863 = vmatprep.subr.mxu0 0.0
    %4864 = vmatpush1.xpose.msra.mxu0 0.0
    %4865 = vmatprep.subr.mxu0 0.0
    %4866 = vmatpush1.xpose.msra.mxu0 0.0
    %4867 = vmatprep.subr.mxu0 0.0
    %4868 = vmatpush1.xpose.msra.mxu0 0.0
    %4869 = vmatprep.subr.mxu0 0.0
    %4870 = vmatpush1.xpose.msra.mxu0 0.0
    %4871 = vmatprep.subr.mxu0 0.0
    %4872 = vmatpush1.xpose.msra.mxu0 0.0
    %4873 = vmatprep.subr.mxu0 0.0
    %4874 = vmatpush1.xpose.msra.mxu0 0.0
    %4875 = vmatprep.subr.mxu0 0.0
    %4876 = vmatpush1.xpose.msra.mxu0 0.0
    %4877 = vmatprep.subr.mxu0 0.0
    %4878 = vmatpush1.xpose.msra.mxu0 0.0
    %4879 = vmatprep.subr.mxu0 0.0
    %4880 = vmatpush1.xpose.msra.mxu0 0.0
    %4881 = vmatprep.subr.mxu0 0.0
    %4882 = vmatpush1.xpose.msra.mxu0 0.0
    %4883 = vmatprep.subr.mxu0 0.0
    %4884 = vmatpush1.xpose.msra.mxu0 0.0
    %4885 = vmatprep.subr.mxu0 0.0
    %4886 = vmatpush1.xpose.msra.mxu0 0.0
    %4887 = vmatprep.subr.mxu0 0.0
    %4888 = vmatpush1.xpose.msra.mxu0 0.0
    %4889 = vmatprep.subr.mxu0 0.0
    %4890 = vmatpush1.xpose.msra.mxu0 0.0
    %4891 = vmatprep.subr.mxu0 0.0
    %4892 = vmatpush1.xpose.msra.mxu0 0.0
    %4893 = vmatprep.subr.mxu0 0.0
    %4894 = vmatpush1.xpose.msra.mxu0 0.0
    %4895 = vmatprep.mubr.f32.mxu0 0.0
    %4896 = vmatmul.mubr.f32.gmra.mrb[0].mxu0 %v4827
    %v4897 = vpop.f32.mrb[0].mxu0
    %v4898 = vadd.f32 0.0, %v4897
    %v4899 = vpop.f32.mrb[0].mxu0
    %4900 = vdwg.mxu0
    %v4901 = vmul.f32 %v4820, 0.17677669
    %v4902 = vmul.f32 %v4898, 0.17677669
    %v4903 = vsel %vm278, %v4901, -inf
    %4904 = vmax.xlane.f32.xlu0 %v4903
    %v4905 = vpop.xlane.xlu0 %4904
    %v4906 = vsel %vm278, %v4902, -inf
    %4907 = vmax.xlane.f32.xlu0 %v4906
    %v4908 = vpop.xlane.xlu0 %4907
    %v4909 = vsub.f32 %v4901, %v4905
    %v4910 = vsub.f32 %v4902, %v4908
    %v4911 = vmul.f32 %v4909, 1.442695
    %v4912 = vpow.pop %v4911
    %v4913 = vmul.f32 %v4910, 1.442695
    %v4914 = vpow.pop %v4913
    %v4915 = vsel %vm278, %v4912, 0.0
    %4916 = vadd.xlane.f32.xlu0 %v4915
    %v4917 = vpop.xlane.xlu0 %4916
    %v4918 = vsel %vm278, %v4914, 0.0
    %4919 = vadd.xlane.f32.xlu0 %v4918
    %v4920 = vpop.xlane.xlu0 %4919
    %v4921 = vrcp.pop %v4917
    %v4922 = vmul.f32 %v4912, %v4921
    %v4923 = vrcp.pop %v4920
    %v4924 = vmul.f32 %v4914, %v4923
    %4926 = vrot.lane.b32.xlu0 %v4398, 96
    %v4927 = vpop.permute.xlu0 %4926
    %v4930 = vsel %vm278, %v4922, 0
    %4932 = vmatprep.subr.mxu0 0.0
    %4933 = vmatpush1.msra.mxu0 %v4927
    %4934 = vmatprep.subr.mxu0 0.0
    %4935 = vmatpush1.msra.mxu0 0.0
    %4936 = vmatprep.subr.mxu0 0.0
    %4937 = vmatpush1.msra.mxu0 0.0
    %4938 = vmatprep.subr.mxu0 0.0
    %4939 = vmatpush1.msra.mxu0 0.0
    %4940 = vmatprep.subr.mxu0 0.0
    %4941 = vmatpush1.msra.mxu0 0.0
    %4942 = vmatprep.subr.mxu0 0.0
    %4943 = vmatpush1.msra.mxu0 0.0
    %4944 = vmatprep.subr.mxu0 0.0
    %4945 = vmatpush1.msra.mxu0 0.0
    %4946 = vmatprep.subr.mxu0 0.0
    %4947 = vmatpush1.msra.mxu0 0.0
    %4948 = vmatprep.subr.mxu0 0.0
    %4949 = vmatpush1.msra.mxu0 0.0
    %4950 = vmatprep.subr.mxu0 0.0
    %4951 = vmatpush1.msra.mxu0 0.0
    %4952 = vmatprep.subr.mxu0 0.0
    %4953 = vmatpush1.msra.mxu0 0.0
    %4954 = vmatprep.subr.mxu0 0.0
    %4955 = vmatpush1.msra.mxu0 0.0
    %4956 = vmatprep.subr.mxu0 0.0
    %4957 = vmatpush1.msra.mxu0 0.0
    %4958 = vmatprep.subr.mxu0 0.0
    %4959 = vmatpush1.msra.mxu0 0.0
    %4960 = vmatprep.subr.mxu0 0.0
    %4961 = vmatpush1.msra.mxu0 0.0
    %4962 = vmatprep.subr.mxu0 0.0
    %4963 = vmatpush1.msra.mxu0 0.0
    %4964 = vmatprep.subr.mxu0 0.0
    %4965 = vmatpush1.msra.mxu0 0.0
    %4966 = vmatprep.subr.mxu0 0.0
    %4967 = vmatpush1.msra.mxu0 0.0
    %4968 = vmatprep.subr.mxu0 0.0
    %4969 = vmatpush1.msra.mxu0 0.0
    %4970 = vmatprep.subr.mxu0 0.0
    %4971 = vmatpush1.msra.mxu0 0.0
    %4972 = vmatprep.subr.mxu0 0.0
    %4973 = vmatpush1.msra.mxu0 0.0
    %4974 = vmatprep.subr.mxu0 0.0
    %4975 = vmatpush1.msra.mxu0 0.0
    %4976 = vmatprep.subr.mxu0 0.0
    %4977 = vmatpush1.msra.mxu0 0.0
    %4978 = vmatprep.subr.mxu0 0.0
    %4979 = vmatpush1.msra.mxu0 0.0
    %4980 = vmatprep.subr.mxu0 0.0
    %4981 = vmatpush1.msra.mxu0 0.0
    %4982 = vmatprep.subr.mxu0 0.0
    %4983 = vmatpush1.msra.mxu0 0.0
    %4984 = vmatprep.subr.mxu0 0.0
    %4985 = vmatpush1.msra.mxu0 0.0
    %4986 = vmatprep.subr.mxu0 0.0
    %4987 = vmatpush1.msra.mxu0 0.0
    %4988 = vmatprep.subr.mxu0 0.0
    %4989 = vmatpush1.msra.mxu0 0.0
    %4990 = vmatprep.subr.mxu0 0.0
    %4991 = vmatpush1.msra.mxu0 0.0
    %4992 = vmatprep.subr.mxu0 0.0
    %4993 = vmatpush1.msra.mxu0 0.0
    %4994 = vmatprep.subr.mxu0 0.0
    %4995 = vmatpush1.msra.mxu0 0.0
    %4996 = vmatprep.mubr.f32.mxu0 0.0
    %4997 = vmatmul.mubr.f32.gmra.mrb[0].mxu0 %v4930
    %v4998 = vpop.f32.mrb[0].mxu0
    %v4999 = vadd.f32 0.0, %v4998
    %v5000 = vpop.f32.mrb[0].mxu0
    %5001 = vdwg.mxu0
    %5003 = vrot.lane.b32.xlu0 %v4403, 96
    %v5004 = vpop.permute.xlu0 %5003
    %v5007 = vsel %vm278, %v4924, 0
    %5009 = vmatprep.subr.mxu0 0.0
    %5010 = vmatpush1.msra.mxu0 %v5004
    %5011 = vmatprep.subr.mxu0 0.0
    %5012 = vmatpush1.msra.mxu0 0.0
    %5013 = vmatprep.subr.mxu0 0.0
    %5014 = vmatpush1.msra.mxu0 0.0
    %5015 = vmatprep.subr.mxu0 0.0
    %5016 = vmatpush1.msra.mxu0 0.0
    %5017 = vmatprep.subr.mxu0 0.0
    %5018 = vmatpush1.msra.mxu0 0.0
    %5019 = vmatprep.subr.mxu0 0.0
    %5020 = vmatpush1.msra.mxu0 0.0
    %5021 = vmatprep.subr.mxu0 0.0
    %5022 = vmatpush1.msra.mxu0 0.0
    %5023 = vmatprep.subr.mxu0 0.0
    %5024 = vmatpush1.msra.mxu0 0.0
    %5025 = vmatprep.subr.mxu0 0.0
    %5026 = vmatpush1.msra.mxu0 0.0
    %5027 = vmatprep.subr.mxu0 0.0
    %5028 = vmatpush1.msra.mxu0 0.0
    %5029 = vmatprep.subr.mxu0 0.0
    %5030 = vmatpush1.msra.mxu0 0.0
    %5031 = vmatprep.subr.mxu0 0.0
    %5032 = vmatpush1.msra.mxu0 0.0
    %5033 = vmatprep.subr.mxu0 0.0
    %5034 = vmatpush1.msra.mxu0 0.0
    %5035 = vmatprep.subr.mxu0 0.0
    %5036 = vmatpush1.msra.mxu0 0.0
    %5037 = vmatprep.subr.mxu0 0.0
    %5038 = vmatpush1.msra.mxu0 0.0
    %5039 = vmatprep.subr.mxu0 0.0
    %5040 = vmatpush1.msra.mxu0 0.0
    %5041 = vmatprep.subr.mxu0 0.0
    %5042 = vmatpush1.msra.mxu0 0.0
    %5043 = vmatprep.subr.mxu0 0.0
    %5044 = vmatpush1.msra.mxu0 0.0
    %5045 = vmatprep.subr.mxu0 0.0
    %5046 = vmatpush1.msra.mxu0 0.0
    %5047 = vmatprep.subr.mxu0 0.0
    %5048 = vmatpush1.msra.mxu0 0.0
    %5049 = vmatprep.subr.mxu0 0.0
    %5050 = vmatpush1.msra.mxu0 0.0
    %5051 = vmatprep.subr.mxu0 0.0
    %5052 = vmatpush1.msra.mxu0 0.0
    %5053 = vmatprep.subr.mxu0 0.0
    %5054 = vmatpush1.msra.mxu0 0.0
    %5055 = vmatprep.subr.mxu0 0.0
    %5056 = vmatpush1.msra.mxu0 0.0
    %5057 = vmatprep.subr.mxu0 0.0
    %5058 = vmatpush1.msra.mxu0 0.0
    %5059 = vmatprep.subr.mxu0 0.0
    %5060 = vmatpush1.msra.mxu0 0.0
    %5061 = vmatprep.subr.mxu0 0.0
    %5062 = vmatpush1.msra.mxu0 0.0
    %5063 = vmatprep.subr.mxu0 0.0
    %5064 = vmatpush1.msra.mxu0 0.0
    %5065 = vmatprep.subr.mxu0 0.0
    %5066 = vmatpush1.msra.mxu0 0.0
    %5067 = vmatprep.subr.mxu0 0.0
    %5068 = vmatpush1.msra.mxu0 0.0
    %5069 = vmatprep.subr.mxu0 0.0
    %5070 = vmatpush1.msra.mxu0 0.0
    %5071 = vmatprep.subr.mxu0 0.0
    %5072 = vmatpush1.msra.mxu0 0.0
    %5073 = vmatprep.mubr.f32.mxu0 0.0
    %5074 = vmatmul.mubr.f32.gmra.mrb[0].mxu0 %v5007
    %v5075 = vpop.f32.mrb[0].mxu0
    %v5076 = vadd.f32 0.0, %v5075
    %v5077 = vpop.f32.mrb[0].mxu0
    %5078 = vdwg.mxu0
    %v5080 = vsel %vm593, %v4999, 0
    %v5083 = vsel %vm593, %v5076, 0
    %5085 = vmatprep.subr.mxu0 0.0
    %5086 = vmatpush1.msra.mxu0 %v4411
    %5087 = vmatprep.subr.mxu0 0.0
    %5088 = vmatpush1.msra.mxu0 %v4412
    %5089 = vmatprep.subr.mxu0 0.0
    %5090 = vmatpush1.msra.mxu0 %v4413
    %5091 = vmatprep.subr.mxu0 0.0
    %5092 = vmatpush1.msra.mxu0 %v4414
    %5093 = vmatprep.subr.mxu0 0.0
    %5094 = vmatpush1.msra.mxu0 0.0
    %5095 = vmatprep.subr.mxu0 0.0
    %5096 = vmatpush1.msra.mxu0 0.0
    %5097 = vmatprep.subr.mxu0 0.0
    %5098 = vmatpush1.msra.mxu0 0.0
    %5099 = vmatprep.subr.mxu0 0.0
    %5100 = vmatpush1.msra.mxu0 0.0
    %5101 = vmatprep.subr.mxu0 0.0
    %5102 = vmatpush1.msra.mxu0 0.0
    %5103 = vmatprep.subr.mxu0 0.0
    %5104 = vmatpush1.msra.mxu0 0.0
    %5105 = vmatprep.subr.mxu0 0.0
    %5106 = vmatpush1.msra.mxu0 0.0
    %5107 = vmatprep.subr.mxu0 0.0
    %5108 = vmatpush1.msra.mxu0 0.0
    %5109 = vmatprep.subr.mxu0 0.0
    %5110 = vmatpush1.msra.mxu0 0.0
    %5111 = vmatprep.subr.mxu0 0.0
    %5112 = vmatpush1.msra.mxu0 0.0
    %5113 = vmatprep.subr.mxu0 0.0
    %5114 = vmatpush1.msra.mxu0 0.0
    %5115 = vmatprep.subr.mxu0 0.0
    %5116 = vmatpush1.msra.mxu0 0.0
    %5117 = vmatprep.subr.mxu0 0.0
    %5118 = vmatpush1.msra.mxu0 0.0
    %5119 = vmatprep.subr.mxu0 0.0
    %5120 = vmatpush1.msra.mxu0 0.0
    %5121 = vmatprep.subr.mxu0 0.0
    %5122 = vmatpush1.msra.mxu0 0.0
    %5123 = vmatprep.subr.mxu0 0.0
    %5124 = vmatpush1.msra.mxu0 0.0
    %5125 = vmatprep.subr.mxu0 0.0
    %5126 = vmatpush1.msra.mxu0 0.0
    %5127 = vmatprep.subr.mxu0 0.0
    %5128 = vmatpush1.msra.mxu0 0.0
    %5129 = vmatprep.subr.mxu0 0.0
    %5130 = vmatpush1.msra.mxu0 0.0
    %5131 = vmatprep.subr.mxu0 0.0
    %5132 = vmatpush1.msra.mxu0 0.0
    %5133 = vmatprep.subr.mxu0 0.0
    %5134 = vmatpush1.msra.mxu0 0.0
    %5135 = vmatprep.subr.mxu0 0.0
    %5136 = vmatpush1.msra.mxu0 0.0
    %5137 = vmatprep.subr.mxu0 0.0
    %5138 = vmatpush1.msra.mxu0 0.0
    %5139 = vmatprep.subr.mxu0 0.0
    %5140 = vmatpush1.msra.mxu0 0.0
    %5141 = vmatprep.subr.mxu0 0.0
    %5142 = vmatpush1.msra.mxu0 0.0
    %5143 = vmatprep.subr.mxu0 0.0
    %5144 = vmatpush1.msra.mxu0 0.0
    %5145 = vmatprep.subr.mxu0 0.0
    %5146 = vmatpush1.msra.mxu0 0.0
    %5147 = vmatprep.subr.mxu0 0.0
    %5148 = vmatpush1.msra.mxu0 0.0
    %5149 = vmatprep.mubr.f32.mxu0 0.0
    %5150 = vmatmul.mubr.f32.gmra.mrb[0].mxu0 %v5080
    %v5151 = vpop.f32.mrb[0].mxu0
    %v5152 = vadd.f32 0.0, %v5151
    %v5153 = vpop.f32.mrb[0].mxu0
    %5154 = vmatprep.mubr.f32.mxu0 0.0
    %5155 = vmatmul.mubr.f32.gmra.mrb[0].mxu0 %v5083
    %v5156 = vpop.f32.mrb[0].mxu0
    %v5157 = vadd.f32 0.0, %v5156
    %v5158 = vpop.f32.mrb[0].mxu0
    %5159 = vdwg.mxu0
    %v5161 = vsel %vm593, %v4669, 0
    %v5164 = vsel %vm593, %v4742, 0
    %5166 = vmatprep.subr.mxu0 0.0
    %5167 = vmatpush1.msra.mxu0 %v4407
    %5168 = vmatprep.subr.mxu0 0.0
    %5169 = vmatpush1.msra.mxu0 %v4408
    %5170 = vmatprep.subr.mxu0 0.0
    %5171 = vmatpush1.msra.mxu0 %v4409
    %5172 = vmatprep.subr.mxu0 0.0
    %5173 = vmatpush1.msra.mxu0 %v4410
    %5174 = vmatprep.subr.mxu0 0.0
    %5175 = vmatpush1.msra.mxu0 0.0
    %5176 = vmatprep.subr.mxu0 0.0
    %5177 = vmatpush1.msra.mxu0 0.0
    %5178 = vmatprep.subr.mxu0 0.0
    %5179 = vmatpush1.msra.mxu0 0.0
    %5180 = vmatprep.subr.mxu0 0.0
    %5181 = vmatpush1.msra.mxu0 0.0
    %5182 = vmatprep.subr.mxu0 0.0
    %5183 = vmatpush1.msra.mxu0 0.0
    %5184 = vmatprep.subr.mxu0 0.0
    %5185 = vmatpush1.msra.mxu0 0.0
    %5186 = vmatprep.subr.mxu0 0.0
    %5187 = vmatpush1.msra.mxu0 0.0
    %5188 = vmatprep.subr.mxu0 0.0
    %5189 = vmatpush1.msra.mxu0 0.0
    %5190 = vmatprep.subr.mxu0 0.0
    %5191 = vmatpush1.msra.mxu0 0.0
    %5192 = vmatprep.subr.mxu0 0.0
    %5193 = vmatpush1.msra.mxu0 0.0
    %5194 = vmatprep.subr.mxu0 0.0
    %5195 = vmatpush1.msra.mxu0 0.0
    %5196 = vmatprep.subr.mxu0 0.0
    %5197 = vmatpush1.msra.mxu0 0.0
    %5198 = vmatprep.subr.mxu0 0.0
    %5199 = vmatpush1.msra.mxu0 0.0
    %5200 = vmatprep.subr.mxu0 0.0
    %5201 = vmatpush1.msra.mxu0 0.0
    %5202 = vmatprep.subr.mxu0 0.0
    %5203 = vmatpush1.msra.mxu0 0.0
    %5204 = vmatprep.subr.mxu0 0.0
    %5205 = vmatpush1.msra.mxu0 0.0
    %5206 = vmatprep.subr.mxu0 0.0
    %5207 = vmatpush1.msra.mxu0 0.0
    %5208 = vmatprep.subr.mxu0 0.0
    %5209 = vmatpush1.msra.mxu0 0.0
    %5210 = vmatprep.subr.mxu0 0.0
    %5211 = vmatpush1.msra.mxu0 0.0
    %5212 = vmatprep.subr.mxu0 0.0
    %5213 = vmatpush1.msra.mxu0 0.0
    %5214 = vmatprep.subr.mxu0 0.0
    %5215 = vmatpush1.msra.mxu0 0.0
    %5216 = vmatprep.subr.mxu0 0.0
    %5217 = vmatpush1.msra.mxu0 0.0
    %5218 = vmatprep.subr.mxu0 0.0
    %5219 = vmatpush1.msra.mxu0 0.0
    %5220 = vmatprep.subr.mxu0 0.0
    %5221 = vmatpush1.msra.mxu0 0.0
    %5222 = vmatprep.subr.mxu0 0.0
    %5223 = vmatpush1.msra.mxu0 0.0
    %5224 = vmatprep.subr.mxu0 0.0
    %5225 = vmatpush1.msra.mxu0 0.0
    %5226 = vmatprep.subr.mxu0 0.0
    %5227 = vmatpush1.msra.mxu0 0.0
    %5228 = vmatprep.subr.mxu0 0.0
    %5229 = vmatpush1.msra.mxu0 0.0
    %5230 = vmatprep.mubr.f32.mxu0 0.0
    %5231 = vmatmul.mubr.f32.gmra.mrb[0].mxu0 %v5161
    %v5232 = vpop.f32.mrb[0].mxu0
    %v5233 = vadd.f32 %v5152, %v5232
    %v5234 = vpop.f32.mrb[0].mxu0
    %5235 = vmatprep.mubr.f32.mxu0 0.0
    %5236 = vmatmul.mubr.f32.gmra.mrb[0].mxu0 %v5164
    %v5237 = vpop.f32.mrb[0].mxu0
    %v5238 = vadd.f32 %v5157, %v5237
    %v5239 = vpop.f32.mrb[0].mxu0
    %5240 = vdwg.mxu0
    %5241 = vrot.lane.b32.xlu0 %v4321, 64
    %v5242 = vpop.permute.xlu0 %5241
    %5243 = vrot.lane.b32.xlu0 %v4323, 64
    %v5244 = vpop.permute.xlu0 %5243
    %v5245 = vsel %vm593, %v5242, 0
    %v5247 = vsel %vm593, %v5244, 0
    %5249 = vmatprep.subr.mxu0 0.0
    %5250 = vmatpush1.xpose.msra.mxu0 %v5247
    %5251 = vmatprep.subr.mxu0 0.0
    %5252 = vmatpush1.xpose.msra.mxu0 0.0
    %5253 = vmatprep.subr.mxu0 0.0
    %5254 = vmatpush1.xpose.msra.mxu0 0.0
    %5255 = vmatprep.subr.mxu0 0.0
    %5256 = vmatpush1.xpose.msra.mxu0 0.0
    %5257 = vmatprep.subr.mxu0 0.0
    %5258 = vmatpush1.xpose.msra.mxu0 0.0
    %5259 = vmatprep.subr.mxu0 0.0
    %5260 = vmatpush1.xpose.msra.mxu0 0.0
    %5261 = vmatprep.subr.mxu0 0.0
    %5262 = vmatpush1.xpose.msra.mxu0 0.0
    %5263 = vmatprep.subr.mxu0 0.0
    %5264 = vmatpush1.xpose.msra.mxu0 0.0
    %5265 = vmatprep.subr.mxu0 0.0
    %5266 = vmatpush1.xpose.msra.mxu0 0.0
    %5267 = vmatprep.subr.mxu0 0.0
    %5268 = vmatpush1.xpose.msra.mxu0 0.0
    %5269 = vmatprep.subr.mxu0 0.0
    %5270 = vmatpush1.xpose.msra.mxu0 0.0
    %5271 = vmatprep.subr.mxu0 0.0
    %5272 = vmatpush1.xpose.msra.mxu0 0.0
    %5273 = vmatprep.subr.mxu0 0.0
    %5274 = vmatpush1.xpose.msra.mxu0 0.0
    %5275 = vmatprep.subr.mxu0 0.0
    %5276 = vmatpush1.xpose.msra.mxu0 0.0
    %5277 = vmatprep.subr.mxu0 0.0
    %5278 = vmatpush1.xpose.msra.mxu0 0.0
    %5279 = vmatprep.subr.mxu0 0.0
    %5280 = vmatpush1.xpose.msra.mxu0 0.0
    %5281 = vmatprep.subr.mxu0 0.0
    %5282 = vmatpush1.xpose.msra.mxu0 0.0
    %5283 = vmatprep.subr.mxu0 0.0
    %5284 = vmatpush1.xpose.msra.mxu0 0.0
    %5285 = vmatprep.subr.mxu0 0.0
    %5286 = vmatpush1.xpose.msra.mxu0 0.0
    %5287 = vmatprep.subr.mxu0 0.0
    %5288 = vmatpush1.xpose.msra.mxu0 0.0
    %5289 = vmatprep.subr.mxu0 0.0
    %5290 = vmatpush1.xpose.msra.mxu0 0.0
    %5291 = vmatprep.subr.mxu0 0.0
    %5292 = vmatpush1.xpose.msra.mxu0 0.0
    %5293 = vmatprep.subr.mxu0 0.0
    %5294 = vmatpush1.xpose.msra.mxu0 0.0
    %5295 = vmatprep.subr.mxu0 0.0
    %5296 = vmatpush1.xpose.msra.mxu0 0.0
    %5297 = vmatprep.subr.mxu0 0.0
    %5298 = vmatpush1.xpose.msra.mxu0 0.0
    %5299 = vmatprep.subr.mxu0 0.0
    %5300 = vmatpush1.xpose.msra.mxu0 0.0
    %5301 = vmatprep.subr.mxu0 0.0
    %5302 = vmatpush1.xpose.msra.mxu0 0.0
    %5303 = vmatprep.subr.mxu0 0.0
    %5304 = vmatpush1.xpose.msra.mxu0 0.0
    %5305 = vmatprep.subr.mxu0 0.0
    %5306 = vmatpush1.xpose.msra.mxu0 0.0
    %5307 = vmatprep.subr.mxu0 0.0
    %5308 = vmatpush1.xpose.msra.mxu0 0.0
    %5309 = vmatprep.subr.mxu0 0.0
    %5310 = vmatpush1.xpose.msra.mxu0 0.0
    %5311 = vmatprep.subr.mxu0 0.0
    %5312 = vmatpush1.xpose.msra.mxu0 0.0
    %5313 = vmatprep.mubr.f32.mxu0 0.0
    %5314 = vmatmul.mubr.f32.gmra.mrb[0].mxu0 %v5245
    %v5315 = vpop.f32.mrb[0].mxu0
    %v5316 = vadd.f32 0.0, %v5315
    %v5317 = vpop.f32.mrb[0].mxu0
    %5318 = vdwg.mxu0
    %5319 = vrot.lane.b32.xlu0 %v4327, 64
    %v5320 = vpop.permute.xlu0 %5319
    %5321 = vrot.lane.b32.xlu0 %v4329, 64
    %v5322 = vpop.permute.xlu0 %5321
    %v5323 = vsel %vm593, %v5320, 0
    %v5325 = vsel %vm593, %v5322, 0
    %5327 = vmatprep.subr.mxu0 0.0
    %5328 = vmatpush1.xpose.msra.mxu0 %v5325
    %5329 = vmatprep.subr.mxu0 0.0
    %5330 = vmatpush1.xpose.msra.mxu0 0.0
    %5331 = vmatprep.subr.mxu0 0.0
    %5332 = vmatpush1.xpose.msra.mxu0 0.0
    %5333 = vmatprep.subr.mxu0 0.0
    %5334 = vmatpush1.xpose.msra.mxu0 0.0
    %5335 = vmatprep.subr.mxu0 0.0
    %5336 = vmatpush1.xpose.msra.mxu0 0.0
    %5337 = vmatprep.subr.mxu0 0.0
    %5338 = vmatpush1.xpose.msra.mxu0 0.0
    %5339 = vmatprep.subr.mxu0 0.0
    %5340 = vmatpush1.xpose.msra.mxu0 0.0
    %5341 = vmatprep.subr.mxu0 0.0
    %5342 = vmatpush1.xpose.msra.mxu0 0.0
    %5343 = vmatprep.subr.mxu0 0.0
    %5344 = vmatpush1.xpose.msra.mxu0 0.0
    %5345 = vmatprep.subr.mxu0 0.0
    %5346 = vmatpush1.xpose.msra.mxu0 0.0
    %5347 = vmatprep.subr.mxu0 0.0
    %5348 = vmatpush1.xpose.msra.mxu0 0.0
    %5349 = vmatprep.subr.mxu0 0.0
    %5350 = vmatpush1.xpose.msra.mxu0 0.0
    %5351 = vmatprep.subr.mxu0 0.0
    %5352 = vmatpush1.xpose.msra.mxu0 0.0
    %5353 = vmatprep.subr.mxu0 0.0
    %5354 = vmatpush1.xpose.msra.mxu0 0.0
    %5355 = vmatprep.subr.mxu0 0.0
    %5356 = vmatpush1.xpose.msra.mxu0 0.0
    %5357 = vmatprep.subr.mxu0 0.0
    %5358 = vmatpush1.xpose.msra.mxu0 0.0
    %5359 = vmatprep.subr.mxu0 0.0
    %5360 = vmatpush1.xpose.msra.mxu0 0.0
    %5361 = vmatprep.subr.mxu0 0.0
    %5362 = vmatpush1.xpose.msra.mxu0 0.0
    %5363 = vmatprep.subr.mxu0 0.0
    %5364 = vmatpush1.xpose.msra.mxu0 0.0
    %5365 = vmatprep.subr.mxu0 0.0
    %5366 = vmatpush1.xpose.msra.mxu0 0.0
    %5367 = vmatprep.subr.mxu0 0.0
    %5368 = vmatpush1.xpose.msra.mxu0 0.0
    %5369 = vmatprep.subr.mxu0 0.0
    %5370 = vmatpush1.xpose.msra.mxu0 0.0
    %5371 = vmatprep.subr.mxu0 0.0
    %5372 = vmatpush1.xpose.msra.mxu0 0.0
    %5373 = vmatprep.subr.mxu0 0.0
    %5374 = vmatpush1.xpose.msra.mxu0 0.0
    %5375 = vmatprep.subr.mxu0 0.0
    %5376 = vmatpush1.xpose.msra.mxu0 0.0
    %5377 = vmatprep.subr.mxu0 0.0
    %5378 = vmatpush1.xpose.msra.mxu0 0.0
    %5379 = vmatprep.subr.mxu0 0.0
    %5380 = vmatpush1.xpose.msra.mxu0 0.0
    %5381 = vmatprep.subr.mxu0 0.0
    %5382 = vmatpush1.xpose.msra.mxu0 0.0
    %5383 = vmatprep.subr.mxu0 0.0
    %5384 = vmatpush1.xpose.msra.mxu0 0.0
    %5385 = vmatprep.subr.mxu0 0.0
    %5386 = vmatpush1.xpose.msra.mxu0 0.0
    %5387 = vmatprep.subr.mxu0 0.0
    %5388 = vmatpush1.xpose.msra.mxu0 0.0
    %5389 = vmatprep.subr.mxu0 0.0
    %5390 = vmatpush1.xpose.msra.mxu0 0.0
    %5391 = vmatprep.mubr.f32.mxu0 0.0
    %5392 = vmatmul.mubr.f32.gmra.mrb[0].mxu0 %v5323
    %v5393 = vpop.f32.mrb[0].mxu0
    %v5394 = vadd.f32 0.0, %v5393
    %v5395 = vpop.f32.mrb[0].mxu0
    %5396 = vdwg.mxu0
    %v5397 = vmul.f32 %v5316, 0.17677669
    %v5398 = vmul.f32 %v5394, 0.17677669
    %v5399 = vsel %vm278, %v5397, -inf
    %5400 = vmax.xlane.f32.xlu0 %v5399
    %v5401 = vpop.xlane.xlu0 %5400
    %v5402 = vsel %vm278, %v5398, -inf
    %5403 = vmax.xlane.f32.xlu0 %v5402
    %v5404 = vpop.xlane.xlu0 %5403
    %v5405 = vsub.f32 %v5397, %v5401
    %v5406 = vsub.f32 %v5398, %v5404
    %v5407 = vmul.f32 %v5405, 1.442695
    %v5408 = vpow.pop %v5407
    %v5409 = vmul.f32 %v5406, 1.442695
    %v5410 = vpow.pop %v5409
    %v5411 = vsel %vm278, %v5408, 0.0
    %5412 = vadd.xlane.f32.xlu0 %v5411
    %v5413 = vpop.xlane.xlu0 %5412
    %v5414 = vsel %vm278, %v5410, 0.0
    %5415 = vadd.xlane.f32.xlu0 %v5414
    %v5416 = vpop.xlane.xlu0 %5415
    %v5417 = vrcp.pop %v5413
    %v5418 = vmul.f32 %v5408, %v5417
    %v5419 = vrcp.pop %v5416
    %v5420 = vmul.f32 %v5410, %v5419
    %5421 = vrot.lane.b32.xlu0 %v4398, 64
    %v5422 = vpop.permute.xlu0 %5421
    %v5425 = vsel %vm278, %v5418, 0
    %5427 = vmatprep.subr.mxu0 0.0
    %5428 = vmatpush1.msra.mxu0 %v5422
    %5429 = vmatprep.subr.mxu0 0.0
    %5430 = vmatpush1.msra.mxu0 0.0
    %5431 = vmatprep.subr.mxu0 0.0
    %5432 = vmatpush1.msra.mxu0 0.0
    %5433 = vmatprep.subr.mxu0 0.0
    %5434 = vmatpush1.msra.mxu0 0.0
    %5435 = vmatprep.subr.mxu0 0.0
    %5436 = vmatpush1.msra.mxu0 0.0
    %5437 = vmatprep.subr.mxu0 0.0
    %5438 = vmatpush1.msra.mxu0 0.0
    %5439 = vmatprep.subr.mxu0 0.0
    %5440 = vmatpush1.msra.mxu0 0.0
    %5441 = vmatprep.subr.mxu0 0.0
    %5442 = vmatpush1.msra.mxu0 0.0
    %5443 = vmatprep.subr.mxu0 0.0
    %5444 = vmatpush1.msra.mxu0 0.0
    %5445 = vmatprep.subr.mxu0 0.0
    %5446 = vmatpush1.msra.mxu0 0.0
    %5447 = vmatprep.subr.mxu0 0.0
    %5448 = vmatpush1.msra.mxu0 0.0
    %5449 = vmatprep.subr.mxu0 0.0
    %5450 = vmatpush1.msra.mxu0 0.0
    %5451 = vmatprep.subr.mxu0 0.0
    %5452 = vmatpush1.msra.mxu0 0.0
    %5453 = vmatprep.subr.mxu0 0.0
    %5454 = vmatpush1.msra.mxu0 0.0
    %5455 = vmatprep.subr.mxu0 0.0
    %5456 = vmatpush1.msra.mxu0 0.0
    %5457 = vmatprep.subr.mxu0 0.0
    %5458 = vmatpush1.msra.mxu0 0.0
    %5459 = vmatprep.subr.mxu0 0.0
    %5460 = vmatpush1.msra.mxu0 0.0
    %5461 = vmatprep.subr.mxu0 0.0
    %5462 = vmatpush1.msra.mxu0 0.0
    %5463 = vmatprep.subr.mxu0 0.0
    %5464 = vmatpush1.msra.mxu0 0.0
    %5465 = vmatprep.subr.mxu0 0.0
    %5466 = vmatpush1.msra.mxu0 0.0
    %5467 = vmatprep.subr.mxu0 0.0
    %5468 = vmatpush1.msra.mxu0 0.0
    %5469 = vmatprep.subr.mxu0 0.0
    %5470 = vmatpush1.msra.mxu0 0.0
    %5471 = vmatprep.subr.mxu0 0.0
    %5472 = vmatpush1.msra.mxu0 0.0
    %5473 = vmatprep.subr.mxu0 0.0
    %5474 = vmatpush1.msra.mxu0 0.0
    %5475 = vmatprep.subr.mxu0 0.0
    %5476 = vmatpush1.msra.mxu0 0.0
    %5477 = vmatprep.subr.mxu0 0.0
    %5478 = vmatpush1.msra.mxu0 0.0
    %5479 = vmatprep.subr.mxu0 0.0
    %5480 = vmatpush1.msra.mxu0 0.0
    %5481 = vmatprep.subr.mxu0 0.0
    %5482 = vmatpush1.msra.mxu0 0.0
    %5483 = vmatprep.subr.mxu0 0.0
    %5484 = vmatpush1.msra.mxu0 0.0
    %5485 = vmatprep.subr.mxu0 0.0
    %5486 = vmatpush1.msra.mxu0 0.0
    %5487 = vmatprep.subr.mxu0 0.0
    %5488 = vmatpush1.msra.mxu0 0.0
    %5489 = vmatprep.subr.mxu0 0.0
    %5490 = vmatpush1.msra.mxu0 0.0
    %5491 = vmatprep.mubr.f32.mxu0 0.0
    %5492 = vmatmul.mubr.f32.gmra.mrb[0].mxu0 %v5425
    %v5493 = vpop.f32.mrb[0].mxu0
    %v5494 = vadd.f32 0.0, %v5493
    %v5495 = vpop.f32.mrb[0].mxu0
    %5496 = vdwg.mxu0
    %5497 = vrot.lane.b32.xlu0 %v4403, 64
    %v5498 = vpop.permute.xlu0 %5497
    %v5501 = vsel %vm278, %v5420, 0
    %5503 = vmatprep.subr.mxu0 0.0
    %5504 = vmatpush1.msra.mxu0 %v5498
    %5505 = vmatprep.subr.mxu0 0.0
    %5506 = vmatpush1.msra.mxu0 0.0
    %5507 = vmatprep.subr.mxu0 0.0
    %5508 = vmatpush1.msra.mxu0 0.0
    %5509 = vmatprep.subr.mxu0 0.0
    %5510 = vmatpush1.msra.mxu0 0.0
    %5511 = vmatprep.subr.mxu0 0.0
    %5512 = vmatpush1.msra.mxu0 0.0
    %5513 = vmatprep.subr.mxu0 0.0
    %5514 = vmatpush1.msra.mxu0 0.0
    %5515 = vmatprep.subr.mxu0 0.0
    %5516 = vmatpush1.msra.mxu0 0.0
    %5517 = vmatprep.subr.mxu0 0.0
    %5518 = vmatpush1.msra.mxu0 0.0
    %5519 = vmatprep.subr.mxu0 0.0
    %5520 = vmatpush1.msra.mxu0 0.0
    %5521 = vmatprep.subr.mxu0 0.0
    %5522 = vmatpush1.msra.mxu0 0.0
    %5523 = vmatprep.subr.mxu0 0.0
    %5524 = vmatpush1.msra.mxu0 0.0
    %5525 = vmatprep.subr.mxu0 0.0
    %5526 = vmatpush1.msra.mxu0 0.0
    %5527 = vmatprep.subr.mxu0 0.0
    %5528 = vmatpush1.msra.mxu0 0.0
    %5529 = vmatprep.subr.mxu0 0.0
    %5530 = vmatpush1.msra.mxu0 0.0
    %5531 = vmatprep.subr.mxu0 0.0
    %5532 = vmatpush1.msra.mxu0 0.0
    %5533 = vmatprep.subr.mxu0 0.0
    %5534 = vmatpush1.msra.mxu0 0.0
    %5535 = vmatprep.subr.mxu0 0.0
    %5536 = vmatpush1.msra.mxu0 0.0
    %5537 = vmatprep.subr.mxu0 0.0
    %5538 = vmatpush1.msra.mxu0 0.0
    %5539 = vmatprep.subr.mxu0 0.0
    %5540 = vmatpush1.msra.mxu0 0.0
    %5541 = vmatprep.subr.mxu0 0.0
    %5542 = vmatpush1.msra.mxu0 0.0
    %5543 = vmatprep.subr.mxu0 0.0
    %5544 = vmatpush1.msra.mxu0 0.0
    %5545 = vmatprep.subr.mxu0 0.0
    %5546 = vmatpush1.msra.mxu0 0.0
    %5547 = vmatprep.subr.mxu0 0.0
    %5548 = vmatpush1.msra.mxu0 0.0
    %5549 = vmatprep.subr.mxu0 0.0
    %5550 = vmatpush1.msra.mxu0 0.0
    %5551 = vmatprep.subr.mxu0 0.0
    %5552 = vmatpush1.msra.mxu0 0.0
    %5553 = vmatprep.subr.mxu0 0.0
    %5554 = vmatpush1.msra.mxu0 0.0
    %5555 = vmatprep.subr.mxu0 0.0
    %5556 = vmatpush1.msra.mxu0 0.0
    %5557 = vmatprep.subr.mxu0 0.0
    %5558 = vmatpush1.msra.mxu0 0.0
    %5559 = vmatprep.subr.mxu0 0.0
    %5560 = vmatpush1.msra.mxu0 0.0
    %5561 = vmatprep.subr.mxu0 0.0
    %5562 = vmatpush1.msra.mxu0 0.0
    %5563 = vmatprep.subr.mxu0 0.0
    %5564 = vmatpush1.msra.mxu0 0.0
    %5565 = vmatprep.subr.mxu0 0.0
    %5566 = vmatpush1.msra.mxu0 0.0
    %5567 = vmatprep.mubr.f32.mxu0 0.0
    %5568 = vmatmul.mubr.f32.gmra.mrb[0].mxu0 %v5501
    %v5569 = vpop.f32.mrb[0].mxu0
    %v5570 = vadd.f32 0.0, %v5569
    %v5571 = vpop.f32.mrb[0].mxu0
    %5572 = vdwg.mxu0
    %v5574 = vsel %vm593, %v5494, 0
    %v5577 = vsel %vm593, %v5570, 0
    %5579 = vmatprep.subr.mxu0 0.0
    %5580 = vmatpush1.msra.mxu0 %v4415
    %5581 = vmatprep.subr.mxu0 0.0
    %5582 = vmatpush1.msra.mxu0 %v4416
    %5583 = vmatprep.subr.mxu0 0.0
    %5584 = vmatpush1.msra.mxu0 %v4417
    %5585 = vmatprep.subr.mxu0 0.0
    %5586 = vmatpush1.msra.mxu0 %v4418
    %5587 = vmatprep.subr.mxu0 0.0
    %5588 = vmatpush1.msra.mxu0 0.0
    %5589 = vmatprep.subr.mxu0 0.0
    %5590 = vmatpush1.msra.mxu0 0.0
    %5591 = vmatprep.subr.mxu0 0.0
    %5592 = vmatpush1.msra.mxu0 0.0
    %5593 = vmatprep.subr.mxu0 0.0
    %5594 = vmatpush1.msra.mxu0 0.0
    %5595 = vmatprep.subr.mxu0 0.0
    %5596 = vmatpush1.msra.mxu0 0.0
    %5597 = vmatprep.subr.mxu0 0.0
    %5598 = vmatpush1.msra.mxu0 0.0
    %5599 = vmatprep.subr.mxu0 0.0
    %5600 = vmatpush1.msra.mxu0 0.0
    %5601 = vmatprep.subr.mxu0 0.0
    %5602 = vmatpush1.msra.mxu0 0.0
    %5603 = vmatprep.subr.mxu0 0.0
    %5604 = vmatpush1.msra.mxu0 0.0
    %5605 = vmatprep.subr.mxu0 0.0
    %5606 = vmatpush1.msra.mxu0 0.0
    %5607 = vmatprep.subr.mxu0 0.0
    %5608 = vmatpush1.msra.mxu0 0.0
    %5609 = vmatprep.subr.mxu0 0.0
    %5610 = vmatpush1.msra.mxu0 0.0
    %5611 = vmatprep.subr.mxu0 0.0
    %5612 = vmatpush1.msra.mxu0 0.0
    %5613 = vmatprep.subr.mxu0 0.0
    %5614 = vmatpush1.msra.mxu0 0.0
    %5615 = vmatprep.subr.mxu0 0.0
    %5616 = vmatpush1.msra.mxu0 0.0
    %5617 = vmatprep.subr.mxu0 0.0
    %5618 = vmatpush1.msra.mxu0 0.0
    %5619 = vmatprep.subr.mxu0 0.0
    %5620 = vmatpush1.msra.mxu0 0.0
    %5621 = vmatprep.subr.mxu0 0.0
    %5622 = vmatpush1.msra.mxu0 0.0
    %5623 = vmatprep.subr.mxu0 0.0
    %5624 = vmatpush1.msra.mxu0 0.0
    %5625 = vmatprep.subr.mxu0 0.0
    %5626 = vmatpush1.msra.mxu0 0.0
    %5627 = vmatprep.subr.mxu0 0.0
    %5628 = vmatpush1.msra.mxu0 0.0
    %5629 = vmatprep.subr.mxu0 0.0
    %5630 = vmatpush1.msra.mxu0 0.0
    %5631 = vmatprep.subr.mxu0 0.0
    %5632 = vmatpush1.msra.mxu0 0.0
    %5633 = vmatprep.subr.mxu0 0.0
    %5634 = vmatpush1.msra.mxu0 0.0
    %5635 = vmatprep.subr.mxu0 0.0
    %5636 = vmatpush1.msra.mxu0 0.0
    %5637 = vmatprep.subr.mxu0 0.0
    %5638 = vmatpush1.msra.mxu0 0.0
    %5639 = vmatprep.subr.mxu0 0.0
    %5640 = vmatpush1.msra.mxu0 0.0
    %5641 = vmatprep.subr.mxu0 0.0
    %5642 = vmatpush1.msra.mxu0 0.0
    %5643 = vmatprep.mubr.f32.mxu0 0.0
    %5644 = vmatmul.mubr.f32.gmra.mrb[0].mxu0 %v5574
    %v5645 = vpop.f32.mrb[0].mxu0
    %v5646 = vadd.f32 0.0, %v5645
    %v5647 = vpop.f32.mrb[0].mxu0
    %5648 = vmatprep.mubr.f32.mxu0 0.0
    %5649 = vmatmul.mubr.f32.gmra.mrb[0].mxu0 %v5577
    %v5650 = vpop.f32.mrb[0].mxu0
    %v5651 = vadd.f32 0.0, %v5650
    %v5652 = vpop.f32.mrb[0].mxu0
    %5653 = vdwg.mxu0
    %v5654 = vadd.f32 %v5233, %v5646
    %v5655 = vadd.f32 %v5238, %v5651
    %5656 = vrot.lane.b32.xlu0 %v4321, 32
    %v5657 = vpop.permute.xlu0 %5656
    %5658 = vrot.lane.b32.xlu0 %v4323, 32
    %v5659 = vpop.permute.xlu0 %5658
    %v5660 = vsel %vm593, %v5657, 0
    %v5662 = vsel %vm593, %v5659, 0
    %5664 = vmatprep.subr.mxu0 0.0
    %5665 = vmatpush1.xpose.msra.mxu0 %v5662
    %5666 = vmatprep.subr.mxu0 0.0
    %5667 = vmatpush1.xpose.msra.mxu0 0.0
    %5668 = vmatprep.subr.mxu0 0.0
    %5669 = vmatpush1.xpose.msra.mxu0 0.0
    %5670 = vmatprep.subr.mxu0 0.0
    %5671 = vmatpush1.xpose.msra.mxu0 0.0
    %5672 = vmatprep.subr.mxu0 0.0
    %5673 = vmatpush1.xpose.msra.mxu0 0.0
    %5674 = vmatprep.subr.mxu0 0.0
    %5675 = vmatpush1.xpose.msra.mxu0 0.0
    %5676 = vmatprep.subr.mxu0 0.0
    %5677 = vmatpush1.xpose.msra.mxu0 0.0
    %5678 = vmatprep.subr.mxu0 0.0
    %5679 = vmatpush1.xpose.msra.mxu0 0.0
    %5680 = vmatprep.subr.mxu0 0.0
    %5681 = vmatpush1.xpose.msra.mxu0 0.0
    %5682 = vmatprep.subr.mxu0 0.0
    %5683 = vmatpush1.xpose.msra.mxu0 0.0
    %5684 = vmatprep.subr.mxu0 0.0
    %5685 = vmatpush1.xpose.msra.mxu0 0.0
    %5686 = vmatprep.subr.mxu0 0.0
    %5687 = vmatpush1.xpose.msra.mxu0 0.0
    %5688 = vmatprep.subr.mxu0 0.0
    %5689 = vmatpush1.xpose.msra.mxu0 0.0
    %5690 = vmatprep.subr.mxu0 0.0
    %5691 = vmatpush1.xpose.msra.mxu0 0.0
    %5692 = vmatprep.subr.mxu0 0.0
    %5693 = vmatpush1.xpose.msra.mxu0 0.0
    %5694 = vmatprep.subr.mxu0 0.0
    %5695 = vmatpush1.xpose.msra.mxu0 0.0
    %5696 = vmatprep.subr.mxu0 0.0
    %5697 = vmatpush1.xpose.msra.mxu0 0.0
    %5698 = vmatprep.subr.mxu0 0.0
    %5699 = vmatpush1.xpose.msra.mxu0 0.0
    %5700 = vmatprep.subr.mxu0 0.0
    %5701 = vmatpush1.xpose.msra.mxu0 0.0
    %5702 = vmatprep.subr.mxu0 0.0
    %5703 = vmatpush1.xpose.msra.mxu0 0.0
    %5704 = vmatprep.subr.mxu0 0.0
    %5705 = vmatpush1.xpose.msra.mxu0 0.0
    %5706 = vmatprep.subr.mxu0 0.0
    %5707 = vmatpush1.xpose.msra.mxu0 0.0
    %5708 = vmatprep.subr.mxu0 0.0
    %5709 = vmatpush1.xpose.msra.mxu0 0.0
    %5710 = vmatprep.subr.mxu0 0.0
    %5711 = vmatpush1.xpose.msra.mxu0 0.0
    %5712 = vmatprep.subr.mxu0 0.0
    %5713 = vmatpush1.xpose.msra.mxu0 0.0
    %5714 = vmatprep.subr.mxu0 0.0
    %5715 = vmatpush1.xpose.msra.mxu0 0.0
    %5716 = vmatprep.subr.mxu0 0.0
    %5717 = vmatpush1.xpose.msra.mxu0 0.0
    %5718 = vmatprep.subr.mxu0 0.0
    %5719 = vmatpush1.xpose.msra.mxu0 0.0
    %5720 = vmatprep.subr.mxu0 0.0
    %5721 = vmatpush1.xpose.msra.mxu0 0.0
    %5722 = vmatprep.subr.mxu0 0.0
    %5723 = vmatpush1.xpose.msra.mxu0 0.0
    %5724 = vmatprep.subr.mxu0 0.0
    %5725 = vmatpush1.xpose.msra.mxu0 0.0
    %5726 = vmatprep.subr.mxu0 0.0
    %5727 = vmatpush1.xpose.msra.mxu0 0.0
    %5728 = vmatprep.mubr.f32.mxu0 0.0
    %5729 = vmatmul.mubr.f32.gmra.mrb[0].mxu0 %v5660
    %v5730 = vpop.f32.mrb[0].mxu0
    %v5731 = vadd.f32 0.0, %v5730
    %v5732 = vpop.f32.mrb[0].mxu0
    %5733 = vdwg.mxu0
    %5734 = vrot.lane.b32.xlu0 %v4327, 32
    %v5735 = vpop.permute.xlu0 %5734
    %5736 = vrot.lane.b32.xlu0 %v4329, 32
    %v5737 = vpop.permute.xlu0 %5736
    %v5738 = vsel %vm593, %v5735, 0
    %v5740 = vsel %vm593, %v5737, 0
    %5742 = vmatprep.subr.mxu0 0.0
    %5743 = vmatpush1.xpose.msra.mxu0 %v5740
    %5744 = vmatprep.subr.mxu0 0.0
    %5745 = vmatpush1.xpose.msra.mxu0 0.0
    %5746 = vmatprep.subr.mxu0 0.0
    %5747 = vmatpush1.xpose.msra.mxu0 0.0
    %5748 = vmatprep.subr.mxu0 0.0
    %5749 = vmatpush1.xpose.msra.mxu0 0.0
    %5750 = vmatprep.subr.mxu0 0.0
    %5751 = vmatpush1.xpose.msra.mxu0 0.0
    %5752 = vmatprep.subr.mxu0 0.0
    %5753 = vmatpush1.xpose.msra.mxu0 0.0
    %5754 = vmatprep.subr.mxu0 0.0
    %5755 = vmatpush1.xpose.msra.mxu0 0.0
    %5756 = vmatprep.subr.mxu0 0.0
    %5757 = vmatpush1.xpose.msra.mxu0 0.0
    %5758 = vmatprep.subr.mxu0 0.0
    %5759 = vmatpush1.xpose.msra.mxu0 0.0
    %5760 = vmatprep.subr.mxu0 0.0
    %5761 = vmatpush1.xpose.msra.mxu0 0.0
    %5762 = vmatprep.subr.mxu0 0.0
    %5763 = vmatpush1.xpose.msra.mxu0 0.0
    %5764 = vmatprep.subr.mxu0 0.0
    %5765 = vmatpush1.xpose.msra.mxu0 0.0
    %5766 = vmatprep.subr.mxu0 0.0
    %5767 = vmatpush1.xpose.msra.mxu0 0.0
    %5768 = vmatprep.subr.mxu0 0.0
    %5769 = vmatpush1.xpose.msra.mxu0 0.0
    %5770 = vmatprep.subr.mxu0 0.0
    %5771 = vmatpush1.xpose.msra.mxu0 0.0
    %5772 = vmatprep.subr.mxu0 0.0
    %5773 = vmatpush1.xpose.msra.mxu0 0.0
    %5774 = vmatprep.subr.mxu0 0.0
    %5775 = vmatpush1.xpose.msra.mxu0 0.0
    %5776 = vmatprep.subr.mxu0 0.0
    %5777 = vmatpush1.xpose.msra.mxu0 0.0
    %5778 = vmatprep.subr.mxu0 0.0
    %5779 = vmatpush1.xpose.msra.mxu0 0.0
    %5780 = vmatprep.subr.mxu0 0.0
    %5781 = vmatpush1.xpose.msra.mxu0 0.0
    %5782 = vmatprep.subr.mxu0 0.0
    %5783 = vmatpush1.xpose.msra.mxu0 0.0
    %5784 = vmatprep.subr.mxu0 0.0
    %5785 = vmatpush1.xpose.msra.mxu0 0.0
    %5786 = vmatprep.subr.mxu0 0.0
    %5787 = vmatpush1.xpose.msra.mxu0 0.0
    %5788 = vmatprep.subr.mxu0 0.0
    %5789 = vmatpush1.xpose.msra.mxu0 0.0
    %5790 = vmatprep.subr.mxu0 0.0
    %5791 = vmatpush1.xpose.msra.mxu0 0.0
    %5792 = vmatprep.subr.mxu0 0.0
    %5793 = vmatpush1.xpose.msra.mxu0 0.0
    %5794 = vmatprep.subr.mxu0 0.0
    %5795 = vmatpush1.xpose.msra.mxu0 0.0
    %5796 = vmatprep.subr.mxu0 0.0
    %5797 = vmatpush1.xpose.msra.mxu0 0.0
    %5798 = vmatprep.subr.mxu0 0.0
    %5799 = vmatpush1.xpose.msra.mxu0 0.0
    %5800 = vmatprep.subr.mxu0 0.0
    %5801 = vmatpush1.xpose.msra.mxu0 0.0
    %5802 = vmatprep.subr.mxu0 0.0
    %5803 = vmatpush1.xpose.msra.mxu0 0.0
    %5804 = vmatprep.subr.mxu0 0.0
    %5805 = vmatpush1.xpose.msra.mxu0 0.0
    %5806 = vmatprep.mubr.f32.mxu0 0.0
    %5807 = vmatmul.mubr.f32.gmra.mrb[0].mxu0 %v5738
    %v5808 = vpop.f32.mrb[0].mxu0
    %v5809 = vadd.f32 0.0, %v5808
    %v5810 = vpop.f32.mrb[0].mxu0
    %5811 = vdwg.mxu0
    %v5812 = vmul.f32 %v5731, 0.17677669
    %v5813 = vmul.f32 %v5809, 0.17677669
    %v5814 = vsel %vm278, %v5812, -inf
    %5815 = vmax.xlane.f32.xlu0 %v5814
    %v5816 = vpop.xlane.xlu0 %5815
    %v5817 = vsel %vm278, %v5813, -inf
    %5818 = vmax.xlane.f32.xlu0 %v5817
    %v5819 = vpop.xlane.xlu0 %5818
    %v5820 = vsub.f32 %v5812, %v5816
    %v5821 = vsub.f32 %v5813, %v5819
    %v5822 = vmul.f32 %v5820, 1.442695
    %v5823 = vpow.pop %v5822
    %v5824 = vmul.f32 %v5821, 1.442695
    %v5825 = vpow.pop %v5824
    %v5826 = vsel %vm278, %v5823, 0.0
    %5827 = vadd.xlane.f32.xlu0 %v5826
    %v5828 = vpop.xlane.xlu0 %5827
    %v5829 = vsel %vm278, %v5825, 0.0
    %5830 = vadd.xlane.f32.xlu0 %v5829
    %v5831 = vpop.xlane.xlu0 %5830
    %v5832 = vrcp.pop %v5828
    %v5833 = vmul.f32 %v5823, %v5832
    %v5834 = vrcp.pop %v5831
    %v5835 = vmul.f32 %v5825, %v5834
    %5836 = vrot.lane.b32.xlu0 %v4398, 32
    %v5837 = vpop.permute.xlu0 %5836
    %v5840 = vsel %vm278, %v5833, 0
    %5842 = vmatprep.subr.mxu0 0.0
    %5843 = vmatpush1.msra.mxu0 %v5837
    %5844 = vmatprep.subr.mxu0 0.0
    %5845 = vmatpush1.msra.mxu0 0.0
    %5846 = vmatprep.subr.mxu0 0.0
    %5847 = vmatpush1.msra.mxu0 0.0
    %5848 = vmatprep.subr.mxu0 0.0
    %5849 = vmatpush1.msra.mxu0 0.0
    %5850 = vmatprep.subr.mxu0 0.0
    %5851 = vmatpush1.msra.mxu0 0.0
    %5852 = vmatprep.subr.mxu0 0.0
    %5853 = vmatpush1.msra.mxu0 0.0
    %5854 = vmatprep.subr.mxu0 0.0
    %5855 = vmatpush1.msra.mxu0 0.0
    %5856 = vmatprep.subr.mxu0 0.0
    %5857 = vmatpush1.msra.mxu0 0.0
    %5858 = vmatprep.subr.mxu0 0.0
    %5859 = vmatpush1.msra.mxu0 0.0
    %5860 = vmatprep.subr.mxu0 0.0
    %5861 = vmatpush1.msra.mxu0 0.0
    %5862 = vmatprep.subr.mxu0 0.0
    %5863 = vmatpush1.msra.mxu0 0.0
    %5864 = vmatprep.subr.mxu0 0.0
    %5865 = vmatpush1.msra.mxu0 0.0
    %5866 = vmatprep.subr.mxu0 0.0
    %5867 = vmatpush1.msra.mxu0 0.0
    %5868 = vmatprep.subr.mxu0 0.0
    %5869 = vmatpush1.msra.mxu0 0.0
    %5870 = vmatprep.subr.mxu0 0.0
    %5871 = vmatpush1.msra.mxu0 0.0
    %5872 = vmatprep.subr.mxu0 0.0
    %5873 = vmatpush1.msra.mxu0 0.0
    %5874 = vmatprep.subr.mxu0 0.0
    %5875 = vmatpush1.msra.mxu0 0.0
    %5876 = vmatprep.subr.mxu0 0.0
    %5877 = vmatpush1.msra.mxu0 0.0
    %5878 = vmatprep.subr.mxu0 0.0
    %5879 = vmatpush1.msra.mxu0 0.0
    %5880 = vmatprep.subr.mxu0 0.0
    %5881 = vmatpush1.msra.mxu0 0.0
    %5882 = vmatprep.subr.mxu0 0.0
    %5883 = vmatpush1.msra.mxu0 0.0
    %5884 = vmatprep.subr.mxu0 0.0
    %5885 = vmatpush1.msra.mxu0 0.0
    %5886 = vmatprep.subr.mxu0 0.0
    %5887 = vmatpush1.msra.mxu0 0.0
    %5888 = vmatprep.subr.mxu0 0.0
    %5889 = vmatpush1.msra.mxu0 0.0
    %5890 = vmatprep.subr.mxu0 0.0
    %5891 = vmatpush1.msra.mxu0 0.0
    %5892 = vmatprep.subr.mxu0 0.0
    %5893 = vmatpush1.msra.mxu0 0.0
    %5894 = vmatprep.subr.mxu0 0.0
    %5895 = vmatpush1.msra.mxu0 0.0
    %5896 = vmatprep.subr.mxu0 0.0
    %5897 = vmatpush1.msra.mxu0 0.0
    %5898 = vmatprep.subr.mxu0 0.0
    %5899 = vmatpush1.msra.mxu0 0.0
    %5900 = vmatprep.subr.mxu0 0.0
    %5901 = vmatpush1.msra.mxu0 0.0
    %5902 = vmatprep.subr.mxu0 0.0
    %5903 = vmatpush1.msra.mxu0 0.0
    %5904 = vmatprep.subr.mxu0 0.0
    %5905 = vmatpush1.msra.mxu0 0.0
    %5906 = vmatprep.mubr.f32.mxu0 0.0
    %5907 = vmatmul.mubr.f32.gmra.mrb[0].mxu0 %v5840
    %v5908 = vpop.f32.mrb[0].mxu0
    %v5909 = vadd.f32 0.0, %v5908
    %v5910 = vpop.f32.mrb[0].mxu0
    %5911 = vdwg.mxu0
    %5912 = vrot.lane.b32.xlu0 %v4403, 32
    %v5913 = vpop.permute.xlu0 %5912
    %v5916 = vsel %vm278, %v5835, 0
    %5918 = vmatprep.subr.mxu0 0.0
    %5919 = vmatpush1.msra.mxu0 %v5913
    %5920 = vmatprep.subr.mxu0 0.0
    %5921 = vmatpush1.msra.mxu0 0.0
    %5922 = vmatprep.subr.mxu0 0.0
    %5923 = vmatpush1.msra.mxu0 0.0
    %5924 = vmatprep.subr.mxu0 0.0
    %5925 = vmatpush1.msra.mxu0 0.0
    %5926 = vmatprep.subr.mxu0 0.0
    %5927 = vmatpush1.msra.mxu0 0.0
    %5928 = vmatprep.subr.mxu0 0.0
    %5929 = vmatpush1.msra.mxu0 0.0
    %5930 = vmatprep.subr.mxu0 0.0
    %5931 = vmatpush1.msra.mxu0 0.0
    %5932 = vmatprep.subr.mxu0 0.0
    %5933 = vmatpush1.msra.mxu0 0.0
    %5934 = vmatprep.subr.mxu0 0.0
    %5935 = vmatpush1.msra.mxu0 0.0
    %5936 = vmatprep.subr.mxu0 0.0
    %5937 = vmatpush1.msra.mxu0 0.0
    %5938 = vmatprep.subr.mxu0 0.0
    %5939 = vmatpush1.msra.mxu0 0.0
    %5940 = vmatprep.subr.mxu0 0.0
    %5941 = vmatpush1.msra.mxu0 0.0
    %5942 = vmatprep.subr.mxu0 0.0
    %5943 = vmatpush1.msra.mxu0 0.0
    %5944 = vmatprep.subr.mxu0 0.0
    %5945 = vmatpush1.msra.mxu0 0.0
    %5946 = vmatprep.subr.mxu0 0.0
    %5947 = vmatpush1.msra.mxu0 0.0
    %5948 = vmatprep.subr.mxu0 0.0
    %5949 = vmatpush1.msra.mxu0 0.0
    %5950 = vmatprep.subr.mxu0 0.0
    %5951 = vmatpush1.msra.mxu0 0.0
    %5952 = vmatprep.subr.mxu0 0.0
    %5953 = vmatpush1.msra.mxu0 0.0
    %5954 = vmatprep.subr.mxu0 0.0
    %5955 = vmatpush1.msra.mxu0 0.0
    %5956 = vmatprep.subr.mxu0 0.0
    %5957 = vmatpush1.msra.mxu0 0.0
    %5958 = vmatprep.subr.mxu0 0.0
    %5959 = vmatpush1.msra.mxu0 0.0
    %5960 = vmatprep.subr.mxu0 0.0
    %5961 = vmatpush1.msra.mxu0 0.0
    %5962 = vmatprep.subr.mxu0 0.0
    %5963 = vmatpush1.msra.mxu0 0.0
    %5964 = vmatprep.subr.mxu0 0.0
    %5965 = vmatpush1.msra.mxu0 0.0
    %5966 = vmatprep.subr.mxu0 0.0
    %5967 = vmatpush1.msra.mxu0 0.0
    %5968 = vmatprep.subr.mxu0 0.0
    %5969 = vmatpush1.msra.mxu0 0.0
    %5970 = vmatprep.subr.mxu0 0.0
    %5971 = vmatpush1.msra.mxu0 0.0
    %5972 = vmatprep.subr.mxu0 0.0
    %5973 = vmatpush1.msra.mxu0 0.0
    %5974 = vmatprep.subr.mxu0 0.0
    %5975 = vmatpush1.msra.mxu0 0.0
    %5976 = vmatprep.subr.mxu0 0.0
    %5977 = vmatpush1.msra.mxu0 0.0
    %5978 = vmatprep.subr.mxu0 0.0
    %5979 = vmatpush1.msra.mxu0 0.0
    %5980 = vmatprep.subr.mxu0 0.0
    %5981 = vmatpush1.msra.mxu0 0.0
    %5982 = vmatprep.mubr.f32.mxu0 0.0
    %5983 = vmatmul.mubr.f32.gmra.mrb[0].mxu0 %v5916
    %v5984 = vpop.f32.mrb[0].mxu0
    %v5985 = vadd.f32 0.0, %v5984
    %v5986 = vpop.f32.mrb[0].mxu0
    %5987 = vdwg.mxu0
    %v5989 = vsel %vm593, %v5909, 0
    %v5992 = vsel %vm593, %v5985, 0
    %5994 = vmatprep.subr.mxu0 0.0
    %5995 = vmatpush1.msra.mxu0 %v4419
    %5996 = vmatprep.subr.mxu0 0.0
    %5997 = vmatpush1.msra.mxu0 %v4420
    %5998 = vmatprep.subr.mxu0 0.0
    %5999 = vmatpush1.msra.mxu0 %v4421
    %6000 = vmatprep.subr.mxu0 0.0
    %6001 = vmatpush1.msra.mxu0 %v4422
    %6002 = vmatprep.subr.mxu0 0.0
    %6003 = vmatpush1.msra.mxu0 0.0
    %6004 = vmatprep.subr.mxu0 0.0
    %6005 = vmatpush1.msra.mxu0 0.0
    %6006 = vmatprep.subr.mxu0 0.0
    %6007 = vmatpush1.msra.mxu0 0.0
    %6008 = vmatprep.subr.mxu0 0.0
    %6009 = vmatpush1.msra.mxu0 0.0
    %6010 = vmatprep.subr.mxu0 0.0
    %6011 = vmatpush1.msra.mxu0 0.0
    %6012 = vmatprep.subr.mxu0 0.0
    %6013 = vmatpush1.msra.mxu0 0.0
    %6014 = vmatprep.subr.mxu0 0.0
    %6015 = vmatpush1.msra.mxu0 0.0
    %6016 = vmatprep.subr.mxu0 0.0
    %6017 = vmatpush1.msra.mxu0 0.0
    %6018 = vmatprep.subr.mxu0 0.0
    %6019 = vmatpush1.msra.mxu0 0.0
    %6020 = vmatprep.subr.mxu0 0.0
    %6021 = vmatpush1.msra.mxu0 0.0
    %6022 = vmatprep.subr.mxu0 0.0
    %6023 = vmatpush1.msra.mxu0 0.0
    %6024 = vmatprep.subr.mxu0 0.0
    %6025 = vmatpush1.msra.mxu0 0.0
    %6026 = vmatprep.subr.mxu0 0.0
    %6027 = vmatpush1.msra.mxu0 0.0
    %6028 = vmatprep.subr.mxu0 0.0
    %6029 = vmatpush1.msra.mxu0 0.0
    %6030 = vmatprep.subr.mxu0 0.0
    %6031 = vmatpush1.msra.mxu0 0.0
    %6032 = vmatprep.subr.mxu0 0.0
    %6033 = vmatpush1.msra.mxu0 0.0
    %6034 = vmatprep.subr.mxu0 0.0
    %6035 = vmatpush1.msra.mxu0 0.0
    %6036 = vmatprep.subr.mxu0 0.0
    %6037 = vmatpush1.msra.mxu0 0.0
    %6038 = vmatprep.subr.mxu0 0.0
    %6039 = vmatpush1.msra.mxu0 0.0
    %6040 = vmatprep.subr.mxu0 0.0
    %6041 = vmatpush1.msra.mxu0 0.0
    %6042 = vmatprep.subr.mxu0 0.0
    %6043 = vmatpush1.msra.mxu0 0.0
    %6044 = vmatprep.subr.mxu0 0.0
    %6045 = vmatpush1.msra.mxu0 0.0
    %6046 = vmatprep.subr.mxu0 0.0
    %6047 = vmatpush1.msra.mxu0 0.0
    %6048 = vmatprep.subr.mxu0 0.0
    %6049 = vmatpush1.msra.mxu0 0.0
    %6050 = vmatprep.subr.mxu0 0.0
    %6051 = vmatpush1.msra.mxu0 0.0
    %6052 = vmatprep.subr.mxu0 0.0
    %6053 = vmatpush1.msra.mxu0 0.0
    %6054 = vmatprep.subr.mxu0 0.0
    %6055 = vmatpush1.msra.mxu0 0.0
    %6056 = vmatprep.subr.mxu0 0.0
    %6057 = vmatpush1.msra.mxu0 0.0
    %6058 = vmatprep.mubr.f32.mxu0 0.0
    %6059 = vmatmul.mubr.f32.gmra.mrb[0].mxu0 %v5989
    %v6060 = vpop.f32.mrb[0].mxu0
    %v6061 = vadd.f32 0.0, %v6060
    %v6062 = vpop.f32.mrb[0].mxu0
    %6063 = vmatprep.mubr.f32.mxu0 0.0
    %6064 = vmatmul.mubr.f32.gmra.mrb[0].mxu0 %v5992
    %v6065 = vpop.f32.mrb[0].mxu0
    %v6066 = vadd.f32 0.0, %v6065
    %v6067 = vpop.f32.mrb[0].mxu0
    %6068 = vdwg.mxu0
    %v6069 = vadd.f32 %v5654, %v6061
    %v6070 = vadd.f32 %v5655, %v6066
    %s6071 = scalar_lea.vmem [#allocation11], 1
    %v6072 = vld [vmem:[%s6071] sm:$0x1]
    %v6074 = vlaneseq
    %v6075 = vshrl.u32 %v6074, 7
    %v6076 = vsub.s32 0, %v6075
    %v6077 = vrot.slane %v6072, %v6076
    %v6079 = vadd.f32 %v6069, %v6077
    %v6080 = vadd.f32 %v6070, %v6077
    %v6081 = vadd.f32 %v4185, %v6079
    %v6082 = vadd.f32 %v4186, %v6080
    %s6083 = scalar_lea.vmem [#allocation13], 1
    %v6084 = vld [vmem:[%s6083] sm:$0x1]
    %s6085 = scalar_lea.vmem [#allocation14], 1
    %v6086 = vld [vmem:[%s6085] sm:$0x1]
    %6087 = vadd.xlane.f32.xlu0 %v6081
    %v6088 = vpop.xlane.xlu0 %6087
    %6089 = vadd.xlane.f32.xlu0 %v6082
    %v6090 = vpop.xlane.xlu0 %6089
    %v6091 = vmul.f32 %v6088, %v2259
    %v6092 = vmul.f32 %v6090, %v2259
    %v6093 = vsub.f32 %v6081, %v6091
    %v6094 = vsub.f32 %v6082, %v6092
    %v6095 = vmul.f32 %v6093, %v6093
    %v6096 = vmul.f32 %v6094, %v6094
    %6097 = vadd.xlane.f32.xlu0 %v6095
    %v6098 = vpop.xlane.xlu0 %6097
    %6099 = vadd.xlane.f32.xlu0 %v6096
    %v6100 = vpop.xlane.xlu0 %6099
    %v6101 = vmul.f32 %v6098, %v2259
    %v6102 = vmul.f32 %v6100, %v2259
    %v6103 = vadd.f32 %v6101, 1e-05
    %v6104 = vadd.f32 %v6102, 1e-05
    %v6105 = vrsqrt.pop %v6103
    %v6106 = vrsqrt.pop %v6104
    %v6107 = vmul.f32 %v6093, %v6105
    %v6108 = vmul.f32 %v6094, %v6106
    %v6110 = vlaneseq
    %v6111 = vshrl.u32 %v6110, 7
    %v6112 = vsub.s32 0, %v6111
    %v6113 = vrot.slane %v6084, %v6112
    %v6115 = vmul.f32 %v6107, %v6113
    %v6116 = vmul.f32 %v6108, %v6113
    %v6118 = vlaneseq
    %v6119 = vshrl.u32 %v6118, 7
    %v6120 = vsub.s32 0, %v6119
    %v6121 = vrot.slane %v6086, %v6120
    %v6123 = vadd.f32 %v6115, %v6121
    %v6124 = vadd.f32 %v6116, %v6121
    %s6125 = scalar_lea.vmem [#allocation16], 2048
    %v6126 = vld [vmem:[%s6125] sm:$0xff]
    %v6127 = vld [vmem:[%s6125 + $0x8] sm:$0xff]
    %v6128 = vld [vmem:[%s6125 + $0x10] sm:$0xff]
    %v6129 = vld [vmem:[%s6125 + $0x18] sm:$0xff]
    %v6130 = vld [vmem:[%s6125 + $0x20] sm:$0xff]
    %v6131 = vld [vmem:[%s6125 + $0x28] sm:$0xff]
    %v6132 = vld [vmem:[%s6125 + $0x30] sm:$0xff]
    %v6133 = vld [vmem:[%s6125 + $0x38] sm:$0xff]
    %v6134 = vld [vmem:[%s6125 + $0x40] sm:$0xff]
    %v6135 = vld [vmem:[%s6125 + $0x48] sm:$0xff]
    %v6136 = vld [vmem:[%s6125 + $0x50] sm:$0xff]
    %v6137 = vld [vmem:[%s6125 + $0x58] sm:$0xff]
    %v6138 = vld [vmem:[%s6125 + $0x60] sm:$0xff]
    %v6139 = vld [vmem:[%s6125 + $0x68] sm:$0xff]
    %v6140 = vld [vmem:[%s6125 + $0x70] sm:$0xff]
    %v6141 = vld [vmem:[%s6125 + $0x78] sm:$0xff]
    %v6142 = vld [vmem:[%s6125 + $0x80] sm:$0xff]
    %v6143 = vld [vmem:[%s6125 + $0x88] sm:$0xff]
    %v6144 = vld [vmem:[%s6125 + $0x90] sm:$0xff]
    %v6145 = vld [vmem:[%s6125 + $0x98] sm:$0xff]
    %v6146 = vld [vmem:[%s6125 + $0xa0] sm:$0xff]
    %v6147 = vld [vmem:[%s6125 + $0xa8] sm:$0xff]
    %v6148 = vld [vmem:[%s6125 + $0xb0] sm:$0xff]
    %v6149 = vld [vmem:[%s6125 + $0xb8] sm:$0xff]
    %v6150 = vld [vmem:[%s6125 + $0xc0] sm:$0xff]
    %v6151 = vld [vmem:[%s6125 + $0xc8] sm:$0xff]
    %v6152 = vld [vmem:[%s6125 + $0xd0] sm:$0xff]
    %v6153 = vld [vmem:[%s6125 + $0xd8] sm:$0xff]
    %v6154 = vld [vmem:[%s6125 + $0xe0] sm:$0xff]
    %v6155 = vld [vmem:[%s6125 + $0xe8] sm:$0xff]
    %v6156 = vld [vmem:[%s6125 + $0xf0] sm:$0xff]
    %v6157 = vld [vmem:[%s6125 + $0xf8] sm:$0xff]
    %v6158 = vld [vmem:[%s6125 + $0x100] sm:$0xff]
    %v6159 = vld [vmem:[%s6125 + $0x108] sm:$0xff]
    %v6160 = vld [vmem:[%s6125 + $0x110] sm:$0xff]
    %v6161 = vld [vmem:[%s6125 + $0x118] sm:$0xff]
    %v6162 = vld [vmem:[%s6125 + $0x120] sm:$0xff]
    %v6163 = vld [vmem:[%s6125 + $0x128] sm:$0xff]
    %v6164 = vld [vmem:[%s6125 + $0x130] sm:$0xff]
    %v6165 = vld [vmem:[%s6125 + $0x138] sm:$0xff]
    %v6166 = vld [vmem:[%s6125 + $0x140] sm:$0xff]
    %v6167 = vld [vmem:[%s6125 + $0x148] sm:$0xff]
    %v6168 = vld [vmem:[%s6125 + $0x150] sm:$0xff]
    %v6169 = vld [vmem:[%s6125 + $0x158] sm:$0xff]
    %v6170 = vld [vmem:[%s6125 + $0x160] sm:$0xff]
    %v6171 = vld [vmem:[%s6125 + $0x168] sm:$0xff]
    %v6172 = vld [vmem:[%s6125 + $0x170] sm:$0xff]
    %v6173 = vld [vmem:[%s6125 + $0x178] sm:$0xff]
    %v6174 = vld [vmem:[%s6125 + $0x180] sm:$0xff]
    %v6175 = vld [vmem:[%s6125 + $0x188] sm:$0xff]
    %v6176 = vld [vmem:[%s6125 + $0x190] sm:$0xff]
    %v6177 = vld [vmem:[%s6125 + $0x198] sm:$0xff]
    %v6178 = vld [vmem:[%s6125 + $0x1a0] sm:$0xff]
    %v6179 = vld [vmem:[%s6125 + $0x1a8] sm:$0xff]
    %v6180 = vld [vmem:[%s6125 + $0x1b0] sm:$0xff]
    %v6181 = vld [vmem:[%s6125 + $0x1b8] sm:$0xff]
    %v6182 = vld [vmem:[%s6125 + $0x1c0] sm:$0xff]
    %v6183 = vld [vmem:[%s6125 + $0x1c8] sm:$0xff]
    %v6184 = vld [vmem:[%s6125 + $0x1d0] sm:$0xff]
    %v6185 = vld [vmem:[%s6125 + $0x1d8] sm:$0xff]
    %v6186 = vld [vmem:[%s6125 + $0x1e0] sm:$0xff]
    %v6187 = vld [vmem:[%s6125 + $0x1e8] sm:$0xff]
    %v6188 = vld [vmem:[%s6125 + $0x1f0] sm:$0xff]
    %v6189 = vld [vmem:[%s6125 + $0x1f8] sm:$0xff]
    %v6190 = vld [vmem:[%s6125 + $0x200] sm:$0xff]
    %v6191 = vld [vmem:[%s6125 + $0x208] sm:$0xff]
    %v6192 = vld [vmem:[%s6125 + $0x210] sm:$0xff]
    %v6193 = vld [vmem:[%s6125 + $0x218] sm:$0xff]
    %v6194 = vld [vmem:[%s6125 + $0x220] sm:$0xff]
    %v6195 = vld [vmem:[%s6125 + $0x228] sm:$0xff]
    %v6196 = vld [vmem:[%s6125 + $0x230] sm:$0xff]
    %v6197 = vld [vmem:[%s6125 + $0x238] sm:$0xff]
    %v6198 = vld [vmem:[%s6125 + $0x240] sm:$0xff]
    %v6199 = vld [vmem:[%s6125 + $0x248] sm:$0xff]
    %v6200 = vld [vmem:[%s6125 + $0x250] sm:$0xff]
    %v6201 = vld [vmem:[%s6125 + $0x258] sm:$0xff]
    %v6202 = vld [vmem:[%s6125 + $0x260] sm:$0xff]
    %v6203 = vld [vmem:[%s6125 + $0x268] sm:$0xff]
    %v6204 = vld [vmem:[%s6125 + $0x270] sm:$0xff]
    %v6205 = vld [vmem:[%s6125 + $0x278] sm:$0xff]
    %v6206 = vld [vmem:[%s6125 + $0x280] sm:$0xff]
    %v6207 = vld [vmem:[%s6125 + $0x288] sm:$0xff]
    %v6208 = vld [vmem:[%s6125 + $0x290] sm:$0xff]
    %v6209 = vld [vmem:[%s6125 + $0x298] sm:$0xff]
    %v6210 = vld [vmem:[%s6125 + $0x2a0] sm:$0xff]
    %v6211 = vld [vmem:[%s6125 + $0x2a8] sm:$0xff]
    %v6212 = vld [vmem:[%s6125 + $0x2b0] sm:$0xff]
    %v6213 = vld [vmem:[%s6125 + $0x2b8] sm:$0xff]
    %v6214 = vld [vmem:[%s6125 + $0x2c0] sm:$0xff]
    %v6215 = vld [vmem:[%s6125 + $0x2c8] sm:$0xff]
    %v6216 = vld [vmem:[%s6125 + $0x2d0] sm:$0xff]
    %v6217 = vld [vmem:[%s6125 + $0x2d8] sm:$0xff]
    %v6218 = vld [vmem:[%s6125 + $0x2e0] sm:$0xff]
    %v6219 = vld [vmem:[%s6125 + $0x2e8] sm:$0xff]
    %v6220 = vld [vmem:[%s6125 + $0x2f0] sm:$0xff]
    %v6221 = vld [vmem:[%s6125 + $0x2f8] sm:$0xff]
    %v6222 = vld [vmem:[%s6125 + $0x300] sm:$0xff]
    %v6223 = vld [vmem:[%s6125 + $0x308] sm:$0xff]
    %v6224 = vld [vmem:[%s6125 + $0x310] sm:$0xff]
    %v6225 = vld [vmem:[%s6125 + $0x318] sm:$0xff]
    %v6226 = vld [vmem:[%s6125 + $0x320] sm:$0xff]
    %v6227 = vld [vmem:[%s6125 + $0x328] sm:$0xff]
    %v6228 = vld [vmem:[%s6125 + $0x330] sm:$0xff]
    %v6229 = vld [vmem:[%s6125 + $0x338] sm:$0xff]
    %v6230 = vld [vmem:[%s6125 + $0x340] sm:$0xff]
    %v6231 = vld [vmem:[%s6125 + $0x348] sm:$0xff]
    %v6232 = vld [vmem:[%s6125 + $0x350] sm:$0xff]
    %v6233 = vld [vmem:[%s6125 + $0x358] sm:$0xff]
    %v6234 = vld [vmem:[%s6125 + $0x360] sm:$0xff]
    %v6235 = vld [vmem:[%s6125 + $0x368] sm:$0xff]
    %v6236 = vld [vmem:[%s6125 + $0x370] sm:$0xff]
    %v6237 = vld [vmem:[%s6125 + $0x378] sm:$0xff]
    %v6238 = vld [vmem:[%s6125 + $0x380] sm:$0xff]
    %v6239 = vld [vmem:[%s6125 + $0x388] sm:$0xff]
    %v6240 = vld [vmem:[%s6125 + $0x390] sm:$0xff]
    %v6241 = vld [vmem:[%s6125 + $0x398] sm:$0xff]
    %v6242 = vld [vmem:[%s6125 + $0x3a0] sm:$0xff]
    %v6243 = vld [vmem:[%s6125 + $0x3a8] sm:$0xff]
    %v6244 = vld [vmem:[%s6125 + $0x3b0] sm:$0xff]
    %v6245 = vld [vmem:[%s6125 + $0x3b8] sm:$0xff]
    %v6246 = vld [vmem:[%s6125 + $0x3c0] sm:$0xff]
    %v6247 = vld [vmem:[%s6125 + $0x3c8] sm:$0xff]
    %v6248 = vld [vmem:[%s6125 + $0x3d0] sm:$0xff]
    %v6249 = vld [vmem:[%s6125 + $0x3d8] sm:$0xff]
    %v6250 = vld [vmem:[%s6125 + $0x3e0] sm:$0xff]
    %v6251 = vld [vmem:[%s6125 + $0x3e8] sm:$0xff]
    %v6252 = vld [vmem:[%s6125 + $0x3f0] sm:$0xff]
    %v6253 = vld [vmem:[%s6125 + $0x3f8] sm:$0xff]
    %v6254 = vld [vmem:[%s6125 + $0x400] sm:$0xff]
    %v6255 = vld [vmem:[%s6125 + $0x408] sm:$0xff]
    %v6256 = vld [vmem:[%s6125 + $0x410] sm:$0xff]
    %v6257 = vld [vmem:[%s6125 + $0x418] sm:$0xff]
    %v6258 = vld [vmem:[%s6125 + $0x420] sm:$0xff]
    %v6259 = vld [vmem:[%s6125 + $0x428] sm:$0xff]
    %v6260 = vld [vmem:[%s6125 + $0x430] sm:$0xff]
    %v6261 = vld [vmem:[%s6125 + $0x438] sm:$0xff]
    %v6262 = vld [vmem:[%s6125 + $0x440] sm:$0xff]
    %v6263 = vld [vmem:[%s6125 + $0x448] sm:$0xff]
    %v6264 = vld [vmem:[%s6125 + $0x450] sm:$0xff]
    %v6265 = vld [vmem:[%s6125 + $0x458] sm:$0xff]
    %v6266 = vld [vmem:[%s6125 + $0x460] sm:$0xff]
    %v6267 = vld [vmem:[%s6125 + $0x468] sm:$0xff]
    %v6268 = vld [vmem:[%s6125 + $0x470] sm:$0xff]
    %v6269 = vld [vmem:[%s6125 + $0x478] sm:$0xff]
    %v6270 = vld [vmem:[%s6125 + $0x480] sm:$0xff]
    %v6271 = vld [vmem:[%s6125 + $0x488] sm:$0xff]
    %v6272 = vld [vmem:[%s6125 + $0x490] sm:$0xff]
    %v6273 = vld [vmem:[%s6125 + $0x498] sm:$0xff]
    %v6274 = vld [vmem:[%s6125 + $0x4a0] sm:$0xff]
    %v6275 = vld [vmem:[%s6125 + $0x4a8] sm:$0xff]
    %v6276 = vld [vmem:[%s6125 + $0x4b0] sm:$0xff]
    %v6277 = vld [vmem:[%s6125 + $0x4b8] sm:$0xff]
    %v6278 = vld [vmem:[%s6125 + $0x4c0] sm:$0xff]
    %v6279 = vld [vmem:[%s6125 + $0x4c8] sm:$0xff]
    %v6280 = vld [vmem:[%s6125 + $0x4d0] sm:$0xff]
    %v6281 = vld [vmem:[%s6125 + $0x4d8] sm:$0xff]
    %v6282 = vld [vmem:[%s6125 + $0x4e0] sm:$0xff]
    %v6283 = vld [vmem:[%s6125 + $0x4e8] sm:$0xff]
    %v6284 = vld [vmem:[%s6125 + $0x4f0] sm:$0xff]
    %v6285 = vld [vmem:[%s6125 + $0x4f8] sm:$0xff]
    %v6286 = vld [vmem:[%s6125 + $0x500] sm:$0xff]
    %v6287 = vld [vmem:[%s6125 + $0x508] sm:$0xff]
    %v6288 = vld [vmem:[%s6125 + $0x510] sm:$0xff]
    %v6289 = vld [vmem:[%s6125 + $0x518] sm:$0xff]
    %v6290 = vld [vmem:[%s6125 + $0x520] sm:$0xff]
    %v6291 = vld [vmem:[%s6125 + $0x528] sm:$0xff]
    %v6292 = vld [vmem:[%s6125 + $0x530] sm:$0xff]
    %v6293 = vld [vmem:[%s6125 + $0x538] sm:$0xff]
    %v6294 = vld [vmem:[%s6125 + $0x540] sm:$0xff]
    %v6295 = vld [vmem:[%s6125 + $0x548] sm:$0xff]
    %v6296 = vld [vmem:[%s6125 + $0x550] sm:$0xff]
    %v6297 = vld [vmem:[%s6125 + $0x558] sm:$0xff]
    %v6298 = vld [vmem:[%s6125 + $0x560] sm:$0xff]
    %v6299 = vld [vmem:[%s6125 + $0x568] sm:$0xff]
    %v6300 = vld [vmem:[%s6125 + $0x570] sm:$0xff]
    %v6301 = vld [vmem:[%s6125 + $0x578] sm:$0xff]
    %v6302 = vld [vmem:[%s6125 + $0x580] sm:$0xff]
    %v6303 = vld [vmem:[%s6125 + $0x588] sm:$0xff]
    %v6304 = vld [vmem:[%s6125 + $0x590] sm:$0xff]
    %v6305 = vld [vmem:[%s6125 + $0x598] sm:$0xff]
    %v6306 = vld [vmem:[%s6125 + $0x5a0] sm:$0xff]
    %v6307 = vld [vmem:[%s6125 + $0x5a8] sm:$0xff]
    %v6308 = vld [vmem:[%s6125 + $0x5b0] sm:$0xff]
    %v6309 = vld [vmem:[%s6125 + $0x5b8] sm:$0xff]
    %v6310 = vld [vmem:[%s6125 + $0x5c0] sm:$0xff]
    %v6311 = vld [vmem:[%s6125 + $0x5c8] sm:$0xff]
    %v6312 = vld [vmem:[%s6125 + $0x5d0] sm:$0xff]
    %v6313 = vld [vmem:[%s6125 + $0x5d8] sm:$0xff]
    %v6314 = vld [vmem:[%s6125 + $0x5e0] sm:$0xff]
    %v6315 = vld [vmem:[%s6125 + $0x5e8] sm:$0xff]
    %v6316 = vld [vmem:[%s6125 + $0x5f0] sm:$0xff]
    %v6317 = vld [vmem:[%s6125 + $0x5f8] sm:$0xff]
    %v6318 = vld [vmem:[%s6125 + $0x600] sm:$0xff]
    %v6319 = vld [vmem:[%s6125 + $0x608] sm:$0xff]
    %v6320 = vld [vmem:[%s6125 + $0x610] sm:$0xff]
    %v6321 = vld [vmem:[%s6125 + $0x618] sm:$0xff]
    %v6322 = vld [vmem:[%s6125 + $0x620] sm:$0xff]
    %v6323 = vld [vmem:[%s6125 + $0x628] sm:$0xff]
    %v6324 = vld [vmem:[%s6125 + $0x630] sm:$0xff]
    %v6325 = vld [vmem:[%s6125 + $0x638] sm:$0xff]
    %v6326 = vld [vmem:[%s6125 + $0x640] sm:$0xff]
    %v6327 = vld [vmem:[%s6125 + $0x648] sm:$0xff]
    %v6328 = vld [vmem:[%s6125 + $0x650] sm:$0xff]
    %v6329 = vld [vmem:[%s6125 + $0x658] sm:$0xff]
    %v6330 = vld [vmem:[%s6125 + $0x660] sm:$0xff]
    %v6331 = vld [vmem:[%s6125 + $0x668] sm:$0xff]
    %v6332 = vld [vmem:[%s6125 + $0x670] sm:$0xff]
    %v6333 = vld [vmem:[%s6125 + $0x678] sm:$0xff]
    %v6334 = vld [vmem:[%s6125 + $0x680] sm:$0xff]
    %v6335 = vld [vmem:[%s6125 + $0x688] sm:$0xff]
    %v6336 = vld [vmem:[%s6125 + $0x690] sm:$0xff]
    %v6337 = vld [vmem:[%s6125 + $0x698] sm:$0xff]
    %v6338 = vld [vmem:[%s6125 + $0x6a0] sm:$0xff]
    %v6339 = vld [vmem:[%s6125 + $0x6a8] sm:$0xff]
    %v6340 = vld [vmem:[%s6125 + $0x6b0] sm:$0xff]
    %v6341 = vld [vmem:[%s6125 + $0x6b8] sm:$0xff]
    %v6342 = vld [vmem:[%s6125 + $0x6c0] sm:$0xff]
    %v6343 = vld [vmem:[%s6125 + $0x6c8] sm:$0xff]
    %v6344 = vld [vmem:[%s6125 + $0x6d0] sm:$0xff]
    %v6345 = vld [vmem:[%s6125 + $0x6d8] sm:$0xff]
    %v6346 = vld [vmem:[%s6125 + $0x6e0] sm:$0xff]
    %v6347 = vld [vmem:[%s6125 + $0x6e8] sm:$0xff]
    %v6348 = vld [vmem:[%s6125 + $0x6f0] sm:$0xff]
    %v6349 = vld [vmem:[%s6125 + $0x6f8] sm:$0xff]
    %v6350 = vld [vmem:[%s6125 + $0x700] sm:$0xff]
    %v6351 = vld [vmem:[%s6125 + $0x708] sm:$0xff]
    %v6352 = vld [vmem:[%s6125 + $0x710] sm:$0xff]
    %v6353 = vld [vmem:[%s6125 + $0x718] sm:$0xff]
    %v6354 = vld [vmem:[%s6125 + $0x720] sm:$0xff]
    %v6355 = vld [vmem:[%s6125 + $0x728] sm:$0xff]
    %v6356 = vld [vmem:[%s6125 + $0x730] sm:$0xff]
    %v6357 = vld [vmem:[%s6125 + $0x738] sm:$0xff]
    %v6358 = vld [vmem:[%s6125 + $0x740] sm:$0xff]
    %v6359 = vld [vmem:[%s6125 + $0x748] sm:$0xff]
    %v6360 = vld [vmem:[%s6125 + $0x750] sm:$0xff]
    %v6361 = vld [vmem:[%s6125 + $0x758] sm:$0xff]
    %v6362 = vld [vmem:[%s6125 + $0x760] sm:$0xff]
    %v6363 = vld [vmem:[%s6125 + $0x768] sm:$0xff]
    %v6364 = vld [vmem:[%s6125 + $0x770] sm:$0xff]
    %v6365 = vld [vmem:[%s6125 + $0x778] sm:$0xff]
    %v6366 = vld [vmem:[%s6125 + $0x780] sm:$0xff]
    %v6367 = vld [vmem:[%s6125 + $0x788] sm:$0xff]
    %v6368 = vld [vmem:[%s6125 + $0x790] sm:$0xff]
    %v6369 = vld [vmem:[%s6125 + $0x798] sm:$0xff]
    %v6370 = vld [vmem:[%s6125 + $0x7a0] sm:$0xff]
    %v6371 = vld [vmem:[%s6125 + $0x7a8] sm:$0xff]
    %v6372 = vld [vmem:[%s6125 + $0x7b0] sm:$0xff]
    %v6373 = vld [vmem:[%s6125 + $0x7b8] sm:$0xff]
    %v6374 = vld [vmem:[%s6125 + $0x7c0] sm:$0xff]
    %v6375 = vld [vmem:[%s6125 + $0x7c8] sm:$0xff]
    %v6376 = vld [vmem:[%s6125 + $0x7d0] sm:$0xff]
    %v6377 = vld [vmem:[%s6125 + $0x7d8] sm:$0xff]
    %v6378 = vld [vmem:[%s6125 + $0x7e0] sm:$0xff]
    %v6379 = vld [vmem:[%s6125 + $0x7e8] sm:$0xff]
    %v6380 = vld [vmem:[%s6125 + $0x7f0] sm:$0xff]
    %v6381 = vld [vmem:[%s6125 + $0x7f8] sm:$0xff]
    %s6382 = scalar_lea.vmem [#allocation17], 16
    %v6383 = vld [vmem:[%s6382] sm:$0xff]
    %v6384 = vld [vmem:[%s6382 + $0x8] sm:$0xff]
    %v6387 = vlaneseq
    %v6388 = vshrl.u32 %v6387, 7
    %v6389 = vsub.s32 0, %v6388
    %v6390 = vrot.slane %v6383, %v6389
    %v6391 = vlaneseq
    %v6392 = vshrl.u32 %v6391, 7
    %v6393 = vsub.s32 1, %v6392
    %v6394 = vrot.slane %v6383, %v6393
    %v6395 = vlaneseq
    %v6396 = vshrl.u32 %v6395, 7
    %v6397 = vsub.s32 2, %v6396
    %v6398 = vrot.slane %v6383, %v6397
    %v6399 = vlaneseq
    %v6400 = vshrl.u32 %v6399, 7
    %v6401 = vsub.s32 3, %v6400
    %v6402 = vrot.slane %v6383, %v6401
    %v6403 = vlaneseq
    %v6404 = vshrl.u32 %v6403, 7
    %v6405 = vsub.s32 4, %v6404
    %v6406 = vrot.slane %v6383, %v6405
    %v6407 = vlaneseq
    %v6408 = vshrl.u32 %v6407, 7
    %v6409 = vsub.s32 5, %v6408
    %v6410 = vrot.slane %v6383, %v6409
    %v6411 = vlaneseq
    %v6412 = vshrl.u32 %v6411, 7
    %v6413 = vsub.s32 6, %v6412
    %v6414 = vrot.slane %v6383, %v6413
    %v6415 = vlaneseq
    %v6416 = vshrl.u32 %v6415, 7
    %v6417 = vsub.s32 7, %v6416
    %v6418 = vrot.slane %v6383, %v6417
    %v6419 = vlaneseq
    %v6420 = vshrl.u32 %v6419, 7
    %v6421 = vsub.s32 0, %v6420
    %v6422 = vrot.slane %v6384, %v6421
    %v6423 = vlaneseq
    %v6424 = vshrl.u32 %v6423, 7
    %v6425 = vsub.s32 1, %v6424
    %v6426 = vrot.slane %v6384, %v6425
    %v6427 = vlaneseq
    %v6428 = vshrl.u32 %v6427, 7
    %v6429 = vsub.s32 2, %v6428
    %v6430 = vrot.slane %v6384, %v6429
    %v6431 = vlaneseq
    %v6432 = vshrl.u32 %v6431, 7
    %v6433 = vsub.s32 3, %v6432
    %v6434 = vrot.slane %v6384, %v6433
    %v6435 = vlaneseq
    %v6436 = vshrl.u32 %v6435, 7
    %v6437 = vsub.s32 4, %v6436
    %v6438 = vrot.slane %v6384, %v6437
    %v6439 = vlaneseq
    %v6440 = vshrl.u32 %v6439, 7
    %v6441 = vsub.s32 5, %v6440
    %v6442 = vrot.slane %v6384, %v6441
    %v6443 = vlaneseq
    %v6444 = vshrl.u32 %v6443, 7
    %v6445 = vsub.s32 6, %v6444
    %v6446 = vrot.slane %v6384, %v6445
    %v6447 = vlaneseq
    %v6448 = vshrl.u32 %v6447, 7
    %v6449 = vsub.s32 7, %v6448
    %v6450 = vrot.slane %v6384, %v6449
    %6467 = vmatprep.subr.mxu0 %v6127
    %6468 = vmatpush1.msra.mxu0 %v6126
    %6469 = vmatprep.subr.mxu0 %v6143
    %6470 = vmatpush1.msra.mxu0 %v6142
    %6471 = vmatprep.subr.mxu0 %v6159
    %6472 = vmatpush1.msra.mxu0 %v6158
    %6473 = vmatprep.subr.mxu0 %v6175
    %6474 = vmatpush1.msra.mxu0 %v6174
    %6475 = vmatprep.subr.mxu0 %v6191
    %6476 = vmatpush1.msra.mxu0 %v6190
    %6477 = vmatprep.subr.mxu0 %v6207
    %6478 = vmatpush1.msra.mxu0 %v6206
    %6479 = vmatprep.subr.mxu0 %v6223
    %6480 = vmatpush1.msra.mxu0 %v6222
    %6481 = vmatprep.subr.mxu0 %v6239
    %6482 = vmatpush1.msra.mxu0 %v6238
    %6483 = vmatprep.subr.mxu0 %v6255
    %6484 = vmatpush1.msra.mxu0 %v6254
    %6485 = vmatprep.subr.mxu0 %v6271
    %6486 = vmatpush1.msra.mxu0 %v6270
    %6487 = vmatprep.subr.mxu0 %v6287
    %6488 = vmatpush1.msra.mxu0 %v6286
    %6489 = vmatprep.subr.mxu0 %v6303
    %6490 = vmatpush1.msra.mxu0 %v6302
    %6491 = vmatprep.subr.mxu0 %v6319
    %6492 = vmatpush1.msra.mxu0 %v6318
    %6493 = vmatprep.subr.mxu0 %v6335
    %6494 = vmatpush1.msra.mxu0 %v6334
    %6495 = vmatprep.subr.mxu0 %v6351
    %6496 = vmatpush1.msra.mxu0 %v6350
    %6497 = vmatprep.subr.mxu0 %v6367
    %6498 = vmatpush1.msra.mxu0 %v6366
    %6499 = vmatprep.subr.mxu0 0.0
    %6500 = vmatpush1.msra.mxu0 0.0
    %6501 = vmatprep.subr.mxu0 0.0
    %6502 = vmatpush1.msra.mxu0 0.0
    %6503 = vmatprep.subr.mxu0 0.0
    %6504 = vmatpush1.msra.mxu0 0.0
    %6505 = vmatprep.subr.mxu0 0.0
    %6506 = vmatpush1.msra.mxu0 0.0
    %6507 = vmatprep.subr.mxu0 0.0
    %6508 = vmatpush1.msra.mxu0 0.0
    %6509 = vmatprep.subr.mxu0 0.0
    %6510 = vmatpush1.msra.mxu0 0.0
    %6511 = vmatprep.subr.mxu0 0.0
    %6512 = vmatpush1.msra.mxu0 0.0
    %6513 = vmatprep.subr.mxu0 0.0
    %6514 = vmatpush1.msra.mxu0 0.0
    %6515 = vmatprep.subr.mxu0 0.0
    %6516 = vmatpush1.msra.mxu0 0.0
    %6517 = vmatprep.subr.mxu0 0.0
    %6518 = vmatpush1.msra.mxu0 0.0
    %6519 = vmatprep.subr.mxu0 0.0
    %6520 = vmatpush1.msra.mxu0 0.0
    %6521 = vmatprep.subr.mxu0 0.0
    %6522 = vmatpush1.msra.mxu0 0.0
    %6523 = vmatprep.subr.mxu0 0.0
    %6524 = vmatpush1.msra.mxu0 0.0
    %6525 = vmatprep.subr.mxu0 0.0
    %6526 = vmatpush1.msra.mxu0 0.0
    %6527 = vmatprep.subr.mxu0 0.0
    %6528 = vmatpush1.msra.mxu0 0.0
    %6529 = vmatprep.subr.mxu0 0.0
    %6530 = vmatpush1.msra.mxu0 0.0
    %6531 = vmatprep.mubr.f32.mxu0 0.0
    %6532 = vmatmul.mubr.f32.gmra.mrb[0].mxu0 %v6123
    %v6533 = vpop.f32.mrb[0].mxu0
    %v6534 = vadd.f32 %v6390, %v6533
    %v6535 = vpop.f32.mrb[0].mxu0
    %v6536 = vadd.f32 %v6394, %v6535
    %6537 = vmatprep.mubr.f32.mxu0 0.0
    %6538 = vmatmul.mubr.f32.gmra.mrb[0].mxu0 %v6124
    %v6539 = vpop.f32.mrb[0].mxu0
    %v6540 = vadd.f32 %v6390, %v6539
    %v6541 = vpop.f32.mrb[0].mxu0
    %v6542 = vadd.f32 %v6394, %v6541
    %6543 = vdwg.mxu0
    %6544 = vmatprep.subr.mxu0 %v6129
    %6545 = vmatpush1.msra.mxu0 %v6128
    %6546 = vmatprep.subr.mxu0 %v6145
    %6547 = vmatpush1.msra.mxu0 %v6144
    %6548 = vmatprep.subr.mxu0 %v6161
    %6549 = vmatpush1.msra.mxu0 %v6160
    %6550 = vmatprep.subr.mxu0 %v6177
    %6551 = vmatpush1.msra.mxu0 %v6176
    %6552 = vmatprep.subr.mxu0 %v6193
    %6553 = vmatpush1.msra.mxu0 %v6192
    %6554 = vmatprep.subr.mxu0 %v6209
    %6555 = vmatpush1.msra.mxu0 %v6208
    %6556 = vmatprep.subr.mxu0 %v6225
    %6557 = vmatpush1.msra.mxu0 %v6224
    %6558 = vmatprep.subr.mxu0 %v6241
    %6559 = vmatpush1.msra.mxu0 %v6240
    %6560 = vmatprep.subr.mxu0 %v6257
    %6561 = vmatpush1.msra.mxu0 %v6256
    %6562 = vmatprep.subr.mxu0 %v6273
    %6563 = vmatpush1.msra.mxu0 %v6272
    %6564 = vmatprep.subr.mxu0 %v6289
    %6565 = vmatpush1.msra.mxu0 %v6288
    %6566 = vmatprep.subr.mxu0 %v6305
    %6567 = vmatpush1.msra.mxu0 %v6304
    %6568 = vmatprep.subr.mxu0 %v6321
    %6569 = vmatpush1.msra.mxu0 %v6320
    %6570 = vmatprep.subr.mxu0 %v6337
    %6571 = vmatpush1.msra.mxu0 %v6336
    %6572 = vmatprep.subr.mxu0 %v6353
    %6573 = vmatpush1.msra.mxu0 %v6352
    %6574 = vmatprep.subr.mxu0 %v6369
    %6575 = vmatpush1.msra.mxu0 %v6368
    %6576 = vmatprep.subr.mxu0 0.0
    %6577 = vmatpush1.msra.mxu0 0.0
    %6578 = vmatprep.subr.mxu0 0.0
    %6579 = vmatpush1.msra.mxu0 0.0
    %6580 = vmatprep.subr.mxu0 0.0
    %6581 = vmatpush1.msra.mxu0 0.0
    %6582 = vmatprep.subr.mxu0 0.0
    %6583 = vmatpush1.msra.mxu0 0.0
    %6584 = vmatprep.subr.mxu0 0.0
    %6585 = vmatpush1.msra.mxu0 0.0
    %6586 = vmatprep.subr.mxu0 0.0
    %6587 = vmatpush1.msra.mxu0 0.0
    %6588 = vmatprep.subr.mxu0 0.0
    %6589 = vmatpush1.msra.mxu0 0.0
    %6590 = vmatprep.subr.mxu0 0.0
    %6591 = vmatpush1.msra.mxu0 0.0
    %6592 = vmatprep.subr.mxu0 0.0
    %6593 = vmatpush1.msra.mxu0 0.0
    %6594 = vmatprep.subr.mxu0 0.0
    %6595 = vmatpush1.msra.mxu0 0.0
    %6596 = vmatprep.subr.mxu0 0.0
    %6597 = vmatpush1.msra.mxu0 0.0
    %6598 = vmatprep.subr.mxu0 0.0
    %6599 = vmatpush1.msra.mxu0 0.0
    %6600 = vmatprep.subr.mxu0 0.0
    %6601 = vmatpush1.msra.mxu0 0.0
    %6602 = vmatprep.subr.mxu0 0.0
    %6603 = vmatpush1.msra.mxu0 0.0
    %6604 = vmatprep.subr.mxu0 0.0
    %6605 = vmatpush1.msra.mxu0 0.0
    %6606 = vmatprep.subr.mxu0 0.0
    %6607 = vmatpush1.msra.mxu0 0.0
    %6608 = vmatprep.mubr.f32.mxu0 0.0
    %6609 = vmatmul.mubr.f32.gmra.mrb[0].mxu0 %v6123
    %v6610 = vpop.f32.mrb[0].mxu0
    %v6611 = vadd.f32 %v6398, %v6610
    %v6612 = vpop.f32.mrb[0].mxu0
    %v6613 = vadd.f32 %v6402, %v6612
    %6614 = vmatprep.mubr.f32.mxu0 0.0
    %6615 = vmatmul.mubr.f32.gmra.mrb[0].mxu0 %v6124
    %v6616 = vpop.f32.mrb[0].mxu0
    %v6617 = vadd.f32 %v6398, %v6616
    %v6618 = vpop.f32.mrb[0].mxu0
    %v6619 = vadd.f32 %v6402, %v6618
    %6620 = vdwg.mxu0
    %6621 = vmatprep.subr.mxu0 %v6131
    %6622 = vmatpush1.msra.mxu0 %v6130
    %6623 = vmatprep.subr.mxu0 %v6147
    %6624 = vmatpush1.msra.mxu0 %v6146
    %6625 = vmatprep.subr.mxu0 %v6163
    %6626 = vmatpush1.msra.mxu0 %v6162
    %6627 = vmatprep.subr.mxu0 %v6179
    %6628 = vmatpush1.msra.mxu0 %v6178
    %6629 = vmatprep.subr.mxu0 %v6195
    %6630 = vmatpush1.msra.mxu0 %v6194
    %6631 = vmatprep.subr.mxu0 %v6211
    %6632 = vmatpush1.msra.mxu0 %v6210
    %6633 = vmatprep.subr.mxu0 %v6227
    %6634 = vmatpush1.msra.mxu0 %v6226
    %6635 = vmatprep.subr.mxu0 %v6243
    %6636 = vmatpush1.msra.mxu0 %v6242
    %6637 = vmatprep.subr.mxu0 %v6259
    %6638 = vmatpush1.msra.mxu0 %v6258
    %6639 = vmatprep.subr.mxu0 %v6275
    %6640 = vmatpush1.msra.mxu0 %v6274
    %6641 = vmatprep.subr.mxu0 %v6291
    %6642 = vmatpush1.msra.mxu0 %v6290
    %6643 = vmatprep.subr.mxu0 %v6307
    %6644 = vmatpush1.msra.mxu0 %v6306
    %6645 = vmatprep.subr.mxu0 %v6323
    %6646 = vmatpush1.msra.mxu0 %v6322
    %6647 = vmatprep.subr.mxu0 %v6339
    %6648 = vmatpush1.msra.mxu0 %v6338
    %6649 = vmatprep.subr.mxu0 %v6355
    %6650 = vmatpush1.msra.mxu0 %v6354
    %6651 = vmatprep.subr.mxu0 %v6371
    %6652 = vmatpush1.msra.mxu0 %v6370
    %6653 = vmatprep.subr.mxu0 0.0
    %6654 = vmatpush1.msra.mxu0 0.0
    %6655 = vmatprep.subr.mxu0 0.0
    %6656 = vmatpush1.msra.mxu0 0.0
    %6657 = vmatprep.subr.mxu0 0.0
    %6658 = vmatpush1.msra.mxu0 0.0
    %6659 = vmatprep.subr.mxu0 0.0
    %6660 = vmatpush1.msra.mxu0 0.0
    %6661 = vmatprep.subr.mxu0 0.0
    %6662 = vmatpush1.msra.mxu0 0.0
    %6663 = vmatprep.subr.mxu0 0.0
    %6664 = vmatpush1.msra.mxu0 0.0
    %6665 = vmatprep.subr.mxu0 0.0
    %6666 = vmatpush1.msra.mxu0 0.0
    %6667 = vmatprep.subr.mxu0 0.0
    %6668 = vmatpush1.msra.mxu0 0.0
    %6669 = vmatprep.subr.mxu0 0.0
    %6670 = vmatpush1.msra.mxu0 0.0
    %6671 = vmatprep.subr.mxu0 0.0
    %6672 = vmatpush1.msra.mxu0 0.0
    %6673 = vmatprep.subr.mxu0 0.0
    %6674 = vmatpush1.msra.mxu0 0.0
    %6675 = vmatprep.subr.mxu0 0.0
    %6676 = vmatpush1.msra.mxu0 0.0
    %6677 = vmatprep.subr.mxu0 0.0
    %6678 = vmatpush1.msra.mxu0 0.0
    %6679 = vmatprep.subr.mxu0 0.0
    %6680 = vmatpush1.msra.mxu0 0.0
    %6681 = vmatprep.subr.mxu0 0.0
    %6682 = vmatpush1.msra.mxu0 0.0
    %6683 = vmatprep.subr.mxu0 0.0
    %6684 = vmatpush1.msra.mxu0 0.0
    %6685 = vmatprep.mubr.f32.mxu0 0.0
    %6686 = vmatmul.mubr.f32.gmra.mrb[0].mxu0 %v6123
    %v6687 = vpop.f32.mrb[0].mxu0
    %v6688 = vadd.f32 %v6406, %v6687
    %v6689 = vpop.f32.mrb[0].mxu0
    %v6690 = vadd.f32 %v6410, %v6689
    %6691 = vmatprep.mubr.f32.mxu0 0.0
    %6692 = vmatmul.mubr.f32.gmra.mrb[0].mxu0 %v6124
    %v6693 = vpop.f32.mrb[0].mxu0
    %v6694 = vadd.f32 %v6406, %v6693
    %v6695 = vpop.f32.mrb[0].mxu0
    %v6696 = vadd.f32 %v6410, %v6695
    %6697 = vdwg.mxu0
    %6698 = vmatprep.subr.mxu0 %v6133
    %6699 = vmatpush1.msra.mxu0 %v6132
    %6700 = vmatprep.subr.mxu0 %v6149
    %6701 = vmatpush1.msra.mxu0 %v6148
    %6702 = vmatprep.subr.mxu0 %v6165
    %6703 = vmatpush1.msra.mxu0 %v6164
    %6704 = vmatprep.subr.mxu0 %v6181
    %6705 = vmatpush1.msra.mxu0 %v6180
    %6706 = vmatprep.subr.mxu0 %v6197
    %6707 = vmatpush1.msra.mxu0 %v6196
    %6708 = vmatprep.subr.mxu0 %v6213
    %6709 = vmatpush1.msra.mxu0 %v6212
    %6710 = vmatprep.subr.mxu0 %v6229
    %6711 = vmatpush1.msra.mxu0 %v6228
    %6712 = vmatprep.subr.mxu0 %v6245
    %6713 = vmatpush1.msra.mxu0 %v6244
    %6714 = vmatprep.subr.mxu0 %v6261
    %6715 = vmatpush1.msra.mxu0 %v6260
    %6716 = vmatprep.subr.mxu0 %v6277
    %6717 = vmatpush1.msra.mxu0 %v6276
    %6718 = vmatprep.subr.mxu0 %v6293
    %6719 = vmatpush1.msra.mxu0 %v6292
    %6720 = vmatprep.subr.mxu0 %v6309
    %6721 = vmatpush1.msra.mxu0 %v6308
    %6722 = vmatprep.subr.mxu0 %v6325
    %6723 = vmatpush1.msra.mxu0 %v6324
    %6724 = vmatprep.subr.mxu0 %v6341
    %6725 = vmatpush1.msra.mxu0 %v6340
    %6726 = vmatprep.subr.mxu0 %v6357
    %6727 = vmatpush1.msra.mxu0 %v6356
    %6728 = vmatprep.subr.mxu0 %v6373
    %6729 = vmatpush1.msra.mxu0 %v6372
    %6730 = vmatprep.subr.mxu0 0.0
    %6731 = vmatpush1.msra.mxu0 0.0
    %6732 = vmatprep.subr.mxu0 0.0
    %6733 = vmatpush1.msra.mxu0 0.0
    %6734 = vmatprep.subr.mxu0 0.0
    %6735 = vmatpush1.msra.mxu0 0.0
    %6736 = vmatprep.subr.mxu0 0.0
    %6737 = vmatpush1.msra.mxu0 0.0
    %6738 = vmatprep.subr.mxu0 0.0
    %6739 = vmatpush1.msra.mxu0 0.0
    %6740 = vmatprep.subr.mxu0 0.0
    %6741 = vmatpush1.msra.mxu0 0.0
    %6742 = vmatprep.subr.mxu0 0.0
    %6743 = vmatpush1.msra.mxu0 0.0
    %6744 = vmatprep.subr.mxu0 0.0
    %6745 = vmatpush1.msra.mxu0 0.0
    %6746 = vmatprep.subr.mxu0 0.0
    %6747 = vmatpush1.msra.mxu0 0.0
    %6748 = vmatprep.subr.mxu0 0.0
    %6749 = vmatpush1.msra.mxu0 0.0
    %6750 = vmatprep.subr.mxu0 0.0
    %6751 = vmatpush1.msra.mxu0 0.0
    %6752 = vmatprep.subr.mxu0 0.0
    %6753 = vmatpush1.msra.mxu0 0.0
    %6754 = vmatprep.subr.mxu0 0.0
    %6755 = vmatpush1.msra.mxu0 0.0
    %6756 = vmatprep.subr.mxu0 0.0
    %6757 = vmatpush1.msra.mxu0 0.0
    %6758 = vmatprep.subr.mxu0 0.0
    %6759 = vmatpush1.msra.mxu0 0.0
    %6760 = vmatprep.subr.mxu0 0.0
    %6761 = vmatpush1.msra.mxu0 0.0
    %6762 = vmatprep.mubr.f32.mxu0 0.0
    %6763 = vmatmul.mubr.f32.gmra.mrb[0].mxu0 %v6123
    %v6764 = vpop.f32.mrb[0].mxu0
    %v6765 = vadd.f32 %v6414, %v6764
    %v6766 = vpop.f32.mrb[0].mxu0
    %v6767 = vadd.f32 %v6418, %v6766
    %6768 = vmatprep.mubr.f32.mxu0 0.0
    %6769 = vmatmul.mubr.f32.gmra.mrb[0].mxu0 %v6124
    %v6770 = vpop.f32.mrb[0].mxu0
    %v6771 = vadd.f32 %v6414, %v6770
    %v6772 = vpop.f32.mrb[0].mxu0
    %v6773 = vadd.f32 %v6418, %v6772
    %6774 = vdwg.mxu0
    %6775 = vmatprep.subr.mxu0 %v6135
    %6776 = vmatpush1.msra.mxu0 %v6134
    %6777 = vmatprep.subr.mxu0 %v6151
    %6778 = vmatpush1.msra.mxu0 %v6150
    %6779 = vmatprep.subr.mxu0 %v6167
    %6780 = vmatpush1.msra.mxu0 %v6166
    %6781 = vmatprep.subr.mxu0 %v6183
    %6782 = vmatpush1.msra.mxu0 %v6182
    %6783 = vmatprep.subr.mxu0 %v6199
    %6784 = vmatpush1.msra.mxu0 %v6198
    %6785 = vmatprep.subr.mxu0 %v6215
    %6786 = vmatpush1.msra.mxu0 %v6214
    %6787 = vmatprep.subr.mxu0 %v6231
    %6788 = vmatpush1.msra.mxu0 %v6230
    %6789 = vmatprep.subr.mxu0 %v6247
    %6790 = vmatpush1.msra.mxu0 %v6246
    %6791 = vmatprep.subr.mxu0 %v6263
    %6792 = vmatpush1.msra.mxu0 %v6262
    %6793 = vmatprep.subr.mxu0 %v6279
    %6794 = vmatpush1.msra.mxu0 %v6278
    %6795 = vmatprep.subr.mxu0 %v6295
    %6796 = vmatpush1.msra.mxu0 %v6294
    %6797 = vmatprep.subr.mxu0 %v6311
    %6798 = vmatpush1.msra.mxu0 %v6310
    %6799 = vmatprep.subr.mxu0 %v6327
    %6800 = vmatpush1.msra.mxu0 %v6326
    %6801 = vmatprep.subr.mxu0 %v6343
    %6802 = vmatpush1.msra.mxu0 %v6342
    %6803 = vmatprep.subr.mxu0 %v6359
    %6804 = vmatpush1.msra.mxu0 %v6358
    %6805 = vmatprep.subr.mxu0 %v6375
    %6806 = vmatpush1.msra.mxu0 %v6374
    %6807 = vmatprep.subr.mxu0 0.0
    %6808 = vmatpush1.msra.mxu0 0.0
    %6809 = vmatprep.subr.mxu0 0.0
    %6810 = vmatpush1.msra.mxu0 0.0
    %6811 = vmatprep.subr.mxu0 0.0
    %6812 = vmatpush1.msra.mxu0 0.0
    %6813 = vmatprep.subr.mxu0 0.0
    %6814 = vmatpush1.msra.mxu0 0.0
    %6815 = vmatprep.subr.mxu0 0.0
    %6816 = vmatpush1.msra.mxu0 0.0
    %6817 = vmatprep.subr.mxu0 0.0
    %6818 = vmatpush1.msra.mxu0 0.0
    %6819 = vmatprep.subr.mxu0 0.0
    %6820 = vmatpush1.msra.mxu0 0.0
    %6821 = vmatprep.subr.mxu0 0.0
    %6822 = vmatpush1.msra.mxu0 0.0
    %6823 = vmatprep.subr.mxu0 0.0
    %6824 = vmatpush1.msra.mxu0 0.0
    %6825 = vmatprep.subr.mxu0 0.0
    %6826 = vmatpush1.msra.mxu0 0.0
    %6827 = vmatprep.subr.mxu0 0.0
    %6828 = vmatpush1.msra.mxu0 0.0
    %6829 = vmatprep.subr.mxu0 0.0
    %6830 = vmatpush1.msra.mxu0 0.0
    %6831 = vmatprep.subr.mxu0 0.0
    %6832 = vmatpush1.msra.mxu0 0.0
    %6833 = vmatprep.subr.mxu0 0.0
    %6834 = vmatpush1.msra.mxu0 0.0
    %6835 = vmatprep.subr.mxu0 0.0
    %6836 = vmatpush1.msra.mxu0 0.0
    %6837 = vmatprep.subr.mxu0 0.0
    %6838 = vmatpush1.msra.mxu0 0.0
    %6839 = vmatprep.mubr.f32.mxu0 0.0
    %6840 = vmatmul.mubr.f32.gmra.mrb[0].mxu0 %v6123
    %v6841 = vpop.f32.mrb[0].mxu0
    %v6842 = vadd.f32 %v6422, %v6841
    %v6843 = vpop.f32.mrb[0].mxu0
    %v6844 = vadd.f32 %v6426, %v6843
    %6845 = vmatprep.mubr.f32.mxu0 0.0
    %6846 = vmatmul.mubr.f32.gmra.mrb[0].mxu0 %v6124
    %v6847 = vpop.f32.mrb[0].mxu0
    %v6848 = vadd.f32 %v6422, %v6847
    %v6849 = vpop.f32.mrb[0].mxu0
    %v6850 = vadd.f32 %v6426, %v6849
    %6851 = vdwg.mxu0
    %6852 = vmatprep.subr.mxu0 %v6137
    %6853 = vmatpush1.msra.mxu0 %v6136
    %6854 = vmatprep.subr.mxu0 %v6153
    %6855 = vmatpush1.msra.mxu0 %v6152
    %6856 = vmatprep.subr.mxu0 %v6169
    %6857 = vmatpush1.msra.mxu0 %v6168
    %6858 = vmatprep.subr.mxu0 %v6185
    %6859 = vmatpush1.msra.mxu0 %v6184
    %6860 = vmatprep.subr.mxu0 %v6201
    %6861 = vmatpush1.msra.mxu0 %v6200
    %6862 = vmatprep.subr.mxu0 %v6217
    %6863 = vmatpush1.msra.mxu0 %v6216
    %6864 = vmatprep.subr.mxu0 %v6233
    %6865 = vmatpush1.msra.mxu0 %v6232
    %6866 = vmatprep.subr.mxu0 %v6249
    %6867 = vmatpush1.msra.mxu0 %v6248
    %6868 = vmatprep.subr.mxu0 %v6265
    %6869 = vmatpush1.msra.mxu0 %v6264
    %6870 = vmatprep.subr.mxu0 %v6281
    %6871 = vmatpush1.msra.mxu0 %v6280
    %6872 = vmatprep.subr.mxu0 %v6297
    %6873 = vmatpush1.msra.mxu0 %v6296
    %6874 = vmatprep.subr.mxu0 %v6313
    %6875 = vmatpush1.msra.mxu0 %v6312
    %6876 = vmatprep.subr.mxu0 %v6329
    %6877 = vmatpush1.msra.mxu0 %v6328
    %6878 = vmatprep.subr.mxu0 %v6345
    %6879 = vmatpush1.msra.mxu0 %v6344
    %6880 = vmatprep.subr.mxu0 %v6361
    %6881 = vmatpush1.msra.mxu0 %v6360
    %6882 = vmatprep.subr.mxu0 %v6377
    %6883 = vmatpush1.msra.mxu0 %v6376
    %6884 = vmatprep.subr.mxu0 0.0
    %6885 = vmatpush1.msra.mxu0 0.0
    %6886 = vmatprep.subr.mxu0 0.0
    %6887 = vmatpush1.msra.mxu0 0.0
    %6888 = vmatprep.subr.mxu0 0.0
    %6889 = vmatpush1.msra.mxu0 0.0
    %6890 = vmatprep.subr.mxu0 0.0
    %6891 = vmatpush1.msra.mxu0 0.0
    %6892 = vmatprep.subr.mxu0 0.0
    %6893 = vmatpush1.msra.mxu0 0.0
    %6894 = vmatprep.subr.mxu0 0.0
    %6895 = vmatpush1.msra.mxu0 0.0
    %6896 = vmatprep.subr.mxu0 0.0
    %6897 = vmatpush1.msra.mxu0 0.0
    %6898 = vmatprep.subr.mxu0 0.0
    %6899 = vmatpush1.msra.mxu0 0.0
    %6900 = vmatprep.subr.mxu0 0.0
    %6901 = vmatpush1.msra.mxu0 0.0
    %6902 = vmatprep.subr.mxu0 0.0
    %6903 = vmatpush1.msra.mxu0 0.0
    %6904 = vmatprep.subr.mxu0 0.0
    %6905 = vmatpush1.msra.mxu0 0.0
    %6906 = vmatprep.subr.mxu0 0.0
    %6907 = vmatpush1.msra.mxu0 0.0
    %6908 = vmatprep.subr.mxu0 0.0
    %6909 = vmatpush1.msra.mxu0 0.0
    %6910 = vmatprep.subr.mxu0 0.0
    %6911 = vmatpush1.msra.mxu0 0.0
    %6912 = vmatprep.subr.mxu0 0.0
    %6913 = vmatpush1.msra.mxu0 0.0
    %6914 = vmatprep.subr.mxu0 0.0
    %6915 = vmatpush1.msra.mxu0 0.0
    %6916 = vmatprep.mubr.f32.mxu0 0.0
    %6917 = vmatmul.mubr.f32.gmra.mrb[0].mxu0 %v6123
    %v6918 = vpop.f32.mrb[0].mxu0
    %v6919 = vadd.f32 %v6430, %v6918
    %v6920 = vpop.f32.mrb[0].mxu0
    %v6921 = vadd.f32 %v6434, %v6920
    %6922 = vmatprep.mubr.f32.mxu0 0.0
    %6923 = vmatmul.mubr.f32.gmra.mrb[0].mxu0 %v6124
    %v6924 = vpop.f32.mrb[0].mxu0
    %v6925 = vadd.f32 %v6430, %v6924
    %v6926 = vpop.f32.mrb[0].mxu0
    %v6927 = vadd.f32 %v6434, %v6926
    %6928 = vdwg.mxu0
    %6929 = vmatprep.subr.mxu0 %v6139
    %6930 = vmatpush1.msra.mxu0 %v6138
    %6931 = vmatprep.subr.mxu0 %v6155
    %6932 = vmatpush1.msra.mxu0 %v6154
    %6933 = vmatprep.subr.mxu0 %v6171
    %6934 = vmatpush1.msra.mxu0 %v6170
    %6935 = vmatprep.subr.mxu0 %v6187
    %6936 = vmatpush1.msra.mxu0 %v6186
    %6937 = vmatprep.subr.mxu0 %v6203
    %6938 = vmatpush1.msra.mxu0 %v6202
    %6939 = vmatprep.subr.mxu0 %v6219
    %6940 = vmatpush1.msra.mxu0 %v6218
    %6941 = vmatprep.subr.mxu0 %v6235
    %6942 = vmatpush1.msra.mxu0 %v6234
    %6943 = vmatprep.subr.mxu0 %v6251
    %6944 = vmatpush1.msra.mxu0 %v6250
    %6945 = vmatprep.subr.mxu0 %v6267
    %6946 = vmatpush1.msra.mxu0 %v6266
    %6947 = vmatprep.subr.mxu0 %v6283
    %6948 = vmatpush1.msra.mxu0 %v6282
    %6949 = vmatprep.subr.mxu0 %v6299
    %6950 = vmatpush1.msra.mxu0 %v6298
    %6951 = vmatprep.subr.mxu0 %v6315
    %6952 = vmatpush1.msra.mxu0 %v6314
    %6953 = vmatprep.subr.mxu0 %v6331
    %6954 = vmatpush1.msra.mxu0 %v6330
    %6955 = vmatprep.subr.mxu0 %v6347
    %6956 = vmatpush1.msra.mxu0 %v6346
    %6957 = vmatprep.subr.mxu0 %v6363
    %6958 = vmatpush1.msra.mxu0 %v6362
    %6959 = vmatprep.subr.mxu0 %v6379
    %6960 = vmatpush1.msra.mxu0 %v6378
    %6961 = vmatprep.subr.mxu0 0.0
    %6962 = vmatpush1.msra.mxu0 0.0
    %6963 = vmatprep.subr.mxu0 0.0
    %6964 = vmatpush1.msra.mxu0 0.0
    %6965 = vmatprep.subr.mxu0 0.0
    %6966 = vmatpush1.msra.mxu0 0.0
    %6967 = vmatprep.subr.mxu0 0.0
    %6968 = vmatpush1.msra.mxu0 0.0
    %6969 = vmatprep.subr.mxu0 0.0
    %6970 = vmatpush1.msra.mxu0 0.0
    %6971 = vmatprep.subr.mxu0 0.0
    %6972 = vmatpush1.msra.mxu0 0.0
    %6973 = vmatprep.subr.mxu0 0.0
    %6974 = vmatpush1.msra.mxu0 0.0
    %6975 = vmatprep.subr.mxu0 0.0
    %6976 = vmatpush1.msra.mxu0 0.0
    %6977 = vmatprep.subr.mxu0 0.0
    %6978 = vmatpush1.msra.mxu0 0.0
    %6979 = vmatprep.subr.mxu0 0.0
    %6980 = vmatpush1.msra.mxu0 0.0
    %6981 = vmatprep.subr.mxu0 0.0
    %6982 = vmatpush1.msra.mxu0 0.0
    %6983 = vmatprep.subr.mxu0 0.0
    %6984 = vmatpush1.msra.mxu0 0.0
    %6985 = vmatprep.subr.mxu0 0.0
    %6986 = vmatpush1.msra.mxu0 0.0
    %6987 = vmatprep.subr.mxu0 0.0
    %6988 = vmatpush1.msra.mxu0 0.0
    %6989 = vmatprep.subr.mxu0 0.0
    %6990 = vmatpush1.msra.mxu0 0.0
    %6991 = vmatprep.subr.mxu0 0.0
    %6992 = vmatpush1.msra.mxu0 0.0
    %6993 = vmatprep.mubr.f32.mxu0 0.0
    %6994 = vmatmul.mubr.f32.gmra.mrb[0].mxu0 %v6123
    %v6995 = vpop.f32.mrb[0].mxu0
    %v6996 = vadd.f32 %v6438, %v6995
    %v6997 = vpop.f32.mrb[0].mxu0
    %v6998 = vadd.f32 %v6442, %v6997
    %6999 = vmatprep.mubr.f32.mxu0 0.0
    %7000 = vmatmul.mubr.f32.gmra.mrb[0].mxu0 %v6124
    %v7001 = vpop.f32.mrb[0].mxu0
    %v7002 = vadd.f32 %v6438, %v7001
    %v7003 = vpop.f32.mrb[0].mxu0
    %v7004 = vadd.f32 %v6442, %v7003
    %7005 = vdwg.mxu0
    %7006 = vmatprep.subr.mxu0 %v6141
    %7007 = vmatpush1.msra.mxu0 %v6140
    %7008 = vmatprep.subr.mxu0 %v6157
    %7009 = vmatpush1.msra.mxu0 %v6156
    %7010 = vmatprep.subr.mxu0 %v6173
    %7011 = vmatpush1.msra.mxu0 %v6172
    %7012 = vmatprep.subr.mxu0 %v6189
    %7013 = vmatpush1.msra.mxu0 %v6188
    %7014 = vmatprep.subr.mxu0 %v6205
    %7015 = vmatpush1.msra.mxu0 %v6204
    %7016 = vmatprep.subr.mxu0 %v6221
    %7017 = vmatpush1.msra.mxu0 %v6220
    %7018 = vmatprep.subr.mxu0 %v6237
    %7019 = vmatpush1.msra.mxu0 %v6236
    %7020 = vmatprep.subr.mxu0 %v6253
    %7021 = vmatpush1.msra.mxu0 %v6252
    %7022 = vmatprep.subr.mxu0 %v6269
    %7023 = vmatpush1.msra.mxu0 %v6268
    %7024 = vmatprep.subr.mxu0 %v6285
    %7025 = vmatpush1.msra.mxu0 %v6284
    %7026 = vmatprep.subr.mxu0 %v6301
    %7027 = vmatpush1.msra.mxu0 %v6300
    %7028 = vmatprep.subr.mxu0 %v6317
    %7029 = vmatpush1.msra.mxu0 %v6316
    %7030 = vmatprep.subr.mxu0 %v6333
    %7031 = vmatpush1.msra.mxu0 %v6332
    %7032 = vmatprep.subr.mxu0 %v6349
    %7033 = vmatpush1.msra.mxu0 %v6348
    %7034 = vmatprep.subr.mxu0 %v6365
    %7035 = vmatpush1.msra.mxu0 %v6364
    %7036 = vmatprep.subr.mxu0 %v6381
    %7037 = vmatpush1.msra.mxu0 %v6380
    %7038 = vmatprep.subr.mxu0 0.0
    %7039 = vmatpush1.msra.mxu0 0.0
    %7040 = vmatprep.subr.mxu0 0.0
    %7041 = vmatpush1.msra.mxu0 0.0
    %7042 = vmatprep.subr.mxu0 0.0
    %7043 = vmatpush1.msra.mxu0 0.0
    %7044 = vmatprep.subr.mxu0 0.0
    %7045 = vmatpush1.msra.mxu0 0.0
    %7046 = vmatprep.subr.mxu0 0.0
    %7047 = vmatpush1.msra.mxu0 0.0
    %7048 = vmatprep.subr.mxu0 0.0
    %7049 = vmatpush1.msra.mxu0 0.0
    %7050 = vmatprep.subr.mxu0 0.0
    %7051 = vmatpush1.msra.mxu0 0.0
    %7052 = vmatprep.subr.mxu0 0.0
    %7053 = vmatpush1.msra.mxu0 0.0
    %7054 = vmatprep.subr.mxu0 0.0
    %7055 = vmatpush1.msra.mxu0 0.0
    %7056 = vmatprep.subr.mxu0 0.0
    %7057 = vmatpush1.msra.mxu0 0.0
    %7058 = vmatprep.subr.mxu0 0.0
    %7059 = vmatpush1.msra.mxu0 0.0
    %7060 = vmatprep.subr.mxu0 0.0
    %7061 = vmatpush1.msra.mxu0 0.0
    %7062 = vmatprep.subr.mxu0 0.0
    %7063 = vmatpush1.msra.mxu0 0.0
    %7064 = vmatprep.subr.mxu0 0.0
    %7065 = vmatpush1.msra.mxu0 0.0
    %7066 = vmatprep.subr.mxu0 0.0
    %7067 = vmatpush1.msra.mxu0 0.0
    %7068 = vmatprep.subr.mxu0 0.0
    %7069 = vmatpush1.msra.mxu0 0.0
    %7070 = vmatprep.mubr.f32.mxu0 0.0
    %7071 = vmatmul.mubr.f32.gmra.mrb[0].mxu0 %v6123
    %v7072 = vpop.f32.mrb[0].mxu0
    %v7073 = vadd.f32 %v6446, %v7072
    %v7074 = vpop.f32.mrb[0].mxu0
    %v7075 = vadd.f32 %v6450, %v7074
    %7076 = vmatprep.mubr.f32.mxu0 0.0
    %7077 = vmatmul.mubr.f32.gmra.mrb[0].mxu0 %v6124
    %v7078 = vpop.f32.mrb[0].mxu0
    %v7079 = vadd.f32 %v6446, %v7078
    %v7080 = vpop.f32.mrb[0].mxu0
    %v7081 = vadd.f32 %v6450, %v7080
    %7082 = vdwg.mxu0
    %v7083 = vmax.f32 %v6534, 0.0
    %v7084 = vmax.f32 %v6536, 0.0
    %v7085 = vmax.f32 %v6611, 0.0
    %v7086 = vmax.f32 %v6613, 0.0
    %v7087 = vmax.f32 %v6688, 0.0
    %v7088 = vmax.f32 %v6690, 0.0
    %v7089 = vmax.f32 %v6765, 0.0
    %v7090 = vmax.f32 %v6767, 0.0
    %v7091 = vmax.f32 %v6842, 0.0
    %v7092 = vmax.f32 %v6844, 0.0
    %v7093 = vmax.f32 %v6919, 0.0
    %v7094 = vmax.f32 %v6921, 0.0
    %v7095 = vmax.f32 %v6996, 0.0
    %v7096 = vmax.f32 %v6998, 0.0
    %v7097 = vmax.f32 %v7073, 0.0
    %v7098 = vmax.f32 %v7075, 0.0
    %v7099 = vmax.f32 %v6540, 0.0
    %v7100 = vmax.f32 %v6542, 0.0
    %v7101 = vmax.f32 %v6617, 0.0
    %v7102 = vmax.f32 %v6619, 0.0
    %v7103 = vmax.f32 %v6694, 0.0
    %v7104 = vmax.f32 %v6696, 0.0
    %v7105 = vmax.f32 %v6771, 0.0
    %v7106 = vmax.f32 %v6773, 0.0
    %v7107 = vmax.f32 %v6848, 0.0
    %v7108 = vmax.f32 %v6850, 0.0
    %v7109 = vmax.f32 %v6925, 0.0
    %v7110 = vmax.f32 %v6927, 0.0
    %v7111 = vmax.f32 %v7002, 0.0
    %v7112 = vmax.f32 %v7004, 0.0
    %v7113 = vmax.f32 %v7079, 0.0
    %v7114 = vmax.f32 %v7081, 0.0
    %s7115 = scalar_lea.vmem [#allocation19], 2048
    %v7116 = vld [vmem:[%s7115] sm:$0xff]
    %v7117 = vld [vmem:[%s7115 + $0x8] sm:$0xff]
    %v7118 = vld [vmem:[%s7115 + $0x10] sm:$0xff]
    %v7119 = vld [vmem:[%s7115 + $0x18] sm:$0xff]
    %v7120 = vld [vmem:[%s7115 + $0x20] sm:$0xff]
    %v7121 = vld [vmem:[%s7115 + $0x28] sm:$0xff]
    %v7122 = vld [vmem:[%s7115 + $0x30] sm:$0xff]
    %v7123 = vld [vmem:[%s7115 + $0x38] sm:$0xff]
    %v7124 = vld [vmem:[%s7115 + $0x40] sm:$0xff]
    %v7125 = vld [vmem:[%s7115 + $0x48] sm:$0xff]
    %v7126 = vld [vmem:[%s7115 + $0x50] sm:$0xff]
    %v7127 = vld [vmem:[%s7115 + $0x58] sm:$0xff]
    %v7128 = vld [vmem:[%s7115 + $0x60] sm:$0xff]
    %v7129 = vld [vmem:[%s7115 + $0x68] sm:$0xff]
    %v7130 = vld [vmem:[%s7115 + $0x70] sm:$0xff]
    %v7131 = vld [vmem:[%s7115 + $0x78] sm:$0xff]
    %v7132 = vld [vmem:[%s7115 + $0x80] sm:$0xff]
    %v7133 = vld [vmem:[%s7115 + $0x88] sm:$0xff]
    %v7134 = vld [vmem:[%s7115 + $0x90] sm:$0xff]
    %v7135 = vld [vmem:[%s7115 + $0x98] sm:$0xff]
    %v7136 = vld [vmem:[%s7115 + $0xa0] sm:$0xff]
    %v7137 = vld [vmem:[%s7115 + $0xa8] sm:$0xff]
    %v7138 = vld [vmem:[%s7115 + $0xb0] sm:$0xff]
    %v7139 = vld [vmem:[%s7115 + $0xb8] sm:$0xff]
    %v7140 = vld [vmem:[%s7115 + $0xc0] sm:$0xff]
    %v7141 = vld [vmem:[%s7115 + $0xc8] sm:$0xff]
    %v7142 = vld [vmem:[%s7115 + $0xd0] sm:$0xff]
    %v7143 = vld [vmem:[%s7115 + $0xd8] sm:$0xff]
    %v7144 = vld [vmem:[%s7115 + $0xe0] sm:$0xff]
    %v7145 = vld [vmem:[%s7115 + $0xe8] sm:$0xff]
    %v7146 = vld [vmem:[%s7115 + $0xf0] sm:$0xff]
    %v7147 = vld [vmem:[%s7115 + $0xf8] sm:$0xff]
    %v7148 = vld [vmem:[%s7115 + $0x100] sm:$0xff]
    %v7149 = vld [vmem:[%s7115 + $0x108] sm:$0xff]
    %v7150 = vld [vmem:[%s7115 + $0x110] sm:$0xff]
    %v7151 = vld [vmem:[%s7115 + $0x118] sm:$0xff]
    %v7152 = vld [vmem:[%s7115 + $0x120] sm:$0xff]
    %v7153 = vld [vmem:[%s7115 + $0x128] sm:$0xff]
    %v7154 = vld [vmem:[%s7115 + $0x130] sm:$0xff]
    %v7155 = vld [vmem:[%s7115 + $0x138] sm:$0xff]
    %v7156 = vld [vmem:[%s7115 + $0x140] sm:$0xff]
    %v7157 = vld [vmem:[%s7115 + $0x148] sm:$0xff]
    %v7158 = vld [vmem:[%s7115 + $0x150] sm:$0xff]
    %v7159 = vld [vmem:[%s7115 + $0x158] sm:$0xff]
    %v7160 = vld [vmem:[%s7115 + $0x160] sm:$0xff]
    %v7161 = vld [vmem:[%s7115 + $0x168] sm:$0xff]
    %v7162 = vld [vmem:[%s7115 + $0x170] sm:$0xff]
    %v7163 = vld [vmem:[%s7115 + $0x178] sm:$0xff]
    %v7164 = vld [vmem:[%s7115 + $0x180] sm:$0xff]
    %v7165 = vld [vmem:[%s7115 + $0x188] sm:$0xff]
    %v7166 = vld [vmem:[%s7115 + $0x190] sm:$0xff]
    %v7167 = vld [vmem:[%s7115 + $0x198] sm:$0xff]
    %v7168 = vld [vmem:[%s7115 + $0x1a0] sm:$0xff]
    %v7169 = vld [vmem:[%s7115 + $0x1a8] sm:$0xff]
    %v7170 = vld [vmem:[%s7115 + $0x1b0] sm:$0xff]
    %v7171 = vld [vmem:[%s7115 + $0x1b8] sm:$0xff]
    %v7172 = vld [vmem:[%s7115 + $0x1c0] sm:$0xff]
    %v7173 = vld [vmem:[%s7115 + $0x1c8] sm:$0xff]
    %v7174 = vld [vmem:[%s7115 + $0x1d0] sm:$0xff]
    %v7175 = vld [vmem:[%s7115 + $0x1d8] sm:$0xff]
    %v7176 = vld [vmem:[%s7115 + $0x1e0] sm:$0xff]
    %v7177 = vld [vmem:[%s7115 + $0x1e8] sm:$0xff]
    %v7178 = vld [vmem:[%s7115 + $0x1f0] sm:$0xff]
    %v7179 = vld [vmem:[%s7115 + $0x1f8] sm:$0xff]
    %v7180 = vld [vmem:[%s7115 + $0x200] sm:$0xff]
    %v7181 = vld [vmem:[%s7115 + $0x208] sm:$0xff]
    %v7182 = vld [vmem:[%s7115 + $0x210] sm:$0xff]
    %v7183 = vld [vmem:[%s7115 + $0x218] sm:$0xff]
    %v7184 = vld [vmem:[%s7115 + $0x220] sm:$0xff]
    %v7185 = vld [vmem:[%s7115 + $0x228] sm:$0xff]
    %v7186 = vld [vmem:[%s7115 + $0x230] sm:$0xff]
    %v7187 = vld [vmem:[%s7115 + $0x238] sm:$0xff]
    %v7188 = vld [vmem:[%s7115 + $0x240] sm:$0xff]
    %v7189 = vld [vmem:[%s7115 + $0x248] sm:$0xff]
    %v7190 = vld [vmem:[%s7115 + $0x250] sm:$0xff]
    %v7191 = vld [vmem:[%s7115 + $0x258] sm:$0xff]
    %v7192 = vld [vmem:[%s7115 + $0x260] sm:$0xff]
    %v7193 = vld [vmem:[%s7115 + $0x268] sm:$0xff]
    %v7194 = vld [vmem:[%s7115 + $0x270] sm:$0xff]
    %v7195 = vld [vmem:[%s7115 + $0x278] sm:$0xff]
    %v7196 = vld [vmem:[%s7115 + $0x280] sm:$0xff]
    %v7197 = vld [vmem:[%s7115 + $0x288] sm:$0xff]
    %v7198 = vld [vmem:[%s7115 + $0x290] sm:$0xff]
    %v7199 = vld [vmem:[%s7115 + $0x298] sm:$0xff]
    %v7200 = vld [vmem:[%s7115 + $0x2a0] sm:$0xff]
    %v7201 = vld [vmem:[%s7115 + $0x2a8] sm:$0xff]
    %v7202 = vld [vmem:[%s7115 + $0x2b0] sm:$0xff]
    %v7203 = vld [vmem:[%s7115 + $0x2b8] sm:$0xff]
    %v7204 = vld [vmem:[%s7115 + $0x2c0] sm:$0xff]
    %v7205 = vld [vmem:[%s7115 + $0x2c8] sm:$0xff]
    %v7206 = vld [vmem:[%s7115 + $0x2d0] sm:$0xff]
    %v7207 = vld [vmem:[%s7115 + $0x2d8] sm:$0xff]
    %v7208 = vld [vmem:[%s7115 + $0x2e0] sm:$0xff]
    %v7209 = vld [vmem:[%s7115 + $0x2e8] sm:$0xff]
    %v7210 = vld [vmem:[%s7115 + $0x2f0] sm:$0xff]
    %v7211 = vld [vmem:[%s7115 + $0x2f8] sm:$0xff]
    %v7212 = vld [vmem:[%s7115 + $0x300] sm:$0xff]
    %v7213 = vld [vmem:[%s7115 + $0x308] sm:$0xff]
    %v7214 = vld [vmem:[%s7115 + $0x310] sm:$0xff]
    %v7215 = vld [vmem:[%s7115 + $0x318] sm:$0xff]
    %v7216 = vld [vmem:[%s7115 + $0x320] sm:$0xff]
    %v7217 = vld [vmem:[%s7115 + $0x328] sm:$0xff]
    %v7218 = vld [vmem:[%s7115 + $0x330] sm:$0xff]
    %v7219 = vld [vmem:[%s7115 + $0x338] sm:$0xff]
    %v7220 = vld [vmem:[%s7115 + $0x340] sm:$0xff]
    %v7221 = vld [vmem:[%s7115 + $0x348] sm:$0xff]
    %v7222 = vld [vmem:[%s7115 + $0x350] sm:$0xff]
    %v7223 = vld [vmem:[%s7115 + $0x358] sm:$0xff]
    %v7224 = vld [vmem:[%s7115 + $0x360] sm:$0xff]
    %v7225 = vld [vmem:[%s7115 + $0x368] sm:$0xff]
    %v7226 = vld [vmem:[%s7115 + $0x370] sm:$0xff]
    %v7227 = vld [vmem:[%s7115 + $0x378] sm:$0xff]
    %v7228 = vld [vmem:[%s7115 + $0x380] sm:$0xff]
    %v7229 = vld [vmem:[%s7115 + $0x388] sm:$0xff]
    %v7230 = vld [vmem:[%s7115 + $0x390] sm:$0xff]
    %v7231 = vld [vmem:[%s7115 + $0x398] sm:$0xff]
    %v7232 = vld [vmem:[%s7115 + $0x3a0] sm:$0xff]
    %v7233 = vld [vmem:[%s7115 + $0x3a8] sm:$0xff]
    %v7234 = vld [vmem:[%s7115 + $0x3b0] sm:$0xff]
    %v7235 = vld [vmem:[%s7115 + $0x3b8] sm:$0xff]
    %v7236 = vld [vmem:[%s7115 + $0x3c0] sm:$0xff]
    %v7237 = vld [vmem:[%s7115 + $0x3c8] sm:$0xff]
    %v7238 = vld [vmem:[%s7115 + $0x3d0] sm:$0xff]
    %v7239 = vld [vmem:[%s7115 + $0x3d8] sm:$0xff]
    %v7240 = vld [vmem:[%s7115 + $0x3e0] sm:$0xff]
    %v7241 = vld [vmem:[%s7115 + $0x3e8] sm:$0xff]
    %v7242 = vld [vmem:[%s7115 + $0x3f0] sm:$0xff]
    %v7243 = vld [vmem:[%s7115 + $0x3f8] sm:$0xff]
    %v7244 = vld [vmem:[%s7115 + $0x400] sm:$0xff]
    %v7245 = vld [vmem:[%s7115 + $0x408] sm:$0xff]
    %v7246 = vld [vmem:[%s7115 + $0x410] sm:$0xff]
    %v7247 = vld [vmem:[%s7115 + $0x418] sm:$0xff]
    %v7248 = vld [vmem:[%s7115 + $0x420] sm:$0xff]
    %v7249 = vld [vmem:[%s7115 + $0x428] sm:$0xff]
    %v7250 = vld [vmem:[%s7115 + $0x430] sm:$0xff]
    %v7251 = vld [vmem:[%s7115 + $0x438] sm:$0xff]
    %v7252 = vld [vmem:[%s7115 + $0x440] sm:$0xff]
    %v7253 = vld [vmem:[%s7115 + $0x448] sm:$0xff]
    %v7254 = vld [vmem:[%s7115 + $0x450] sm:$0xff]
    %v7255 = vld [vmem:[%s7115 + $0x458] sm:$0xff]
    %v7256 = vld [vmem:[%s7115 + $0x460] sm:$0xff]
    %v7257 = vld [vmem:[%s7115 + $0x468] sm:$0xff]
    %v7258 = vld [vmem:[%s7115 + $0x470] sm:$0xff]
    %v7259 = vld [vmem:[%s7115 + $0x478] sm:$0xff]
    %v7260 = vld [vmem:[%s7115 + $0x480] sm:$0xff]
    %v7261 = vld [vmem:[%s7115 + $0x488] sm:$0xff]
    %v7262 = vld [vmem:[%s7115 + $0x490] sm:$0xff]
    %v7263 = vld [vmem:[%s7115 + $0x498] sm:$0xff]
    %v7264 = vld [vmem:[%s7115 + $0x4a0] sm:$0xff]
    %v7265 = vld [vmem:[%s7115 + $0x4a8] sm:$0xff]
    %v7266 = vld [vmem:[%s7115 + $0x4b0] sm:$0xff]
    %v7267 = vld [vmem:[%s7115 + $0x4b8] sm:$0xff]
    %v7268 = vld [vmem:[%s7115 + $0x4c0] sm:$0xff]
    %v7269 = vld [vmem:[%s7115 + $0x4c8] sm:$0xff]
    %v7270 = vld [vmem:[%s7115 + $0x4d0] sm:$0xff]
    %v7271 = vld [vmem:[%s7115 + $0x4d8] sm:$0xff]
    %v7272 = vld [vmem:[%s7115 + $0x4e0] sm:$0xff]
    %v7273 = vld [vmem:[%s7115 + $0x4e8] sm:$0xff]
    %v7274 = vld [vmem:[%s7115 + $0x4f0] sm:$0xff]
    %v7275 = vld [vmem:[%s7115 + $0x4f8] sm:$0xff]
    %v7276 = vld [vmem:[%s7115 + $0x500] sm:$0xff]
    %v7277 = vld [vmem:[%s7115 + $0x508] sm:$0xff]
    %v7278 = vld [vmem:[%s7115 + $0x510] sm:$0xff]
    %v7279 = vld [vmem:[%s7115 + $0x518] sm:$0xff]
    %v7280 = vld [vmem:[%s7115 + $0x520] sm:$0xff]
    %v7281 = vld [vmem:[%s7115 + $0x528] sm:$0xff]
    %v7282 = vld [vmem:[%s7115 + $0x530] sm:$0xff]
    %v7283 = vld [vmem:[%s7115 + $0x538] sm:$0xff]
    %v7284 = vld [vmem:[%s7115 + $0x540] sm:$0xff]
    %v7285 = vld [vmem:[%s7115 + $0x548] sm:$0xff]
    %v7286 = vld [vmem:[%s7115 + $0x550] sm:$0xff]
    %v7287 = vld [vmem:[%s7115 + $0x558] sm:$0xff]
    %v7288 = vld [vmem:[%s7115 + $0x560] sm:$0xff]
    %v7289 = vld [vmem:[%s7115 + $0x568] sm:$0xff]
    %v7290 = vld [vmem:[%s7115 + $0x570] sm:$0xff]
    %v7291 = vld [vmem:[%s7115 + $0x578] sm:$0xff]
    %v7292 = vld [vmem:[%s7115 + $0x580] sm:$0xff]
    %v7293 = vld [vmem:[%s7115 + $0x588] sm:$0xff]
    %v7294 = vld [vmem:[%s7115 + $0x590] sm:$0xff]
    %v7295 = vld [vmem:[%s7115 + $0x598] sm:$0xff]
    %v7296 = vld [vmem:[%s7115 + $0x5a0] sm:$0xff]
    %v7297 = vld [vmem:[%s7115 + $0x5a8] sm:$0xff]
    %v7298 = vld [vmem:[%s7115 + $0x5b0] sm:$0xff]
    %v7299 = vld [vmem:[%s7115 + $0x5b8] sm:$0xff]
    %v7300 = vld [vmem:[%s7115 + $0x5c0] sm:$0xff]
    %v7301 = vld [vmem:[%s7115 + $0x5c8] sm:$0xff]
    %v7302 = vld [vmem:[%s7115 + $0x5d0] sm:$0xff]
    %v7303 = vld [vmem:[%s7115 + $0x5d8] sm:$0xff]
    %v7304 = vld [vmem:[%s7115 + $0x5e0] sm:$0xff]
    %v7305 = vld [vmem:[%s7115 + $0x5e8] sm:$0xff]
    %v7306 = vld [vmem:[%s7115 + $0x5f0] sm:$0xff]
    %v7307 = vld [vmem:[%s7115 + $0x5f8] sm:$0xff]
    %v7308 = vld [vmem:[%s7115 + $0x600] sm:$0xff]
    %v7309 = vld [vmem:[%s7115 + $0x608] sm:$0xff]
    %v7310 = vld [vmem:[%s7115 + $0x610] sm:$0xff]
    %v7311 = vld [vmem:[%s7115 + $0x618] sm:$0xff]
    %v7312 = vld [vmem:[%s7115 + $0x620] sm:$0xff]
    %v7313 = vld [vmem:[%s7115 + $0x628] sm:$0xff]
    %v7314 = vld [vmem:[%s7115 + $0x630] sm:$0xff]
    %v7315 = vld [vmem:[%s7115 + $0x638] sm:$0xff]
    %v7316 = vld [vmem:[%s7115 + $0x640] sm:$0xff]
    %v7317 = vld [vmem:[%s7115 + $0x648] sm:$0xff]
    %v7318 = vld [vmem:[%s7115 + $0x650] sm:$0xff]
    %v7319 = vld [vmem:[%s7115 + $0x658] sm:$0xff]
    %v7320 = vld [vmem:[%s7115 + $0x660] sm:$0xff]
    %v7321 = vld [vmem:[%s7115 + $0x668] sm:$0xff]
    %v7322 = vld [vmem:[%s7115 + $0x670] sm:$0xff]
    %v7323 = vld [vmem:[%s7115 + $0x678] sm:$0xff]
    %v7324 = vld [vmem:[%s7115 + $0x680] sm:$0xff]
    %v7325 = vld [vmem:[%s7115 + $0x688] sm:$0xff]
    %v7326 = vld [vmem:[%s7115 + $0x690] sm:$0xff]
    %v7327 = vld [vmem:[%s7115 + $0x698] sm:$0xff]
    %v7328 = vld [vmem:[%s7115 + $0x6a0] sm:$0xff]
    %v7329 = vld [vmem:[%s7115 + $0x6a8] sm:$0xff]
    %v7330 = vld [vmem:[%s7115 + $0x6b0] sm:$0xff]
    %v7331 = vld [vmem:[%s7115 + $0x6b8] sm:$0xff]
    %v7332 = vld [vmem:[%s7115 + $0x6c0] sm:$0xff]
    %v7333 = vld [vmem:[%s7115 + $0x6c8] sm:$0xff]
    %v7334 = vld [vmem:[%s7115 + $0x6d0] sm:$0xff]
    %v7335 = vld [vmem:[%s7115 + $0x6d8] sm:$0xff]
    %v7336 = vld [vmem:[%s7115 + $0x6e0] sm:$0xff]
    %v7337 = vld [vmem:[%s7115 + $0x6e8] sm:$0xff]
    %v7338 = vld [vmem:[%s7115 + $0x6f0] sm:$0xff]
    %v7339 = vld [vmem:[%s7115 + $0x6f8] sm:$0xff]
    %v7340 = vld [vmem:[%s7115 + $0x700] sm:$0xff]
    %v7341 = vld [vmem:[%s7115 + $0x708] sm:$0xff]
    %v7342 = vld [vmem:[%s7115 + $0x710] sm:$0xff]
    %v7343 = vld [vmem:[%s7115 + $0x718] sm:$0xff]
    %v7344 = vld [vmem:[%s7115 + $0x720] sm:$0xff]
    %v7345 = vld [vmem:[%s7115 + $0x728] sm:$0xff]
    %v7346 = vld [vmem:[%s7115 + $0x730] sm:$0xff]
    %v7347 = vld [vmem:[%s7115 + $0x738] sm:$0xff]
    %v7348 = vld [vmem:[%s7115 + $0x740] sm:$0xff]
    %v7349 = vld [vmem:[%s7115 + $0x748] sm:$0xff]
    %v7350 = vld [vmem:[%s7115 + $0x750] sm:$0xff]
    %v7351 = vld [vmem:[%s7115 + $0x758] sm:$0xff]
    %v7352 = vld [vmem:[%s7115 + $0x760] sm:$0xff]
    %v7353 = vld [vmem:[%s7115 + $0x768] sm:$0xff]
    %v7354 = vld [vmem:[%s7115 + $0x770] sm:$0xff]
    %v7355 = vld [vmem:[%s7115 + $0x778] sm:$0xff]
    %v7356 = vld [vmem:[%s7115 + $0x780] sm:$0xff]
    %v7357 = vld [vmem:[%s7115 + $0x788] sm:$0xff]
    %v7358 = vld [vmem:[%s7115 + $0x790] sm:$0xff]
    %v7359 = vld [vmem:[%s7115 + $0x798] sm:$0xff]
    %v7360 = vld [vmem:[%s7115 + $0x7a0] sm:$0xff]
    %v7361 = vld [vmem:[%s7115 + $0x7a8] sm:$0xff]
    %v7362 = vld [vmem:[%s7115 + $0x7b0] sm:$0xff]
    %v7363 = vld [vmem:[%s7115 + $0x7b8] sm:$0xff]
    %v7364 = vld [vmem:[%s7115 + $0x7c0] sm:$0xff]
    %v7365 = vld [vmem:[%s7115 + $0x7c8] sm:$0xff]
    %v7366 = vld [vmem:[%s7115 + $0x7d0] sm:$0xff]
    %v7367 = vld [vmem:[%s7115 + $0x7d8] sm:$0xff]
    %v7368 = vld [vmem:[%s7115 + $0x7e0] sm:$0xff]
    %v7369 = vld [vmem:[%s7115 + $0x7e8] sm:$0xff]
    %v7370 = vld [vmem:[%s7115 + $0x7f0] sm:$0xff]
    %v7371 = vld [vmem:[%s7115 + $0x7f8] sm:$0xff]
    %s7372 = scalar_lea.vmem [#allocation20], 1
    %v7373 = vld [vmem:[%s7372] sm:$0x1]
    %v7375 = vlaneseq
    %v7376 = vshrl.u32 %v7375, 7
    %v7377 = vsub.s32 0, %v7376
    %v7378 = vrot.slane %v7373, %v7377
    %7380 = vmatprep.subr.mxu0 0.0
    %7381 = vmatpush1.msra.mxu0 %v7116
    %7382 = vmatprep.subr.mxu0 0.0
    %7383 = vmatpush1.msra.mxu0 %v7117
    %7384 = vmatprep.subr.mxu0 0.0
    %7385 = vmatpush1.msra.mxu0 %v7118
    %7386 = vmatprep.subr.mxu0 0.0
    %7387 = vmatpush1.msra.mxu0 %v7119
    %7388 = vmatprep.subr.mxu0 0.0
    %7389 = vmatpush1.msra.mxu0 %v7120
    %7390 = vmatprep.subr.mxu0 0.0
    %7391 = vmatpush1.msra.mxu0 %v7121
    %7392 = vmatprep.subr.mxu0 0.0
    %7393 = vmatpush1.msra.mxu0 %v7122
    %7394 = vmatprep.subr.mxu0 0.0
    %7395 = vmatpush1.msra.mxu0 %v7123
    %7396 = vmatprep.subr.mxu0 0.0
    %7397 = vmatpush1.msra.mxu0 %v7124
    %7398 = vmatprep.subr.mxu0 0.0
    %7399 = vmatpush1.msra.mxu0 %v7125
    %7400 = vmatprep.subr.mxu0 0.0
    %7401 = vmatpush1.msra.mxu0 %v7126
    %7402 = vmatprep.subr.mxu0 0.0
    %7403 = vmatpush1.msra.mxu0 %v7127
    %7404 = vmatprep.subr.mxu0 0.0
    %7405 = vmatpush1.msra.mxu0 %v7128
    %7406 = vmatprep.subr.mxu0 0.0
    %7407 = vmatpush1.msra.mxu0 %v7129
    %7408 = vmatprep.subr.mxu0 0.0
    %7409 = vmatpush1.msra.mxu0 %v7130
    %7410 = vmatprep.subr.mxu0 0.0
    %7411 = vmatpush1.msra.mxu0 %v7131
    %7412 = vmatprep.subr.mxu0 0.0
    %7413 = vmatpush1.msra.mxu0 %v7132
    %7414 = vmatprep.subr.mxu0 0.0
    %7415 = vmatpush1.msra.mxu0 %v7133
    %7416 = vmatprep.subr.mxu0 0.0
    %7417 = vmatpush1.msra.mxu0 %v7134
    %7418 = vmatprep.subr.mxu0 0.0
    %7419 = vmatpush1.msra.mxu0 %v7135
    %7420 = vmatprep.subr.mxu0 0.0
    %7421 = vmatpush1.msra.mxu0 %v7136
    %7422 = vmatprep.subr.mxu0 0.0
    %7423 = vmatpush1.msra.mxu0 %v7137
    %7424 = vmatprep.subr.mxu0 0.0
    %7425 = vmatpush1.msra.mxu0 %v7138
    %7426 = vmatprep.subr.mxu0 0.0
    %7427 = vmatpush1.msra.mxu0 %v7139
    %7428 = vmatprep.subr.mxu0 0.0
    %7429 = vmatpush1.msra.mxu0 %v7140
    %7430 = vmatprep.subr.mxu0 0.0
    %7431 = vmatpush1.msra.mxu0 %v7141
    %7432 = vmatprep.subr.mxu0 0.0
    %7433 = vmatpush1.msra.mxu0 %v7142
    %7434 = vmatprep.subr.mxu0 0.0
    %7435 = vmatpush1.msra.mxu0 %v7143
    %7436 = vmatprep.subr.mxu0 0.0
    %7437 = vmatpush1.msra.mxu0 %v7144
    %7438 = vmatprep.subr.mxu0 0.0
    %7439 = vmatpush1.msra.mxu0 %v7145
    %7440 = vmatprep.subr.mxu0 0.0
    %7441 = vmatpush1.msra.mxu0 %v7146
    %7442 = vmatprep.subr.mxu0 0.0
    %7443 = vmatpush1.msra.mxu0 %v7147
    %7444 = vmatprep.mubr.f32.mxu0 %v7084
    %7445 = vmatmul.mubr.f32.gmra.mrb[0].mxu0 %v7083
    %v7446 = vpop.f32.mrb[0].mxu0
    %v7447 = vadd.f32 %v7378, %v7446
    %v7448 = vpop.f32.mrb[0].mxu0
    %7449 = vmatprep.mubr.f32.mxu0 %v7100
    %7450 = vmatmul.mubr.f32.gmra.mrb[0].mxu0 %v7099
    %v7451 = vpop.f32.mrb[0].mxu0
    %v7452 = vadd.f32 %v7378, %v7451
    %v7453 = vpop.f32.mrb[0].mxu0
    %7454 = vdwg.mxu0
    %7455 = vmatprep.subr.mxu0 0.0
    %7456 = vmatpush1.msra.mxu0 %v7148
    %7457 = vmatprep.subr.mxu0 0.0
    %7458 = vmatpush1.msra.mxu0 %v7149
    %7459 = vmatprep.subr.mxu0 0.0
    %7460 = vmatpush1.msra.mxu0 %v7150
    %7461 = vmatprep.subr.mxu0 0.0
    %7462 = vmatpush1.msra.mxu0 %v7151
    %7463 = vmatprep.subr.mxu0 0.0
    %7464 = vmatpush1.msra.mxu0 %v7152
    %7465 = vmatprep.subr.mxu0 0.0
    %7466 = vmatpush1.msra.mxu0 %v7153
    %7467 = vmatprep.subr.mxu0 0.0
    %7468 = vmatpush1.msra.mxu0 %v7154
    %7469 = vmatprep.subr.mxu0 0.0
    %7470 = vmatpush1.msra.mxu0 %v7155
    %7471 = vmatprep.subr.mxu0 0.0
    %7472 = vmatpush1.msra.mxu0 %v7156
    %7473 = vmatprep.subr.mxu0 0.0
    %7474 = vmatpush1.msra.mxu0 %v7157
    %7475 = vmatprep.subr.mxu0 0.0
    %7476 = vmatpush1.msra.mxu0 %v7158
    %7477 = vmatprep.subr.mxu0 0.0
    %7478 = vmatpush1.msra.mxu0 %v7159
    %7479 = vmatprep.subr.mxu0 0.0
    %7480 = vmatpush1.msra.mxu0 %v7160
    %7481 = vmatprep.subr.mxu0 0.0
    %7482 = vmatpush1.msra.mxu0 %v7161
    %7483 = vmatprep.subr.mxu0 0.0
    %7484 = vmatpush1.msra.mxu0 %v7162
    %7485 = vmatprep.subr.mxu0 0.0
    %7486 = vmatpush1.msra.mxu0 %v7163
    %7487 = vmatprep.subr.mxu0 0.0
    %7488 = vmatpush1.msra.mxu0 %v7164
    %7489 = vmatprep.subr.mxu0 0.0
    %7490 = vmatpush1.msra.mxu0 %v7165
    %7491 = vmatprep.subr.mxu0 0.0
    %7492 = vmatpush1.msra.mxu0 %v7166
    %7493 = vmatprep.subr.mxu0 0.0
    %7494 = vmatpush1.msra.mxu0 %v7167
    %7495 = vmatprep.subr.mxu0 0.0
    %7496 = vmatpush1.msra.mxu0 %v7168
    %7497 = vmatprep.subr.mxu0 0.0
    %7498 = vmatpush1.msra.mxu0 %v7169
    %7499 = vmatprep.subr.mxu0 0.0
    %7500 = vmatpush1.msra.mxu0 %v7170
    %7501 = vmatprep.subr.mxu0 0.0
    %7502 = vmatpush1.msra.mxu0 %v7171
    %7503 = vmatprep.subr.mxu0 0.0
    %7504 = vmatpush1.msra.mxu0 %v7172
    %7505 = vmatprep.subr.mxu0 0.0
    %7506 = vmatpush1.msra.mxu0 %v7173
    %7507 = vmatprep.subr.mxu0 0.0
    %7508 = vmatpush1.msra.mxu0 %v7174
    %7509 = vmatprep.subr.mxu0 0.0
    %7510 = vmatpush1.msra.mxu0 %v7175
    %7511 = vmatprep.subr.mxu0 0.0
    %7512 = vmatpush1.msra.mxu0 %v7176
    %7513 = vmatprep.subr.mxu0 0.0
    %7514 = vmatpush1.msra.mxu0 %v7177
    %7515 = vmatprep.subr.mxu0 0.0
    %7516 = vmatpush1.msra.mxu0 %v7178
    %7517 = vmatprep.subr.mxu0 0.0
    %7518 = vmatpush1.msra.mxu0 %v7179
    %7519 = vmatprep.mubr.f32.mxu0 %v7086
    %7520 = vmatmul.mubr.f32.gmra.mrb[0].mxu0 %v7085
    %v7521 = vpop.f32.mrb[0].mxu0
    %v7522 = vadd.f32 %v7447, %v7521
    %v7523 = vpop.f32.mrb[0].mxu0
    %7524 = vmatprep.mubr.f32.mxu0 %v7102
    %7525 = vmatmul.mubr.f32.gmra.mrb[0].mxu0 %v7101
    %v7526 = vpop.f32.mrb[0].mxu0
    %v7527 = vadd.f32 %v7452, %v7526
    %v7528 = vpop.f32.mrb[0].mxu0
    %7529 = vdwg.mxu0
    %7530 = vmatprep.subr.mxu0 0.0
    %7531 = vmatpush1.msra.mxu0 %v7180
    %7532 = vmatprep.subr.mxu0 0.0
    %7533 = vmatpush1.msra.mxu0 %v7181
    %7534 = vmatprep.subr.mxu0 0.0
    %7535 = vmatpush1.msra.mxu0 %v7182
    %7536 = vmatprep.subr.mxu0 0.0
    %7537 = vmatpush1.msra.mxu0 %v7183
    %7538 = vmatprep.subr.mxu0 0.0
    %7539 = vmatpush1.msra.mxu0 %v7184
    %7540 = vmatprep.subr.mxu0 0.0
    %7541 = vmatpush1.msra.mxu0 %v7185
    %7542 = vmatprep.subr.mxu0 0.0
    %7543 = vmatpush1.msra.mxu0 %v7186
    %7544 = vmatprep.subr.mxu0 0.0
    %7545 = vmatpush1.msra.mxu0 %v7187
    %7546 = vmatprep.subr.mxu0 0.0
    %7547 = vmatpush1.msra.mxu0 %v7188
    %7548 = vmatprep.subr.mxu0 0.0
    %7549 = vmatpush1.msra.mxu0 %v7189
    %7550 = vmatprep.subr.mxu0 0.0
    %7551 = vmatpush1.msra.mxu0 %v7190
    %7552 = vmatprep.subr.mxu0 0.0
    %7553 = vmatpush1.msra.mxu0 %v7191
    %7554 = vmatprep.subr.mxu0 0.0
    %7555 = vmatpush1.msra.mxu0 %v7192
    %7556 = vmatprep.subr.mxu0 0.0
    %7557 = vmatpush1.msra.mxu0 %v7193
    %7558 = vmatprep.subr.mxu0 0.0
    %7559 = vmatpush1.msra.mxu0 %v7194
    %7560 = vmatprep.subr.mxu0 0.0
    %7561 = vmatpush1.msra.mxu0 %v7195
    %7562 = vmatprep.subr.mxu0 0.0
    %7563 = vmatpush1.msra.mxu0 %v7196
    %7564 = vmatprep.subr.mxu0 0.0
    %7565 = vmatpush1.msra.mxu0 %v7197
    %7566 = vmatprep.subr.mxu0 0.0
    %7567 = vmatpush1.msra.mxu0 %v7198
    %7568 = vmatprep.subr.mxu0 0.0
    %7569 = vmatpush1.msra.mxu0 %v7199
    %7570 = vmatprep.subr.mxu0 0.0
    %7571 = vmatpush1.msra.mxu0 %v7200
    %7572 = vmatprep.subr.mxu0 0.0
    %7573 = vmatpush1.msra.mxu0 %v7201
    %7574 = vmatprep.subr.mxu0 0.0
    %7575 = vmatpush1.msra.mxu0 %v7202
    %7576 = vmatprep.subr.mxu0 0.0
    %7577 = vmatpush1.msra.mxu0 %v7203
    %7578 = vmatprep.subr.mxu0 0.0
    %7579 = vmatpush1.msra.mxu0 %v7204
    %7580 = vmatprep.subr.mxu0 0.0
    %7581 = vmatpush1.msra.mxu0 %v7205
    %7582 = vmatprep.subr.mxu0 0.0
    %7583 = vmatpush1.msra.mxu0 %v7206
    %7584 = vmatprep.subr.mxu0 0.0
    %7585 = vmatpush1.msra.mxu0 %v7207
    %7586 = vmatprep.subr.mxu0 0.0
    %7587 = vmatpush1.msra.mxu0 %v7208
    %7588 = vmatprep.subr.mxu0 0.0
    %7589 = vmatpush1.msra.mxu0 %v7209
    %7590 = vmatprep.subr.mxu0 0.0
    %7591 = vmatpush1.msra.mxu0 %v7210
    %7592 = vmatprep.subr.mxu0 0.0
    %7593 = vmatpush1.msra.mxu0 %v7211
    %7594 = vmatprep.mubr.f32.mxu0 %v7088
    %7595 = vmatmul.mubr.f32.gmra.mrb[0].mxu0 %v7087
    %v7596 = vpop.f32.mrb[0].mxu0
    %v7597 = vadd.f32 %v7522, %v7596
    %v7598 = vpop.f32.mrb[0].mxu0
    %7599 = vmatprep.mubr.f32.mxu0 %v7104
    %7600 = vmatmul.mubr.f32.gmra.mrb[0].mxu0 %v7103
    %v7601 = vpop.f32.mrb[0].mxu0
    %v7602 = vadd.f32 %v7527, %v7601
    %v7603 = vpop.f32.mrb[0].mxu0
    %7604 = vdwg.mxu0
    %7605 = vmatprep.subr.mxu0 0.0
    %7606 = vmatpush1.msra.mxu0 %v7212
    %7607 = vmatprep.subr.mxu0 0.0
    %7608 = vmatpush1.msra.mxu0 %v7213
    %7609 = vmatprep.subr.mxu0 0.0
    %7610 = vmatpush1.msra.mxu0 %v7214
    %7611 = vmatprep.subr.mxu0 0.0
    %7612 = vmatpush1.msra.mxu0 %v7215
    %7613 = vmatprep.subr.mxu0 0.0
    %7614 = vmatpush1.msra.mxu0 %v7216
    %7615 = vmatprep.subr.mxu0 0.0
    %7616 = vmatpush1.msra.mxu0 %v7217
    %7617 = vmatprep.subr.mxu0 0.0
    %7618 = vmatpush1.msra.mxu0 %v7218
    %7619 = vmatprep.subr.mxu0 0.0
    %7620 = vmatpush1.msra.mxu0 %v7219
    %7621 = vmatprep.subr.mxu0 0.0
    %7622 = vmatpush1.msra.mxu0 %v7220
    %7623 = vmatprep.subr.mxu0 0.0
    %7624 = vmatpush1.msra.mxu0 %v7221
    %7625 = vmatprep.subr.mxu0 0.0
    %7626 = vmatpush1.msra.mxu0 %v7222
    %7627 = vmatprep.subr.mxu0 0.0
    %7628 = vmatpush1.msra.mxu0 %v7223
    %7629 = vmatprep.subr.mxu0 0.0
    %7630 = vmatpush1.msra.mxu0 %v7224
    %7631 = vmatprep.subr.mxu0 0.0
    %7632 = vmatpush1.msra.mxu0 %v7225
    %7633 = vmatprep.subr.mxu0 0.0
    %7634 = vmatpush1.msra.mxu0 %v7226
    %7635 = vmatprep.subr.mxu0 0.0
    %7636 = vmatpush1.msra.mxu0 %v7227
    %7637 = vmatprep.subr.mxu0 0.0
    %7638 = vmatpush1.msra.mxu0 %v7228
    %7639 = vmatprep.subr.mxu0 0.0
    %7640 = vmatpush1.msra.mxu0 %v7229
    %7641 = vmatprep.subr.mxu0 0.0
    %7642 = vmatpush1.msra.mxu0 %v7230
    %7643 = vmatprep.subr.mxu0 0.0
    %7644 = vmatpush1.msra.mxu0 %v7231
    %7645 = vmatprep.subr.mxu0 0.0
    %7646 = vmatpush1.msra.mxu0 %v7232
    %7647 = vmatprep.subr.mxu0 0.0
    %7648 = vmatpush1.msra.mxu0 %v7233
    %7649 = vmatprep.subr.mxu0 0.0
    %7650 = vmatpush1.msra.mxu0 %v7234
    %7651 = vmatprep.subr.mxu0 0.0
    %7652 = vmatpush1.msra.mxu0 %v7235
    %7653 = vmatprep.subr.mxu0 0.0
    %7654 = vmatpush1.msra.mxu0 %v7236
    %7655 = vmatprep.subr.mxu0 0.0
    %7656 = vmatpush1.msra.mxu0 %v7237
    %7657 = vmatprep.subr.mxu0 0.0
    %7658 = vmatpush1.msra.mxu0 %v7238
    %7659 = vmatprep.subr.mxu0 0.0
    %7660 = vmatpush1.msra.mxu0 %v7239
    %7661 = vmatprep.subr.mxu0 0.0
    %7662 = vmatpush1.msra.mxu0 %v7240
    %7663 = vmatprep.subr.mxu0 0.0
    %7664 = vmatpush1.msra.mxu0 %v7241
    %7665 = vmatprep.subr.mxu0 0.0
    %7666 = vmatpush1.msra.mxu0 %v7242
    %7667 = vmatprep.subr.mxu0 0.0
    %7668 = vmatpush1.msra.mxu0 %v7243
    %7669 = vmatprep.mubr.f32.mxu0 %v7090
    %7670 = vmatmul.mubr.f32.gmra.mrb[0].mxu0 %v7089
    %v7671 = vpop.f32.mrb[0].mxu0
    %v7672 = vadd.f32 %v7597, %v7671
    %v7673 = vpop.f32.mrb[0].mxu0
    %7674 = vmatprep.mubr.f32.mxu0 %v7106
    %7675 = vmatmul.mubr.f32.gmra.mrb[0].mxu0 %v7105
    %v7676 = vpop.f32.mrb[0].mxu0
    %v7677 = vadd.f32 %v7602, %v7676
    %v7678 = vpop.f32.mrb[0].mxu0
    %7679 = vdwg.mxu0
    %7680 = vmatprep.subr.mxu0 0.0
    %7681 = vmatpush1.msra.mxu0 %v7244
    %7682 = vmatprep.subr.mxu0 0.0
    %7683 = vmatpush1.msra.mxu0 %v7245
    %7684 = vmatprep.subr.mxu0 0.0
    %7685 = vmatpush1.msra.mxu0 %v7246
    %7686 = vmatprep.subr.mxu0 0.0
    %7687 = vmatpush1.msra.mxu0 %v7247
    %7688 = vmatprep.subr.mxu0 0.0
    %7689 = vmatpush1.msra.mxu0 %v7248
    %7690 = vmatprep.subr.mxu0 0.0
    %7691 = vmatpush1.msra.mxu0 %v7249
    %7692 = vmatprep.subr.mxu0 0.0
    %7693 = vmatpush1.msra.mxu0 %v7250
    %7694 = vmatprep.subr.mxu0 0.0
    %7695 = vmatpush1.msra.mxu0 %v7251
    %7696 = vmatprep.subr.mxu0 0.0
    %7697 = vmatpush1.msra.mxu0 %v7252
    %7698 = vmatprep.subr.mxu0 0.0
    %7699 = vmatpush1.msra.mxu0 %v7253
    %7700 = vmatprep.subr.mxu0 0.0
    %7701 = vmatpush1.msra.mxu0 %v7254
    %7702 = vmatprep.subr.mxu0 0.0
    %7703 = vmatpush1.msra.mxu0 %v7255
    %7704 = vmatprep.subr.mxu0 0.0
    %7705 = vmatpush1.msra.mxu0 %v7256
    %7706 = vmatprep.subr.mxu0 0.0
    %7707 = vmatpush1.msra.mxu0 %v7257
    %7708 = vmatprep.subr.mxu0 0.0
    %7709 = vmatpush1.msra.mxu0 %v7258
    %7710 = vmatprep.subr.mxu0 0.0
    %7711 = vmatpush1.msra.mxu0 %v7259
    %7712 = vmatprep.subr.mxu0 0.0
    %7713 = vmatpush1.msra.mxu0 %v7260
    %7714 = vmatprep.subr.mxu0 0.0
    %7715 = vmatpush1.msra.mxu0 %v7261
    %7716 = vmatprep.subr.mxu0 0.0
    %7717 = vmatpush1.msra.mxu0 %v7262
    %7718 = vmatprep.subr.mxu0 0.0
    %7719 = vmatpush1.msra.mxu0 %v7263
    %7720 = vmatprep.subr.mxu0 0.0
    %7721 = vmatpush1.msra.mxu0 %v7264
    %7722 = vmatprep.subr.mxu0 0.0
    %7723 = vmatpush1.msra.mxu0 %v7265
    %7724 = vmatprep.subr.mxu0 0.0
    %7725 = vmatpush1.msra.mxu0 %v7266
    %7726 = vmatprep.subr.mxu0 0.0
    %7727 = vmatpush1.msra.mxu0 %v7267
    %7728 = vmatprep.subr.mxu0 0.0
    %7729 = vmatpush1.msra.mxu0 %v7268
    %7730 = vmatprep.subr.mxu0 0.0
    %7731 = vmatpush1.msra.mxu0 %v7269
    %7732 = vmatprep.subr.mxu0 0.0
    %7733 = vmatpush1.msra.mxu0 %v7270
    %7734 = vmatprep.subr.mxu0 0.0
    %7735 = vmatpush1.msra.mxu0 %v7271
    %7736 = vmatprep.subr.mxu0 0.0
    %7737 = vmatpush1.msra.mxu0 %v7272
    %7738 = vmatprep.subr.mxu0 0.0
    %7739 = vmatpush1.msra.mxu0 %v7273
    %7740 = vmatprep.subr.mxu0 0.0
    %7741 = vmatpush1.msra.mxu0 %v7274
    %7742 = vmatprep.subr.mxu0 0.0
    %7743 = vmatpush1.msra.mxu0 %v7275
    %7744 = vmatprep.mubr.f32.mxu0 %v7092
    %7745 = vmatmul.mubr.f32.gmra.mrb[0].mxu0 %v7091
    %v7746 = vpop.f32.mrb[0].mxu0
    %v7747 = vadd.f32 %v7672, %v7746
    %v7748 = vpop.f32.mrb[0].mxu0
    %7749 = vmatprep.mubr.f32.mxu0 %v7108
    %7750 = vmatmul.mubr.f32.gmra.mrb[0].mxu0 %v7107
    %v7751 = vpop.f32.mrb[0].mxu0
    %v7752 = vadd.f32 %v7677, %v7751
    %v7753 = vpop.f32.mrb[0].mxu0
    %7754 = vdwg.mxu0
    %7755 = vmatprep.subr.mxu0 0.0
    %7756 = vmatpush1.msra.mxu0 %v7276
    %7757 = vmatprep.subr.mxu0 0.0
    %7758 = vmatpush1.msra.mxu0 %v7277
    %7759 = vmatprep.subr.mxu0 0.0
    %7760 = vmatpush1.msra.mxu0 %v7278
    %7761 = vmatprep.subr.mxu0 0.0
    %7762 = vmatpush1.msra.mxu0 %v7279
    %7763 = vmatprep.subr.mxu0 0.0
    %7764 = vmatpush1.msra.mxu0 %v7280
    %7765 = vmatprep.subr.mxu0 0.0
    %7766 = vmatpush1.msra.mxu0 %v7281
    %7767 = vmatprep.subr.mxu0 0.0
    %7768 = vmatpush1.msra.mxu0 %v7282
    %7769 = vmatprep.subr.mxu0 0.0
    %7770 = vmatpush1.msra.mxu0 %v7283
    %7771 = vmatprep.subr.mxu0 0.0
    %7772 = vmatpush1.msra.mxu0 %v7284
    %7773 = vmatprep.subr.mxu0 0.0
    %7774 = vmatpush1.msra.mxu0 %v7285
    %7775 = vmatprep.subr.mxu0 0.0
    %7776 = vmatpush1.msra.mxu0 %v7286
    %7777 = vmatprep.subr.mxu0 0.0
    %7778 = vmatpush1.msra.mxu0 %v7287
    %7779 = vmatprep.subr.mxu0 0.0
    %7780 = vmatpush1.msra.mxu0 %v7288
    %7781 = vmatprep.subr.mxu0 0.0
    %7782 = vmatpush1.msra.mxu0 %v7289
    %7783 = vmatprep.subr.mxu0 0.0
    %7784 = vmatpush1.msra.mxu0 %v7290
    %7785 = vmatprep.subr.mxu0 0.0
    %7786 = vmatpush1.msra.mxu0 %v7291
    %7787 = vmatprep.subr.mxu0 0.0
    %7788 = vmatpush1.msra.mxu0 %v7292
    %7789 = vmatprep.subr.mxu0 0.0
    %7790 = vmatpush1.msra.mxu0 %v7293
    %7791 = vmatprep.subr.mxu0 0.0
    %7792 = vmatpush1.msra.mxu0 %v7294
    %7793 = vmatprep.subr.mxu0 0.0
    %7794 = vmatpush1.msra.mxu0 %v7295
    %7795 = vmatprep.subr.mxu0 0.0
    %7796 = vmatpush1.msra.mxu0 %v7296
    %7797 = vmatprep.subr.mxu0 0.0
    %7798 = vmatpush1.msra.mxu0 %v7297
    %7799 = vmatprep.subr.mxu0 0.0
    %7800 = vmatpush1.msra.mxu0 %v7298
    %7801 = vmatprep.subr.mxu0 0.0
    %7802 = vmatpush1.msra.mxu0 %v7299
    %7803 = vmatprep.subr.mxu0 0.0
    %7804 = vmatpush1.msra.mxu0 %v7300
    %7805 = vmatprep.subr.mxu0 0.0
    %7806 = vmatpush1.msra.mxu0 %v7301
    %7807 = vmatprep.subr.mxu0 0.0
    %7808 = vmatpush1.msra.mxu0 %v7302
    %7809 = vmatprep.subr.mxu0 0.0
    %7810 = vmatpush1.msra.mxu0 %v7303
    %7811 = vmatprep.subr.mxu0 0.0
    %7812 = vmatpush1.msra.mxu0 %v7304
    %7813 = vmatprep.subr.mxu0 0.0
    %7814 = vmatpush1.msra.mxu0 %v7305
    %7815 = vmatprep.subr.mxu0 0.0
    %7816 = vmatpush1.msra.mxu0 %v7306
    %7817 = vmatprep.subr.mxu0 0.0
    %7818 = vmatpush1.msra.mxu0 %v7307
    %7819 = vmatprep.mubr.f32.mxu0 %v7094
    %7820 = vmatmul.mubr.f32.gmra.mrb[0].mxu0 %v7093
    %v7821 = vpop.f32.mrb[0].mxu0
    %v7822 = vadd.f32 %v7747, %v7821
    %v7823 = vpop.f32.mrb[0].mxu0
    %7824 = vmatprep.mubr.f32.mxu0 %v7110
    %7825 = vmatmul.mubr.f32.gmra.mrb[0].mxu0 %v7109
    %v7826 = vpop.f32.mrb[0].mxu0
    %v7827 = vadd.f32 %v7752, %v7826
    %v7828 = vpop.f32.mrb[0].mxu0
    %7829 = vdwg.mxu0
    %7830 = vmatprep.subr.mxu0 0.0
    %7831 = vmatpush1.msra.mxu0 %v7308
    %7832 = vmatprep.subr.mxu0 0.0
    %7833 = vmatpush1.msra.mxu0 %v7309
    %7834 = vmatprep.subr.mxu0 0.0
    %7835 = vmatpush1.msra.mxu0 %v7310
    %7836 = vmatprep.subr.mxu0 0.0
    %7837 = vmatpush1.msra.mxu0 %v7311
    %7838 = vmatprep.subr.mxu0 0.0
    %7839 = vmatpush1.msra.mxu0 %v7312
    %7840 = vmatprep.subr.mxu0 0.0
    %7841 = vmatpush1.msra.mxu0 %v7313
    %7842 = vmatprep.subr.mxu0 0.0
    %7843 = vmatpush1.msra.mxu0 %v7314
    %7844 = vmatprep.subr.mxu0 0.0
    %7845 = vmatpush1.msra.mxu0 %v7315
    %7846 = vmatprep.subr.mxu0 0.0
    %7847 = vmatpush1.msra.mxu0 %v7316
    %7848 = vmatprep.subr.mxu0 0.0
    %7849 = vmatpush1.msra.mxu0 %v7317
    %7850 = vmatprep.subr.mxu0 0.0
    %7851 = vmatpush1.msra.mxu0 %v7318
    %7852 = vmatprep.subr.mxu0 0.0
    %7853 = vmatpush1.msra.mxu0 %v7319
    %7854 = vmatprep.subr.mxu0 0.0
    %7855 = vmatpush1.msra.mxu0 %v7320
    %7856 = vmatprep.subr.mxu0 0.0
    %7857 = vmatpush1.msra.mxu0 %v7321
    %7858 = vmatprep.subr.mxu0 0.0
    %7859 = vmatpush1.msra.mxu0 %v7322
    %7860 = vmatprep.subr.mxu0 0.0
    %7861 = vmatpush1.msra.mxu0 %v7323
    %7862 = vmatprep.subr.mxu0 0.0
    %7863 = vmatpush1.msra.mxu0 %v7324
    %7864 = vmatprep.subr.mxu0 0.0
    %7865 = vmatpush1.msra.mxu0 %v7325
    %7866 = vmatprep.subr.mxu0 0.0
    %7867 = vmatpush1.msra.mxu0 %v7326
    %7868 = vmatprep.subr.mxu0 0.0
    %7869 = vmatpush1.msra.mxu0 %v7327
    %7870 = vmatprep.subr.mxu0 0.0
    %7871 = vmatpush1.msra.mxu0 %v7328
    %7872 = vmatprep.subr.mxu0 0.0
    %7873 = vmatpush1.msra.mxu0 %v7329
    %7874 = vmatprep.subr.mxu0 0.0
    %7875 = vmatpush1.msra.mxu0 %v7330
    %7876 = vmatprep.subr.mxu0 0.0
    %7877 = vmatpush1.msra.mxu0 %v7331
    %7878 = vmatprep.subr.mxu0 0.0
    %7879 = vmatpush1.msra.mxu0 %v7332
    %7880 = vmatprep.subr.mxu0 0.0
    %7881 = vmatpush1.msra.mxu0 %v7333
    %7882 = vmatprep.subr.mxu0 0.0
    %7883 = vmatpush1.msra.mxu0 %v7334
    %7884 = vmatprep.subr.mxu0 0.0
    %7885 = vmatpush1.msra.mxu0 %v7335
    %7886 = vmatprep.subr.mxu0 0.0
    %7887 = vmatpush1.msra.mxu0 %v7336
    %7888 = vmatprep.subr.mxu0 0.0
    %7889 = vmatpush1.msra.mxu0 %v7337
    %7890 = vmatprep.subr.mxu0 0.0
    %7891 = vmatpush1.msra.mxu0 %v7338
    %7892 = vmatprep.subr.mxu0 0.0
    %7893 = vmatpush1.msra.mxu0 %v7339
    %7894 = vmatprep.mubr.f32.mxu0 %v7096
    %7895 = vmatmul.mubr.f32.gmra.mrb[0].mxu0 %v7095
    %v7896 = vpop.f32.mrb[0].mxu0
    %v7897 = vadd.f32 %v7822, %v7896
    %v7898 = vpop.f32.mrb[0].mxu0
    %7899 = vmatprep.mubr.f32.mxu0 %v7112
    %7900 = vmatmul.mubr.f32.gmra.mrb[0].mxu0 %v7111
    %v7901 = vpop.f32.mrb[0].mxu0
    %v7902 = vadd.f32 %v7827, %v7901
    %v7903 = vpop.f32.mrb[0].mxu0
    %7904 = vdwg.mxu0
    %7905 = vmatprep.subr.mxu0 0.0
    %7906 = vmatpush1.msra.mxu0 %v7340
    %7907 = vmatprep.subr.mxu0 0.0
    %7908 = vmatpush1.msra.mxu0 %v7341
    %7909 = vmatprep.subr.mxu0 0.0
    %7910 = vmatpush1.msra.mxu0 %v7342
    %7911 = vmatprep.subr.mxu0 0.0
    %7912 = vmatpush1.msra.mxu0 %v7343
    %7913 = vmatprep.subr.mxu0 0.0
    %7914 = vmatpush1.msra.mxu0 %v7344
    %7915 = vmatprep.subr.mxu0 0.0
    %7916 = vmatpush1.msra.mxu0 %v7345
    %7917 = vmatprep.subr.mxu0 0.0
    %7918 = vmatpush1.msra.mxu0 %v7346
    %7919 = vmatprep.subr.mxu0 0.0
    %7920 = vmatpush1.msra.mxu0 %v7347
    %7921 = vmatprep.subr.mxu0 0.0
    %7922 = vmatpush1.msra.mxu0 %v7348
    %7923 = vmatprep.subr.mxu0 0.0
    %7924 = vmatpush1.msra.mxu0 %v7349
    %7925 = vmatprep.subr.mxu0 0.0
    %7926 = vmatpush1.msra.mxu0 %v7350
    %7927 = vmatprep.subr.mxu0 0.0
    %7928 = vmatpush1.msra.mxu0 %v7351
    %7929 = vmatprep.subr.mxu0 0.0
    %7930 = vmatpush1.msra.mxu0 %v7352
    %7931 = vmatprep.subr.mxu0 0.0
    %7932 = vmatpush1.msra.mxu0 %v7353
    %7933 = vmatprep.subr.mxu0 0.0
    %7934 = vmatpush1.msra.mxu0 %v7354
    %7935 = vmatprep.subr.mxu0 0.0
    %7936 = vmatpush1.msra.mxu0 %v7355
    %7937 = vmatprep.subr.mxu0 0.0
    %7938 = vmatpush1.msra.mxu0 %v7356
    %7939 = vmatprep.subr.mxu0 0.0
    %7940 = vmatpush1.msra.mxu0 %v7357
    %7941 = vmatprep.subr.mxu0 0.0
    %7942 = vmatpush1.msra.mxu0 %v7358
    %7943 = vmatprep.subr.mxu0 0.0
    %7944 = vmatpush1.msra.mxu0 %v7359
    %7945 = vmatprep.subr.mxu0 0.0
    %7946 = vmatpush1.msra.mxu0 %v7360
    %7947 = vmatprep.subr.mxu0 0.0
    %7948 = vmatpush1.msra.mxu0 %v7361
    %7949 = vmatprep.subr.mxu0 0.0
    %7950 = vmatpush1.msra.mxu0 %v7362
    %7951 = vmatprep.subr.mxu0 0.0
    %7952 = vmatpush1.msra.mxu0 %v7363
    %7953 = vmatprep.subr.mxu0 0.0
    %7954 = vmatpush1.msra.mxu0 %v7364
    %7955 = vmatprep.subr.mxu0 0.0
    %7956 = vmatpush1.msra.mxu0 %v7365
    %7957 = vmatprep.subr.mxu0 0.0
    %7958 = vmatpush1.msra.mxu0 %v7366
    %7959 = vmatprep.subr.mxu0 0.0
    %7960 = vmatpush1.msra.mxu0 %v7367
    %7961 = vmatprep.subr.mxu0 0.0
    %7962 = vmatpush1.msra.mxu0 %v7368
    %7963 = vmatprep.subr.mxu0 0.0
    %7964 = vmatpush1.msra.mxu0 %v7369
    %7965 = vmatprep.subr.mxu0 0.0
    %7966 = vmatpush1.msra.mxu0 %v7370
    %7967 = vmatprep.subr.mxu0 0.0
    %7968 = vmatpush1.msra.mxu0 %v7371
    %7969 = vmatprep.mubr.f32.mxu0 %v7098
    %7970 = vmatmul.mubr.f32.gmra.mrb[0].mxu0 %v7097
    %v7971 = vpop.f32.mrb[0].mxu0
    %v7972 = vadd.f32 %v7897, %v7971
    %v7973 = vpop.f32.mrb[0].mxu0
    %7974 = vmatprep.mubr.f32.mxu0 %v7114
    %7975 = vmatmul.mubr.f32.gmra.mrb[0].mxu0 %v7113
    %v7976 = vpop.f32.mrb[0].mxu0
    %v7977 = vadd.f32 %v7902, %v7976
    %v7978 = vpop.f32.mrb[0].mxu0
    %7979 = vdwg.mxu0
    %v7980 = vadd.f32 %v6123, %v7972
    %v7981 = vadd.f32 %v6124, %v7977
    %s7982 = scalar_lea.vmem [#allocation22], 1
    %v7983 = vld [vmem:[%s7982] sm:$0x1]
    %s7984 = scalar_lea.vmem [#allocation23], 1
    %v7985 = vld [vmem:[%s7984] sm:$0x1]
    %7986 = vadd.xlane.f32.xlu0 %v7980
    %v7987 = vpop.xlane.xlu0 %7986
    %7988 = vadd.xlane.f32.xlu0 %v7981
    %v7989 = vpop.xlane.xlu0 %7988
    %v7990 = vmul.f32 %v7987, %v2259
    %v7991 = vmul.f32 %v7989, %v2259
    %v7992 = vsub.f32 %v7980, %v7990
    %v7993 = vsub.f32 %v7981, %v7991
    %v7994 = vmul.f32 %v7992, %v7992
    %v7995 = vmul.f32 %v7993, %v7993
    %7996 = vadd.xlane.f32.xlu0 %v7994
    %v7997 = vpop.xlane.xlu0 %7996
    %7998 = vadd.xlane.f32.xlu0 %v7995
    %v7999 = vpop.xlane.xlu0 %7998
    %v8000 = vmul.f32 %v7997, %v2259
    %v8001 = vmul.f32 %v7999, %v2259
    %v8002 = vadd.f32 %v8000, 1e-05
    %v8003 = vadd.f32 %v8001, 1e-05
    %v8004 = vrsqrt.pop %v8002
    %v8005 = vrsqrt.pop %v8003
    %v8006 = vmul.f32 %v7992, %v8004
    %v8007 = vmul.f32 %v7993, %v8005
    %v8009 = vlaneseq
    %v8010 = vshrl.u32 %v8009, 7
    %v8011 = vsub.s32 0, %v8010
    %v8012 = vrot.slane %v7983, %v8011
    %v8014 = vmul.f32 %v8006, %v8012
    %v8015 = vmul.f32 %v8007, %v8012
    %v8017 = vlaneseq
    %v8018 = vshrl.u32 %v8017, 7
    %v8019 = vsub.s32 0, %v8018
    %v8020 = vrot.slane %v7985, %v8019
    %v8022 = vadd.f32 %v8014, %v8020
    %v8023 = vadd.f32 %v8015, %v8020
    %v8024 = vrot.slane %v8022, 4
    %v8025 = vadd.f32 %v8022, %v8024
    %v8026 = vrot.slane %v8025, 2
    %v8027 = vadd.f32 %v8025, %v8026
    %v8028 = vrot.slane %v8027, 1
    %v8029 = vadd.f32 %v8027, %v8028
    %v8030 = vrot.slane %v8023, 4
    %v8031 = vadd.f32 %v8023, %v8030
    %v8032 = vrot.slane %v8031, 2
    %v8033 = vadd.f32 %v8031, %v8032
    %v8034 = vrot.slane %v8033, 1
    %v8035 = vadd.f32 %v8033, %v8034
    %v8036 = vrcp.pop 8.0
    %v8037 = vmul.f32 %v8029, %v8036
    %v8038 = vmul.f32 %v8035, %v8036
    %v8039 = vld [vmem:[#allocation25] sm:$0xff]
    %v8040 = vld [vmem:[#allocation25 + $0x8] sm:$0xff]
    %v8041 = vld [vmem:[#allocation25 + $0x10] sm:$0xff]
    %v8042 = vld [vmem:[#allocation25 + $0x18] sm:$0xff]
    %v8043 = vld [vmem:[#allocation25 + $0x20] sm:$0xff]
    %v8044 = vld [vmem:[#allocation25 + $0x28] sm:$0xff]
    %v8045 = vld [vmem:[#allocation25 + $0x30] sm:$0xff]
    %v8046 = vld [vmem:[#allocation25 + $0x38] sm:$0xff]
    %v8047 = vld [vmem:[#allocation25 + $0x40] sm:$0xff]
    %v8048 = vld [vmem:[#allocation25 + $0x48] sm:$0xff]
    %v8049 = vld [vmem:[#allocation25 + $0x50] sm:$0xff]
    %v8050 = vld [vmem:[#allocation25 + $0x58] sm:$0xff]
    %v8051 = vld [vmem:[#allocation25 + $0x60] sm:$0xff]
    %v8052 = vld [vmem:[#allocation25 + $0x68] sm:$0xff]
    %v8053 = vld [vmem:[#allocation25 + $0x70] sm:$0xff]
    %v8054 = vld [vmem:[#allocation25 + $0x78] sm:$0xff]
    %v8055 = vld [vmem:[#allocation26] sm:$0x1]
    %v8057 = vlaneseq
    %v8058 = vshrl.u32 %v8057, 7
    %v8059 = vsub.s32 0, %v8058
    %v8060 = vrot.slane %v8055, %v8059
    %vm8064 = vcmask 1041409
    %v8065 = vsel %vm8064, %v8038, %v8037
    %8067 = vmatprep.subr.mxu0 0.0
    %8068 = vmatpush1.msra.mxu0 %v8039
    %8069 = vmatprep.subr.mxu0 0.0
    %8070 = vmatpush1.msra.mxu0 %v8040
    %8071 = vmatprep.subr.mxu0 0.0
    %8072 = vmatpush1.msra.mxu0 %v8041
    %8073 = vmatprep.subr.mxu0 0.0
    %8074 = vmatpush1.msra.mxu0 %v8042
    %8075 = vmatprep.subr.mxu0 0.0
    %8076 = vmatpush1.msra.mxu0 %v8043
    %8077 = vmatprep.subr.mxu0 0.0
    %8078 = vmatpush1.msra.mxu0 %v8044
    %8079 = vmatprep.subr.mxu0 0.0
    %8080 = vmatpush1.msra.mxu0 %v8045
    %8081 = vmatprep.subr.mxu0 0.0
    %8082 = vmatpush1.msra.mxu0 %v8046
    %8083 = vmatprep.subr.mxu0 0.0
    %8084 = vmatpush1.msra.mxu0 %v8047
    %8085 = vmatprep.subr.mxu0 0.0
    %8086 = vmatpush1.msra.mxu0 %v8048
    %8087 = vmatprep.subr.mxu0 0.0
    %8088 = vmatpush1.msra.mxu0 %v8049
    %8089 = vmatprep.subr.mxu0 0.0
    %8090 = vmatpush1.msra.mxu0 %v8050
    %8091 = vmatprep.subr.mxu0 0.0
    %8092 = vmatpush1.msra.mxu0 %v8051
    %8093 = vmatprep.subr.mxu0 0.0
    %8094 = vmatpush1.msra.mxu0 %v8052
    %8095 = vmatprep.subr.mxu0 0.0
    %8096 = vmatpush1.msra.mxu0 %v8053
    %8097 = vmatprep.subr.mxu0 0.0
    %8098 = vmatpush1.msra.mxu0 %v8054
    %8099 = vmatprep.subr.mxu0 0.0
    %8100 = vmatpush1.msra.mxu0 0.0
    %8101 = vmatprep.subr.mxu0 0.0
    %8102 = vmatpush1.msra.mxu0 0.0
    %8103 = vmatprep.subr.mxu0 0.0
    %8104 = vmatpush1.msra.mxu0 0.0
    %8105 = vmatprep.subr.mxu0 0.0
    %8106 = vmatpush1.msra.mxu0 0.0
    %8107 = vmatprep.subr.mxu0 0.0
    %8108 = vmatpush1.msra.mxu0 0.0
    %8109 = vmatprep.subr.mxu0 0.0
    %8110 = vmatpush1.msra.mxu0 0.0
    %8111 = vmatprep.subr.mxu0 0.0
    %8112 = vmatpush1.msra.mxu0 0.0
    %8113 = vmatprep.subr.mxu0 0.0
    %8114 = vmatpush1.msra.mxu0 0.0
    %8115 = vmatprep.subr.mxu0 0.0
    %8116 = vmatpush1.msra.mxu0 0.0
    %8117 = vmatprep.subr.mxu0 0.0
    %8118 = vmatpush1.msra.mxu0 0.0
    %8119 = vmatprep.subr.mxu0 0.0
    %8120 = vmatpush1.msra.mxu0 0.0
    %8121 = vmatprep.subr.mxu0 0.0
    %8122 = vmatpush1.msra.mxu0 0.0
    %8123 = vmatprep.subr.mxu0 0.0
    %8124 = vmatpush1.msra.mxu0 0.0
    %8125 = vmatprep.subr.mxu0 0.0
    %8126 = vmatpush1.msra.mxu0 0.0
    %8127 = vmatprep.subr.mxu0 0.0
    %8128 = vmatpush1.msra.mxu0 0.0
    %8129 = vmatprep.subr.mxu0 0.0
    %8130 = vmatpush1.msra.mxu0 0.0
    %8131 = vmatprep.mubr.f32.mxu0 0.0
    %8132 = vmatmul.mubr.f32.gmra.mrb[0].mxu0 %v8065
    %v8133 = vpop.f32.mrb[0].mxu0
    %v8134 = vadd.f32 %v8060, %v8133
    %v8135 = vpop.f32.mrb[0].mxu0
    %8136 = vdwg.mxu0
    %v8139 = vunpack.c.l.s4 1966171168
    %v8140 = vunpack.c.0.s8 %v8139
    %v8141 = vlaneseq
    %v8142 = vshrl.u32 %v8141, 7
    %v8143 = vsub.s32 %v8140, %v8142
    %v8144 = vrot.slane %v8134, %v8143
    %v8145 = vcombine.high %v8144, %v8144
    %v8147 = vunpack.c.l.s4 1966171168
    %v8148 = vunpack.c.0.s8 %v8147
    %v8149 = vlaneseq
    %v8150 = vshrl.u32 %v8149, 7
    %v8151 = vsub.s32 %v8148, %v8150
    %v8152 = vrot.slane %v8144, %v8151
    %v8154 = vunpack.c.l.s4 1966171168
    %v8155 = vunpack.c.0.s8 %v8154
    %v8156 = vlaneseq
    %v8157 = vshrl.u32 %v8156, 7
    %v8158 = vsub.s32 %v8155, %v8157
    %v8159 = vrot.slane %v8145, %v8158
    %8162 = vst [vmem:[#allocation28] sm:$0x1] %v8152
    %8163 = vst [vmem:[#allocation28 + $0x1] sm:$0x1] %v8159
    // Predicated region
    $region134: #{event_transformer_forward.1} parent=1 // pred_check
      _
    $region135: #{event_transformer_forward.1} parent=1 // pred_check_branch
      %8165 = sbr.rel (0) target = $region137
    $region136: #{event_transformer_forward.1} parent=1 // pred_region
      %s8167 = ssub.s32 32, 32
      %8168 = vsyncadd [#allocation4], %s8167
      %s8169 = sshll.u32 [#allocation28], 4
      %s8170 = int_to_ptr.vmem [resolvable:$true] %s8169
      %8175 = dma.vmem_to_hbm [thread:$0]  %s8170, 32, %s17, [#allocation4], 16, 16, 1
    $region137: #{event_transformer_forward.1} parent=1 // pred_fallthru
      _
    // Predicated region
    $region138: #{event_transformer_forward.1} parent=1 // pred_check
      _
    $region139: #{event_transformer_forward.1} parent=1 // pred_check_branch
      %8177 = sbr.rel (0) target = $region141
    $region140: #{event_transformer_forward.1} parent=1 // pred_region
      %8178 = dma.done [#allocation4], 32
    $region141: #{event_transformer_forward.1} parent=1 // pred_fallthru
      _
    %8179 = vsyncpa [#allocation3], 1
    %8180 = vsyncpa [#allocation6], 1
    %8181 = vsyncpa [#allocation9], 1
    %8182 = vsyncpa [#allocation12], 1
    %8183 = vsyncpa [#allocation15], 1
    %8184 = vsyncpa [#allocation18], 1
    %8185 = vsyncpa [#allocation21], 1
    %8186 = vsyncpa [#allocation24], 1
    %8187 = vsyncpa [#allocation27], 1
    %8188 = vsyncpa [#allocation4], 1

</llo_original>
